<compile_context>
chip_gen: v7x
topology: tpu7x:2x2x1
jax: 0.10.0
libtpu: 0.0.40
codegen_flags: <defaults>
</compile_context>

<pallas_src>
import functools

import jax
import jax.numpy as jnp
from jax.experimental import pallas as pl
from jax.experimental.pallas import tpu as pltpu

EPS = 1e-5
LANE = 128


# ---------------------------------------------------------------------------
# Per-generation compiler params
# ---------------------------------------------------------------------------
@functools.lru_cache(maxsize=None)
def _vmem_limit_bytes():
    # Stay at ~half of physical VMEM per core so double-buffering never silently
    # serializes (v5e/v6e: 128 MiB physical, v7x: 64 MiB).  Conservative fallback.
    try:
        phys = int(getattr(pltpu.get_tpu_info(), "vmem_capacity_bytes"))
    except Exception:
        phys = 64 * 1024 * 1024
    return max(32 * 1024 * 1024, min(96 * 1024 * 1024, phys // 2))


def _compiler_params():
    return pltpu.CompilerParams(
        dimension_semantics=("parallel",),   # images are independent -> both TCs on v7x
        vmem_limit_bytes=_vmem_limit_bytes(),
    )


# ---------------------------------------------------------------------------
# Pallas kernels
# ---------------------------------------------------------------------------
def _conv3x3_bn_stats_kernel(src_ref, exp_ref, shift_ref, w_ref, b_ref,
                             acc_ref, sum_ref, ssq_ref,
                             pad_ref, col_ref,
                             *, H, W, c_out, apply_relu):
    """Fused (BN-apply ->) ReLU -> zero-pad -> 3x3 conv -> BN partial stats.

    src_ref   : (H*W, Cs)        narrow (real-channel) input block
    exp_ref   : (Cs, 128)        lane-expand matrix: identity (conv1) / diag(scale1) (conv2)
    shift_ref : (1, 128)         0 (conv1) or BN1 shift (zero in pad lanes) (conv2)
    w_ref     : (9*128, 128)     tap-major conv weights, zero pad rows/cols
    b_ref     : (1, 128)         conv bias (zero pad lanes)
    acc_ref   : (H*W, c_out)     pre-BN conv output, REAL channels only
    sum_ref   : (1, 128)         per-image channel sum       (BN partial stats)
    ssq_ref   : (1, 128)         per-image channel sum-of-sq (BN partial stats)
    pad_ref   : (H+2, W+2, 128)  VMEM scratch: spatially padded 128-lane activation
    col_ref   : (H*W, 9*128)     VMEM scratch: im2col buffer
    """
    C = pad_ref.shape[-1]
    HW = H * W

    # 1) Lane-expand the narrow input to 128 lanes on the MXU.  For conv2 this is the
    #    fused BN1-apply: relu(acc1 @ diag(scale1) + shift1).  Pad lanes come out 0.
    v = jnp.dot(src_ref[...], exp_ref[...], preferred_element_type=jnp.float32)
    v = v + shift_ref[...]
    if apply_relu:
        v = jnp.maximum(v, 0.0)
    v3 = v.reshape(H, W, C)

    # 2) Build the spatially zero-padded activation in VMEM (zero halo ring).
    zrow = jnp.zeros((1, W + 2, C), jnp.float32)
    zcol = jnp.zeros((H, 1, C), jnp.float32)
    mid = jnp.concatenate([zcol, v3, zcol], axis=1)            # (H, W+2, C)
    pad_ref[...] = jnp.concatenate([zrow, mid, zrow], axis=0)  # (H+2, W+2, C)

    # 3) im2col: 9 lane-aligned tap copies, then ONE (HW, 9C) x (9C, C) MXU matmul.
    for t in range(9):
        kh, kw = t // 3, t % 3
        col_ref[:, t * C:(t + 1) * C] = (
            pad_ref[kh:kh + H, kw:kw + W, :].reshape(HW, C))
    acc = jnp.dot(col_ref[...], w_ref[...], preferred_element_type=jnp.float32)
    acc = acc + b_ref[...]

    # 4) Per-image BN partial stats (pad lanes are exactly zero -> harmless in finalize).
    sum_ref[...] = jnp.sum(acc, axis=0, keepdims=True)
    ssq_ref[...] = jnp.sum(acc * acc, axis=0, keepdims=True)

    # 5) Store only the real output channels to HBM (no 16x pad-zero traffic).
    acc_ref[...] = acc[:, :c_out]


def _bn_relu_pool_kernel(acc_ref, scale_ref, shift_ref, o_ref, *, c_out):
    """BN2-apply + ReLU fused with a 2x2 average pool.

    acc_ref   : (Ho, 2, Wo, 2*c_out)  pre-BN conv2 output: dim1 = row parity; lanes
                [0:c_out] = even columns, [c_out:2*c_out] = odd columns.
    scale_ref : (1, 2*c_out)          per-channel BN scale, tiled x2 to match the lanes
    shift_ref : (1, 2*c_out)
    o_ref     : (Ho, Wo, c_out)
    """
    sc = scale_ref[...]
    sh = shift_ref[...]
    top = jnp.maximum(acc_ref[:, 0, :, :] * sc + sh, 0.0)
    bot = jnp.maximum(acc_ref[:, 1, :, :] * sc + sh, 0.0)
    s = top + bot
    o_ref[...] = 0.25 * (s[:, :, :c_out] + s[:, :, c_out:])


# ---------------------------------------------------------------------------
# pallas_call wrappers
# ---------------------------------------------------------------------------
def conv3x3_bn_stats(src, exp, shift, w, b, *, H, W, c_out, apply_relu):
    """One fused conv layer over the batch.

    src   : (N, H*W, Cs) narrow real-channel input (x for conv1, acc1 for conv2)
    exp   : (Cs, 128)    lane-expand matrix (identity / diag(BN1 scale))
    shift : (1, 128)     additive term applied after the expand matmul
    w     : (9*128, 128) tap-major conv weights;  b: (1, 128) conv bias
    Returns (acc, sums, ssqs): (N, H*W, c_out) f32, (N, 1, 128), (N, 1, 128).
    """
    N, HW, c_src = src.shape
    assert HW == H * W
    C = LANE
    # TODO(synk): for large images, tile the grid over H with a (TH+2, W+2) halo block
    # (manual DMA / pltpu.emit_pipeline) so the (H*W, 9*128) im2col scratch stays inside
    # the per-generation VMEM budget (v7x: 64 MiB physical per core; v5e/v6e: 128 MiB).
    flops = N * 2 * HW * C * (9 * C + c_src)
    bytes_accessed = 4 * (src.size + exp.size + shift.size + w.size + b.size
                          + N * HW * c_out + 2 * N * C)
    kern = functools.partial(_conv3x3_bn_stats_kernel, H=H, W=W,
                             c_out=c_out, apply_relu=apply_relu)
    return pl.pallas_call(
        kern,
        grid=(N,),
        in_specs=[
            pl.BlockSpec((None, HW, c_src), lambda n: (n, 0, 0)),
            pl.BlockSpec((c_src, C), lambda n: (0, 0)),
            pl.BlockSpec((1, C), lambda n: (0, 0)),
            pl.BlockSpec((9 * C, C), lambda n: (0, 0)),
            pl.BlockSpec((1, C), lambda n: (0, 0)),
        ],
        out_specs=(
            pl.BlockSpec((None, HW, c_out), lambda n: (n, 0, 0)),
            pl.BlockSpec((None, 1, C), lambda n: (n, 0, 0)),
            pl.BlockSpec((None, 1, C), lambda n: (n, 0, 0)),
        ),
        out_shape=(
            jax.ShapeDtypeStruct((N, HW, c_out), jnp.float32),
            jax.ShapeDtypeStruct((N, 1, C), jnp.float32),
            jax.ShapeDtypeStruct((N, 1, C), jnp.float32),
        ),
        scratch_shapes=[
            pltpu.VMEM((H + 2, W + 2, C), jnp.float32),   # zero-padded activation
            pltpu.VMEM((HW, 9 * C), jnp.float32),         # im2col buffer
        ],
        compiler_params=_compiler_params(),
        cost_estimate=pl.CostEstimate(flops=flops, transcendentals=0,
                                      bytes_accessed=bytes_accessed),
    )(src, exp, shift, w, b)


def bn_relu_pool(acc_folded, scale2, shift2, c_out):
    """acc_folded: (N, Ho, 2, Wo, 2*c_out);  scale2/shift2: (1, 2*c_out)."""
    N, Ho, _, Wo, two_c = acc_folded.shape
    flops = N * Ho * Wo * two_c * 4
    bytes_accessed = 4 * (acc_folded.size + scale2.size + shift2.size
                          + N * Ho * Wo * c_out)
    kern = functools.partial(_bn_relu_pool_kernel, c_out=c_out)
    return pl.pallas_call(
        kern,
        grid=(N,),
        in_specs=[
            pl.BlockSpec((None, Ho, 2, Wo, two_c), lambda n: (n, 0, 0, 0, 0)),
            pl.BlockSpec((1, two_c), lambda n: (0, 0)),
            pl.BlockSpec((1, two_c), lambda n: (0, 0)),
        ],
        out_specs=pl.BlockSpec((None, Ho, Wo, c_out), lambda n: (n, 0, 0, 0)),
        out_shape=jax.ShapeDtypeStruct((N, Ho, Wo, c_out), jnp.float32),
        compiler_params=_compiler_params(),
        cost_estimate=pl.CostEstimate(flops=flops, transcendentals=0,
                                      bytes_accessed=bytes_accessed),
    )(acc_folded, scale2, shift2)


# ---------------------------------------------------------------------------
# Plain-JAX glue (per-channel BN finalize + free layout reshapes only)
# ---------------------------------------------------------------------------
def _finalize_bn(ssum, ssq, gamma, beta, count):
    """Training-mode BN: biased variance from partial sums -> per-channel scale/shift.

    Note (review): E[x^2]-E[x]^2 in f32 cancels badly when |mean| >> std; fine for
    kaiming-initialised convs (near-zero mean).  TODO(synk): Welford/two-pass if reused.
    """
    mean = jnp.sum(ssum, axis=0) / count                                 # (1, 128)
    var = jnp.maximum(jnp.sum(ssq, axis=0) / count - mean * mean, 0.0)   # (1, 128)
    scale = gamma * jax.lax.rsqrt(var + EPS)
    shift = beta - mean * scale          # pad lanes: beta=0, mean=0 -> exactly 0
    return scale, shift


def _diag_expand(scale_row):
    """(1, c) BN scale -> (c, 128) matrix with the scale on the diagonal, zeros elsewhere."""
    c = scale_row.shape[-1]
    return jnp.eye(c, LANE, dtype=jnp.float32) * scale_row.reshape(c, 1)


def conv_block_forward(x_nchw, params):
    """Forward of ConvBlock. Input/output are NCHW like the PyTorch module."""
    N, cin, H, W = x_nchw.shape
    assert H % 2 == 0 and W % 2 == 0
    cout = params["w1_raw"].shape[-1]
    HW = H * W
    count = N * HW

    # NCHW -> (N, H*W, Cin): channels-last, kept at the REAL channel count in HBM.
    # 128-lane zero padding happens only inside VMEM (the expand matmul in the kernel).
    x = jnp.transpose(x_nchw, (0, 2, 3, 1)).astype(jnp.float32).reshape(N, HW, cin)

    # conv1 (+ BN1 partial stats).
    zero_shift = jnp.zeros((1, LANE), jnp.float32)
    acc1, s1, q1 = conv3x3_bn_stats(x, params["eye1"], zero_shift,
                                    params["w1"], params["b1"],
                                    H=H, W=W, c_out=cout, apply_relu=False)
    scale1, shift1 = _finalize_bn(s1, q1, params["g1"], params["beta1"], count)

    # conv2 fused with BN1-apply + ReLU + spatial pad (no h1 HBM round trip): inside the
    # kernel, relu(acc1 @ diag(scale1) + shift1) is built directly in the padded
    # 128-lane VMEM scratch that feeds the im2col matmul.
    d1 = _diag_expand(scale1[:, :cout])
    acc2, s2, q2 = conv3x3_bn_stats(acc1, d1, shift1,
                                    params["w2"], params["b2"],
                                    H=H, W=W, c_out=cout, apply_relu=True)
    scale2, shift2 = _finalize_bn(s2, q2, params["g2"], params["beta2"], count)

    # BN2-apply + ReLU + 2x2 avg-pool, fused.  acc2 (N, H*W, cout) reshapes for free
    # (row-major) to (N, Ho, 2, Wo, 2*cout): lanes [0:cout] = even columns, rest = odd.
    Ho, Wo = H // 2, W // 2
    acc2f = acc2.reshape(N, Ho, 2, Wo, 2 * cout)
    sc2 = jnp.concatenate([scale2[:, :cout]] * 2, axis=-1)
    sh2 = jnp.concatenate([shift2[:, :cout]] * 2, axis=-1)
    pooled = bn_relu_pool(acc2f, sc2, sh2, cout)               # (N, Ho, Wo, cout)
    return jnp.transpose(pooled, (0, 3, 1, 2))                 # -> NCHW


# ---------------------------------------------------------------------------
# Parameter init (mirrors ConvBlock._init_weights); weights lane-padded, data NOT.
# ---------------------------------------------------------------------------
def init_params(key, cin, cout):
    k1, k2 = jax.random.split(key)
    # kaiming_normal_ (fan_in, gain sqrt(2)): std = sqrt(2 / (cin * 3 * 3))
    w1 = jax.random.normal(k1, (3, 3, cin, cout), jnp.float32) * jnp.sqrt(2.0 / (cin * 9))
    w2 = jax.random.normal(k2, (3, 3, cout, cout), jnp.float32) * jnp.sqrt(2.0 / (cout * 9))
    w1p = jnp.zeros((3, 3, LANE, LANE), jnp.float32).at[:, :, :cin, :cout].set(w1)
    w2p = jnp.zeros((3, 3, LANE, LANE), jnp.float32).at[:, :, :cout, :cout].set(w2)
    return {
        # tap-major rows ((kh*3+kw)*128 + c_in) matching the kernel's im2col layout.
        "w1": w1p.reshape(9 * LANE, LANE),
        "w2": w2p.reshape(9 * LANE, LANE),
        "b1": jnp.zeros((1, LANE), jnp.float32),
        "b2": jnp.zeros((1, LANE), jnp.float32),
        "g1": jnp.ones((1, LANE), jnp.float32),
        "g2": jnp.ones((1, LANE), jnp.float32),
        "beta1": jnp.zeros((1, LANE), jnp.float32),
        "beta2": jnp.zeros((1, LANE), jnp.float32),
        "eye1": jnp.eye(cin, LANE, dtype=jnp.float32),   # lane-expand for the raw input
        # raw HWIO weights kept for the pure-JAX reference check
        "w1_raw": w1,
        "w2_raw": w2,
    }


# ---------------------------------------------------------------------------
# Pure-JAX reference (for correctness verification only)
# ---------------------------------------------------------------------------
def ref_forward(x_nchw, params):
    def conv(x, w_hwio):
        w_oihw = jnp.transpose(w_hwio, (3, 2, 0, 1))
        return jax.lax.conv_general_dilated(
            x, w_oihw, window_strides=(1, 1), padding=[(1, 1), (1, 1)],
            dimension_numbers=("NCHW", "OIHW", "NCHW"))

    def bn_relu_ref(x):  # training-mode BN, gamma=1, beta=0
        mean = jnp.mean(x, axis=(0, 2, 3), keepdims=True)
        var = jnp.mean((x - mean) ** 2, axis=(0, 2, 3), keepdims=True)
        return jnp.maximum((x - mean) * jax.lax.rsqrt(var + EPS), 0.0)

    h = bn_relu_ref(conv(x_nchw, params["w1_raw"]))
    h = bn_relu_ref(conv(h, params["w2_raw"]))
    N, C, H, W = h.shape
    return h.reshape(N, C, H // 2, 2, W // 2, 2).mean(axis=(3, 5))


# ---------------------------------------------------------------------------
if __name__ == "__main__":
    key = jax.random.PRNGKey(0)
    kx, kp = jax.random.split(key)

    N, Cin, H, W = 2, 4, 16, 16
    Cout = 8

    x = jax.random.normal(kx, (N, Cin, H, W), jnp.float32)
    params = init_params(kp, Cin, Cout)

    fwd = jax.jit(functools.partial(conv_block_forward, params=params))
    out = jax.block_until_ready(fwd(x))

    assert out.shape == (N, Cout, H // 2, W // 2), out.shape

    ref = ref_forward(x, params)
    max_err = float(jnp.max(jnp.abs(out - ref)))
    if max_err > 1e-3:
        raise AssertionError(f"Pallas output mismatch vs reference: {max_err}")

    print("KERNEL_OK")
</pallas_src>

<mosaic_0001>
module attributes {stable_mosaic.version = 11 : i64} {
  func.func @_conv3x3_bn_stats_kernel(%arg0: i32, %arg1: memref<1x256x4xf32, #tpu.memory_space<vmem>>, %arg2: memref<4x128xf32, #tpu.memory_space<vmem>>, %arg3: memref<1x128xf32, #tpu.memory_space<vmem>>, %arg4: memref<1152x128xf32, #tpu.memory_space<vmem>>, %arg5: memref<1x128xf32, #tpu.memory_space<vmem>>, %arg6: memref<1x256x8xf32, #tpu.memory_space<vmem>>, %arg7: memref<1x1x128xf32, #tpu.memory_space<vmem>>, %arg8: memref<1x1x128xf32, #tpu.memory_space<vmem>>, %arg9: memref<18x18x128xf32, #tpu.memory_space<vmem>>, %arg10: memref<256x1152xf32, #tpu.memory_space<vmem>>) attributes {dimension_semantics = [#tpu.dimension_semantics<parallel>], iteration_bounds = array<i64: 2>, scalar_prefetch = 0 : i64, scratch_operands = 2 : i64, tpu.core_type = #tpu.core_type<tc>, window_params = [{transform_indices = @transform_0, window_bounds = array<i64: 1, 256, 4>}, {pipeline_mode = #tpu.pipeline_mode<synchronous>, transform_indices = @transform_1, window_bounds = array<i64: 4, 128>}, {pipeline_mode = #tpu.pipeline_mode<synchronous>, transform_indices = @transform_2, window_bounds = array<i64: 1, 128>}, {pipeline_mode = #tpu.pipeline_mode<synchronous>, transform_indices = @transform_3, window_bounds = array<i64: 1152, 128>}, {pipeline_mode = #tpu.pipeline_mode<synchronous>, transform_indices = @transform_4, window_bounds = array<i64: 1, 128>}, {transform_indices = @transform_5, window_bounds = array<i64: 1, 256, 8>}, {transform_indices = @transform_6, window_bounds = array<i64: 1, 1, 128>}, {transform_indices = @transform_7, window_bounds = array<i64: 1, 1, 128>}]} {
    %c0 = arith.constant 0 : index
    %c0_0 = arith.constant 0 : index
    %c0_1 = arith.constant 0 : index
    %0 = vector.load %arg1[%c0, %c0_0, %c0_1] : memref<1x256x4xf32, #tpu.memory_space<vmem>>, vector<1x256x4xf32>
    %1 = vector.shape_cast %0 : vector<1x256x4xf32> to vector<256x4xf32>
    %c0_2 = arith.constant 0 : index
    %c0_3 = arith.constant 0 : index
    %2 = vector.load %arg2[%c0_2, %c0_3] : memref<4x128xf32, #tpu.memory_space<vmem>>, vector<4x128xf32>
    %cst = arith.constant dense<0.000000e+00> : vector<256x128xf32>
    %3 = tpu.matmul %1, %2, %cst {dimension_numbers = #tpu.dot_dimension_numbers<[1], [0], [0], [1], [0, 0, 1, 1], [], []>} : vector<256x4xf32>, vector<4x128xf32>, vector<256x128xf32> -> vector<256x128xf32>
    %c0_4 = arith.constant 0 : index
    %c0_5 = arith.constant 0 : index
    %4 = vector.load %arg3[%c0_4, %c0_5] : memref<1x128xf32, #tpu.memory_space<vmem>>, vector<1x128xf32>
    %5 = vector.broadcast %4 : vector<1x128xf32> to vector<256x128xf32>
    %6 = arith.addf %3, %5 : vector<256x128xf32>
    %7 = vector.shape_cast %6 : vector<256x128xf32> to vector<16x16x128xf32>
    %cst_6 = arith.constant 0.000000e+00 : f32
    %8 = vector.broadcast %cst_6 : f32 to vector<1x18x128xf32>
    %cst_7 = arith.constant 0.000000e+00 : f32
    %9 = vector.broadcast %cst_7 : f32 to vector<16x1x128xf32>
    %10 = tpu.concatenate %9, %7, %9 in 1 : vector<16x1x128xf32>, vector<16x16x128xf32>, vector<16x1x128xf32> -> vector<16x18x128xf32>
    %11 = tpu.concatenate %8, %10, %8 in 0 : vector<1x18x128xf32>, vector<16x18x128xf32>, vector<1x18x128xf32> -> vector<18x18x128xf32>
    %c0_8 = arith.constant 0 : index
    %c0_9 = arith.constant 0 : index
    %c0_10 = arith.constant 0 : index
    %12 = vector.load %arg9[%c0_8, %c0_9, %c0_10] : memref<18x18x128xf32, #tpu.memory_space<vmem>>, vector<18x18x128xf32>
    tpu.vector_store %arg9[%c0_8, %c0_9, %c0_10], %11 {strides = array<i32>} : memref<18x18x128xf32, #tpu.memory_space<vmem>>, vector<18x18x128xf32>,
    %c0_11 = arith.constant 0 : index
    %c0_12 = arith.constant 0 : index
    %c0_13 = arith.constant 0 : index
    %13 = vector.load %arg9[%c0_11, %c0_12, %c0_13] : memref<18x18x128xf32, #tpu.memory_space<vmem>>, vector<16x16x128xf32>
    %14 = vector.shape_cast %13 : vector<16x16x128xf32> to vector<256x128xf32>
    %c0_14 = arith.constant 0 : index
    %c0_15 = arith.constant 0 : index
    %15 = vector.load %arg10[%c0_14, %c0_15] : memref<256x1152xf32, #tpu.memory_space<vmem>>, vector<256x128xf32>
    tpu.vector_store %arg10[%c0_14, %c0_15], %14 {strides = array<i32>} : memref<256x1152xf32, #tpu.memory_space<vmem>>, vector<256x128xf32>,
    %c0_16 = arith.constant 0 : index
    %c1 = arith.constant 1 : index
    %c0_17 = arith.constant 0 : index
    %16 = vector.load %arg9[%c0_16, %c1, %c0_17] : memref<18x18x128xf32, #tpu.memory_space<vmem>>, vector<16x16x128xf32>
    %17 = vector.shape_cast %16 : vector<16x16x128xf32> to vector<256x128xf32>
    %c0_18 = arith.constant 0 : index
    %c128 = arith.constant 128 : index
    %18 = vector.load %arg10[%c0_18, %c128] : memref<256x1152xf32, #tpu.memory_space<vmem>>, vector<256x128xf32>
    tpu.vector_store %arg10[%c0_18, %c128], %17 {strides = array<i32>} : memref<256x1152xf32, #tpu.memory_space<vmem>>, vector<256x128xf32>,
    %c0_19 = arith.constant 0 : index
    %c2 = arith.constant 2 : index
    %c0_20 = arith.constant 0 : index
    %19 = vector.load %arg9[%c0_19, %c2, %c0_20] : memref<18x18x128xf32, #tpu.memory_space<vmem>>, vector<16x16x128xf32>
    %20 = vector.shape_cast %19 : vector<16x16x128xf32> to vector<256x128xf32>
    %c0_21 = arith.constant 0 : index
    %c256 = arith.constant 256 : index
    %21 = vector.load %arg10[%c0_21, %c256] : memref<256x1152xf32, #tpu.memory_space<vmem>>, vector<256x128xf32>
    tpu.vector_store %arg10[%c0_21, %c256], %20 {strides = array<i32>} : memref<256x1152xf32, #tpu.memory_space<vmem>>, vector<256x128xf32>,
    %c1_22 = arith.constant 1 : index
    %c0_23 = arith.constant 0 : index
    %c0_24 = arith.constant 0 : index
    %22 = vector.load %arg9[%c1_22, %c0_23, %c0_24] : memref<18x18x128xf32, #tpu.memory_space<vmem>>, vector<16x16x128xf32>
    %23 = vector.shape_cast %22 : vector<16x16x128xf32> to vector<256x128xf32>
    %c0_25 = arith.constant 0 : index
    %c384 = arith.constant 384 : index
    %24 = vector.load %arg10[%c0_25, %c384] : memref<256x1152xf32, #tpu.memory_space<vmem>>, vector<256x128xf32>
    tpu.vector_store %arg10[%c0_25, %c384], %23 {strides = array<i32>} : memref<256x1152xf32, #tpu.memory_space<vmem>>, vector<256x128xf32>,
    %c1_26 = arith.constant 1 : index
    %c1_27 = arith.constant 1 : index
    %c0_28 = arith.constant 0 : index
    %25 = vector.load %arg9[%c1_26, %c1_27, %c0_28] : memref<18x18x128xf32, #tpu.memory_space<vmem>>, vector<16x16x128xf32>
    %26 = vector.shape_cast %25 : vector<16x16x128xf32> to vector<256x128xf32>
    %c0_29 = arith.constant 0 : index
    %c512 = arith.constant 512 : index
    %27 = vector.load %arg10[%c0_29, %c512] : memref<256x1152xf32, #tpu.memory_space<vmem>>, vector<256x128xf32>
    tpu.vector_store %arg10[%c0_29, %c512], %26 {strides = array<i32>} : memref<256x1152xf32, #tpu.memory_space<vmem>>, vector<256x128xf32>,
    %c1_30 = arith.constant 1 : index
    %c2_31 = arith.constant 2 : index
    %c0_32 = arith.constant 0 : index
    %28 = vector.load %arg9[%c1_30, %c2_31, %c0_32] : memref<18x18x128xf32, #tpu.memory_space<vmem>>, vector<16x16x128xf32>
    %29 = vector.shape_cast %28 : vector<16x16x128xf32> to vector<256x128xf32>
    %c0_33 = arith.constant 0 : index
    %c640 = arith.constant 640 : index
    %30 = vector.load %arg10[%c0_33, %c640] : memref<256x1152xf32, #tpu.memory_space<vmem>>, vector<256x128xf32>
    tpu.vector_store %arg10[%c0_33, %c640], %29 {strides = array<i32>} : memref<256x1152xf32, #tpu.memory_space<vmem>>, vector<256x128xf32>,
    %c2_34 = arith.constant 2 : index
    %c0_35 = arith.constant 0 : index
    %c0_36 = arith.constant 0 : index
    %31 = vector.load %arg9[%c2_34, %c0_35, %c0_36] : memref<18x18x128xf32, #tpu.memory_space<vmem>>, vector<16x16x128xf32>
    %32 = vector.shape_cast %31 : vector<16x16x128xf32> to vector<256x128xf32>
    %c0_37 = arith.constant 0 : index
    %c768 = arith.constant 768 : index
    %33 = vector.load %arg10[%c0_37, %c768] : memref<256x1152xf32, #tpu.memory_space<vmem>>, vector<256x128xf32>
    tpu.vector_store %arg10[%c0_37, %c768], %32 {strides = array<i32>} : memref<256x1152xf32, #tpu.memory_space<vmem>>, vector<256x128xf32>,
    %c2_38 = arith.constant 2 : index
    %c1_39 = arith.constant 1 : index
    %c0_40 = arith.constant 0 : index
    %34 = vector.load %arg9[%c2_38, %c1_39, %c0_40] : memref<18x18x128xf32, #tpu.memory_space<vmem>>, vector<16x16x128xf32>
    %35 = vector.shape_cast %34 : vector<16x16x128xf32> to vector<256x128xf32>
    %c0_41 = arith.constant 0 : index
    %c896 = arith.constant 896 : index
    %36 = vector.load %arg10[%c0_41, %c896] : memref<256x1152xf32, #tpu.memory_space<vmem>>, vector<256x128xf32>
    tpu.vector_store %arg10[%c0_41, %c896], %35 {strides = array<i32>} : memref<256x1152xf32, #tpu.memory_space<vmem>>, vector<256x128xf32>,
    %c2_42 = arith.constant 2 : index
    %c2_43 = arith.constant 2 : index
    %c0_44 = arith.constant 0 : index
    %37 = vector.load %arg9[%c2_42, %c2_43, %c0_44] : memref<18x18x128xf32, #tpu.memory_space<vmem>>, vector<16x16x128xf32>
    %38 = vector.shape_cast %37 : vector<16x16x128xf32> to vector<256x128xf32>
    %c0_45 = arith.constant 0 : index
    %c1024 = arith.constant 1024 : index
    %39 = vector.load %arg10[%c0_45, %c1024] : memref<256x1152xf32, #tpu.memory_space<vmem>>, vector<256x128xf32>
    tpu.vector_store %arg10[%c0_45, %c1024], %38 {strides = array<i32>} : memref<256x1152xf32, #tpu.memory_space<vmem>>, vector<256x128xf32>,
    %c0_46 = arith.constant 0 : index
    %c0_47 = arith.constant 0 : index
    %40 = vector.load %arg10[%c0_46, %c0_47] : memref<256x1152xf32, #tpu.memory_space<vmem>>, vector<256x1152xf32>
    %c0_48 = arith.constant 0 : index
    %c0_49 = arith.constant 0 : index
    %41 = vector.load %arg4[%c0_48, %c0_49] : memref<1152x128xf32, #tpu.memory_space<vmem>>, vector<1152x128xf32>
    %cst_50 = arith.constant dense<0.000000e+00> : vector<256x128xf32>
    %42 = tpu.matmul %40, %41, %cst_50 {dimension_numbers = #tpu.dot_dimension_numbers<[1], [0], [0], [1], [0, 0, 1, 1], [], []>} : vector<256x1152xf32>, vector<1152x128xf32>, vector<256x128xf32> -> vector<256x128xf32>
    %c0_51 = arith.constant 0 : index
    %c0_52 = arith.constant 0 : index
    %43 = vector.load %arg5[%c0_51, %c0_52] : memref<1x128xf32, #tpu.memory_space<vmem>>, vector<1x128xf32>
    %44 = vector.broadcast %43 : vector<1x128xf32> to vector<256x128xf32>
    %45 = arith.addf %42, %44 : vector<256x128xf32>
    %cst_53 = arith.constant dense<0.000000e+00> : vector<128xf32>
    %46 = vector.multi_reduction <add>, %45, %cst_53 [0] : vector<256x128xf32> to vector<128xf32>
    %47 = vector.shape_cast %46 : vector<128xf32> to vector<1x128xf32>
    %c0_54 = arith.constant 0 : index
    %c0_55 = arith.constant 0 : index
    %c0_56 = arith.constant 0 : index
    %48 = vector.load %arg7[%c0_54, %c0_55, %c0_56] : memref<1x1x128xf32, #tpu.memory_space<vmem>>, vector<1x1x128xf32>
    %49 = vector.shape_cast %48 : vector<1x1x128xf32> to vector<1x128xf32>
    %50 = vector.shape_cast %47 : vector<1x128xf32> to vector<1x1x128xf32>
    tpu.vector_store %arg7[%c0_54, %c0_55, %c0_56], %50 {strides = array<i32>} : memref<1x1x128xf32, #tpu.memory_space<vmem>>, vector<1x1x128xf32>,
    %51 = arith.mulf %45, %45 : vector<256x128xf32>
    %cst_57 = arith.constant dense<0.000000e+00> : vector<128xf32>
    %52 = vector.multi_reduction <add>, %51, %cst_57 [0] : vector<256x128xf32> to vector<128xf32>
    %53 = vector.shape_cast %52 : vector<128xf32> to vector<1x128xf32>
    %c0_58 = arith.constant 0 : index
    %c0_59 = arith.constant 0 : index
    %c0_60 = arith.constant 0 : index
    %54 = vector.load %arg8[%c0_58, %c0_59, %c0_60] : memref<1x1x128xf32, #tpu.memory_space<vmem>>, vector<1x1x128xf32>
    %55 = vector.shape_cast %54 : vector<1x1x128xf32> to vector<1x128xf32>
    %56 = vector.shape_cast %53 : vector<1x128xf32> to vector<1x1x128xf32>
    tpu.vector_store %arg8[%c0_58, %c0_59, %c0_60], %56 {strides = array<i32>} : memref<1x1x128xf32, #tpu.memory_space<vmem>>, vector<1x1x128xf32>,
    %57 = vector.extract_strided_slice %45 {offsets = [0, 0], sizes = [256, 8], strides = [1, 1]} : vector<256x128xf32> to vector<256x8xf32>
    %c0_61 = arith.constant 0 : index
    %c0_62 = arith.constant 0 : index
    %c0_63 = arith.constant 0 : index
    %58 = vector.load %arg6[%c0_61, %c0_62, %c0_63] : memref<1x256x8xf32, #tpu.memory_space<vmem>>, vector<1x256x8xf32>
    %59 = vector.shape_cast %58 : vector<1x256x8xf32> to vector<256x8xf32>
    %60 = vector.shape_cast %57 : vector<256x8xf32> to vector<1x256x8xf32>
    tpu.vector_store %arg6[%c0_61, %c0_62, %c0_63], %60 {strides = array<i32>} : memref<1x256x8xf32, #tpu.memory_space<vmem>>, vector<1x256x8xf32>,
    return
  }
  func.func @transform_0(%arg0: i32) -> (i32, i32, i32) {
    %c0_i32 = arith.constant 0 : i32
    %c0_i32_0 = arith.constant 0 : i32
    %c0_i32_1 = arith.constant 0 : i32
    return %arg0, %c0_i32, %c0_i32_0 : i32, i32, i32
  }
  func.func @transform_1(%arg0: i32) -> (i32, i32) {
    %c0_i32 = arith.constant 0 : i32
    %c0_i32_0 = arith.constant 0 : i32
    %c0_i32_1 = arith.constant 0 : i32
    return %c0_i32, %c0_i32_0 : i32, i32
  }
  func.func @transform_2(%arg0: i32) -> (i32, i32) {
    %c0_i32 = arith.constant 0 : i32
    %c0_i32_0 = arith.constant 0 : i32
    %c0_i32_1 = arith.constant 0 : i32
    return %c0_i32, %c0_i32_0 : i32, i32
  }
  func.func @transform_3(%arg0: i32) -> (i32, i32) {
    %c0_i32 = arith.constant 0 : i32
    %c0_i32_0 = arith.constant 0 : i32
    %c0_i32_1 = arith.constant 0 : i32
    return %c0_i32, %c0_i32_0 : i32, i32
  }
  func.func @transform_4(%arg0: i32) -> (i32, i32) {
    %c0_i32 = arith.constant 0 : i32
    %c0_i32_0 = arith.constant 0 : i32
    %c0_i32_1 = arith.constant 0 : i32
    return %c0_i32, %c0_i32_0 : i32, i32
  }
  func.func @transform_5(%arg0: i32) -> (i32, i32, i32) {
    %c0_i32 = arith.constant 0 : i32
    %c0_i32_0 = arith.constant 0 : i32
    %c0_i32_1 = arith.constant 0 : i32
    return %arg0, %c0_i32, %c0_i32_0 : i32, i32, i32
  }
  func.func @transform_6(%arg0: i32) -> (i32, i32, i32) {
    %c0_i32 = arith.constant 0 : i32
    %c0_i32_0 = arith.constant 0 : i32
    %c0_i32_1 = arith.constant 0 : i32
    return %arg0, %c0_i32, %c0_i32_0 : i32, i32, i32
  }
  func.func @transform_7(%arg0: i32) -> (i32, i32, i32) {
    %c0_i32 = arith.constant 0 : i32
    %c0_i32_0 = arith.constant 0 : i32
    %c0_i32_1 = arith.constant 0 : i32
    return %arg0, %c0_i32, %c0_i32_0 : i32, i32, i32
  }
}

module attributes {stable_mosaic.version = 11 : i64} {
  func.func @_bn_relu_pool_kernel(%arg0: i32, %arg1: memref<1x8x2x8x16xf32, #tpu.memory_space<vmem>>, %arg2: memref<1x16xf32, #tpu.memory_space<vmem>>, %arg3: memref<1x16xf32, #tpu.memory_space<vmem>>, %arg4: memref<1x8x8x8xf32, #tpu.memory_space<vmem>>) attributes {dimension_semantics = [#tpu.dimension_semantics<parallel>], iteration_bounds = array<i64: 2>, scalar_prefetch = 0 : i64, scratch_operands = 0 : i64, tpu.core_type = #tpu.core_type<tc>, window_params = [{transform_indices = @transform_0, window_bounds = array<i64: 1, 8, 2, 8, 16>}, {pipeline_mode = #tpu.pipeline_mode<synchronous>, transform_indices = @transform_1, window_bounds = array<i64: 1, 16>}, {pipeline_mode = #tpu.pipeline_mode<synchronous>, transform_indices = @transform_2, window_bounds = array<i64: 1, 16>}, {transform_indices = @transform_3, window_bounds = array<i64: 1, 8, 8, 8>}]} {
    %c0 = arith.constant 0 : index
    %c0_0 = arith.constant 0 : index
    %0 = vector.load %arg2[%c0, %c0_0] : memref<1x16xf32, #tpu.memory_space<vmem>>, vector<1x16xf32>
    %c0_1 = arith.constant 0 : index
    %c0_2 = arith.constant 0 : index
    %1 = vector.load %arg3[%c0_1, %c0_2] : memref<1x16xf32, #tpu.memory_space<vmem>>, vector<1x16xf32>
    %c0_3 = arith.constant 0 : index
    %c0_4 = arith.constant 0 : index
    %c0_5 = arith.constant 0 : index
    %c0_6 = arith.constant 0 : index
    %c0_7 = arith.constant 0 : index
    %2 = vector.load %arg1[%c0_3, %c0_4, %c0_5, %c0_6, %c0_7] : memref<1x8x2x8x16xf32, #tpu.memory_space<vmem>>, vector<1x8x1x8x16xf32>
    %3 = vector.shape_cast %2 : vector<1x8x1x8x16xf32> to vector<8x8x16xf32>
    %4 = vector.shape_cast %0 : vector<1x16xf32> to vector<1x1x16xf32>
    %5 = vector.broadcast %4 : vector<1x1x16xf32> to vector<8x8x16xf32>
    %6 = arith.mulf %3, %5 : vector<8x8x16xf32>
    %7 = vector.shape_cast %1 : vector<1x16xf32> to vector<1x1x16xf32>
    %8 = vector.broadcast %7 : vector<1x1x16xf32> to vector<8x8x16xf32>
    %9 = arith.addf %6, %8 : vector<8x8x16xf32>
    %cst = arith.constant 0.000000e+00 : f32
    %10 = vector.broadcast %cst : f32 to vector<8x8x16xf32>
    %11 = arith.maximumf %9, %10 : vector<8x8x16xf32>
    %c0_8 = arith.constant 0 : index
    %c0_9 = arith.constant 0 : index
    %c1 = arith.constant 1 : index
    %c0_10 = arith.constant 0 : index
    %c0_11 = arith.constant 0 : index
    %12 = vector.load %arg1[%c0_8, %c0_9, %c1, %c0_10, %c0_11] : memref<1x8x2x8x16xf32, #tpu.memory_space<vmem>>, vector<1x8x1x8x16xf32>
    %13 = vector.shape_cast %12 : vector<1x8x1x8x16xf32> to vector<8x8x16xf32>
    %14 = vector.shape_cast %0 : vector<1x16xf32> to vector<1x1x16xf32>
    %15 = vector.broadcast %14 : vector<1x1x16xf32> to vector<8x8x16xf32>
    %16 = arith.mulf %13, %15 : vector<8x8x16xf32>
    %17 = vector.shape_cast %1 : vector<1x16xf32> to vector<1x1x16xf32>
    %18 = vector.broadcast %17 : vector<1x1x16xf32> to vector<8x8x16xf32>
    %19 = arith.addf %16, %18 : vector<8x8x16xf32>
    %cst_12 = arith.constant 0.000000e+00 : f32
    %20 = vector.broadcast %cst_12 : f32 to vector<8x8x16xf32>
    %21 = arith.maximumf %19, %20 : vector<8x8x16xf32>
    %22 = arith.addf %11, %21 : vector<8x8x16xf32>
    %23 = vector.extract_strided_slice %22 {offsets = [0, 0, 0], sizes = [8, 8, 8], strides = [1, 1, 1]} : vector<8x8x16xf32> to vector<8x8x8xf32>
    %24 = vector.extract_strided_slice %22 {offsets = [0, 0, 8], sizes = [8, 8, 8], strides = [1, 1, 1]} : vector<8x8x16xf32> to vector<8x8x8xf32>
    %25 = arith.addf %23, %24 : vector<8x8x8xf32>
    %cst_13 = arith.constant 2.500000e-01 : f32
    %26 = vector.broadcast %cst_13 : f32 to vector<8x8x8xf32>
    %27 = arith.mulf %26, %25 : vector<8x8x8xf32>
    %c0_14 = arith.constant 0 : index
    %c0_15 = arith.constant 0 : index
    %c0_16 = arith.constant 0 : index
    %c0_17 = arith.constant 0 : index
    %28 = vector.load %arg4[%c0_14, %c0_15, %c0_16, %c0_17] : memref<1x8x8x8xf32, #tpu.memory_space<vmem>>, vector<1x8x8x8xf32>
    %29 = vector.shape_cast %28 : vector<1x8x8x8xf32> to vector<8x8x8xf32>
    %30 = vector.shape_cast %27 : vector<8x8x8xf32> to vector<1x8x8x8xf32>
    tpu.vector_store %arg4[%c0_14, %c0_15, %c0_16, %c0_17], %30 {strides = array<i32>} : memref<1x8x8x8xf32, #tpu.memory_space<vmem>>, vector<1x8x8x8xf32>,
    return
  }
  func.func @transform_0(%arg0: i32) -> (i32, i32, i32, i32, i32) {
    %c0_i32 = arith.constant 0 : i32
    %c0_i32_0 = arith.constant 0 : i32
    %c0_i32_1 = arith.constant 0 : i32
    %c0_i32_2 = arith.constant 0 : i32
    %c0_i32_3 = arith.constant 0 : i32
    return %arg0, %c0_i32, %c0_i32_0, %c0_i32_1, %c0_i32_2 : i32, i32, i32, i32, i32
  }
  func.func @transform_1(%arg0: i32) -> (i32, i32) {
    %c0_i32 = arith.constant 0 : i32
    %c0_i32_0 = arith.constant 0 : i32
    %c0_i32_1 = arith.constant 0 : i32
    return %c0_i32, %c0_i32_0 : i32, i32
  }
  func.func @transform_2(%arg0: i32) -> (i32, i32) {
    %c0_i32 = arith.constant 0 : i32
    %c0_i32_0 = arith.constant 0 : i32
    %c0_i32_1 = arith.constant 0 : i32
    return %c0_i32, %c0_i32_0 : i32, i32
  }
  func.func @transform_3(%arg0: i32) -> (i32, i32, i32, i32) {
    %c0_i32 = arith.constant 0 : i32
    %c0_i32_0 = arith.constant 0 : i32
    %c0_i32_1 = arith.constant 0 : i32
    %c0_i32_2 = arith.constant 0 : i32
    return %arg0, %c0_i32, %c0_i32_0, %c0_i32_1 : i32, i32, i32, i32
  }
}

module attributes {stable_mosaic.version = 11 : i64} {
  func.func @_conv3x3_bn_stats_kernel(%arg0: i32, %arg1: memref<1x256x8xf32, #tpu.memory_space<vmem>>, %arg2: memref<8x128xf32, #tpu.memory_space<vmem>>, %arg3: memref<1x128xf32, #tpu.memory_space<vmem>>, %arg4: memref<1152x128xf32, #tpu.memory_space<vmem>>, %arg5: memref<1x128xf32, #tpu.memory_space<vmem>>, %arg6: memref<1x256x8xf32, #tpu.memory_space<vmem>>, %arg7: memref<1x1x128xf32, #tpu.memory_space<vmem>>, %arg8: memref<1x1x128xf32, #tpu.memory_space<vmem>>, %arg9: memref<18x18x128xf32, #tpu.memory_space<vmem>>, %arg10: memref<256x1152xf32, #tpu.memory_space<vmem>>) attributes {dimension_semantics = [#tpu.dimension_semantics<parallel>], iteration_bounds = array<i64: 2>, scalar_prefetch = 0 : i64, scratch_operands = 2 : i64, tpu.core_type = #tpu.core_type<tc>, window_params = [{transform_indices = @transform_0, window_bounds = array<i64: 1, 256, 8>}, {pipeline_mode = #tpu.pipeline_mode<synchronous>, transform_indices = @transform_1, window_bounds = array<i64: 8, 128>}, {pipeline_mode = #tpu.pipeline_mode<synchronous>, transform_indices = @transform_2, window_bounds = array<i64: 1, 128>}, {pipeline_mode = #tpu.pipeline_mode<synchronous>, transform_indices = @transform_3, window_bounds = array<i64: 1152, 128>}, {pipeline_mode = #tpu.pipeline_mode<synchronous>, transform_indices = @transform_4, window_bounds = array<i64: 1, 128>}, {transform_indices = @transform_5, window_bounds = array<i64: 1, 256, 8>}, {transform_indices = @transform_6, window_bounds = array<i64: 1, 1, 128>}, {transform_indices = @transform_7, window_bounds = array<i64: 1, 1, 128>}]} {
    %c0 = arith.constant 0 : index
    %c0_0 = arith.constant 0 : index
    %c0_1 = arith.constant 0 : index
    %0 = vector.load %arg1[%c0, %c0_0, %c0_1] : memref<1x256x8xf32, #tpu.memory_space<vmem>>, vector<1x256x8xf32>
    %1 = vector.shape_cast %0 : vector<1x256x8xf32> to vector<256x8xf32>
    %c0_2 = arith.constant 0 : index
    %c0_3 = arith.constant 0 : index
    %2 = vector.load %arg2[%c0_2, %c0_3] : memref<8x128xf32, #tpu.memory_space<vmem>>, vector<8x128xf32>
    %cst = arith.constant dense<0.000000e+00> : vector<256x128xf32>
    %3 = tpu.matmul %1, %2, %cst {dimension_numbers = #tpu.dot_dimension_numbers<[1], [0], [0], [1], [0, 0, 1, 1], [], []>} : vector<256x8xf32>, vector<8x128xf32>, vector<256x128xf32> -> vector<256x128xf32>
    %c0_4 = arith.constant 0 : index
    %c0_5 = arith.constant 0 : index
    %4 = vector.load %arg3[%c0_4, %c0_5] : memref<1x128xf32, #tpu.memory_space<vmem>>, vector<1x128xf32>
    %5 = vector.broadcast %4 : vector<1x128xf32> to vector<256x128xf32>
    %6 = arith.addf %3, %5 : vector<256x128xf32>
    %cst_6 = arith.constant 0.000000e+00 : f32
    %7 = vector.broadcast %cst_6 : f32 to vector<256x128xf32>
    %8 = arith.maximumf %6, %7 : vector<256x128xf32>
    %9 = vector.shape_cast %8 : vector<256x128xf32> to vector<16x16x128xf32>
    %cst_7 = arith.constant 0.000000e+00 : f32
    %10 = vector.broadcast %cst_7 : f32 to vector<1x18x128xf32>
    %cst_8 = arith.constant 0.000000e+00 : f32
    %11 = vector.broadcast %cst_8 : f32 to vector<16x1x128xf32>
    %12 = tpu.concatenate %11, %9, %11 in 1 : vector<16x1x128xf32>, vector<16x16x128xf32>, vector<16x1x128xf32> -> vector<16x18x128xf32>
    %13 = tpu.concatenate %10, %12, %10 in 0 : vector<1x18x128xf32>, vector<16x18x128xf32>, vector<1x18x128xf32> -> vector<18x18x128xf32>
    %c0_9 = arith.constant 0 : index
    %c0_10 = arith.constant 0 : index
    %c0_11 = arith.constant 0 : index
    %14 = vector.load %arg9[%c0_9, %c0_10, %c0_11] : memref<18x18x128xf32, #tpu.memory_space<vmem>>, vector<18x18x128xf32>
    tpu.vector_store %arg9[%c0_9, %c0_10, %c0_11], %13 {strides = array<i32>} : memref<18x18x128xf32, #tpu.memory_space<vmem>>, vector<18x18x128xf32>,
    %c0_12 = arith.constant 0 : index
    %c0_13 = arith.constant 0 : index
    %c0_14 = arith.constant 0 : index
    %15 = vector.load %arg9[%c0_12, %c0_13, %c0_14] : memref<18x18x128xf32, #tpu.memory_space<vmem>>, vector<16x16x128xf32>
    %16 = vector.shape_cast %15 : vector<16x16x128xf32> to vector<256x128xf32>
    %c0_15 = arith.constant 0 : index
    %c0_16 = arith.constant 0 : index
    %17 = vector.load %arg10[%c0_15, %c0_16] : memref<256x1152xf32, #tpu.memory_space<vmem>>, vector<256x128xf32>
    tpu.vector_store %arg10[%c0_15, %c0_16], %16 {strides = array<i32>} : memref<256x1152xf32, #tpu.memory_space<vmem>>, vector<256x128xf32>,
    %c0_17 = arith.constant 0 : index
    %c1 = arith.constant 1 : index
    %c0_18 = arith.constant 0 : index
    %18 = vector.load %arg9[%c0_17, %c1, %c0_18] : memref<18x18x128xf32, #tpu.memory_space<vmem>>, vector<16x16x128xf32>
    %19 = vector.shape_cast %18 : vector<16x16x128xf32> to vector<256x128xf32>
    %c0_19 = arith.constant 0 : index
    %c128 = arith.constant 128 : index
    %20 = vector.load %arg10[%c0_19, %c128] : memref<256x1152xf32, #tpu.memory_space<vmem>>, vector<256x128xf32>
    tpu.vector_store %arg10[%c0_19, %c128], %19 {strides = array<i32>} : memref<256x1152xf32, #tpu.memory_space<vmem>>, vector<256x128xf32>,
    %c0_20 = arith.constant 0 : index
    %c2 = arith.constant 2 : index
    %c0_21 = arith.constant 0 : index
    %21 = vector.load %arg9[%c0_20, %c2, %c0_21] : memref<18x18x128xf32, #tpu.memory_space<vmem>>, vector<16x16x128xf32>
    %22 = vector.shape_cast %21 : vector<16x16x128xf32> to vector<256x128xf32>
    %c0_22 = arith.constant 0 : index
    %c256 = arith.constant 256 : index
    %23 = vector.load %arg10[%c0_22, %c256] : memref<256x1152xf32, #tpu.memory_space<vmem>>, vector<256x128xf32>
    tpu.vector_store %arg10[%c0_22, %c256], %22 {strides = array<i32>} : memref<256x1152xf32, #tpu.memory_space<vmem>>, vector<256x128xf32>,
    %c1_23 = arith.constant 1 : index
    %c0_24 = arith.constant 0 : index
    %c0_25 = arith.constant 0 : index
    %24 = vector.load %arg9[%c1_23, %c0_24, %c0_25] : memref<18x18x128xf32, #tpu.memory_space<vmem>>, vector<16x16x128xf32>
    %25 = vector.shape_cast %24 : vector<16x16x128xf32> to vector<256x128xf32>
    %c0_26 = arith.constant 0 : index
    %c384 = arith.constant 384 : index
    %26 = vector.load %arg10[%c0_26, %c384] : memref<256x1152xf32, #tpu.memory_space<vmem>>, vector<256x128xf32>
    tpu.vector_store %arg10[%c0_26, %c384], %25 {strides = array<i32>} : memref<256x1152xf32, #tpu.memory_space<vmem>>, vector<256x128xf32>,
    %c1_27 = arith.constant 1 : index
    %c1_28 = arith.constant 1 : index
    %c0_29 = arith.constant 0 : index
    %27 = vector.load %arg9[%c1_27, %c1_28, %c0_29] : memref<18x18x128xf32, #tpu.memory_space<vmem>>, vector<16x16x128xf32>
    %28 = vector.shape_cast %27 : vector<16x16x128xf32> to vector<256x128xf32>
    %c0_30 = arith.constant 0 : index
    %c512 = arith.constant 512 : index
    %29 = vector.load %arg10[%c0_30, %c512] : memref<256x1152xf32, #tpu.memory_space<vmem>>, vector<256x128xf32>
    tpu.vector_store %arg10[%c0_30, %c512], %28 {strides = array<i32>} : memref<256x1152xf32, #tpu.memory_space<vmem>>, vector<256x128xf32>,
    %c1_31 = arith.constant 1 : index
    %c2_32 = arith.constant 2 : index
    %c0_33 = arith.constant 0 : index
    %30 = vector.load %arg9[%c1_31, %c2_32, %c0_33] : memref<18x18x128xf32, #tpu.memory_space<vmem>>, vector<16x16x128xf32>
    %31 = vector.shape_cast %30 : vector<16x16x128xf32> to vector<256x128xf32>
    %c0_34 = arith.constant 0 : index
    %c640 = arith.constant 640 : index
    %32 = vector.load %arg10[%c0_34, %c640] : memref<256x1152xf32, #tpu.memory_space<vmem>>, vector<256x128xf32>
    tpu.vector_store %arg10[%c0_34, %c640], %31 {strides = array<i32>} : memref<256x1152xf32, #tpu.memory_space<vmem>>, vector<256x128xf32>,
    %c2_35 = arith.constant 2 : index
    %c0_36 = arith.constant 0 : index
    %c0_37 = arith.constant 0 : index
    %33 = vector.load %arg9[%c2_35, %c0_36, %c0_37] : memref<18x18x128xf32, #tpu.memory_space<vmem>>, vector<16x16x128xf32>
    %34 = vector.shape_cast %33 : vector<16x16x128xf32> to vector<256x128xf32>
    %c0_38 = arith.constant 0 : index
    %c768 = arith.constant 768 : index
    %35 = vector.load %arg10[%c0_38, %c768] : memref<256x1152xf32, #tpu.memory_space<vmem>>, vector<256x128xf32>
    tpu.vector_store %arg10[%c0_38, %c768], %34 {strides = array<i32>} : memref<256x1152xf32, #tpu.memory_space<vmem>>, vector<256x128xf32>,
    %c2_39 = arith.constant 2 : index
    %c1_40 = arith.constant 1 : index
    %c0_41 = arith.constant 0 : index
    %36 = vector.load %arg9[%c2_39, %c1_40, %c0_41] : memref<18x18x128xf32, #tpu.memory_space<vmem>>, vector<16x16x128xf32>
    %37 = vector.shape_cast %36 : vector<16x16x128xf32> to vector<256x128xf32>
    %c0_42 = arith.constant 0 : index
    %c896 = arith.constant 896 : index
    %38 = vector.load %arg10[%c0_42, %c896] : memref<256x1152xf32, #tpu.memory_space<vmem>>, vector<256x128xf32>
    tpu.vector_store %arg10[%c0_42, %c896], %37 {strides = array<i32>} : memref<256x1152xf32, #tpu.memory_space<vmem>>, vector<256x128xf32>,
    %c2_43 = arith.constant 2 : index
    %c2_44 = arith.constant 2 : index
    %c0_45 = arith.constant 0 : index
    %39 = vector.load %arg9[%c2_43, %c2_44, %c0_45] : memref<18x18x128xf32, #tpu.memory_space<vmem>>, vector<16x16x128xf32>
    %40 = vector.shape_cast %39 : vector<16x16x128xf32> to vector<256x128xf32>
    %c0_46 = arith.constant 0 : index
    %c1024 = arith.constant 1024 : index
    %41 = vector.load %arg10[%c0_46, %c1024] : memref<256x1152xf32, #tpu.memory_space<vmem>>, vector<256x128xf32>
    tpu.vector_store %arg10[%c0_46, %c1024], %40 {strides = array<i32>} : memref<256x1152xf32, #tpu.memory_space<vmem>>, vector<256x128xf32>,
    %c0_47 = arith.constant 0 : index
    %c0_48 = arith.constant 0 : index
    %42 = vector.load %arg10[%c0_47, %c0_48] : memref<256x1152xf32, #tpu.memory_space<vmem>>, vector<256x1152xf32>
    %c0_49 = arith.constant 0 : index
    %c0_50 = arith.constant 0 : index
    %43 = vector.load %arg4[%c0_49, %c0_50] : memref<1152x128xf32, #tpu.memory_space<vmem>>, vector<1152x128xf32>
    %cst_51 = arith.constant dense<0.000000e+00> : vector<256x128xf32>
    %44 = tpu.matmul %42, %43, %cst_51 {dimension_numbers = #tpu.dot_dimension_numbers<[1], [0], [0], [1], [0, 0, 1, 1], [], []>} : vector<256x1152xf32>, vector<1152x128xf32>, vector<256x128xf32> -> vector<256x128xf32>
    %c0_52 = arith.constant 0 : index
    %c0_53 = arith.constant 0 : index
    %45 = vector.load %arg5[%c0_52, %c0_53] : memref<1x128xf32, #tpu.memory_space<vmem>>, vector<1x128xf32>
    %46 = vector.broadcast %45 : vector<1x128xf32> to vector<256x128xf32>
    %47 = arith.addf %44, %46 : vector<256x128xf32>
    %cst_54 = arith.constant dense<0.000000e+00> : vector<128xf32>
    %48 = vector.multi_reduction <add>, %47, %cst_54 [0] : vector<256x128xf32> to vector<128xf32>
    %49 = vector.shape_cast %48 : vector<128xf32> to vector<1x128xf32>
    %c0_55 = arith.constant 0 : index
    %c0_56 = arith.constant 0 : index
    %c0_57 = arith.constant 0 : index
    %50 = vector.load %arg7[%c0_55, %c0_56, %c0_57] : memref<1x1x128xf32, #tpu.memory_space<vmem>>, vector<1x1x128xf32>
    %51 = vector.shape_cast %50 : vector<1x1x128xf32> to vector<1x128xf32>
    %52 = vector.shape_cast %49 : vector<1x128xf32> to vector<1x1x128xf32>
    tpu.vector_store %arg7[%c0_55, %c0_56, %c0_57], %52 {strides = array<i32>} : memref<1x1x128xf32, #tpu.memory_space<vmem>>, vector<1x1x128xf32>,
    %53 = arith.mulf %47, %47 : vector<256x128xf32>
    %cst_58 = arith.constant dense<0.000000e+00> : vector<128xf32>
    %54 = vector.multi_reduction <add>, %53, %cst_58 [0] : vector<256x128xf32> to vector<128xf32>
    %55 = vector.shape_cast %54 : vector<128xf32> to vector<1x128xf32>
    %c0_59 = arith.constant 0 : index
    %c0_60 = arith.constant 0 : index
    %c0_61 = arith.constant 0 : index
    %56 = vector.load %arg8[%c0_59, %c0_60, %c0_61] : memref<1x1x128xf32, #tpu.memory_space<vmem>>, vector<1x1x128xf32>
    %57 = vector.shape_cast %56 : vector<1x1x128xf32> to vector<1x128xf32>
    %58 = vector.shape_cast %55 : vector<1x128xf32> to vector<1x1x128xf32>
    tpu.vector_store %arg8[%c0_59, %c0_60, %c0_61], %58 {strides = array<i32>} : memref<1x1x128xf32, #tpu.memory_space<vmem>>, vector<1x1x128xf32>,
    %59 = vector.extract_strided_slice %47 {offsets = [0, 0], sizes = [256, 8], strides = [1, 1]} : vector<256x128xf32> to vector<256x8xf32>
    %c0_62 = arith.constant 0 : index
    %c0_63 = arith.constant 0 : index
    %c0_64 = arith.constant 0 : index
    %60 = vector.load %arg6[%c0_62, %c0_63, %c0_64] : memref<1x256x8xf32, #tpu.memory_space<vmem>>, vector<1x256x8xf32>
    %61 = vector.shape_cast %60 : vector<1x256x8xf32> to vector<256x8xf32>
    %62 = vector.shape_cast %59 : vector<256x8xf32> to vector<1x256x8xf32>
    tpu.vector_store %arg6[%c0_62, %c0_63, %c0_64], %62 {strides = array<i32>} : memref<1x256x8xf32, #tpu.memory_space<vmem>>, vector<1x256x8xf32>,
    return
  }
  func.func @transform_0(%arg0: i32) -> (i32, i32, i32) {
    %c0_i32 = arith.constant 0 : i32
    %c0_i32_0 = arith.constant 0 : i32
    %c0_i32_1 = arith.constant 0 : i32
    return %arg0, %c0_i32, %c0_i32_0 : i32, i32, i32
  }
  func.func @transform_1(%arg0: i32) -> (i32, i32) {
    %c0_i32 = arith.constant 0 : i32
    %c0_i32_0 = arith.constant 0 : i32
    %c0_i32_1 = arith.constant 0 : i32
    return %c0_i32, %c0_i32_0 : i32, i32
  }
  func.func @transform_2(%arg0: i32) -> (i32, i32) {
    %c0_i32 = arith.constant 0 : i32
    %c0_i32_0 = arith.constant 0 : i32
    %c0_i32_1 = arith.constant 0 : i32
    return %c0_i32, %c0_i32_0 : i32, i32
  }
  func.func @transform_3(%arg0: i32) -> (i32, i32) {
    %c0_i32 = arith.constant 0 : i32
    %c0_i32_0 = arith.constant 0 : i32
    %c0_i32_1 = arith.constant 0 : i32
    return %c0_i32, %c0_i32_0 : i32, i32
  }
  func.func @transform_4(%arg0: i32) -> (i32, i32) {
    %c0_i32 = arith.constant 0 : i32
    %c0_i32_0 = arith.constant 0 : i32
    %c0_i32_1 = arith.constant 0 : i32
    return %c0_i32, %c0_i32_0 : i32, i32
  }
  func.func @transform_5(%arg0: i32) -> (i32, i32, i32) {
    %c0_i32 = arith.constant 0 : i32
    %c0_i32_0 = arith.constant 0 : i32
    %c0_i32_1 = arith.constant 0 : i32
    return %arg0, %c0_i32, %c0_i32_0 : i32, i32, i32
  }
  func.func @transform_6(%arg0: i32) -> (i32, i32, i32) {
    %c0_i32 = arith.constant 0 : i32
    %c0_i32_0 = arith.constant 0 : i32
    %c0_i32_1 = arith.constant 0 : i32
    return %arg0, %c0_i32, %c0_i32_0 : i32, i32, i32
  }
  func.func @transform_7(%arg0: i32) -> (i32, i32, i32) {
    %c0_i32 = arith.constant 0 : i32
    %c0_i32_0 = arith.constant 0 : i32
    %c0_i32_1 = arith.constant 0 : i32
    return %arg0, %c0_i32, %c0_i32_0 : i32, i32, i32
  }
}

</mosaic_0001>

<llo_original>
// kernel: conv_block_forward.5
$region0: #{conv_block_forward.5}
  #allocation0 [shape = 'u32[]', space=smem, size = 0x4, offset = 0x4, fixed_abs, tag = 'smem constant byte address 0x4 - core index']
  #allocation1 [shape = 'u32[144,128]{1,0:T(1,128)}', space=vmem, size = 0x12000, scoped, tag = 'internal scratch']
  %s0 = inlined_call_operand.vmem [shape: f32[2,8,2,8,16], index: 0, kind: input, shape index: {}]
  %s1 = inlined_call_operand.vmem [shape: f32[1,16], index: 1, kind: input, shape index: {}]
  %s2 = inlined_call_operand.vmem [shape: f32[1,16], index: 2, kind: input, shape index: {}]
  %s3 = inlined_call_operand.vmem [shape: f32[2,8,8,8], index: 3, kind: output, shape index: {}]
  %s4 = sld [smem:[#allocation0]]
  $region45: #{conv_block_forward.5} parent=0
    _
  %s6 = ssub.s32 1, %s4
  %s7 = scalar_select 0, %s6, %s4
  loop: start=0, step=1, limit=4
  $region2: #{conv_block_forward.5} parent=0 // loop_pre_header
    _
  $region3: #{conv_block_forward.5} parent=0 // loop_header
    %s9 = sphi 0, %s13
    %p10 = scmp.ge.s32.totalorder %s9, 4
    %s19 = sphi 0, %s21
    %s22 = sphi 0, %s19
    %s23 = sphi 0, %s22
    %s39 = sphi 0, %s23
    %s43 = sphi 0, %s43
    %s45 = sphi 0, %s43
    %s46 = sphi 0, %s45
    %s60 = sphi 0, %s46
    %s64 = sphi 0, %s64
    %s66 = sphi 0, %s64
    %s67 = sphi 0, %s66
    %s81 = sphi 0, %s67
    %s87 = sphi 0, %s89
    %s90 = sphi 0, %s87
    %s91 = sphi 0, %s90
    %s107 = sphi 0, %s91
  $region4: #{conv_block_forward.5} parent=0 // loop_header_branch
    %12 = sbr.rel (%p10) target = $region8
  $region5: #{conv_block_forward.5} parent=0 // loop_body
    %s14 = ssub.s32 %s9, 1
    %s15 = ssub.s32 %s9, 2
    %s16 = sadd.s32 %s9, 1
    %s17 = ssub.s32 %s9, %s16
    %p18 = scmp.eq.s32.totalorder %s17, 0
    %s20 = sadd.s32 %s19, 1
    %s21 = scalar_select %p18, %s19, %s20
    %p24 = pneg %p18
    %p25 = scmp.eq.s32.totalorder %s9, 1
    %p26 = por %p24, %p25
    %p27 = scmp.ne.s32.totalorder %s19, %s22
    %p28 = scmp.eq.s32.totalorder %s9, 0
    %p29 = por %p27, %p28
    %p30 = scmp.ne.s32.totalorder %s19, %s22
    %p31 = scmp.eq.s32.totalorder %s14, 1
    %p32 = por %p30, %p31
    %p33 = scmp.ne.s32.totalorder %s22, %s23
    %p34 = scmp.eq.s32.totalorder %s14, 0
    %p35 = por %p33, %p34
    %p36 = scmp.ne.s32.totalorder %s22, %s23
    %p37 = scmp.eq.s32.totalorder %s15, 1
    %p38 = por %p36, %p37
    %p40 = scmp.ne.s32.totalorder %s23, %s39
    %p41 = scmp.eq.s32.totalorder %s15, 0
    %p42 = por %p40, %p41
    %s44 = sadd.s32 %s43, 1
    %p47 = scmp.eq.s32.totalorder %s9, 1
    %p48 = scmp.ne.s32.totalorder %s43, %s45
    %p49 = scmp.eq.s32.totalorder %s9, 0
    %p50 = por %p48, %p49
    %p51 = scmp.ne.s32.totalorder %s43, %s45
    %p52 = scmp.eq.s32.totalorder %s14, 1
    %p53 = por %p51, %p52
    %p54 = scmp.ne.s32.totalorder %s45, %s46
    %p55 = scmp.eq.s32.totalorder %s14, 0
    %p56 = por %p54, %p55
    %p57 = scmp.ne.s32.totalorder %s45, %s46
    %p58 = scmp.eq.s32.totalorder %s15, 1
    %p59 = por %p57, %p58
    %p61 = scmp.ne.s32.totalorder %s46, %s60
    %p62 = scmp.eq.s32.totalorder %s15, 0
    %p63 = por %p61, %p62
    %s65 = sadd.s32 %s64, 1
    %p68 = scmp.eq.s32.totalorder %s9, 1
    %p69 = scmp.ne.s32.totalorder %s64, %s66
    %p70 = scmp.eq.s32.totalorder %s9, 0
    %p71 = por %p69, %p70
    %p72 = scmp.ne.s32.totalorder %s64, %s66
    %p73 = scmp.eq.s32.totalorder %s14, 1
    %p74 = por %p72, %p73
    %p75 = scmp.ne.s32.totalorder %s66, %s67
    %p76 = scmp.eq.s32.totalorder %s14, 0
    %p77 = por %p75, %p76
    %p78 = scmp.ne.s32.totalorder %s66, %s67
    %p79 = scmp.eq.s32.totalorder %s15, 1
    %p80 = por %p78, %p79
    %p82 = scmp.ne.s32.totalorder %s67, %s81
    %p83 = scmp.eq.s32.totalorder %s15, 0
    %p84 = por %p82, %p83
    %s85 = ssub.s32 %s9, %s16
    %p86 = scmp.eq.s32.totalorder %s85, 0
    %s88 = sadd.s32 %s87, 1
    %s89 = scalar_select %p86, %s87, %s88
    %p92 = pneg %p86
    %p93 = scmp.eq.s32.totalorder %s9, 1
    %p94 = por %p92, %p93
    %p95 = scmp.ne.s32.totalorder %s87, %s90
    %p96 = scmp.eq.s32.totalorder %s9, 0
    %p97 = por %p95, %p96
    %p98 = scmp.ne.s32.totalorder %s87, %s90
    %p99 = scmp.eq.s32.totalorder %s14, 1
    %p100 = por %p98, %p99
    %p101 = scmp.ne.s32.totalorder %s90, %s91
    %p102 = scmp.eq.s32.totalorder %s14, 0
    %p103 = por %p101, %p102
    %p104 = scmp.ne.s32.totalorder %s90, %s91
    %p105 = scmp.eq.s32.totalorder %s15, 1
    %p106 = por %p104, %p105
    %p108 = scmp.ne.s32.totalorder %s91, %s107
    %p109 = scmp.eq.s32.totalorder %s15, 0
    %p110 = por %p108, %p109
    %p111 = scmp.le.s32.totalorder 1, %s9
    %p112 = scmp.lt.s32.totalorder %s9, 3
    %p113 = pnand %p111, %p112
    %p114 = pneg %p113
    // Predicated region
    $region9: #{conv_block_forward.5} parent=5 // pred_check
      _
    $region10: #{conv_block_forward.5} parent=5 // pred_check_branch
      %116 = sbr.rel (%p113) target = $region12
    $region11: #{conv_block_forward.5} parent=5 // pred_region
      %s117 = ssub.s32 %s9, 1
      // Predicated region
      $region13: #{conv_block_forward.5} parent=11 // pred_check
        %p118 = pneg %p56
      $region14: #{conv_block_forward.5} parent=11 // pred_check_branch
        %120 = sbr.rel (%p118) target = $region16
      $region15: #{conv_block_forward.5} parent=11 // pred_region
        _
      $region16: #{conv_block_forward.5} parent=11 // pred_fallthru
        _
      // Predicated region
      $region17: #{conv_block_forward.5} parent=11 // pred_check
        %p121 = pneg %p77
      $region18: #{conv_block_forward.5} parent=11 // pred_check_branch
        %123 = sbr.rel (%p121) target = $region20
      $region19: #{conv_block_forward.5} parent=11 // pred_region
        _
      $region20: #{conv_block_forward.5} parent=11 // pred_fallthru
        _
    $region12: #{conv_block_forward.5} parent=5 // pred_fallthru
      _
    %p124 = scmp.lt.s32.totalorder %s9, 2
    // Predicated region
    $region21: #{conv_block_forward.5} parent=5 // pred_check
      %p125 = pneg %p124
    $region22: #{conv_block_forward.5} parent=5 // pred_check_branch
      %127 = sbr.rel (%p125) target = $region24
    $region23: #{conv_block_forward.5} parent=5 // pred_region
      // Predicated region
      $region25: #{conv_block_forward.5} parent=23 // pred_check
        %p128 = pneg %p29
      $region26: #{conv_block_forward.5} parent=23 // pred_check_branch
        %130 = sbr.rel (%p128) target = $region28
      $region27: #{conv_block_forward.5} parent=23 // pred_region
        %p131 = scmp.lt.s32.totalorder %s9, 1
        %s132 = scalar_select %p131, %s9, 1
        %s133 = smul.addr %s132, 16
        %s134 = smul.addr %s133, 8
        %s135 = scalar_lea.vmem %s0, %s134
      $region28: #{conv_block_forward.5} parent=23 // pred_fallthru
        _
    $region24: #{conv_block_forward.5} parent=5 // pred_fallthru
      _
    %p136 = scmp.le.s32.totalorder 1, %s9
    %p137 = scmp.lt.s32.totalorder %s9, 3
    %p138 = pnand %p136, %p137
    %p139 = pneg %p138
    // Predicated region
    $region29: #{conv_block_forward.5} parent=5 // pred_check
      _
    $region30: #{conv_block_forward.5} parent=5 // pred_check_branch
      %141 = sbr.rel (%p138) target = $region32
    $region31: #{conv_block_forward.5} parent=5 // pred_region
      %s142 = ssub.s32 %s9, 1
      %p143 = scmp.lt.s32.totalorder %s14, 1
      %s144 = scalar_select %p143, %s14, 1
      %s145 = smul.addr %s144, 16
      %s146 = smul.addr %s145, 8
      %s147 = scalar_lea.vmem %s0, %s146
      %p148 = pneg %p35
      %p149 = pneg %p32
      %p150 = pneg %p56
      %p151 = pneg %p53
      %p152 = pneg %p77
      %p153 = pneg %p74
      %p154 = pneg %p103
      %p155 = pneg %p100
      %p156 = scmp.lt.s32.totalorder %s14, 1
      %s157 = scalar_select %p156, %s14, 1
      %s158 = smul.addr %s157, 8
      %s159 = smul.addr %s158, 8
      %s160 = scalar_lea.vmem %s3, %s159
      %p161 = scmp.lt.s32.totalorder %s14, 1
      %s162 = scalar_select %p161, %s14, 1
      %s163 = smul.addr %s162, 16
      %s164 = smul.addr %s163, 8
      %s165 = scalar_lea.vmem %s0, %s164
      %p166 = scmp.lt.s32.totalorder %s14, 1
      %s167 = scalar_select %p166, %s14, 1
      %s168 = smul.addr %s167, 8
      %s169 = smul.addr %s168, 8
      %s170 = scalar_lea.vmem %s3, %s169
      %v171 = vld [vmem:[%s1] sm:$0x1]
      %v172 = vld [vmem:[%s2] sm:$0x1]
      %v173 = vld [vmem:[%s165] sm:$0xff]
      %v174 = vld [vmem:[%s165 + $0x10] sm:$0xff]
      %v175 = vld [vmem:[%s165 + $0x20] sm:$0xff]
      %v176 = vld [vmem:[%s165 + $0x30] sm:$0xff]
      %v177 = vld [vmem:[%s165 + $0x40] sm:$0xff]
      %v178 = vld [vmem:[%s165 + $0x50] sm:$0xff]
      %v179 = vld [vmem:[%s165 + $0x60] sm:$0xff]
      %v180 = vld [vmem:[%s165 + $0x70] sm:$0xff]
      %v182 = vlaneseq
      %v183 = vshrl.u32 %v182, 7
      %v184 = vsub.s32 0, %v183
      %v185 = vrot.slane %v171, %v184
      %v187 = vmul.f32 %v173, %v185
      %v188 = vmul.f32 %v174, %v185
      %v189 = vmul.f32 %v175, %v185
      %v190 = vmul.f32 %v176, %v185
      %v191 = vmul.f32 %v177, %v185
      %v192 = vmul.f32 %v178, %v185
      %v193 = vmul.f32 %v179, %v185
      %v194 = vmul.f32 %v180, %v185
      %v196 = vlaneseq
      %v197 = vshrl.u32 %v196, 7
      %v198 = vsub.s32 0, %v197
      %v199 = vrot.slane %v172, %v198
      %v201 = vadd.f32 %v187, %v199
      %v202 = vadd.f32 %v188, %v199
      %v203 = vadd.f32 %v189, %v199
      %v204 = vadd.f32 %v190, %v199
      %v205 = vadd.f32 %v191, %v199
      %v206 = vadd.f32 %v192, %v199
      %v207 = vadd.f32 %v193, %v199
      %v208 = vadd.f32 %v194, %v199
      %v209 = vmax.f32 %v201, 0.0
      %v210 = vmax.f32 %v202, 0.0
      %v211 = vmax.f32 %v203, 0.0
      %v212 = vmax.f32 %v204, 0.0
      %v213 = vmax.f32 %v205, 0.0
      %v214 = vmax.f32 %v206, 0.0
      %v215 = vmax.f32 %v207, 0.0
      %v216 = vmax.f32 %v208, 0.0
      %s217 = scalar_lea.vmem %s165, 8
      %v218 = vld [vmem:[%s217] sm:$0xff]
      %v219 = vld [vmem:[%s217 + $0x10] sm:$0xff]
      %v220 = vld [vmem:[%s217 + $0x20] sm:$0xff]
      %v221 = vld [vmem:[%s217 + $0x30] sm:$0xff]
      %v222 = vld [vmem:[%s217 + $0x40] sm:$0xff]
      %v223 = vld [vmem:[%s217 + $0x50] sm:$0xff]
      %v224 = vld [vmem:[%s217 + $0x60] sm:$0xff]
      %v225 = vld [vmem:[%s217 + $0x70] sm:$0xff]
      %v226 = vmul.f32 %v218, %v185
      %v227 = vmul.f32 %v219, %v185
      %v228 = vmul.f32 %v220, %v185
      %v229 = vmul.f32 %v221, %v185
      %v230 = vmul.f32 %v222, %v185
      %v231 = vmul.f32 %v223, %v185
      %v232 = vmul.f32 %v224, %v185
      %v233 = vmul.f32 %v225, %v185
      %v234 = vadd.f32 %v226, %v199
      %v235 = vadd.f32 %v227, %v199
      %v236 = vadd.f32 %v228, %v199
      %v237 = vadd.f32 %v229, %v199
      %v238 = vadd.f32 %v230, %v199
      %v239 = vadd.f32 %v231, %v199
      %v240 = vadd.f32 %v232, %v199
      %v241 = vadd.f32 %v233, %v199
      %v242 = vmax.f32 %v234, 0.0
      %v243 = vmax.f32 %v235, 0.0
      %v244 = vmax.f32 %v236, 0.0
      %v245 = vmax.f32 %v237, 0.0
      %v246 = vmax.f32 %v238, 0.0
      %v247 = vmax.f32 %v239, 0.0
      %v248 = vmax.f32 %v240, 0.0
      %v249 = vmax.f32 %v241, 0.0
      %v250 = vadd.f32 %v209, %v242
      %v251 = vadd.f32 %v210, %v243
      %v252 = vadd.f32 %v211, %v244
      %v253 = vadd.f32 %v212, %v245
      %v254 = vadd.f32 %v213, %v246
      %v255 = vadd.f32 %v214, %v247
      %v256 = vadd.f32 %v215, %v248
      %v257 = vadd.f32 %v216, %v249
      %266 = vrot.lane.b32.xlu0 %v250, 120
      %v267 = vpop.permute.xlu0 %266
      %268 = vrot.lane.b32.xlu0 %v251, 120
      %v269 = vpop.permute.xlu0 %268
      %270 = vrot.lane.b32.xlu0 %v252, 120
      %v271 = vpop.permute.xlu0 %270
      %272 = vrot.lane.b32.xlu0 %v253, 120
      %v273 = vpop.permute.xlu0 %272
      %274 = vrot.lane.b32.xlu0 %v254, 120
      %v275 = vpop.permute.xlu0 %274
      %276 = vrot.lane.b32.xlu0 %v255, 120
      %v277 = vpop.permute.xlu0 %276
      %278 = vrot.lane.b32.xlu0 %v256, 120
      %v279 = vpop.permute.xlu0 %278
      %280 = vrot.lane.b32.xlu0 %v257, 120
      %v281 = vpop.permute.xlu0 %280
      %v290 = vadd.f32 %v250, %v267
      %v291 = vadd.f32 %v251, %v269
      %v292 = vadd.f32 %v252, %v271
      %v293 = vadd.f32 %v253, %v273
      %v294 = vadd.f32 %v254, %v275
      %v295 = vadd.f32 %v255, %v277
      %v296 = vadd.f32 %v256, %v279
      %v297 = vadd.f32 %v257, %v281
      %v298 = vmul.f32 %v290, 0.25
      %v299 = vmul.f32 %v291, 0.25
      %v300 = vmul.f32 %v292, 0.25
      %v301 = vmul.f32 %v293, 0.25
      %v302 = vmul.f32 %v294, 0.25
      %v303 = vmul.f32 %v295, 0.25
      %v304 = vmul.f32 %v296, 0.25
      %v305 = vmul.f32 %v297, 0.25
      %vm306 = vcmask 64512
      %307 = vst.msk [vmem:[%s170] sm:$0xff] %vm306, %v298
      %308 = vst.msk [vmem:[%s170 + $0x8] sm:$0xff] %vm306, %v299
      %309 = vst.msk [vmem:[%s170 + $0x10] sm:$0xff] %vm306, %v300
      %310 = vst.msk [vmem:[%s170 + $0x18] sm:$0xff] %vm306, %v301
      %311 = vst.msk [vmem:[%s170 + $0x20] sm:$0xff] %vm306, %v302
      %312 = vst.msk [vmem:[%s170 + $0x28] sm:$0xff] %vm306, %v303
      %313 = vst.msk [vmem:[%s170 + $0x30] sm:$0xff] %vm306, %v304
      %314 = vst.msk [vmem:[%s170 + $0x38] sm:$0xff] %vm306, %v305
      %p315 = scmp.lt.s32.totalorder %s14, 1
      %s316 = scalar_select %p315, %s14, 1
      %s317 = smul.addr %s316, 8
      %s318 = smul.addr %s317, 8
      %s319 = scalar_lea.vmem %s3, %s318
      // Predicated region
      $region33: #{conv_block_forward.5} parent=31 // pred_check
        %p320 = pneg %p100
      $region34: #{conv_block_forward.5} parent=31 // pred_check_branch
        %322 = sbr.rel (%p320) target = $region36
      $region35: #{conv_block_forward.5} parent=31 // pred_region
        _
      $region36: #{conv_block_forward.5} parent=31 // pred_fallthru
        _
    $region32: #{conv_block_forward.5} parent=5 // pred_fallthru
      _
    %p323 = scmp.le.s32.totalorder 2, %s9
    // Predicated region
    $region37: #{conv_block_forward.5} parent=5 // pred_check
      %p324 = pneg %p323
    $region38: #{conv_block_forward.5} parent=5 // pred_check_branch
      %326 = sbr.rel (%p324) target = $region40
    $region39: #{conv_block_forward.5} parent=5 // pred_region
      %s327 = ssub.s32 %s9, 2
      // Predicated region
      $region41: #{conv_block_forward.5} parent=39 // pred_check
        %p328 = pneg %p106
      $region42: #{conv_block_forward.5} parent=39 // pred_check_branch
        %330 = sbr.rel (%p328) target = $region44
      $region43: #{conv_block_forward.5} parent=39 // pred_region
        %p331 = scmp.lt.s32.totalorder %s15, 1
        %s332 = scalar_select %p331, %s15, 1
        %s333 = smul.addr %s332, 8
        %s334 = smul.addr %s333, 8
        %s335 = scalar_lea.vmem %s3, %s334
      $region44: #{conv_block_forward.5} parent=39 // pred_fallthru
        _
    $region40: #{conv_block_forward.5} parent=5 // pred_fallthru
      _
  $region6: #{conv_block_forward.5} parent=0 // loop_footer
    %s13 = sadd.s32 1, %s9
  $region7: #{conv_block_forward.5} parent=0 // loop_footer_branch
    %8 = sbr.rel target = $region3
  $region8: #{conv_block_forward.5} parent=0 // loop_exit
    _

// kernel: conv_block_forward.4
$region0: #{conv_block_forward.4}
  #allocation0 [shape = 'u32[]', space=smem, size = 0x4, offset = 0x4, fixed_abs, tag = 'smem constant byte address 0x4 - core index']
  #allocation1 [shape = 'u32[144,128]{1,0:T(1,128)}', space=vmem, size = 0x12000, scoped, tag = 'internal scratch']
  #allocation2 [shape = 'f32[18,18,128]{2,1,0:T(8,128)}', space=vmem, size = 0x36000, scoped, tag = 'scratch operand']
  #allocation3 [shape = 'f32[256,1152]{1,0:T(8,128)}', space=vmem, size = 0x120000, scoped, tag = 'scratch operand']
  %s0 = inlined_call_operand.vmem [shape: f32[2,256,8], index: 0, kind: input, shape index: {}]
  %s1 = inlined_call_operand.vmem [shape: f32[8,128], index: 1, kind: input, shape index: {}]
  %s2 = inlined_call_operand.vmem [shape: f32[1,128], index: 2, kind: input, shape index: {}]
  %s3 = inlined_call_operand.vmem [shape: f32[1152,128], index: 3, kind: input, shape index: {}]
  %s4 = inlined_call_operand.vmem [shape: f32[1,128], index: 4, kind: input, shape index: {}]
  %s5 = inlined_call_operand.vmem [shape: f32[2,256,8], index: 5, kind: output, shape index: {0}]
  %s6 = inlined_call_operand.vmem [shape: f32[2,1,128], index: 6, kind: output, shape index: {1}]
  %s7 = inlined_call_operand.vmem [shape: f32[2,1,128], index: 7, kind: output, shape index: {2}]
  %8 = xla_tuple %s5, %s6, %s7
  %s9 = sld [smem:[#allocation0]]
  $region69: #{conv_block_forward.4} parent=0
    _
  %s11 = ssub.s32 1, %s9
  %s12 = scalar_select 0, %s11, %s9
  loop: start=0, step=1, limit=4
  $region2: #{conv_block_forward.4} parent=0 // loop_pre_header
    _
  $region3: #{conv_block_forward.4} parent=0 // loop_header
    %s14 = sphi 0, %s18
    %p15 = scmp.ge.s32.totalorder %s14, 4
    %s24 = sphi 0, %s26
    %s27 = sphi 0, %s24
    %s28 = sphi 0, %s27
    %s44 = sphi 0, %s28
    %s48 = sphi 0, %s48
    %s50 = sphi 0, %s48
    %s51 = sphi 0, %s50
    %s65 = sphi 0, %s51
    %s69 = sphi 0, %s69
    %s71 = sphi 0, %s69
    %s72 = sphi 0, %s71
    %s86 = sphi 0, %s72
    %s90 = sphi 0, %s90
    %s92 = sphi 0, %s90
    %s93 = sphi 0, %s92
    %s107 = sphi 0, %s93
    %s111 = sphi 0, %s111
    %s113 = sphi 0, %s111
    %s114 = sphi 0, %s113
    %s128 = sphi 0, %s114
    %s134 = sphi 0, %s136
    %s137 = sphi 0, %s134
    %s138 = sphi 0, %s137
    %s154 = sphi 0, %s138
    %s160 = sphi 0, %s162
    %s163 = sphi 0, %s160
    %s164 = sphi 0, %s163
    %s180 = sphi 0, %s164
    %s186 = sphi 0, %s188
    %s189 = sphi 0, %s186
    %s190 = sphi 0, %s189
    %s206 = sphi 0, %s190
  $region4: #{conv_block_forward.4} parent=0 // loop_header_branch
    %17 = sbr.rel (%p15) target = $region8
  $region5: #{conv_block_forward.4} parent=0 // loop_body
    %s19 = ssub.s32 %s14, 1
    %s20 = ssub.s32 %s14, 2
    %s21 = sadd.s32 %s14, 1
    %s22 = ssub.s32 %s14, %s21
    %p23 = scmp.eq.s32.totalorder %s22, 0
    %s25 = sadd.s32 %s24, 1
    %s26 = scalar_select %p23, %s24, %s25
    %p29 = pneg %p23
    %p30 = scmp.eq.s32.totalorder %s14, 1
    %p31 = por %p29, %p30
    %p32 = scmp.ne.s32.totalorder %s24, %s27
    %p33 = scmp.eq.s32.totalorder %s14, 0
    %p34 = por %p32, %p33
    %p35 = scmp.ne.s32.totalorder %s24, %s27
    %p36 = scmp.eq.s32.totalorder %s19, 1
    %p37 = por %p35, %p36
    %p38 = scmp.ne.s32.totalorder %s27, %s28
    %p39 = scmp.eq.s32.totalorder %s19, 0
    %p40 = por %p38, %p39
    %p41 = scmp.ne.s32.totalorder %s27, %s28
    %p42 = scmp.eq.s32.totalorder %s20, 1
    %p43 = por %p41, %p42
    %p45 = scmp.ne.s32.totalorder %s28, %s44
    %p46 = scmp.eq.s32.totalorder %s20, 0
    %p47 = por %p45, %p46
    %s49 = sadd.s32 %s48, 1
    %p52 = scmp.eq.s32.totalorder %s14, 1
    %p53 = scmp.ne.s32.totalorder %s48, %s50
    %p54 = scmp.eq.s32.totalorder %s14, 0
    %p55 = por %p53, %p54
    %p56 = scmp.ne.s32.totalorder %s48, %s50
    %p57 = scmp.eq.s32.totalorder %s19, 1
    %p58 = por %p56, %p57
    %p59 = scmp.ne.s32.totalorder %s50, %s51
    %p60 = scmp.eq.s32.totalorder %s19, 0
    %p61 = por %p59, %p60
    %p62 = scmp.ne.s32.totalorder %s50, %s51
    %p63 = scmp.eq.s32.totalorder %s20, 1
    %p64 = por %p62, %p63
    %p66 = scmp.ne.s32.totalorder %s51, %s65
    %p67 = scmp.eq.s32.totalorder %s20, 0
    %p68 = por %p66, %p67
    %s70 = sadd.s32 %s69, 1
    %p73 = scmp.eq.s32.totalorder %s14, 1
    %p74 = scmp.ne.s32.totalorder %s69, %s71
    %p75 = scmp.eq.s32.totalorder %s14, 0
    %p76 = por %p74, %p75
    %p77 = scmp.ne.s32.totalorder %s69, %s71
    %p78 = scmp.eq.s32.totalorder %s19, 1
    %p79 = por %p77, %p78
    %p80 = scmp.ne.s32.totalorder %s71, %s72
    %p81 = scmp.eq.s32.totalorder %s19, 0
    %p82 = por %p80, %p81
    %p83 = scmp.ne.s32.totalorder %s71, %s72
    %p84 = scmp.eq.s32.totalorder %s20, 1
    %p85 = por %p83, %p84
    %p87 = scmp.ne.s32.totalorder %s72, %s86
    %p88 = scmp.eq.s32.totalorder %s20, 0
    %p89 = por %p87, %p88
    %s91 = sadd.s32 %s90, 1
    %p94 = scmp.eq.s32.totalorder %s14, 1
    %p95 = scmp.ne.s32.totalorder %s90, %s92
    %p96 = scmp.eq.s32.totalorder %s14, 0
    %p97 = por %p95, %p96
    %p98 = scmp.ne.s32.totalorder %s90, %s92
    %p99 = scmp.eq.s32.totalorder %s19, 1
    %p100 = por %p98, %p99
    %p101 = scmp.ne.s32.totalorder %s92, %s93
    %p102 = scmp.eq.s32.totalorder %s19, 0
    %p103 = por %p101, %p102
    %p104 = scmp.ne.s32.totalorder %s92, %s93
    %p105 = scmp.eq.s32.totalorder %s20, 1
    %p106 = por %p104, %p105
    %p108 = scmp.ne.s32.totalorder %s93, %s107
    %p109 = scmp.eq.s32.totalorder %s20, 0
    %p110 = por %p108, %p109
    %s112 = sadd.s32 %s111, 1
    %p115 = scmp.eq.s32.totalorder %s14, 1
    %p116 = scmp.ne.s32.totalorder %s111, %s113
    %p117 = scmp.eq.s32.totalorder %s14, 0
    %p118 = por %p116, %p117
    %p119 = scmp.ne.s32.totalorder %s111, %s113
    %p120 = scmp.eq.s32.totalorder %s19, 1
    %p121 = por %p119, %p120
    %p122 = scmp.ne.s32.totalorder %s113, %s114
    %p123 = scmp.eq.s32.totalorder %s19, 0
    %p124 = por %p122, %p123
    %p125 = scmp.ne.s32.totalorder %s113, %s114
    %p126 = scmp.eq.s32.totalorder %s20, 1
    %p127 = por %p125, %p126
    %p129 = scmp.ne.s32.totalorder %s114, %s128
    %p130 = scmp.eq.s32.totalorder %s20, 0
    %p131 = por %p129, %p130
    %s132 = ssub.s32 %s14, %s21
    %p133 = scmp.eq.s32.totalorder %s132, 0
    %s135 = sadd.s32 %s134, 1
    %s136 = scalar_select %p133, %s134, %s135
    %p139 = pneg %p133
    %p140 = scmp.eq.s32.totalorder %s14, 1
    %p141 = por %p139, %p140
    %p142 = scmp.ne.s32.totalorder %s134, %s137
    %p143 = scmp.eq.s32.totalorder %s14, 0
    %p144 = por %p142, %p143
    %p145 = scmp.ne.s32.totalorder %s134, %s137
    %p146 = scmp.eq.s32.totalorder %s19, 1
    %p147 = por %p145, %p146
    %p148 = scmp.ne.s32.totalorder %s137, %s138
    %p149 = scmp.eq.s32.totalorder %s19, 0
    %p150 = por %p148, %p149
    %p151 = scmp.ne.s32.totalorder %s137, %s138
    %p152 = scmp.eq.s32.totalorder %s20, 1
    %p153 = por %p151, %p152
    %p155 = scmp.ne.s32.totalorder %s138, %s154
    %p156 = scmp.eq.s32.totalorder %s20, 0
    %p157 = por %p155, %p156
    %s158 = ssub.s32 %s14, %s21
    %p159 = scmp.eq.s32.totalorder %s158, 0
    %s161 = sadd.s32 %s160, 1
    %s162 = scalar_select %p159, %s160, %s161
    %p165 = pneg %p159
    %p166 = scmp.eq.s32.totalorder %s14, 1
    %p167 = por %p165, %p166
    %p168 = scmp.ne.s32.totalorder %s160, %s163
    %p169 = scmp.eq.s32.totalorder %s14, 0
    %p170 = por %p168, %p169
    %p171 = scmp.ne.s32.totalorder %s160, %s163
    %p172 = scmp.eq.s32.totalorder %s19, 1
    %p173 = por %p171, %p172
    %p174 = scmp.ne.s32.totalorder %s163, %s164
    %p175 = scmp.eq.s32.totalorder %s19, 0
    %p176 = por %p174, %p175
    %p177 = scmp.ne.s32.totalorder %s163, %s164
    %p178 = scmp.eq.s32.totalorder %s20, 1
    %p179 = por %p177, %p178
    %p181 = scmp.ne.s32.totalorder %s164, %s180
    %p182 = scmp.eq.s32.totalorder %s20, 0
    %p183 = por %p181, %p182
    %s184 = ssub.s32 %s14, %s21
    %p185 = scmp.eq.s32.totalorder %s184, 0
    %s187 = sadd.s32 %s186, 1
    %s188 = scalar_select %p185, %s186, %s187
    %p191 = pneg %p185
    %p192 = scmp.eq.s32.totalorder %s14, 1
    %p193 = por %p191, %p192
    %p194 = scmp.ne.s32.totalorder %s186, %s189
    %p195 = scmp.eq.s32.totalorder %s14, 0
    %p196 = por %p194, %p195
    %p197 = scmp.ne.s32.totalorder %s186, %s189
    %p198 = scmp.eq.s32.totalorder %s19, 1
    %p199 = por %p197, %p198
    %p200 = scmp.ne.s32.totalorder %s189, %s190
    %p201 = scmp.eq.s32.totalorder %s19, 0
    %p202 = por %p200, %p201
    %p203 = scmp.ne.s32.totalorder %s189, %s190
    %p204 = scmp.eq.s32.totalorder %s20, 1
    %p205 = por %p203, %p204
    %p207 = scmp.ne.s32.totalorder %s190, %s206
    %p208 = scmp.eq.s32.totalorder %s20, 0
    %p209 = por %p207, %p208
    %p210 = scmp.le.s32.totalorder 1, %s14
    %p211 = scmp.lt.s32.totalorder %s14, 3
    %p212 = pnand %p210, %p211
    %p213 = pneg %p212
    // Predicated region
    $region9: #{conv_block_forward.4} parent=5 // pred_check
      _
    $region10: #{conv_block_forward.4} parent=5 // pred_check_branch
      %215 = sbr.rel (%p212) target = $region12
    $region11: #{conv_block_forward.4} parent=5 // pred_region
      %s216 = ssub.s32 %s14, 1
      // Predicated region
      $region13: #{conv_block_forward.4} parent=11 // pred_check
        %p217 = pneg %p61
      $region14: #{conv_block_forward.4} parent=11 // pred_check_branch
        %219 = sbr.rel (%p217) target = $region16
      $region15: #{conv_block_forward.4} parent=11 // pred_region
        _
      $region16: #{conv_block_forward.4} parent=11 // pred_fallthru
        _
      // Predicated region
      $region17: #{conv_block_forward.4} parent=11 // pred_check
        %p220 = pneg %p82
      $region18: #{conv_block_forward.4} parent=11 // pred_check_branch
        %222 = sbr.rel (%p220) target = $region20
      $region19: #{conv_block_forward.4} parent=11 // pred_region
        _
      $region20: #{conv_block_forward.4} parent=11 // pred_fallthru
        _
      // Predicated region
      $region21: #{conv_block_forward.4} parent=11 // pred_check
        %p223 = pneg %p103
      $region22: #{conv_block_forward.4} parent=11 // pred_check_branch
        %225 = sbr.rel (%p223) target = $region24
      $region23: #{conv_block_forward.4} parent=11 // pred_region
        _
      $region24: #{conv_block_forward.4} parent=11 // pred_fallthru
        _
      // Predicated region
      $region25: #{conv_block_forward.4} parent=11 // pred_check
        %p226 = pneg %p124
      $region26: #{conv_block_forward.4} parent=11 // pred_check_branch
        %228 = sbr.rel (%p226) target = $region28
      $region27: #{conv_block_forward.4} parent=11 // pred_region
        _
      $region28: #{conv_block_forward.4} parent=11 // pred_fallthru
        _
    $region12: #{conv_block_forward.4} parent=5 // pred_fallthru
      _
    %p229 = scmp.lt.s32.totalorder %s14, 2
    // Predicated region
    $region29: #{conv_block_forward.4} parent=5 // pred_check
      %p230 = pneg %p229
    $region30: #{conv_block_forward.4} parent=5 // pred_check_branch
      %232 = sbr.rel (%p230) target = $region32
    $region31: #{conv_block_forward.4} parent=5 // pred_region
      // Predicated region
      $region33: #{conv_block_forward.4} parent=31 // pred_check
        %p233 = pneg %p34
      $region34: #{conv_block_forward.4} parent=31 // pred_check_branch
        %235 = sbr.rel (%p233) target = $region36
      $region35: #{conv_block_forward.4} parent=31 // pred_region
        %p236 = scmp.lt.s32.totalorder %s14, 1
        %s237 = scalar_select %p236, %s14, 1
        %s238 = smul.addr %s237, 32
        %s239 = smul.addr %s238, 8
        %s240 = scalar_lea.vmem %s0, %s239
      $region36: #{conv_block_forward.4} parent=31 // pred_fallthru
        _
    $region32: #{conv_block_forward.4} parent=5 // pred_fallthru
      _
    %p241 = scmp.le.s32.totalorder 1, %s14
    %p242 = scmp.lt.s32.totalorder %s14, 3
    %p243 = pnand %p241, %p242
    %p244 = pneg %p243
    // Predicated region
    $region37: #{conv_block_forward.4} parent=5 // pred_check
      _
    $region38: #{conv_block_forward.4} parent=5 // pred_check_branch
      %246 = sbr.rel (%p243) target = $region40
    $region39: #{conv_block_forward.4} parent=5 // pred_region
      %s247 = ssub.s32 %s14, 1
      %p248 = scmp.lt.s32.totalorder %s19, 1
      %s249 = scalar_select %p248, %s19, 1
      %s250 = smul.addr %s249, 32
      %s251 = smul.addr %s250, 8
      %s252 = scalar_lea.vmem %s0, %s251
      %p253 = pneg %p40
      %p254 = pneg %p37
      %p255 = pneg %p61
      %p256 = pneg %p58
      %p257 = pneg %p82
      %p258 = pneg %p79
      %p259 = pneg %p103
      %p260 = pneg %p100
      %p261 = pneg %p124
      %p262 = pneg %p121
      %p263 = pneg %p150
      %p264 = pneg %p147
      %p265 = scmp.lt.s32.totalorder %s19, 1
      %s266 = scalar_select %p265, %s19, 1
      %s267 = smul.addr %s266, 32
      %s268 = smul.addr %s267, 8
      %s269 = scalar_lea.vmem %s5, %s268
      %p270 = pneg %p176
      %p271 = pneg %p173
      %p272 = scmp.lt.s32.totalorder %s19, 1
      %s273 = scalar_select %p272, %s19, 1
      %s274 = scalar_lea.vmem %s6, %s273
      %p275 = pneg %p202
      %p276 = pneg %p199
      %p277 = scmp.lt.s32.totalorder %s19, 1
      %s278 = scalar_select %p277, %s19, 1
      %s279 = scalar_lea.vmem %s7, %s278
      %p280 = scmp.lt.s32.totalorder %s19, 1
      %s281 = scalar_select %p280, %s19, 1
      %s282 = smul.addr %s281, 32
      %s283 = smul.addr %s282, 8
      %s284 = scalar_lea.vmem %s0, %s283
      %p285 = scmp.lt.s32.totalorder %s19, 1
      %s286 = scalar_select %p285, %s19, 1
      %s287 = smul.addr %s286, 32
      %s288 = smul.addr %s287, 8
      %s289 = scalar_lea.vmem %s5, %s288
      %p290 = scmp.lt.s32.totalorder %s19, 1
      %s291 = scalar_select %p290, %s19, 1
      %s292 = scalar_lea.vmem %s6, %s291
      %p293 = scmp.lt.s32.totalorder %s19, 1
      %s294 = scalar_select %p293, %s19, 1
      %s295 = scalar_lea.vmem %s7, %s294
      %v296 = vld [vmem:[%s284] sm:$0xff]
      %v297 = vld [vmem:[%s284 + $0x8] sm:$0xff]
      %v298 = vld [vmem:[%s284 + $0x10] sm:$0xff]
      %v299 = vld [vmem:[%s284 + $0x18] sm:$0xff]
      %v300 = vld [vmem:[%s284 + $0x20] sm:$0xff]
      %v301 = vld [vmem:[%s284 + $0x28] sm:$0xff]
      %v302 = vld [vmem:[%s284 + $0x30] sm:$0xff]
      %v303 = vld [vmem:[%s284 + $0x38] sm:$0xff]
      %v304 = vld [vmem:[%s284 + $0x40] sm:$0xff]
      %v305 = vld [vmem:[%s284 + $0x48] sm:$0xff]
      %v306 = vld [vmem:[%s284 + $0x50] sm:$0xff]
      %v307 = vld [vmem:[%s284 + $0x58] sm:$0xff]
      %v308 = vld [vmem:[%s284 + $0x60] sm:$0xff]
      %v309 = vld [vmem:[%s284 + $0x68] sm:$0xff]
      %v310 = vld [vmem:[%s284 + $0x70] sm:$0xff]
      %v311 = vld [vmem:[%s284 + $0x78] sm:$0xff]
      %v312 = vld [vmem:[%s284 + $0x80] sm:$0xff]
      %v313 = vld [vmem:[%s284 + $0x88] sm:$0xff]
      %v314 = vld [vmem:[%s284 + $0x90] sm:$0xff]
      %v315 = vld [vmem:[%s284 + $0x98] sm:$0xff]
      %v316 = vld [vmem:[%s284 + $0xa0] sm:$0xff]
      %v317 = vld [vmem:[%s284 + $0xa8] sm:$0xff]
      %v318 = vld [vmem:[%s284 + $0xb0] sm:$0xff]
      %v319 = vld [vmem:[%s284 + $0xb8] sm:$0xff]
      %v320 = vld [vmem:[%s284 + $0xc0] sm:$0xff]
      %v321 = vld [vmem:[%s284 + $0xc8] sm:$0xff]
      %v322 = vld [vmem:[%s284 + $0xd0] sm:$0xff]
      %v323 = vld [vmem:[%s284 + $0xd8] sm:$0xff]
      %v324 = vld [vmem:[%s284 + $0xe0] sm:$0xff]
      %v325 = vld [vmem:[%s284 + $0xe8] sm:$0xff]
      %v326 = vld [vmem:[%s284 + $0xf0] sm:$0xff]
      %v327 = vld [vmem:[%s284 + $0xf8] sm:$0xff]
      %v328 = vld [vmem:[%s1] sm:$0xff]
      %v329 = vld [vmem:[%s2] sm:$0x1]
      %v331 = vlaneseq
      %v332 = vshrl.u32 %v331, 7
      %v333 = vsub.s32 0, %v332
      %v334 = vrot.slane %v329, %v333
      %vm336 = vcmask 64512
      %v338 = vsel %vm336, %v296, 0
      %v341 = vsel %vm336, %v297, 0
      %v344 = vsel %vm336, %v298, 0
      %v347 = vsel %vm336, %v299, 0
      %v350 = vsel %vm336, %v300, 0
      %v353 = vsel %vm336, %v301, 0
      %v356 = vsel %vm336, %v302, 0
      %v359 = vsel %vm336, %v303, 0
      %v362 = vsel %vm336, %v304, 0
      %v365 = vsel %vm336, %v305, 0
      %v368 = vsel %vm336, %v306, 0
      %v371 = vsel %vm336, %v307, 0
      %v374 = vsel %vm336, %v308, 0
      %v377 = vsel %vm336, %v309, 0
      %v380 = vsel %vm336, %v310, 0
      %v383 = vsel %vm336, %v311, 0
      %v386 = vsel %vm336, %v312, 0
      %v389 = vsel %vm336, %v313, 0
      %v392 = vsel %vm336, %v314, 0
      %v395 = vsel %vm336, %v315, 0
      %v398 = vsel %vm336, %v316, 0
      %v401 = vsel %vm336, %v317, 0
      %v404 = vsel %vm336, %v318, 0
      %v407 = vsel %vm336, %v319, 0
      %v410 = vsel %vm336, %v320, 0
      %v413 = vsel %vm336, %v321, 0
      %v416 = vsel %vm336, %v322, 0
      %v419 = vsel %vm336, %v323, 0
      %v422 = vsel %vm336, %v324, 0
      %v425 = vsel %vm336, %v325, 0
      %v428 = vsel %vm336, %v326, 0
      %v431 = vsel %vm336, %v327, 0
      %433 = vmatprep.subr.mxu0 0.0
      %434 = vmatpush1.msra.mxu0 %v328
      %435 = vmatprep.subr.mxu0 0.0
      %436 = vmatpush1.msra.mxu0 0.0
      %437 = vmatprep.subr.mxu0 0.0
      %438 = vmatpush1.msra.mxu0 0.0
      %439 = vmatprep.subr.mxu0 0.0
      %440 = vmatpush1.msra.mxu0 0.0
      %441 = vmatprep.subr.mxu0 0.0
      %442 = vmatpush1.msra.mxu0 0.0
      %443 = vmatprep.subr.mxu0 0.0
      %444 = vmatpush1.msra.mxu0 0.0
      %445 = vmatprep.subr.mxu0 0.0
      %446 = vmatpush1.msra.mxu0 0.0
      %447 = vmatprep.subr.mxu0 0.0
      %448 = vmatpush1.msra.mxu0 0.0
      %449 = vmatprep.subr.mxu0 0.0
      %450 = vmatpush1.msra.mxu0 0.0
      %451 = vmatprep.subr.mxu0 0.0
      %452 = vmatpush1.msra.mxu0 0.0
      %453 = vmatprep.subr.mxu0 0.0
      %454 = vmatpush1.msra.mxu0 0.0
      %455 = vmatprep.subr.mxu0 0.0
      %456 = vmatpush1.msra.mxu0 0.0
      %457 = vmatprep.subr.mxu0 0.0
      %458 = vmatpush1.msra.mxu0 0.0
      %459 = vmatprep.subr.mxu0 0.0
      %460 = vmatpush1.msra.mxu0 0.0
      %461 = vmatprep.subr.mxu0 0.0
      %462 = vmatpush1.msra.mxu0 0.0
      %463 = vmatprep.subr.mxu0 0.0
      %464 = vmatpush1.msra.mxu0 0.0
      %465 = vmatprep.subr.mxu0 0.0
      %466 = vmatpush1.msra.mxu0 0.0
      %467 = vmatprep.subr.mxu0 0.0
      %468 = vmatpush1.msra.mxu0 0.0
      %469 = vmatprep.subr.mxu0 0.0
      %470 = vmatpush1.msra.mxu0 0.0
      %471 = vmatprep.subr.mxu0 0.0
      %472 = vmatpush1.msra.mxu0 0.0
      %473 = vmatprep.subr.mxu0 0.0
      %474 = vmatpush1.msra.mxu0 0.0
      %475 = vmatprep.subr.mxu0 0.0
      %476 = vmatpush1.msra.mxu0 0.0
      %477 = vmatprep.subr.mxu0 0.0
      %478 = vmatpush1.msra.mxu0 0.0
      %479 = vmatprep.subr.mxu0 0.0
      %480 = vmatpush1.msra.mxu0 0.0
      %481 = vmatprep.subr.mxu0 0.0
      %482 = vmatpush1.msra.mxu0 0.0
      %483 = vmatprep.subr.mxu0 0.0
      %484 = vmatpush1.msra.mxu0 0.0
      %485 = vmatprep.subr.mxu0 0.0
      %486 = vmatpush1.msra.mxu0 0.0
      %487 = vmatprep.subr.mxu0 0.0
      %488 = vmatpush1.msra.mxu0 0.0
      %489 = vmatprep.subr.mxu0 0.0
      %490 = vmatpush1.msra.mxu0 0.0
      %491 = vmatprep.subr.mxu0 0.0
      %492 = vmatpush1.msra.mxu0 0.0
      %493 = vmatprep.subr.mxu0 0.0
      %494 = vmatpush1.msra.mxu0 0.0
      %495 = vmatprep.subr.mxu0 0.0
      %496 = vmatpush1.msra.mxu0 0.0
      %497 = vmatprep.mubr.f32.mxu0 0.0
      %498 = vmatmul.mubr.f32.gmra.mrb[0].mxu0 %v338
      %v499 = vpop.f32.mrb[0].mxu0
      %v500 = vadd.f32 %v334, %v499
      %v501 = vpop.f32.mrb[0].mxu0
      %502 = vmatprep.mubr.f32.mxu0 0.0
      %503 = vmatmul.mubr.f32.gmra.mrb[0].mxu0 %v341
      %v504 = vpop.f32.mrb[0].mxu0
      %v505 = vadd.f32 %v334, %v504
      %v506 = vpop.f32.mrb[0].mxu0
      %507 = vmatprep.mubr.f32.mxu0 0.0
      %508 = vmatmul.mubr.f32.gmra.mrb[0].mxu0 %v344
      %v509 = vpop.f32.mrb[0].mxu0
      %v510 = vadd.f32 %v334, %v509
      %v511 = vpop.f32.mrb[0].mxu0
      %512 = vmatprep.mubr.f32.mxu0 0.0
      %513 = vmatmul.mubr.f32.gmra.mrb[0].mxu0 %v347
      %v514 = vpop.f32.mrb[0].mxu0
      %v515 = vadd.f32 %v334, %v514
      %v516 = vpop.f32.mrb[0].mxu0
      %517 = vmatprep.mubr.f32.mxu0 0.0
      %518 = vmatmul.mubr.f32.gmra.mrb[0].mxu0 %v350
      %v519 = vpop.f32.mrb[0].mxu0
      %v520 = vadd.f32 %v334, %v519
      %v521 = vpop.f32.mrb[0].mxu0
      %522 = vmatprep.mubr.f32.mxu0 0.0
      %523 = vmatmul.mubr.f32.gmra.mrb[0].mxu0 %v353
      %v524 = vpop.f32.mrb[0].mxu0
      %v525 = vadd.f32 %v334, %v524
      %v526 = vpop.f32.mrb[0].mxu0
      %527 = vmatprep.mubr.f32.mxu0 0.0
      %528 = vmatmul.mubr.f32.gmra.mrb[0].mxu0 %v356
      %v529 = vpop.f32.mrb[0].mxu0
      %v530 = vadd.f32 %v334, %v529
      %v531 = vpop.f32.mrb[0].mxu0
      %532 = vmatprep.mubr.f32.mxu0 0.0
      %533 = vmatmul.mubr.f32.gmra.mrb[0].mxu0 %v359
      %v534 = vpop.f32.mrb[0].mxu0
      %v535 = vadd.f32 %v334, %v534
      %v536 = vpop.f32.mrb[0].mxu0
      %537 = vmatprep.mubr.f32.mxu0 0.0
      %538 = vmatmul.mubr.f32.gmra.mrb[0].mxu0 %v362
      %v539 = vpop.f32.mrb[0].mxu0
      %v540 = vadd.f32 %v334, %v539
      %v541 = vpop.f32.mrb[0].mxu0
      %542 = vmatprep.mubr.f32.mxu0 0.0
      %543 = vmatmul.mubr.f32.gmra.mrb[0].mxu0 %v365
      %v544 = vpop.f32.mrb[0].mxu0
      %v545 = vadd.f32 %v334, %v544
      %v546 = vpop.f32.mrb[0].mxu0
      %547 = vmatprep.mubr.f32.mxu0 0.0
      %548 = vmatmul.mubr.f32.gmra.mrb[0].mxu0 %v368
      %v549 = vpop.f32.mrb[0].mxu0
      %v550 = vadd.f32 %v334, %v549
      %v551 = vpop.f32.mrb[0].mxu0
      %552 = vmatprep.mubr.f32.mxu0 0.0
      %553 = vmatmul.mubr.f32.gmra.mrb[0].mxu0 %v371
      %v554 = vpop.f32.mrb[0].mxu0
      %v555 = vadd.f32 %v334, %v554
      %v556 = vpop.f32.mrb[0].mxu0
      %557 = vmatprep.mubr.f32.mxu0 0.0
      %558 = vmatmul.mubr.f32.gmra.mrb[0].mxu0 %v374
      %v559 = vpop.f32.mrb[0].mxu0
      %v560 = vadd.f32 %v334, %v559
      %v561 = vpop.f32.mrb[0].mxu0
      %562 = vmatprep.mubr.f32.mxu0 0.0
      %563 = vmatmul.mubr.f32.gmra.mrb[0].mxu0 %v377
      %v564 = vpop.f32.mrb[0].mxu0
      %v565 = vadd.f32 %v334, %v564
      %v566 = vpop.f32.mrb[0].mxu0
      %567 = vmatprep.mubr.f32.mxu0 0.0
      %568 = vmatmul.mubr.f32.gmra.mrb[0].mxu0 %v380
      %v569 = vpop.f32.mrb[0].mxu0
      %v570 = vadd.f32 %v334, %v569
      %v571 = vpop.f32.mrb[0].mxu0
      %572 = vmatprep.mubr.f32.mxu0 0.0
      %573 = vmatmul.mubr.f32.gmra.mrb[0].mxu0 %v383
      %v574 = vpop.f32.mrb[0].mxu0
      %v575 = vadd.f32 %v334, %v574
      %v576 = vpop.f32.mrb[0].mxu0
      %577 = vmatprep.mubr.f32.mxu0 0.0
      %578 = vmatmul.mubr.f32.gmra.mrb[0].mxu0 %v386
      %v579 = vpop.f32.mrb[0].mxu0
      %v580 = vadd.f32 %v334, %v579
      %v581 = vpop.f32.mrb[0].mxu0
      %582 = vmatprep.mubr.f32.mxu0 0.0
      %583 = vmatmul.mubr.f32.gmra.mrb[0].mxu0 %v389
      %v584 = vpop.f32.mrb[0].mxu0
      %v585 = vadd.f32 %v334, %v584
      %v586 = vpop.f32.mrb[0].mxu0
      %587 = vmatprep.mubr.f32.mxu0 0.0
      %588 = vmatmul.mubr.f32.gmra.mrb[0].mxu0 %v392
      %v589 = vpop.f32.mrb[0].mxu0
      %v590 = vadd.f32 %v334, %v589
      %v591 = vpop.f32.mrb[0].mxu0
      %592 = vmatprep.mubr.f32.mxu0 0.0
      %593 = vmatmul.mubr.f32.gmra.mrb[0].mxu0 %v395
      %v594 = vpop.f32.mrb[0].mxu0
      %v595 = vadd.f32 %v334, %v594
      %v596 = vpop.f32.mrb[0].mxu0
      %597 = vmatprep.mubr.f32.mxu0 0.0
      %598 = vmatmul.mubr.f32.gmra.mrb[0].mxu0 %v398
      %v599 = vpop.f32.mrb[0].mxu0
      %v600 = vadd.f32 %v334, %v599
      %v601 = vpop.f32.mrb[0].mxu0
      %602 = vmatprep.mubr.f32.mxu0 0.0
      %603 = vmatmul.mubr.f32.gmra.mrb[0].mxu0 %v401
      %v604 = vpop.f32.mrb[0].mxu0
      %v605 = vadd.f32 %v334, %v604
      %v606 = vpop.f32.mrb[0].mxu0
      %607 = vmatprep.mubr.f32.mxu0 0.0
      %608 = vmatmul.mubr.f32.gmra.mrb[0].mxu0 %v404
      %v609 = vpop.f32.mrb[0].mxu0
      %v610 = vadd.f32 %v334, %v609
      %v611 = vpop.f32.mrb[0].mxu0
      %612 = vmatprep.mubr.f32.mxu0 0.0
      %613 = vmatmul.mubr.f32.gmra.mrb[0].mxu0 %v407
      %v614 = vpop.f32.mrb[0].mxu0
      %v615 = vadd.f32 %v334, %v614
      %v616 = vpop.f32.mrb[0].mxu0
      %617 = vmatprep.mubr.f32.mxu0 0.0
      %618 = vmatmul.mubr.f32.gmra.mrb[0].mxu0 %v410
      %v619 = vpop.f32.mrb[0].mxu0
      %v620 = vadd.f32 %v334, %v619
      %v621 = vpop.f32.mrb[0].mxu0
      %622 = vmatprep.mubr.f32.mxu0 0.0
      %623 = vmatmul.mubr.f32.gmra.mrb[0].mxu0 %v413
      %v624 = vpop.f32.mrb[0].mxu0
      %v625 = vadd.f32 %v334, %v624
      %v626 = vpop.f32.mrb[0].mxu0
      %627 = vmatprep.mubr.f32.mxu0 0.0
      %628 = vmatmul.mubr.f32.gmra.mrb[0].mxu0 %v416
      %v629 = vpop.f32.mrb[0].mxu0
      %v630 = vadd.f32 %v334, %v629
      %v631 = vpop.f32.mrb[0].mxu0
      %632 = vmatprep.mubr.f32.mxu0 0.0
      %633 = vmatmul.mubr.f32.gmra.mrb[0].mxu0 %v419
      %v634 = vpop.f32.mrb[0].mxu0
      %v635 = vadd.f32 %v334, %v634
      %v636 = vpop.f32.mrb[0].mxu0
      %637 = vmatprep.mubr.f32.mxu0 0.0
      %638 = vmatmul.mubr.f32.gmra.mrb[0].mxu0 %v422
      %v639 = vpop.f32.mrb[0].mxu0
      %v640 = vadd.f32 %v334, %v639
      %v641 = vpop.f32.mrb[0].mxu0
      %642 = vmatprep.mubr.f32.mxu0 0.0
      %643 = vmatmul.mubr.f32.gmra.mrb[0].mxu0 %v425
      %v644 = vpop.f32.mrb[0].mxu0
      %v645 = vadd.f32 %v334, %v644
      %v646 = vpop.f32.mrb[0].mxu0
      %647 = vmatprep.mubr.f32.mxu0 0.0
      %648 = vmatmul.mubr.f32.gmra.mrb[0].mxu0 %v428
      %v649 = vpop.f32.mrb[0].mxu0
      %v650 = vadd.f32 %v334, %v649
      %v651 = vpop.f32.mrb[0].mxu0
      %652 = vmatprep.mubr.f32.mxu0 0.0
      %653 = vmatmul.mubr.f32.gmra.mrb[0].mxu0 %v431
      %v654 = vpop.f32.mrb[0].mxu0
      %v655 = vadd.f32 %v334, %v654
      %v656 = vpop.f32.mrb[0].mxu0
      %657 = vdwg.mxu0
      %v658 = vmax.f32 %v500, 0.0
      %v659 = vmax.f32 %v505, 0.0
      %v660 = vmax.f32 %v510, 0.0
      %v661 = vmax.f32 %v515, 0.0
      %v662 = vmax.f32 %v520, 0.0
      %v663 = vmax.f32 %v525, 0.0
      %v664 = vmax.f32 %v530, 0.0
      %v665 = vmax.f32 %v535, 0.0
      %v666 = vmax.f32 %v540, 0.0
      %v667 = vmax.f32 %v545, 0.0
      %v668 = vmax.f32 %v550, 0.0
      %v669 = vmax.f32 %v555, 0.0
      %v670 = vmax.f32 %v560, 0.0
      %v671 = vmax.f32 %v565, 0.0
      %v672 = vmax.f32 %v570, 0.0
      %v673 = vmax.f32 %v575, 0.0
      %v674 = vmax.f32 %v580, 0.0
      %v675 = vmax.f32 %v585, 0.0
      %v676 = vmax.f32 %v590, 0.0
      %v677 = vmax.f32 %v595, 0.0
      %v678 = vmax.f32 %v600, 0.0
      %v679 = vmax.f32 %v605, 0.0
      %v680 = vmax.f32 %v610, 0.0
      %v681 = vmax.f32 %v615, 0.0
      %v682 = vmax.f32 %v620, 0.0
      %v683 = vmax.f32 %v625, 0.0
      %v684 = vmax.f32 %v630, 0.0
      %v685 = vmax.f32 %v635, 0.0
      %v686 = vmax.f32 %v640, 0.0
      %v687 = vmax.f32 %v645, 0.0
      %v688 = vmax.f32 %v650, 0.0
      %v689 = vmax.f32 %v655, 0.0
      %vm722 = vcmask 1040384
      %v723 = vrot.slane %v658, 7
      %v724 = vrot.slane %v659, 7
      %v725 = vsel %vm722, %v723, %v724
      %v726 = vrot.slane %v660, 7
      %v727 = vrot.slane %v661, 7
      %v728 = vsel %vm722, %v726, %v727
      %v729 = vrot.slane %v662, 7
      %v730 = vrot.slane %v663, 7
      %v731 = vsel %vm722, %v729, %v730
      %v732 = vrot.slane %v664, 7
      %v733 = vrot.slane %v665, 7
      %v734 = vsel %vm722, %v732, %v733
      %v735 = vrot.slane %v666, 7
      %v736 = vrot.slane %v667, 7
      %v737 = vsel %vm722, %v735, %v736
      %v738 = vrot.slane %v668, 7
      %v739 = vrot.slane %v669, 7
      %v740 = vsel %vm722, %v738, %v739
      %v741 = vrot.slane %v670, 7
      %v742 = vrot.slane %v671, 7
      %v743 = vsel %vm722, %v741, %v742
      %v744 = vrot.slane %v672, 7
      %v745 = vrot.slane %v673, 7
      %v746 = vsel %vm722, %v744, %v745
      %v747 = vrot.slane %v674, 7
      %v748 = vrot.slane %v675, 7
      %v749 = vsel %vm722, %v747, %v748
      %v750 = vrot.slane %v676, 7
      %v751 = vrot.slane %v677, 7
      %v752 = vsel %vm722, %v750, %v751
      %v753 = vrot.slane %v678, 7
      %v754 = vrot.slane %v679, 7
      %v755 = vsel %vm722, %v753, %v754
      %v756 = vrot.slane %v680, 7
      %v757 = vrot.slane %v681, 7
      %v758 = vsel %vm722, %v756, %v757
      %v759 = vrot.slane %v682, 7
      %v760 = vrot.slane %v683, 7
      %v761 = vsel %vm722, %v759, %v760
      %v762 = vrot.slane %v684, 7
      %v763 = vrot.slane %v685, 7
      %v764 = vsel %vm722, %v762, %v763
      %v765 = vrot.slane %v686, 7
      %v766 = vrot.slane %v687, 7
      %v767 = vsel %vm722, %v765, %v766
      %v768 = vrot.slane %v688, 7
      %v769 = vrot.slane %v689, 7
      %v770 = vsel %vm722, %v768, %v769
      %v819 = vsel %vm722, 0.0, %v723
      %v820 = vsel %vm722, 0.0, %v726
      %v821 = vsel %vm722, 0.0, %v729
      %v822 = vsel %vm722, 0.0, %v732
      %v823 = vsel %vm722, 0.0, %v735
      %v824 = vsel %vm722, 0.0, %v738
      %v825 = vsel %vm722, 0.0, %v741
      %v826 = vsel %vm722, 0.0, %v744
      %v827 = vsel %vm722, 0.0, %v747
      %v828 = vsel %vm722, 0.0, %v750
      %v829 = vsel %vm722, 0.0, %v753
      %v830 = vsel %vm722, 0.0, %v756
      %v831 = vsel %vm722, 0.0, %v759
      %v832 = vsel %vm722, 0.0, %v762
      %v833 = vsel %vm722, 0.0, %v765
      %v834 = vsel %vm722, 0.0, %v768
      %v835 = vsel %vm722, %v724, 0.0
      %v836 = vsel %vm722, %v727, 0.0
      %v837 = vsel %vm722, %v730, 0.0
      %v838 = vsel %vm722, %v733, 0.0
      %v839 = vsel %vm722, %v736, 0.0
      %v840 = vsel %vm722, %v739, 0.0
      %v841 = vsel %vm722, %v742, 0.0
      %v842 = vsel %vm722, %v745, 0.0
      %v843 = vsel %vm722, %v748, 0.0
      %v844 = vsel %vm722, %v751, 0.0
      %v845 = vsel %vm722, %v754, 0.0
      %v846 = vsel %vm722, %v757, 0.0
      %v847 = vsel %vm722, %v760, 0.0
      %v848 = vsel %vm722, %v763, 0.0
      %v849 = vsel %vm722, %v766, 0.0
      %v850 = vsel %vm722, %v769, 0.0
      %851 = vst [vmem:[#allocation2] sm:$0xff] 0.0
      %852 = vst [vmem:[#allocation2 + $0x8] sm:$0xff] 0.0
      %853 = vst [vmem:[#allocation2 + $0x10] sm:$0x3] 0.0
      %854 = vst [vmem:[#allocation2 + $0x18] sm:$0xff] %v819
      %855 = vst [vmem:[#allocation2 + $0x20] sm:$0xff] %v725
      %856 = vst [vmem:[#allocation2 + $0x28] sm:$0x3] %v835
      %857 = vst [vmem:[#allocation2 + $0x30] sm:$0xff] %v820
      %858 = vst [vmem:[#allocation2 + $0x38] sm:$0xff] %v728
      %859 = vst [vmem:[#allocation2 + $0x40] sm:$0x3] %v836
      %860 = vst [vmem:[#allocation2 + $0x48] sm:$0xff] %v821
      %861 = vst [vmem:[#allocation2 + $0x50] sm:$0xff] %v731
      %862 = vst [vmem:[#allocation2 + $0x58] sm:$0x3] %v837
      %863 = vst [vmem:[#allocation2 + $0x60] sm:$0xff] %v822
      %864 = vst [vmem:[#allocation2 + $0x68] sm:$0xff] %v734
      %865 = vst [vmem:[#allocation2 + $0x70] sm:$0x3] %v838
      %866 = vst [vmem:[#allocation2 + $0x78] sm:$0xff] %v823
      %867 = vst [vmem:[#allocation2 + $0x80] sm:$0xff] %v737
      %868 = vst [vmem:[#allocation2 + $0x88] sm:$0x3] %v839
      %869 = vst [vmem:[#allocation2 + $0x90] sm:$0xff] %v824
      %870 = vst [vmem:[#allocation2 + $0x98] sm:$0xff] %v740
      %871 = vst [vmem:[#allocation2 + $0xa0] sm:$0x3] %v840
      %872 = vst [vmem:[#allocation2 + $0xa8] sm:$0xff] %v825
      %873 = vst [vmem:[#allocation2 + $0xb0] sm:$0xff] %v743
      %874 = vst [vmem:[#allocation2 + $0xb8] sm:$0x3] %v841
      %875 = vst [vmem:[#allocation2 + $0xc0] sm:$0xff] %v826
      %876 = vst [vmem:[#allocation2 + $0xc8] sm:$0xff] %v746
      %877 = vst [vmem:[#allocation2 + $0xd0] sm:$0x3] %v842
      %878 = vst [vmem:[#allocation2 + $0xd8] sm:$0xff] %v827
      %879 = vst [vmem:[#allocation2 + $0xe0] sm:$0xff] %v749
      %880 = vst [vmem:[#allocation2 + $0xe8] sm:$0x3] %v843
      %881 = vst [vmem:[#allocation2 + $0xf0] sm:$0xff] %v828
      %882 = vst [vmem:[#allocation2 + $0xf8] sm:$0xff] %v752
      %883 = vst [vmem:[#allocation2 + $0x100] sm:$0x3] %v844
      %884 = vst [vmem:[#allocation2 + $0x108] sm:$0xff] %v829
      %885 = vst [vmem:[#allocation2 + $0x110] sm:$0xff] %v755
      %886 = vst [vmem:[#allocation2 + $0x118] sm:$0x3] %v845
      %887 = vst [vmem:[#allocation2 + $0x120] sm:$0xff] %v830
      %888 = vst [vmem:[#allocation2 + $0x128] sm:$0xff] %v758
      %889 = vst [vmem:[#allocation2 + $0x130] sm:$0x3] %v846
      %890 = vst [vmem:[#allocation2 + $0x138] sm:$0xff] %v831
      %891 = vst [vmem:[#allocation2 + $0x140] sm:$0xff] %v761
      %892 = vst [vmem:[#allocation2 + $0x148] sm:$0x3] %v847
      %893 = vst [vmem:[#allocation2 + $0x150] sm:$0xff] %v832
      %894 = vst [vmem:[#allocation2 + $0x158] sm:$0xff] %v764
      %895 = vst [vmem:[#allocation2 + $0x160] sm:$0x3] %v848
      %896 = vst [vmem:[#allocation2 + $0x168] sm:$0xff] %v833
      %897 = vst [vmem:[#allocation2 + $0x170] sm:$0xff] %v767
      %898 = vst [vmem:[#allocation2 + $0x178] sm:$0x3] %v849
      %899 = vst [vmem:[#allocation2 + $0x180] sm:$0xff] %v834
      %900 = vst [vmem:[#allocation2 + $0x188] sm:$0xff] %v770
      %901 = vst [vmem:[#allocation2 + $0x190] sm:$0x3] %v850
      %902 = vst [vmem:[#allocation2 + $0x198] sm:$0xff] 0.0
      %903 = vst [vmem:[#allocation2 + $0x1a0] sm:$0xff] 0.0
      %904 = vst [vmem:[#allocation2 + $0x1a8] sm:$0x3] 0.0
      %v905 = vld [vmem:[#allocation2] sm:$0xff]
      %v906 = vld [vmem:[#allocation2 + $0x8] sm:$0xff]
      %v907 = vld [vmem:[#allocation2 + $0x18] sm:$0xff]
      %v908 = vld [vmem:[#allocation2 + $0x20] sm:$0xff]
      %v909 = vld [vmem:[#allocation2 + $0x30] sm:$0xff]
      %v910 = vld [vmem:[#allocation2 + $0x38] sm:$0xff]
      %v911 = vld [vmem:[#allocation2 + $0x48] sm:$0xff]
      %v912 = vld [vmem:[#allocation2 + $0x50] sm:$0xff]
      %v913 = vld [vmem:[#allocation2 + $0x60] sm:$0xff]
      %v914 = vld [vmem:[#allocation2 + $0x68] sm:$0xff]
      %v915 = vld [vmem:[#allocation2 + $0x78] sm:$0xff]
      %v916 = vld [vmem:[#allocation2 + $0x80] sm:$0xff]
      %v917 = vld [vmem:[#allocation2 + $0x90] sm:$0xff]
      %v918 = vld [vmem:[#allocation2 + $0x98] sm:$0xff]
      %v919 = vld [vmem:[#allocation2 + $0xa8] sm:$0xff]
      %v920 = vld [vmem:[#allocation2 + $0xb0] sm:$0xff]
      %v921 = vld [vmem:[#allocation2 + $0xc0] sm:$0xff]
      %v922 = vld [vmem:[#allocation2 + $0xc8] sm:$0xff]
      %v923 = vld [vmem:[#allocation2 + $0xd8] sm:$0xff]
      %v924 = vld [vmem:[#allocation2 + $0xe0] sm:$0xff]
      %v925 = vld [vmem:[#allocation2 + $0xf0] sm:$0xff]
      %v926 = vld [vmem:[#allocation2 + $0xf8] sm:$0xff]
      %v927 = vld [vmem:[#allocation2 + $0x108] sm:$0xff]
      %v928 = vld [vmem:[#allocation2 + $0x110] sm:$0xff]
      %v929 = vld [vmem:[#allocation2 + $0x120] sm:$0xff]
      %v930 = vld [vmem:[#allocation2 + $0x128] sm:$0xff]
      %v931 = vld [vmem:[#allocation2 + $0x138] sm:$0xff]
      %v932 = vld [vmem:[#allocation2 + $0x140] sm:$0xff]
      %v933 = vld [vmem:[#allocation2 + $0x150] sm:$0xff]
      %v934 = vld [vmem:[#allocation2 + $0x158] sm:$0xff]
      %v935 = vld [vmem:[#allocation2 + $0x168] sm:$0xff]
      %v936 = vld [vmem:[#allocation2 + $0x170] sm:$0xff]
      %937 = vst [vmem:[#allocation3] sm:$0xff] %v905
      %938 = vst [vmem:[#allocation3 + $0x48] sm:$0xff] %v906
      %939 = vst [vmem:[#allocation3 + $0x90] sm:$0xff] %v907
      %940 = vst [vmem:[#allocation3 + $0xd8] sm:$0xff] %v908
      %941 = vst [vmem:[#allocation3 + $0x120] sm:$0xff] %v909
      %942 = vst [vmem:[#allocation3 + $0x168] sm:$0xff] %v910
      %943 = vst [vmem:[#allocation3 + $0x1b0] sm:$0xff] %v911
      %944 = vst [vmem:[#allocation3 + $0x1f8] sm:$0xff] %v912
      %945 = vst [vmem:[#allocation3 + $0x240] sm:$0xff] %v913
      %946 = vst [vmem:[#allocation3 + $0x288] sm:$0xff] %v914
      %947 = vst [vmem:[#allocation3 + $0x2d0] sm:$0xff] %v915
      %948 = vst [vmem:[#allocation3 + $0x318] sm:$0xff] %v916
      %949 = vst [vmem:[#allocation3 + $0x360] sm:$0xff] %v917
      %950 = vst [vmem:[#allocation3 + $0x3a8] sm:$0xff] %v918
      %951 = vst [vmem:[#allocation3 + $0x3f0] sm:$0xff] %v919
      %952 = vst [vmem:[#allocation3 + $0x438] sm:$0xff] %v920
      %953 = vst [vmem:[#allocation3 + $0x480] sm:$0xff] %v921
      %954 = vst [vmem:[#allocation3 + $0x4c8] sm:$0xff] %v922
      %955 = vst [vmem:[#allocation3 + $0x510] sm:$0xff] %v923
      %956 = vst [vmem:[#allocation3 + $0x558] sm:$0xff] %v924
      %957 = vst [vmem:[#allocation3 + $0x5a0] sm:$0xff] %v925
      %958 = vst [vmem:[#allocation3 + $0x5e8] sm:$0xff] %v926
      %959 = vst [vmem:[#allocation3 + $0x630] sm:$0xff] %v927
      %960 = vst [vmem:[#allocation3 + $0x678] sm:$0xff] %v928
      %961 = vst [vmem:[#allocation3 + $0x6c0] sm:$0xff] %v929
      %962 = vst [vmem:[#allocation3 + $0x708] sm:$0xff] %v930
      %963 = vst [vmem:[#allocation3 + $0x750] sm:$0xff] %v931
      %964 = vst [vmem:[#allocation3 + $0x798] sm:$0xff] %v932
      %965 = vst [vmem:[#allocation3 + $0x7e0] sm:$0xff] %v933
      %966 = vst [vmem:[#allocation3 + $0x828] sm:$0xff] %v934
      %967 = vst [vmem:[#allocation3 + $0x870] sm:$0xff] %v935
      %968 = vst [vmem:[#allocation3 + $0x8b8] sm:$0xff] %v936
      %v969 = vld [vmem:[#allocation2 + $0x1] sm:$0xff]
      %v970 = vld [vmem:[#allocation2 + $0x9] sm:$0xff]
      %v971 = vld [vmem:[#allocation2 + $0x19] sm:$0xff]
      %v972 = vld [vmem:[#allocation2 + $0x21] sm:$0xff]
      %v973 = vld [vmem:[#allocation2 + $0x31] sm:$0xff]
      %v974 = vld [vmem:[#allocation2 + $0x39] sm:$0xff]
      %v975 = vld [vmem:[#allocation2 + $0x49] sm:$0xff]
      %v976 = vld [vmem:[#allocation2 + $0x51] sm:$0xff]
      %v977 = vld [vmem:[#allocation2 + $0x61] sm:$0xff]
      %v978 = vld [vmem:[#allocation2 + $0x69] sm:$0xff]
      %v979 = vld [vmem:[#allocation2 + $0x79] sm:$0xff]
      %v980 = vld [vmem:[#allocation2 + $0x81] sm:$0xff]
      %v981 = vld [vmem:[#allocation2 + $0x91] sm:$0xff]
      %v982 = vld [vmem:[#allocation2 + $0x99] sm:$0xff]
      %v983 = vld [vmem:[#allocation2 + $0xa9] sm:$0xff]
      %v984 = vld [vmem:[#allocation2 + $0xb1] sm:$0xff]
      %v985 = vld [vmem:[#allocation2 + $0xc1] sm:$0xff]
      %v986 = vld [vmem:[#allocation2 + $0xc9] sm:$0xff]
      %v987 = vld [vmem:[#allocation2 + $0xd9] sm:$0xff]
      %v988 = vld [vmem:[#allocation2 + $0xe1] sm:$0xff]
      %v989 = vld [vmem:[#allocation2 + $0xf1] sm:$0xff]
      %v990 = vld [vmem:[#allocation2 + $0xf9] sm:$0xff]
      %v991 = vld [vmem:[#allocation2 + $0x109] sm:$0xff]
      %v992 = vld [vmem:[#allocation2 + $0x111] sm:$0xff]
      %v993 = vld [vmem:[#allocation2 + $0x121] sm:$0xff]
      %v994 = vld [vmem:[#allocation2 + $0x129] sm:$0xff]
      %v995 = vld [vmem:[#allocation2 + $0x139] sm:$0xff]
      %v996 = vld [vmem:[#allocation2 + $0x141] sm:$0xff]
      %v997 = vld [vmem:[#allocation2 + $0x151] sm:$0xff]
      %v998 = vld [vmem:[#allocation2 + $0x159] sm:$0xff]
      %v999 = vld [vmem:[#allocation2 + $0x169] sm:$0xff]
      %v1000 = vld [vmem:[#allocation2 + $0x171] sm:$0xff]
      %1001 = vst [vmem:[#allocation3 + $0x8] sm:$0xff] %v969
      %1002 = vst [vmem:[#allocation3 + $0x50] sm:$0xff] %v970
      %1003 = vst [vmem:[#allocation3 + $0x98] sm:$0xff] %v971
      %1004 = vst [vmem:[#allocation3 + $0xe0] sm:$0xff] %v972
      %1005 = vst [vmem:[#allocation3 + $0x128] sm:$0xff] %v973
      %1006 = vst [vmem:[#allocation3 + $0x170] sm:$0xff] %v974
      %1007 = vst [vmem:[#allocation3 + $0x1b8] sm:$0xff] %v975
      %1008 = vst [vmem:[#allocation3 + $0x200] sm:$0xff] %v976
      %1009 = vst [vmem:[#allocation3 + $0x248] sm:$0xff] %v977
      %1010 = vst [vmem:[#allocation3 + $0x290] sm:$0xff] %v978
      %1011 = vst [vmem:[#allocation3 + $0x2d8] sm:$0xff] %v979
      %1012 = vst [vmem:[#allocation3 + $0x320] sm:$0xff] %v980
      %1013 = vst [vmem:[#allocation3 + $0x368] sm:$0xff] %v981
      %1014 = vst [vmem:[#allocation3 + $0x3b0] sm:$0xff] %v982
      %1015 = vst [vmem:[#allocation3 + $0x3f8] sm:$0xff] %v983
      %1016 = vst [vmem:[#allocation3 + $0x440] sm:$0xff] %v984
      %1017 = vst [vmem:[#allocation3 + $0x488] sm:$0xff] %v985
      %1018 = vst [vmem:[#allocation3 + $0x4d0] sm:$0xff] %v986
      %1019 = vst [vmem:[#allocation3 + $0x518] sm:$0xff] %v987
      %1020 = vst [vmem:[#allocation3 + $0x560] sm:$0xff] %v988
      %1021 = vst [vmem:[#allocation3 + $0x5a8] sm:$0xff] %v989
      %1022 = vst [vmem:[#allocation3 + $0x5f0] sm:$0xff] %v990
      %1023 = vst [vmem:[#allocation3 + $0x638] sm:$0xff] %v991
      %1024 = vst [vmem:[#allocation3 + $0x680] sm:$0xff] %v992
      %1025 = vst [vmem:[#allocation3 + $0x6c8] sm:$0xff] %v993
      %1026 = vst [vmem:[#allocation3 + $0x710] sm:$0xff] %v994
      %1027 = vst [vmem:[#allocation3 + $0x758] sm:$0xff] %v995
      %1028 = vst [vmem:[#allocation3 + $0x7a0] sm:$0xff] %v996
      %1029 = vst [vmem:[#allocation3 + $0x7e8] sm:$0xff] %v997
      %1030 = vst [vmem:[#allocation3 + $0x830] sm:$0xff] %v998
      %1031 = vst [vmem:[#allocation3 + $0x878] sm:$0xff] %v999
      %1032 = vst [vmem:[#allocation3 + $0x8c0] sm:$0xff] %v1000
      %v1033 = vld [vmem:[#allocation2 + $0x2] sm:$0xff]
      %v1034 = vld [vmem:[#allocation2 + $0xa] sm:$0xff]
      %v1035 = vld [vmem:[#allocation2 + $0x1a] sm:$0xff]
      %v1036 = vld [vmem:[#allocation2 + $0x22] sm:$0xff]
      %v1037 = vld [vmem:[#allocation2 + $0x32] sm:$0xff]
      %v1038 = vld [vmem:[#allocation2 + $0x3a] sm:$0xff]
      %v1039 = vld [vmem:[#allocation2 + $0x4a] sm:$0xff]
      %v1040 = vld [vmem:[#allocation2 + $0x52] sm:$0xff]
      %v1041 = vld [vmem:[#allocation2 + $0x62] sm:$0xff]
      %v1042 = vld [vmem:[#allocation2 + $0x6a] sm:$0xff]
      %v1043 = vld [vmem:[#allocation2 + $0x7a] sm:$0xff]
      %v1044 = vld [vmem:[#allocation2 + $0x82] sm:$0xff]
      %v1045 = vld [vmem:[#allocation2 + $0x92] sm:$0xff]
      %v1046 = vld [vmem:[#allocation2 + $0x9a] sm:$0xff]
      %v1047 = vld [vmem:[#allocation2 + $0xaa] sm:$0xff]
      %v1048 = vld [vmem:[#allocation2 + $0xb2] sm:$0xff]
      %v1049 = vld [vmem:[#allocation2 + $0xc2] sm:$0xff]
      %v1050 = vld [vmem:[#allocation2 + $0xca] sm:$0xff]
      %v1051 = vld [vmem:[#allocation2 + $0xda] sm:$0xff]
      %v1052 = vld [vmem:[#allocation2 + $0xe2] sm:$0xff]
      %v1053 = vld [vmem:[#allocation2 + $0xf2] sm:$0xff]
      %v1054 = vld [vmem:[#allocation2 + $0xfa] sm:$0xff]
      %v1055 = vld [vmem:[#allocation2 + $0x10a] sm:$0xff]
      %v1056 = vld [vmem:[#allocation2 + $0x112] sm:$0xff]
      %v1057 = vld [vmem:[#allocation2 + $0x122] sm:$0xff]
      %v1058 = vld [vmem:[#allocation2 + $0x12a] sm:$0xff]
      %v1059 = vld [vmem:[#allocation2 + $0x13a] sm:$0xff]
      %v1060 = vld [vmem:[#allocation2 + $0x142] sm:$0xff]
      %v1061 = vld [vmem:[#allocation2 + $0x152] sm:$0xff]
      %v1062 = vld [vmem:[#allocation2 + $0x15a] sm:$0xff]
      %v1063 = vld [vmem:[#allocation2 + $0x16a] sm:$0xff]
      %v1064 = vld [vmem:[#allocation2 + $0x172] sm:$0xff]
      %1065 = vst [vmem:[#allocation3 + $0x10] sm:$0xff] %v1033
      %1066 = vst [vmem:[#allocation3 + $0x58] sm:$0xff] %v1034
      %1067 = vst [vmem:[#allocation3 + $0xa0] sm:$0xff] %v1035
      %1068 = vst [vmem:[#allocation3 + $0xe8] sm:$0xff] %v1036
      %1069 = vst [vmem:[#allocation3 + $0x130] sm:$0xff] %v1037
      %1070 = vst [vmem:[#allocation3 + $0x178] sm:$0xff] %v1038
      %1071 = vst [vmem:[#allocation3 + $0x1c0] sm:$0xff] %v1039
      %1072 = vst [vmem:[#allocation3 + $0x208] sm:$0xff] %v1040
      %1073 = vst [vmem:[#allocation3 + $0x250] sm:$0xff] %v1041
      %1074 = vst [vmem:[#allocation3 + $0x298] sm:$0xff] %v1042
      %1075 = vst [vmem:[#allocation3 + $0x2e0] sm:$0xff] %v1043
      %1076 = vst [vmem:[#allocation3 + $0x328] sm:$0xff] %v1044
      %1077 = vst [vmem:[#allocation3 + $0x370] sm:$0xff] %v1045
      %1078 = vst [vmem:[#allocation3 + $0x3b8] sm:$0xff] %v1046
      %1079 = vst [vmem:[#allocation3 + $0x400] sm:$0xff] %v1047
      %1080 = vst [vmem:[#allocation3 + $0x448] sm:$0xff] %v1048
      %1081 = vst [vmem:[#allocation3 + $0x490] sm:$0xff] %v1049
      %1082 = vst [vmem:[#allocation3 + $0x4d8] sm:$0xff] %v1050
      %1083 = vst [vmem:[#allocation3 + $0x520] sm:$0xff] %v1051
      %1084 = vst [vmem:[#allocation3 + $0x568] sm:$0xff] %v1052
      %1085 = vst [vmem:[#allocation3 + $0x5b0] sm:$0xff] %v1053
      %1086 = vst [vmem:[#allocation3 + $0x5f8] sm:$0xff] %v1054
      %1087 = vst [vmem:[#allocation3 + $0x640] sm:$0xff] %v1055
      %1088 = vst [vmem:[#allocation3 + $0x688] sm:$0xff] %v1056
      %1089 = vst [vmem:[#allocation3 + $0x6d0] sm:$0xff] %v1057
      %1090 = vst [vmem:[#allocation3 + $0x718] sm:$0xff] %v1058
      %1091 = vst [vmem:[#allocation3 + $0x760] sm:$0xff] %v1059
      %1092 = vst [vmem:[#allocation3 + $0x7a8] sm:$0xff] %v1060
      %1093 = vst [vmem:[#allocation3 + $0x7f0] sm:$0xff] %v1061
      %1094 = vst [vmem:[#allocation3 + $0x838] sm:$0xff] %v1062
      %1095 = vst [vmem:[#allocation3 + $0x880] sm:$0xff] %v1063
      %1096 = vst [vmem:[#allocation3 + $0x8c8] sm:$0xff] %v1064
      %s1097 = scalar_lea.vmem [#allocation2], 24
      %v1098 = vld [vmem:[%s1097] sm:$0xff]
      %v1099 = vld [vmem:[%s1097 + $0x8] sm:$0xff]
      %v1100 = vld [vmem:[%s1097 + $0x18] sm:$0xff]
      %v1101 = vld [vmem:[%s1097 + $0x20] sm:$0xff]
      %v1102 = vld [vmem:[%s1097 + $0x30] sm:$0xff]
      %v1103 = vld [vmem:[%s1097 + $0x38] sm:$0xff]
      %v1104 = vld [vmem:[%s1097 + $0x48] sm:$0xff]
      %v1105 = vld [vmem:[%s1097 + $0x50] sm:$0xff]
      %v1106 = vld [vmem:[%s1097 + $0x60] sm:$0xff]
      %v1107 = vld [vmem:[%s1097 + $0x68] sm:$0xff]
      %v1108 = vld [vmem:[%s1097 + $0x78] sm:$0xff]
      %v1109 = vld [vmem:[%s1097 + $0x80] sm:$0xff]
      %v1110 = vld [vmem:[%s1097 + $0x90] sm:$0xff]
      %v1111 = vld [vmem:[%s1097 + $0x98] sm:$0xff]
      %v1112 = vld [vmem:[%s1097 + $0xa8] sm:$0xff]
      %v1113 = vld [vmem:[%s1097 + $0xb0] sm:$0xff]
      %v1114 = vld [vmem:[%s1097 + $0xc0] sm:$0xff]
      %v1115 = vld [vmem:[%s1097 + $0xc8] sm:$0xff]
      %v1116 = vld [vmem:[%s1097 + $0xd8] sm:$0xff]
      %v1117 = vld [vmem:[%s1097 + $0xe0] sm:$0xff]
      %v1118 = vld [vmem:[%s1097 + $0xf0] sm:$0xff]
      %v1119 = vld [vmem:[%s1097 + $0xf8] sm:$0xff]
      %v1120 = vld [vmem:[%s1097 + $0x108] sm:$0xff]
      %v1121 = vld [vmem:[%s1097 + $0x110] sm:$0xff]
      %v1122 = vld [vmem:[%s1097 + $0x120] sm:$0xff]
      %v1123 = vld [vmem:[%s1097 + $0x128] sm:$0xff]
      %v1124 = vld [vmem:[%s1097 + $0x138] sm:$0xff]
      %v1125 = vld [vmem:[%s1097 + $0x140] sm:$0xff]
      %v1126 = vld [vmem:[%s1097 + $0x150] sm:$0xff]
      %v1127 = vld [vmem:[%s1097 + $0x158] sm:$0xff]
      %v1128 = vld [vmem:[%s1097 + $0x168] sm:$0xff]
      %v1129 = vld [vmem:[%s1097 + $0x170] sm:$0xff]
      %1130 = vst [vmem:[#allocation3 + $0x18] sm:$0xff] %v1098
      %1131 = vst [vmem:[#allocation3 + $0x60] sm:$0xff] %v1099
      %1132 = vst [vmem:[#allocation3 + $0xa8] sm:$0xff] %v1100
      %1133 = vst [vmem:[#allocation3 + $0xf0] sm:$0xff] %v1101
      %1134 = vst [vmem:[#allocation3 + $0x138] sm:$0xff] %v1102
      %1135 = vst [vmem:[#allocation3 + $0x180] sm:$0xff] %v1103
      %1136 = vst [vmem:[#allocation3 + $0x1c8] sm:$0xff] %v1104
      %1137 = vst [vmem:[#allocation3 + $0x210] sm:$0xff] %v1105
      %1138 = vst [vmem:[#allocation3 + $0x258] sm:$0xff] %v1106
      %1139 = vst [vmem:[#allocation3 + $0x2a0] sm:$0xff] %v1107
      %1140 = vst [vmem:[#allocation3 + $0x2e8] sm:$0xff] %v1108
      %1141 = vst [vmem:[#allocation3 + $0x330] sm:$0xff] %v1109
      %1142 = vst [vmem:[#allocation3 + $0x378] sm:$0xff] %v1110
      %1143 = vst [vmem:[#allocation3 + $0x3c0] sm:$0xff] %v1111
      %1144 = vst [vmem:[#allocation3 + $0x408] sm:$0xff] %v1112
      %1145 = vst [vmem:[#allocation3 + $0x450] sm:$0xff] %v1113
      %1146 = vst [vmem:[#allocation3 + $0x498] sm:$0xff] %v1114
      %1147 = vst [vmem:[#allocation3 + $0x4e0] sm:$0xff] %v1115
      %1148 = vst [vmem:[#allocation3 + $0x528] sm:$0xff] %v1116
      %1149 = vst [vmem:[#allocation3 + $0x570] sm:$0xff] %v1117
      %1150 = vst [vmem:[#allocation3 + $0x5b8] sm:$0xff] %v1118
      %1151 = vst [vmem:[#allocation3 + $0x600] sm:$0xff] %v1119
      %1152 = vst [vmem:[#allocation3 + $0x648] sm:$0xff] %v1120
      %1153 = vst [vmem:[#allocation3 + $0x690] sm:$0xff] %v1121
      %1154 = vst [vmem:[#allocation3 + $0x6d8] sm:$0xff] %v1122
      %1155 = vst [vmem:[#allocation3 + $0x720] sm:$0xff] %v1123
      %1156 = vst [vmem:[#allocation3 + $0x768] sm:$0xff] %v1124
      %1157 = vst [vmem:[#allocation3 + $0x7b0] sm:$0xff] %v1125
      %1158 = vst [vmem:[#allocation3 + $0x7f8] sm:$0xff] %v1126
      %1159 = vst [vmem:[#allocation3 + $0x840] sm:$0xff] %v1127
      %1160 = vst [vmem:[#allocation3 + $0x888] sm:$0xff] %v1128
      %1161 = vst [vmem:[#allocation3 + $0x8d0] sm:$0xff] %v1129
      %v1162 = vld [vmem:[%s1097 + $0x1] sm:$0xff]
      %v1163 = vld [vmem:[%s1097 + $0x9] sm:$0xff]
      %v1164 = vld [vmem:[%s1097 + $0x19] sm:$0xff]
      %v1165 = vld [vmem:[%s1097 + $0x21] sm:$0xff]
      %v1166 = vld [vmem:[%s1097 + $0x31] sm:$0xff]
      %v1167 = vld [vmem:[%s1097 + $0x39] sm:$0xff]
      %v1168 = vld [vmem:[%s1097 + $0x49] sm:$0xff]
      %v1169 = vld [vmem:[%s1097 + $0x51] sm:$0xff]
      %v1170 = vld [vmem:[%s1097 + $0x61] sm:$0xff]
      %v1171 = vld [vmem:[%s1097 + $0x69] sm:$0xff]
      %v1172 = vld [vmem:[%s1097 + $0x79] sm:$0xff]
      %v1173 = vld [vmem:[%s1097 + $0x81] sm:$0xff]
      %v1174 = vld [vmem:[%s1097 + $0x91] sm:$0xff]
      %v1175 = vld [vmem:[%s1097 + $0x99] sm:$0xff]
      %v1176 = vld [vmem:[%s1097 + $0xa9] sm:$0xff]
      %v1177 = vld [vmem:[%s1097 + $0xb1] sm:$0xff]
      %v1178 = vld [vmem:[%s1097 + $0xc1] sm:$0xff]
      %v1179 = vld [vmem:[%s1097 + $0xc9] sm:$0xff]
      %v1180 = vld [vmem:[%s1097 + $0xd9] sm:$0xff]
      %v1181 = vld [vmem:[%s1097 + $0xe1] sm:$0xff]
      %v1182 = vld [vmem:[%s1097 + $0xf1] sm:$0xff]
      %v1183 = vld [vmem:[%s1097 + $0xf9] sm:$0xff]
      %v1184 = vld [vmem:[%s1097 + $0x109] sm:$0xff]
      %v1185 = vld [vmem:[%s1097 + $0x111] sm:$0xff]
      %v1186 = vld [vmem:[%s1097 + $0x121] sm:$0xff]
      %v1187 = vld [vmem:[%s1097 + $0x129] sm:$0xff]
      %v1188 = vld [vmem:[%s1097 + $0x139] sm:$0xff]
      %v1189 = vld [vmem:[%s1097 + $0x141] sm:$0xff]
      %v1190 = vld [vmem:[%s1097 + $0x151] sm:$0xff]
      %v1191 = vld [vmem:[%s1097 + $0x159] sm:$0xff]
      %v1192 = vld [vmem:[%s1097 + $0x169] sm:$0xff]
      %v1193 = vld [vmem:[%s1097 + $0x171] sm:$0xff]
      %1194 = vst [vmem:[#allocation3 + $0x20] sm:$0xff] %v1162
      %1195 = vst [vmem:[#allocation3 + $0x68] sm:$0xff] %v1163
      %1196 = vst [vmem:[#allocation3 + $0xb0] sm:$0xff] %v1164
      %1197 = vst [vmem:[#allocation3 + $0xf8] sm:$0xff] %v1165
      %1198 = vst [vmem:[#allocation3 + $0x140] sm:$0xff] %v1166
      %1199 = vst [vmem:[#allocation3 + $0x188] sm:$0xff] %v1167
      %1200 = vst [vmem:[#allocation3 + $0x1d0] sm:$0xff] %v1168
      %1201 = vst [vmem:[#allocation3 + $0x218] sm:$0xff] %v1169
      %1202 = vst [vmem:[#allocation3 + $0x260] sm:$0xff] %v1170
      %1203 = vst [vmem:[#allocation3 + $0x2a8] sm:$0xff] %v1171
      %1204 = vst [vmem:[#allocation3 + $0x2f0] sm:$0xff] %v1172
      %1205 = vst [vmem:[#allocation3 + $0x338] sm:$0xff] %v1173
      %1206 = vst [vmem:[#allocation3 + $0x380] sm:$0xff] %v1174
      %1207 = vst [vmem:[#allocation3 + $0x3c8] sm:$0xff] %v1175
      %1208 = vst [vmem:[#allocation3 + $0x410] sm:$0xff] %v1176
      %1209 = vst [vmem:[#allocation3 + $0x458] sm:$0xff] %v1177
      %1210 = vst [vmem:[#allocation3 + $0x4a0] sm:$0xff] %v1178
      %1211 = vst [vmem:[#allocation3 + $0x4e8] sm:$0xff] %v1179
      %1212 = vst [vmem:[#allocation3 + $0x530] sm:$0xff] %v1180
      %1213 = vst [vmem:[#allocation3 + $0x578] sm:$0xff] %v1181
      %1214 = vst [vmem:[#allocation3 + $0x5c0] sm:$0xff] %v1182
      %1215 = vst [vmem:[#allocation3 + $0x608] sm:$0xff] %v1183
      %1216 = vst [vmem:[#allocation3 + $0x650] sm:$0xff] %v1184
      %1217 = vst [vmem:[#allocation3 + $0x698] sm:$0xff] %v1185
      %1218 = vst [vmem:[#allocation3 + $0x6e0] sm:$0xff] %v1186
      %1219 = vst [vmem:[#allocation3 + $0x728] sm:$0xff] %v1187
      %1220 = vst [vmem:[#allocation3 + $0x770] sm:$0xff] %v1188
      %1221 = vst [vmem:[#allocation3 + $0x7b8] sm:$0xff] %v1189
      %1222 = vst [vmem:[#allocation3 + $0x800] sm:$0xff] %v1190
      %1223 = vst [vmem:[#allocation3 + $0x848] sm:$0xff] %v1191
      %1224 = vst [vmem:[#allocation3 + $0x890] sm:$0xff] %v1192
      %1225 = vst [vmem:[#allocation3 + $0x8d8] sm:$0xff] %v1193
      %v1226 = vld [vmem:[%s1097 + $0x2] sm:$0xff]
      %v1227 = vld [vmem:[%s1097 + $0xa] sm:$0xff]
      %v1228 = vld [vmem:[%s1097 + $0x1a] sm:$0xff]
      %v1229 = vld [vmem:[%s1097 + $0x22] sm:$0xff]
      %v1230 = vld [vmem:[%s1097 + $0x32] sm:$0xff]
      %v1231 = vld [vmem:[%s1097 + $0x3a] sm:$0xff]
      %v1232 = vld [vmem:[%s1097 + $0x4a] sm:$0xff]
      %v1233 = vld [vmem:[%s1097 + $0x52] sm:$0xff]
      %v1234 = vld [vmem:[%s1097 + $0x62] sm:$0xff]
      %v1235 = vld [vmem:[%s1097 + $0x6a] sm:$0xff]
      %v1236 = vld [vmem:[%s1097 + $0x7a] sm:$0xff]
      %v1237 = vld [vmem:[%s1097 + $0x82] sm:$0xff]
      %v1238 = vld [vmem:[%s1097 + $0x92] sm:$0xff]
      %v1239 = vld [vmem:[%s1097 + $0x9a] sm:$0xff]
      %v1240 = vld [vmem:[%s1097 + $0xaa] sm:$0xff]
      %v1241 = vld [vmem:[%s1097 + $0xb2] sm:$0xff]
      %v1242 = vld [vmem:[%s1097 + $0xc2] sm:$0xff]
      %v1243 = vld [vmem:[%s1097 + $0xca] sm:$0xff]
      %v1244 = vld [vmem:[%s1097 + $0xda] sm:$0xff]
      %v1245 = vld [vmem:[%s1097 + $0xe2] sm:$0xff]
      %v1246 = vld [vmem:[%s1097 + $0xf2] sm:$0xff]
      %v1247 = vld [vmem:[%s1097 + $0xfa] sm:$0xff]
      %v1248 = vld [vmem:[%s1097 + $0x10a] sm:$0xff]
      %v1249 = vld [vmem:[%s1097 + $0x112] sm:$0xff]
      %v1250 = vld [vmem:[%s1097 + $0x122] sm:$0xff]
      %v1251 = vld [vmem:[%s1097 + $0x12a] sm:$0xff]
      %v1252 = vld [vmem:[%s1097 + $0x13a] sm:$0xff]
      %v1253 = vld [vmem:[%s1097 + $0x142] sm:$0xff]
      %v1254 = vld [vmem:[%s1097 + $0x152] sm:$0xff]
      %v1255 = vld [vmem:[%s1097 + $0x15a] sm:$0xff]
      %v1256 = vld [vmem:[%s1097 + $0x16a] sm:$0xff]
      %v1257 = vld [vmem:[%s1097 + $0x172] sm:$0xff]
      %1258 = vst [vmem:[#allocation3 + $0x28] sm:$0xff] %v1226
      %1259 = vst [vmem:[#allocation3 + $0x70] sm:$0xff] %v1227
      %1260 = vst [vmem:[#allocation3 + $0xb8] sm:$0xff] %v1228
      %1261 = vst [vmem:[#allocation3 + $0x100] sm:$0xff] %v1229
      %1262 = vst [vmem:[#allocation3 + $0x148] sm:$0xff] %v1230
      %1263 = vst [vmem:[#allocation3 + $0x190] sm:$0xff] %v1231
      %1264 = vst [vmem:[#allocation3 + $0x1d8] sm:$0xff] %v1232
      %1265 = vst [vmem:[#allocation3 + $0x220] sm:$0xff] %v1233
      %1266 = vst [vmem:[#allocation3 + $0x268] sm:$0xff] %v1234
      %1267 = vst [vmem:[#allocation3 + $0x2b0] sm:$0xff] %v1235
      %1268 = vst [vmem:[#allocation3 + $0x2f8] sm:$0xff] %v1236
      %1269 = vst [vmem:[#allocation3 + $0x340] sm:$0xff] %v1237
      %1270 = vst [vmem:[#allocation3 + $0x388] sm:$0xff] %v1238
      %1271 = vst [vmem:[#allocation3 + $0x3d0] sm:$0xff] %v1239
      %1272 = vst [vmem:[#allocation3 + $0x418] sm:$0xff] %v1240
      %1273 = vst [vmem:[#allocation3 + $0x460] sm:$0xff] %v1241
      %1274 = vst [vmem:[#allocation3 + $0x4a8] sm:$0xff] %v1242
      %1275 = vst [vmem:[#allocation3 + $0x4f0] sm:$0xff] %v1243
      %1276 = vst [vmem:[#allocation3 + $0x538] sm:$0xff] %v1244
      %1277 = vst [vmem:[#allocation3 + $0x580] sm:$0xff] %v1245
      %1278 = vst [vmem:[#allocation3 + $0x5c8] sm:$0xff] %v1246
      %1279 = vst [vmem:[#allocation3 + $0x610] sm:$0xff] %v1247
      %1280 = vst [vmem:[#allocation3 + $0x658] sm:$0xff] %v1248
      %1281 = vst [vmem:[#allocation3 + $0x6a0] sm:$0xff] %v1249
      %1282 = vst [vmem:[#allocation3 + $0x6e8] sm:$0xff] %v1250
      %1283 = vst [vmem:[#allocation3 + $0x730] sm:$0xff] %v1251
      %1284 = vst [vmem:[#allocation3 + $0x778] sm:$0xff] %v1252
      %1285 = vst [vmem:[#allocation3 + $0x7c0] sm:$0xff] %v1253
      %1286 = vst [vmem:[#allocation3 + $0x808] sm:$0xff] %v1254
      %1287 = vst [vmem:[#allocation3 + $0x850] sm:$0xff] %v1255
      %1288 = vst [vmem:[#allocation3 + $0x898] sm:$0xff] %v1256
      %1289 = vst [vmem:[#allocation3 + $0x8e0] sm:$0xff] %v1257
      %s1290 = scalar_lea.vmem [#allocation2], 48
      %v1291 = vld [vmem:[%s1290] sm:$0xff]
      %v1292 = vld [vmem:[%s1290 + $0x8] sm:$0xff]
      %v1293 = vld [vmem:[%s1290 + $0x18] sm:$0xff]
      %v1294 = vld [vmem:[%s1290 + $0x20] sm:$0xff]
      %v1295 = vld [vmem:[%s1290 + $0x30] sm:$0xff]
      %v1296 = vld [vmem:[%s1290 + $0x38] sm:$0xff]
      %v1297 = vld [vmem:[%s1290 + $0x48] sm:$0xff]
      %v1298 = vld [vmem:[%s1290 + $0x50] sm:$0xff]
      %v1299 = vld [vmem:[%s1290 + $0x60] sm:$0xff]
      %v1300 = vld [vmem:[%s1290 + $0x68] sm:$0xff]
      %v1301 = vld [vmem:[%s1290 + $0x78] sm:$0xff]
      %v1302 = vld [vmem:[%s1290 + $0x80] sm:$0xff]
      %v1303 = vld [vmem:[%s1290 + $0x90] sm:$0xff]
      %v1304 = vld [vmem:[%s1290 + $0x98] sm:$0xff]
      %v1305 = vld [vmem:[%s1290 + $0xa8] sm:$0xff]
      %v1306 = vld [vmem:[%s1290 + $0xb0] sm:$0xff]
      %v1307 = vld [vmem:[%s1290 + $0xc0] sm:$0xff]
      %v1308 = vld [vmem:[%s1290 + $0xc8] sm:$0xff]
      %v1309 = vld [vmem:[%s1290 + $0xd8] sm:$0xff]
      %v1310 = vld [vmem:[%s1290 + $0xe0] sm:$0xff]
      %v1311 = vld [vmem:[%s1290 + $0xf0] sm:$0xff]
      %v1312 = vld [vmem:[%s1290 + $0xf8] sm:$0xff]
      %v1313 = vld [vmem:[%s1290 + $0x108] sm:$0xff]
      %v1314 = vld [vmem:[%s1290 + $0x110] sm:$0xff]
      %v1315 = vld [vmem:[%s1290 + $0x120] sm:$0xff]
      %v1316 = vld [vmem:[%s1290 + $0x128] sm:$0xff]
      %v1317 = vld [vmem:[%s1290 + $0x138] sm:$0xff]
      %v1318 = vld [vmem:[%s1290 + $0x140] sm:$0xff]
      %v1319 = vld [vmem:[%s1290 + $0x150] sm:$0xff]
      %v1320 = vld [vmem:[%s1290 + $0x158] sm:$0xff]
      %v1321 = vld [vmem:[%s1290 + $0x168] sm:$0xff]
      %v1322 = vld [vmem:[%s1290 + $0x170] sm:$0xff]
      %1323 = vst [vmem:[#allocation3 + $0x30] sm:$0xff] %v1291
      %1324 = vst [vmem:[#allocation3 + $0x78] sm:$0xff] %v1292
      %1325 = vst [vmem:[#allocation3 + $0xc0] sm:$0xff] %v1293
      %1326 = vst [vmem:[#allocation3 + $0x108] sm:$0xff] %v1294
      %1327 = vst [vmem:[#allocation3 + $0x150] sm:$0xff] %v1295
      %1328 = vst [vmem:[#allocation3 + $0x198] sm:$0xff] %v1296
      %1329 = vst [vmem:[#allocation3 + $0x1e0] sm:$0xff] %v1297
      %1330 = vst [vmem:[#allocation3 + $0x228] sm:$0xff] %v1298
      %1331 = vst [vmem:[#allocation3 + $0x270] sm:$0xff] %v1299
      %1332 = vst [vmem:[#allocation3 + $0x2b8] sm:$0xff] %v1300
      %1333 = vst [vmem:[#allocation3 + $0x300] sm:$0xff] %v1301
      %1334 = vst [vmem:[#allocation3 + $0x348] sm:$0xff] %v1302
      %1335 = vst [vmem:[#allocation3 + $0x390] sm:$0xff] %v1303
      %1336 = vst [vmem:[#allocation3 + $0x3d8] sm:$0xff] %v1304
      %1337 = vst [vmem:[#allocation3 + $0x420] sm:$0xff] %v1305
      %1338 = vst [vmem:[#allocation3 + $0x468] sm:$0xff] %v1306
      %1339 = vst [vmem:[#allocation3 + $0x4b0] sm:$0xff] %v1307
      %1340 = vst [vmem:[#allocation3 + $0x4f8] sm:$0xff] %v1308
      %1341 = vst [vmem:[#allocation3 + $0x540] sm:$0xff] %v1309
      %1342 = vst [vmem:[#allocation3 + $0x588] sm:$0xff] %v1310
      %1343 = vst [vmem:[#allocation3 + $0x5d0] sm:$0xff] %v1311
      %1344 = vst [vmem:[#allocation3 + $0x618] sm:$0xff] %v1312
      %1345 = vst [vmem:[#allocation3 + $0x660] sm:$0xff] %v1313
      %1346 = vst [vmem:[#allocation3 + $0x6a8] sm:$0xff] %v1314
      %1347 = vst [vmem:[#allocation3 + $0x6f0] sm:$0xff] %v1315
      %1348 = vst [vmem:[#allocation3 + $0x738] sm:$0xff] %v1316
      %1349 = vst [vmem:[#allocation3 + $0x780] sm:$0xff] %v1317
      %1350 = vst [vmem:[#allocation3 + $0x7c8] sm:$0xff] %v1318
      %1351 = vst [vmem:[#allocation3 + $0x810] sm:$0xff] %v1319
      %1352 = vst [vmem:[#allocation3 + $0x858] sm:$0xff] %v1320
      %1353 = vst [vmem:[#allocation3 + $0x8a0] sm:$0xff] %v1321
      %1354 = vst [vmem:[#allocation3 + $0x8e8] sm:$0xff] %v1322
      %v1355 = vld [vmem:[%s1290 + $0x1] sm:$0xff]
      %v1356 = vld [vmem:[%s1290 + $0x9] sm:$0xff]
      %v1357 = vld [vmem:[%s1290 + $0x19] sm:$0xff]
      %v1358 = vld [vmem:[%s1290 + $0x21] sm:$0xff]
      %v1359 = vld [vmem:[%s1290 + $0x31] sm:$0xff]
      %v1360 = vld [vmem:[%s1290 + $0x39] sm:$0xff]
      %v1361 = vld [vmem:[%s1290 + $0x49] sm:$0xff]
      %v1362 = vld [vmem:[%s1290 + $0x51] sm:$0xff]
      %v1363 = vld [vmem:[%s1290 + $0x61] sm:$0xff]
      %v1364 = vld [vmem:[%s1290 + $0x69] sm:$0xff]
      %v1365 = vld [vmem:[%s1290 + $0x79] sm:$0xff]
      %v1366 = vld [vmem:[%s1290 + $0x81] sm:$0xff]
      %v1367 = vld [vmem:[%s1290 + $0x91] sm:$0xff]
      %v1368 = vld [vmem:[%s1290 + $0x99] sm:$0xff]
      %v1369 = vld [vmem:[%s1290 + $0xa9] sm:$0xff]
      %v1370 = vld [vmem:[%s1290 + $0xb1] sm:$0xff]
      %v1371 = vld [vmem:[%s1290 + $0xc1] sm:$0xff]
      %v1372 = vld [vmem:[%s1290 + $0xc9] sm:$0xff]
      %v1373 = vld [vmem:[%s1290 + $0xd9] sm:$0xff]
      %v1374 = vld [vmem:[%s1290 + $0xe1] sm:$0xff]
      %v1375 = vld [vmem:[%s1290 + $0xf1] sm:$0xff]
      %v1376 = vld [vmem:[%s1290 + $0xf9] sm:$0xff]
      %v1377 = vld [vmem:[%s1290 + $0x109] sm:$0xff]
      %v1378 = vld [vmem:[%s1290 + $0x111] sm:$0xff]
      %v1379 = vld [vmem:[%s1290 + $0x121] sm:$0xff]
      %v1380 = vld [vmem:[%s1290 + $0x129] sm:$0xff]
      %v1381 = vld [vmem:[%s1290 + $0x139] sm:$0xff]
      %v1382 = vld [vmem:[%s1290 + $0x141] sm:$0xff]
      %v1383 = vld [vmem:[%s1290 + $0x151] sm:$0xff]
      %v1384 = vld [vmem:[%s1290 + $0x159] sm:$0xff]
      %v1385 = vld [vmem:[%s1290 + $0x169] sm:$0xff]
      %v1386 = vld [vmem:[%s1290 + $0x171] sm:$0xff]
      %1387 = vst [vmem:[#allocation3 + $0x38] sm:$0xff] %v1355
      %1388 = vst [vmem:[#allocation3 + $0x80] sm:$0xff] %v1356
      %1389 = vst [vmem:[#allocation3 + $0xc8] sm:$0xff] %v1357
      %1390 = vst [vmem:[#allocation3 + $0x110] sm:$0xff] %v1358
      %1391 = vst [vmem:[#allocation3 + $0x158] sm:$0xff] %v1359
      %1392 = vst [vmem:[#allocation3 + $0x1a0] sm:$0xff] %v1360
      %1393 = vst [vmem:[#allocation3 + $0x1e8] sm:$0xff] %v1361
      %1394 = vst [vmem:[#allocation3 + $0x230] sm:$0xff] %v1362
      %1395 = vst [vmem:[#allocation3 + $0x278] sm:$0xff] %v1363
      %1396 = vst [vmem:[#allocation3 + $0x2c0] sm:$0xff] %v1364
      %1397 = vst [vmem:[#allocation3 + $0x308] sm:$0xff] %v1365
      %1398 = vst [vmem:[#allocation3 + $0x350] sm:$0xff] %v1366
      %1399 = vst [vmem:[#allocation3 + $0x398] sm:$0xff] %v1367
      %1400 = vst [vmem:[#allocation3 + $0x3e0] sm:$0xff] %v1368
      %1401 = vst [vmem:[#allocation3 + $0x428] sm:$0xff] %v1369
      %1402 = vst [vmem:[#allocation3 + $0x470] sm:$0xff] %v1370
      %1403 = vst [vmem:[#allocation3 + $0x4b8] sm:$0xff] %v1371
      %1404 = vst [vmem:[#allocation3 + $0x500] sm:$0xff] %v1372
      %1405 = vst [vmem:[#allocation3 + $0x548] sm:$0xff] %v1373
      %1406 = vst [vmem:[#allocation3 + $0x590] sm:$0xff] %v1374
      %1407 = vst [vmem:[#allocation3 + $0x5d8] sm:$0xff] %v1375
      %1408 = vst [vmem:[#allocation3 + $0x620] sm:$0xff] %v1376
      %1409 = vst [vmem:[#allocation3 + $0x668] sm:$0xff] %v1377
      %1410 = vst [vmem:[#allocation3 + $0x6b0] sm:$0xff] %v1378
      %1411 = vst [vmem:[#allocation3 + $0x6f8] sm:$0xff] %v1379
      %1412 = vst [vmem:[#allocation3 + $0x740] sm:$0xff] %v1380
      %1413 = vst [vmem:[#allocation3 + $0x788] sm:$0xff] %v1381
      %1414 = vst [vmem:[#allocation3 + $0x7d0] sm:$0xff] %v1382
      %1415 = vst [vmem:[#allocation3 + $0x818] sm:$0xff] %v1383
      %1416 = vst [vmem:[#allocation3 + $0x860] sm:$0xff] %v1384
      %1417 = vst [vmem:[#allocation3 + $0x8a8] sm:$0xff] %v1385
      %1418 = vst [vmem:[#allocation3 + $0x8f0] sm:$0xff] %v1386
      %v1419 = vld [vmem:[%s1290 + $0x2] sm:$0xff]
      %v1420 = vld [vmem:[%s1290 + $0xa] sm:$0xff]
      %v1421 = vld [vmem:[%s1290 + $0x1a] sm:$0xff]
      %v1422 = vld [vmem:[%s1290 + $0x22] sm:$0xff]
      %v1423 = vld [vmem:[%s1290 + $0x32] sm:$0xff]
      %v1424 = vld [vmem:[%s1290 + $0x3a] sm:$0xff]
      %v1425 = vld [vmem:[%s1290 + $0x4a] sm:$0xff]
      %v1426 = vld [vmem:[%s1290 + $0x52] sm:$0xff]
      %v1427 = vld [vmem:[%s1290 + $0x62] sm:$0xff]
      %v1428 = vld [vmem:[%s1290 + $0x6a] sm:$0xff]
      %v1429 = vld [vmem:[%s1290 + $0x7a] sm:$0xff]
      %v1430 = vld [vmem:[%s1290 + $0x82] sm:$0xff]
      %v1431 = vld [vmem:[%s1290 + $0x92] sm:$0xff]
      %v1432 = vld [vmem:[%s1290 + $0x9a] sm:$0xff]
      %v1433 = vld [vmem:[%s1290 + $0xaa] sm:$0xff]
      %v1434 = vld [vmem:[%s1290 + $0xb2] sm:$0xff]
      %v1435 = vld [vmem:[%s1290 + $0xc2] sm:$0xff]
      %v1436 = vld [vmem:[%s1290 + $0xca] sm:$0xff]
      %v1437 = vld [vmem:[%s1290 + $0xda] sm:$0xff]
      %v1438 = vld [vmem:[%s1290 + $0xe2] sm:$0xff]
      %v1439 = vld [vmem:[%s1290 + $0xf2] sm:$0xff]
      %v1440 = vld [vmem:[%s1290 + $0xfa] sm:$0xff]
      %v1441 = vld [vmem:[%s1290 + $0x10a] sm:$0xff]
      %v1442 = vld [vmem:[%s1290 + $0x112] sm:$0xff]
      %v1443 = vld [vmem:[%s1290 + $0x122] sm:$0xff]
      %v1444 = vld [vmem:[%s1290 + $0x12a] sm:$0xff]
      %v1445 = vld [vmem:[%s1290 + $0x13a] sm:$0xff]
      %v1446 = vld [vmem:[%s1290 + $0x142] sm:$0xff]
      %v1447 = vld [vmem:[%s1290 + $0x152] sm:$0xff]
      %v1448 = vld [vmem:[%s1290 + $0x15a] sm:$0xff]
      %v1449 = vld [vmem:[%s1290 + $0x16a] sm:$0xff]
      %v1450 = vld [vmem:[%s1290 + $0x172] sm:$0xff]
      %1451 = vst [vmem:[#allocation3 + $0x40] sm:$0xff] %v1419
      %1452 = vst [vmem:[#allocation3 + $0x88] sm:$0xff] %v1420
      %1453 = vst [vmem:[#allocation3 + $0xd0] sm:$0xff] %v1421
      %1454 = vst [vmem:[#allocation3 + $0x118] sm:$0xff] %v1422
      %1455 = vst [vmem:[#allocation3 + $0x160] sm:$0xff] %v1423
      %1456 = vst [vmem:[#allocation3 + $0x1a8] sm:$0xff] %v1424
      %1457 = vst [vmem:[#allocation3 + $0x1f0] sm:$0xff] %v1425
      %1458 = vst [vmem:[#allocation3 + $0x238] sm:$0xff] %v1426
      %1459 = vst [vmem:[#allocation3 + $0x280] sm:$0xff] %v1427
      %1460 = vst [vmem:[#allocation3 + $0x2c8] sm:$0xff] %v1428
      %1461 = vst [vmem:[#allocation3 + $0x310] sm:$0xff] %v1429
      %1462 = vst [vmem:[#allocation3 + $0x358] sm:$0xff] %v1430
      %1463 = vst [vmem:[#allocation3 + $0x3a0] sm:$0xff] %v1431
      %1464 = vst [vmem:[#allocation3 + $0x3e8] sm:$0xff] %v1432
      %1465 = vst [vmem:[#allocation3 + $0x430] sm:$0xff] %v1433
      %1466 = vst [vmem:[#allocation3 + $0x478] sm:$0xff] %v1434
      %1467 = vst [vmem:[#allocation3 + $0x4c0] sm:$0xff] %v1435
      %1468 = vst [vmem:[#allocation3 + $0x508] sm:$0xff] %v1436
      %1469 = vst [vmem:[#allocation3 + $0x550] sm:$0xff] %v1437
      %1470 = vst [vmem:[#allocation3 + $0x598] sm:$0xff] %v1438
      %1471 = vst [vmem:[#allocation3 + $0x5e0] sm:$0xff] %v1439
      %1472 = vst [vmem:[#allocation3 + $0x628] sm:$0xff] %v1440
      %1473 = vst [vmem:[#allocation3 + $0x670] sm:$0xff] %v1441
      %1474 = vst [vmem:[#allocation3 + $0x6b8] sm:$0xff] %v1442
      %1475 = vst [vmem:[#allocation3 + $0x700] sm:$0xff] %v1443
      %1476 = vst [vmem:[#allocation3 + $0x748] sm:$0xff] %v1444
      %1477 = vst [vmem:[#allocation3 + $0x790] sm:$0xff] %v1445
      %1478 = vst [vmem:[#allocation3 + $0x7d8] sm:$0xff] %v1446
      %1479 = vst [vmem:[#allocation3 + $0x820] sm:$0xff] %v1447
      %1480 = vst [vmem:[#allocation3 + $0x868] sm:$0xff] %v1448
      %1481 = vst [vmem:[#allocation3 + $0x8b0] sm:$0xff] %v1449
      %1482 = vst [vmem:[#allocation3 + $0x8f8] sm:$0xff] %v1450
      %v1483 = vld [vmem:[#allocation3] sm:$0xff]
      %v1484 = vld [vmem:[#allocation3 + $0x8] sm:$0xff]
      %v1485 = vld [vmem:[#allocation3 + $0x10] sm:$0xff]
      %v1486 = vld [vmem:[#allocation3 + $0x18] sm:$0xff]
      %v1487 = vld [vmem:[#allocation3 + $0x20] sm:$0xff]
      %v1488 = vld [vmem:[#allocation3 + $0x28] sm:$0xff]
      %v1489 = vld [vmem:[#allocation3 + $0x30] sm:$0xff]
      %v1490 = vld [vmem:[#allocation3 + $0x38] sm:$0xff]
      %v1491 = vld [vmem:[#allocation3 + $0x40] sm:$0xff]
      %v1492 = vld [vmem:[#allocation3 + $0x48] sm:$0xff]
      %v1493 = vld [vmem:[#allocation3 + $0x50] sm:$0xff]
      %v1494 = vld [vmem:[#allocation3 + $0x58] sm:$0xff]
      %v1495 = vld [vmem:[#allocation3 + $0x60] sm:$0xff]
      %v1496 = vld [vmem:[#allocation3 + $0x68] sm:$0xff]
      %v1497 = vld [vmem:[#allocation3 + $0x70] sm:$0xff]
      %v1498 = vld [vmem:[#allocation3 + $0x78] sm:$0xff]
      %v1499 = vld [vmem:[#allocation3 + $0x80] sm:$0xff]
      %v1500 = vld [vmem:[#allocation3 + $0x88] sm:$0xff]
      %v1501 = vld [vmem:[#allocation3 + $0x90] sm:$0xff]
      %v1502 = vld [vmem:[#allocation3 + $0x98] sm:$0xff]
      %v1503 = vld [vmem:[#allocation3 + $0xa0] sm:$0xff]
      %v1504 = vld [vmem:[#allocation3 + $0xa8] sm:$0xff]
      %v1505 = vld [vmem:[#allocation3 + $0xb0] sm:$0xff]
      %v1506 = vld [vmem:[#allocation3 + $0xb8] sm:$0xff]
      %v1507 = vld [vmem:[#allocation3 + $0xc0] sm:$0xff]
      %v1508 = vld [vmem:[#allocation3 + $0xc8] sm:$0xff]
      %v1509 = vld [vmem:[#allocation3 + $0xd0] sm:$0xff]
      %v1510 = vld [vmem:[#allocation3 + $0xd8] sm:$0xff]
      %v1511 = vld [vmem:[#allocation3 + $0xe0] sm:$0xff]
      %v1512 = vld [vmem:[#allocation3 + $0xe8] sm:$0xff]
      %v1513 = vld [vmem:[#allocation3 + $0xf0] sm:$0xff]
      %v1514 = vld [vmem:[#allocation3 + $0xf8] sm:$0xff]
      %v1515 = vld [vmem:[#allocation3 + $0x100] sm:$0xff]
      %v1516 = vld [vmem:[#allocation3 + $0x108] sm:$0xff]
      %v1517 = vld [vmem:[#allocation3 + $0x110] sm:$0xff]
      %v1518 = vld [vmem:[#allocation3 + $0x118] sm:$0xff]
      %v1519 = vld [vmem:[#allocation3 + $0x120] sm:$0xff]
      %v1520 = vld [vmem:[#allocation3 + $0x128] sm:$0xff]
      %v1521 = vld [vmem:[#allocation3 + $0x130] sm:$0xff]
      %v1522 = vld [vmem:[#allocation3 + $0x138] sm:$0xff]
      %v1523 = vld [vmem:[#allocation3 + $0x140] sm:$0xff]
      %v1524 = vld [vmem:[#allocation3 + $0x148] sm:$0xff]
      %v1525 = vld [vmem:[#allocation3 + $0x150] sm:$0xff]
      %v1526 = vld [vmem:[#allocation3 + $0x158] sm:$0xff]
      %v1527 = vld [vmem:[#allocation3 + $0x160] sm:$0xff]
      %v1528 = vld [vmem:[#allocation3 + $0x168] sm:$0xff]
      %v1529 = vld [vmem:[#allocation3 + $0x170] sm:$0xff]
      %v1530 = vld [vmem:[#allocation3 + $0x178] sm:$0xff]
      %v1531 = vld [vmem:[#allocation3 + $0x180] sm:$0xff]
      %v1532 = vld [vmem:[#allocation3 + $0x188] sm:$0xff]
      %v1533 = vld [vmem:[#allocation3 + $0x190] sm:$0xff]
      %v1534 = vld [vmem:[#allocation3 + $0x198] sm:$0xff]
      %v1535 = vld [vmem:[#allocation3 + $0x1a0] sm:$0xff]
      %v1536 = vld [vmem:[#allocation3 + $0x1a8] sm:$0xff]
      %v1537 = vld [vmem:[#allocation3 + $0x1b0] sm:$0xff]
      %v1538 = vld [vmem:[#allocation3 + $0x1b8] sm:$0xff]
      %v1539 = vld [vmem:[#allocation3 + $0x1c0] sm:$0xff]
      %v1540 = vld [vmem:[#allocation3 + $0x1c8] sm:$0xff]
      %v1541 = vld [vmem:[#allocation3 + $0x1d0] sm:$0xff]
      %v1542 = vld [vmem:[#allocation3 + $0x1d8] sm:$0xff]
      %v1543 = vld [vmem:[#allocation3 + $0x1e0] sm:$0xff]
      %v1544 = vld [vmem:[#allocation3 + $0x1e8] sm:$0xff]
      %v1545 = vld [vmem:[#allocation3 + $0x1f0] sm:$0xff]
      %v1546 = vld [vmem:[#allocation3 + $0x1f8] sm:$0xff]
      %v1547 = vld [vmem:[#allocation3 + $0x200] sm:$0xff]
      %v1548 = vld [vmem:[#allocation3 + $0x208] sm:$0xff]
      %v1549 = vld [vmem:[#allocation3 + $0x210] sm:$0xff]
      %v1550 = vld [vmem:[#allocation3 + $0x218] sm:$0xff]
      %v1551 = vld [vmem:[#allocation3 + $0x220] sm:$0xff]
      %v1552 = vld [vmem:[#allocation3 + $0x228] sm:$0xff]
      %v1553 = vld [vmem:[#allocation3 + $0x230] sm:$0xff]
      %v1554 = vld [vmem:[#allocation3 + $0x238] sm:$0xff]
      %v1555 = vld [vmem:[#allocation3 + $0x240] sm:$0xff]
      %v1556 = vld [vmem:[#allocation3 + $0x248] sm:$0xff]
      %v1557 = vld [vmem:[#allocation3 + $0x250] sm:$0xff]
      %v1558 = vld [vmem:[#allocation3 + $0x258] sm:$0xff]
      %v1559 = vld [vmem:[#allocation3 + $0x260] sm:$0xff]
      %v1560 = vld [vmem:[#allocation3 + $0x268] sm:$0xff]
      %v1561 = vld [vmem:[#allocation3 + $0x270] sm:$0xff]
      %v1562 = vld [vmem:[#allocation3 + $0x278] sm:$0xff]
      %v1563 = vld [vmem:[#allocation3 + $0x280] sm:$0xff]
      %v1564 = vld [vmem:[#allocation3 + $0x288] sm:$0xff]
      %v1565 = vld [vmem:[#allocation3 + $0x290] sm:$0xff]
      %v1566 = vld [vmem:[#allocation3 + $0x298] sm:$0xff]
      %v1567 = vld [vmem:[#allocation3 + $0x2a0] sm:$0xff]
      %v1568 = vld [vmem:[#allocation3 + $0x2a8] sm:$0xff]
      %v1569 = vld [vmem:[#allocation3 + $0x2b0] sm:$0xff]
      %v1570 = vld [vmem:[#allocation3 + $0x2b8] sm:$0xff]
      %v1571 = vld [vmem:[#allocation3 + $0x2c0] sm:$0xff]
      %v1572 = vld [vmem:[#allocation3 + $0x2c8] sm:$0xff]
      %v1573 = vld [vmem:[#allocation3 + $0x2d0] sm:$0xff]
      %v1574 = vld [vmem:[#allocation3 + $0x2d8] sm:$0xff]
      %v1575 = vld [vmem:[#allocation3 + $0x2e0] sm:$0xff]
      %v1576 = vld [vmem:[#allocation3 + $0x2e8] sm:$0xff]
      %v1577 = vld [vmem:[#allocation3 + $0x2f0] sm:$0xff]
      %v1578 = vld [vmem:[#allocation3 + $0x2f8] sm:$0xff]
      %v1579 = vld [vmem:[#allocation3 + $0x300] sm:$0xff]
      %v1580 = vld [vmem:[#allocation3 + $0x308] sm:$0xff]
      %v1581 = vld [vmem:[#allocation3 + $0x310] sm:$0xff]
      %v1582 = vld [vmem:[#allocation3 + $0x318] sm:$0xff]
      %v1583 = vld [vmem:[#allocation3 + $0x320] sm:$0xff]
      %v1584 = vld [vmem:[#allocation3 + $0x328] sm:$0xff]
      %v1585 = vld [vmem:[#allocation3 + $0x330] sm:$0xff]
      %v1586 = vld [vmem:[#allocation3 + $0x338] sm:$0xff]
      %v1587 = vld [vmem:[#allocation3 + $0x340] sm:$0xff]
      %v1588 = vld [vmem:[#allocation3 + $0x348] sm:$0xff]
      %v1589 = vld [vmem:[#allocation3 + $0x350] sm:$0xff]
      %v1590 = vld [vmem:[#allocation3 + $0x358] sm:$0xff]
      %v1591 = vld [vmem:[#allocation3 + $0x360] sm:$0xff]
      %v1592 = vld [vmem:[#allocation3 + $0x368] sm:$0xff]
      %v1593 = vld [vmem:[#allocation3 + $0x370] sm:$0xff]
      %v1594 = vld [vmem:[#allocation3 + $0x378] sm:$0xff]
      %v1595 = vld [vmem:[#allocation3 + $0x380] sm:$0xff]
      %v1596 = vld [vmem:[#allocation3 + $0x388] sm:$0xff]
      %v1597 = vld [vmem:[#allocation3 + $0x390] sm:$0xff]
      %v1598 = vld [vmem:[#allocation3 + $0x398] sm:$0xff]
      %v1599 = vld [vmem:[#allocation3 + $0x3a0] sm:$0xff]
      %v1600 = vld [vmem:[#allocation3 + $0x3a8] sm:$0xff]
      %v1601 = vld [vmem:[#allocation3 + $0x3b0] sm:$0xff]
      %v1602 = vld [vmem:[#allocation3 + $0x3b8] sm:$0xff]
      %v1603 = vld [vmem:[#allocation3 + $0x3c0] sm:$0xff]
      %v1604 = vld [vmem:[#allocation3 + $0x3c8] sm:$0xff]
      %v1605 = vld [vmem:[#allocation3 + $0x3d0] sm:$0xff]
      %v1606 = vld [vmem:[#allocation3 + $0x3d8] sm:$0xff]
      %v1607 = vld [vmem:[#allocation3 + $0x3e0] sm:$0xff]
      %v1608 = vld [vmem:[#allocation3 + $0x3e8] sm:$0xff]
      %v1609 = vld [vmem:[#allocation3 + $0x3f0] sm:$0xff]
      %v1610 = vld [vmem:[#allocation3 + $0x3f8] sm:$0xff]
      %v1611 = vld [vmem:[#allocation3 + $0x400] sm:$0xff]
      %v1612 = vld [vmem:[#allocation3 + $0x408] sm:$0xff]
      %v1613 = vld [vmem:[#allocation3 + $0x410] sm:$0xff]
      %v1614 = vld [vmem:[#allocation3 + $0x418] sm:$0xff]
      %v1615 = vld [vmem:[#allocation3 + $0x420] sm:$0xff]
      %v1616 = vld [vmem:[#allocation3 + $0x428] sm:$0xff]
      %v1617 = vld [vmem:[#allocation3 + $0x430] sm:$0xff]
      %v1618 = vld [vmem:[#allocation3 + $0x438] sm:$0xff]
      %v1619 = vld [vmem:[#allocation3 + $0x440] sm:$0xff]
      %v1620 = vld [vmem:[#allocation3 + $0x448] sm:$0xff]
      %v1621 = vld [vmem:[#allocation3 + $0x450] sm:$0xff]
      %v1622 = vld [vmem:[#allocation3 + $0x458] sm:$0xff]
      %v1623 = vld [vmem:[#allocation3 + $0x460] sm:$0xff]
      %v1624 = vld [vmem:[#allocation3 + $0x468] sm:$0xff]
      %v1625 = vld [vmem:[#allocation3 + $0x470] sm:$0xff]
      %v1626 = vld [vmem:[#allocation3 + $0x478] sm:$0xff]
      %v1627 = vld [vmem:[#allocation3 + $0x480] sm:$0xff]
      %v1628 = vld [vmem:[#allocation3 + $0x488] sm:$0xff]
      %v1629 = vld [vmem:[#allocation3 + $0x490] sm:$0xff]
      %v1630 = vld [vmem:[#allocation3 + $0x498] sm:$0xff]
      %v1631 = vld [vmem:[#allocation3 + $0x4a0] sm:$0xff]
      %v1632 = vld [vmem:[#allocation3 + $0x4a8] sm:$0xff]
      %v1633 = vld [vmem:[#allocation3 + $0x4b0] sm:$0xff]
      %v1634 = vld [vmem:[#allocation3 + $0x4b8] sm:$0xff]
      %v1635 = vld [vmem:[#allocation3 + $0x4c0] sm:$0xff]
      %v1636 = vld [vmem:[#allocation3 + $0x4c8] sm:$0xff]
      %v1637 = vld [vmem:[#allocation3 + $0x4d0] sm:$0xff]
      %v1638 = vld [vmem:[#allocation3 + $0x4d8] sm:$0xff]
      %v1639 = vld [vmem:[#allocation3 + $0x4e0] sm:$0xff]
      %v1640 = vld [vmem:[#allocation3 + $0x4e8] sm:$0xff]
      %v1641 = vld [vmem:[#allocation3 + $0x4f0] sm:$0xff]
      %v1642 = vld [vmem:[#allocation3 + $0x4f8] sm:$0xff]
      %v1643 = vld [vmem:[#allocation3 + $0x500] sm:$0xff]
      %v1644 = vld [vmem:[#allocation3 + $0x508] sm:$0xff]
      %v1645 = vld [vmem:[#allocation3 + $0x510] sm:$0xff]
      %v1646 = vld [vmem:[#allocation3 + $0x518] sm:$0xff]
      %v1647 = vld [vmem:[#allocation3 + $0x520] sm:$0xff]
      %v1648 = vld [vmem:[#allocation3 + $0x528] sm:$0xff]
      %v1649 = vld [vmem:[#allocation3 + $0x530] sm:$0xff]
      %v1650 = vld [vmem:[#allocation3 + $0x538] sm:$0xff]
      %v1651 = vld [vmem:[#allocation3 + $0x540] sm:$0xff]
      %v1652 = vld [vmem:[#allocation3 + $0x548] sm:$0xff]
      %v1653 = vld [vmem:[#allocation3 + $0x550] sm:$0xff]
      %v1654 = vld [vmem:[#allocation3 + $0x558] sm:$0xff]
      %v1655 = vld [vmem:[#allocation3 + $0x560] sm:$0xff]
      %v1656 = vld [vmem:[#allocation3 + $0x568] sm:$0xff]
      %v1657 = vld [vmem:[#allocation3 + $0x570] sm:$0xff]
      %v1658 = vld [vmem:[#allocation3 + $0x578] sm:$0xff]
      %v1659 = vld [vmem:[#allocation3 + $0x580] sm:$0xff]
      %v1660 = vld [vmem:[#allocation3 + $0x588] sm:$0xff]
      %v1661 = vld [vmem:[#allocation3 + $0x590] sm:$0xff]
      %v1662 = vld [vmem:[#allocation3 + $0x598] sm:$0xff]
      %v1663 = vld [vmem:[#allocation3 + $0x5a0] sm:$0xff]
      %v1664 = vld [vmem:[#allocation3 + $0x5a8] sm:$0xff]
      %v1665 = vld [vmem:[#allocation3 + $0x5b0] sm:$0xff]
      %v1666 = vld [vmem:[#allocation3 + $0x5b8] sm:$0xff]
      %v1667 = vld [vmem:[#allocation3 + $0x5c0] sm:$0xff]
      %v1668 = vld [vmem:[#allocation3 + $0x5c8] sm:$0xff]
      %v1669 = vld [vmem:[#allocation3 + $0x5d0] sm:$0xff]
      %v1670 = vld [vmem:[#allocation3 + $0x5d8] sm:$0xff]
      %v1671 = vld [vmem:[#allocation3 + $0x5e0] sm:$0xff]
      %v1672 = vld [vmem:[#allocation3 + $0x5e8] sm:$0xff]
      %v1673 = vld [vmem:[#allocation3 + $0x5f0] sm:$0xff]
      %v1674 = vld [vmem:[#allocation3 + $0x5f8] sm:$0xff]
      %v1675 = vld [vmem:[#allocation3 + $0x600] sm:$0xff]
      %v1676 = vld [vmem:[#allocation3 + $0x608] sm:$0xff]
      %v1677 = vld [vmem:[#allocation3 + $0x610] sm:$0xff]
      %v1678 = vld [vmem:[#allocation3 + $0x618] sm:$0xff]
      %v1679 = vld [vmem:[#allocation3 + $0x620] sm:$0xff]
      %v1680 = vld [vmem:[#allocation3 + $0x628] sm:$0xff]
      %v1681 = vld [vmem:[#allocation3 + $0x630] sm:$0xff]
      %v1682 = vld [vmem:[#allocation3 + $0x638] sm:$0xff]
      %v1683 = vld [vmem:[#allocation3 + $0x640] sm:$0xff]
      %v1684 = vld [vmem:[#allocation3 + $0x648] sm:$0xff]
      %v1685 = vld [vmem:[#allocation3 + $0x650] sm:$0xff]
      %v1686 = vld [vmem:[#allocation3 + $0x658] sm:$0xff]
      %v1687 = vld [vmem:[#allocation3 + $0x660] sm:$0xff]
      %v1688 = vld [vmem:[#allocation3 + $0x668] sm:$0xff]
      %v1689 = vld [vmem:[#allocation3 + $0x670] sm:$0xff]
      %v1690 = vld [vmem:[#allocation3 + $0x678] sm:$0xff]
      %v1691 = vld [vmem:[#allocation3 + $0x680] sm:$0xff]
      %v1692 = vld [vmem:[#allocation3 + $0x688] sm:$0xff]
      %v1693 = vld [vmem:[#allocation3 + $0x690] sm:$0xff]
      %v1694 = vld [vmem:[#allocation3 + $0x698] sm:$0xff]
      %v1695 = vld [vmem:[#allocation3 + $0x6a0] sm:$0xff]
      %v1696 = vld [vmem:[#allocation3 + $0x6a8] sm:$0xff]
      %v1697 = vld [vmem:[#allocation3 + $0x6b0] sm:$0xff]
      %v1698 = vld [vmem:[#allocation3 + $0x6b8] sm:$0xff]
      %v1699 = vld [vmem:[#allocation3 + $0x6c0] sm:$0xff]
      %v1700 = vld [vmem:[#allocation3 + $0x6c8] sm:$0xff]
      %v1701 = vld [vmem:[#allocation3 + $0x6d0] sm:$0xff]
      %v1702 = vld [vmem:[#allocation3 + $0x6d8] sm:$0xff]
      %v1703 = vld [vmem:[#allocation3 + $0x6e0] sm:$0xff]
      %v1704 = vld [vmem:[#allocation3 + $0x6e8] sm:$0xff]
      %v1705 = vld [vmem:[#allocation3 + $0x6f0] sm:$0xff]
      %v1706 = vld [vmem:[#allocation3 + $0x6f8] sm:$0xff]
      %v1707 = vld [vmem:[#allocation3 + $0x700] sm:$0xff]
      %v1708 = vld [vmem:[#allocation3 + $0x708] sm:$0xff]
      %v1709 = vld [vmem:[#allocation3 + $0x710] sm:$0xff]
      %v1710 = vld [vmem:[#allocation3 + $0x718] sm:$0xff]
      %v1711 = vld [vmem:[#allocation3 + $0x720] sm:$0xff]
      %v1712 = vld [vmem:[#allocation3 + $0x728] sm:$0xff]
      %v1713 = vld [vmem:[#allocation3 + $0x730] sm:$0xff]
      %v1714 = vld [vmem:[#allocation3 + $0x738] sm:$0xff]
      %v1715 = vld [vmem:[#allocation3 + $0x740] sm:$0xff]
      %v1716 = vld [vmem:[#allocation3 + $0x748] sm:$0xff]
      %v1717 = vld [vmem:[#allocation3 + $0x750] sm:$0xff]
      %v1718 = vld [vmem:[#allocation3 + $0x758] sm:$0xff]
      %v1719 = vld [vmem:[#allocation3 + $0x760] sm:$0xff]
      %v1720 = vld [vmem:[#allocation3 + $0x768] sm:$0xff]
      %v1721 = vld [vmem:[#allocation3 + $0x770] sm:$0xff]
      %v1722 = vld [vmem:[#allocation3 + $0x778] sm:$0xff]
      %v1723 = vld [vmem:[#allocation3 + $0x780] sm:$0xff]
      %v1724 = vld [vmem:[#allocation3 + $0x788] sm:$0xff]
      %v1725 = vld [vmem:[#allocation3 + $0x790] sm:$0xff]
      %v1726 = vld [vmem:[#allocation3 + $0x798] sm:$0xff]
      %v1727 = vld [vmem:[#allocation3 + $0x7a0] sm:$0xff]
      %v1728 = vld [vmem:[#allocation3 + $0x7a8] sm:$0xff]
      %v1729 = vld [vmem:[#allocation3 + $0x7b0] sm:$0xff]
      %v1730 = vld [vmem:[#allocation3 + $0x7b8] sm:$0xff]
      %v1731 = vld [vmem:[#allocation3 + $0x7c0] sm:$0xff]
      %v1732 = vld [vmem:[#allocation3 + $0x7c8] sm:$0xff]
      %v1733 = vld [vmem:[#allocation3 + $0x7d0] sm:$0xff]
      %v1734 = vld [vmem:[#allocation3 + $0x7d8] sm:$0xff]
      %v1735 = vld [vmem:[#allocation3 + $0x7e0] sm:$0xff]
      %v1736 = vld [vmem:[#allocation3 + $0x7e8] sm:$0xff]
      %v1737 = vld [vmem:[#allocation3 + $0x7f0] sm:$0xff]
      %v1738 = vld [vmem:[#allocation3 + $0x7f8] sm:$0xff]
      %v1739 = vld [vmem:[#allocation3 + $0x800] sm:$0xff]
      %v1740 = vld [vmem:[#allocation3 + $0x808] sm:$0xff]
      %v1741 = vld [vmem:[#allocation3 + $0x810] sm:$0xff]
      %v1742 = vld [vmem:[#allocation3 + $0x818] sm:$0xff]
      %v1743 = vld [vmem:[#allocation3 + $0x820] sm:$0xff]
      %v1744 = vld [vmem:[#allocation3 + $0x828] sm:$0xff]
      %v1745 = vld [vmem:[#allocation3 + $0x830] sm:$0xff]
      %v1746 = vld [vmem:[#allocation3 + $0x838] sm:$0xff]
      %v1747 = vld [vmem:[#allocation3 + $0x840] sm:$0xff]
      %v1748 = vld [vmem:[#allocation3 + $0x848] sm:$0xff]
      %v1749 = vld [vmem:[#allocation3 + $0x850] sm:$0xff]
      %v1750 = vld [vmem:[#allocation3 + $0x858] sm:$0xff]
      %v1751 = vld [vmem:[#allocation3 + $0x860] sm:$0xff]
      %v1752 = vld [vmem:[#allocation3 + $0x868] sm:$0xff]
      %v1753 = vld [vmem:[#allocation3 + $0x870] sm:$0xff]
      %v1754 = vld [vmem:[#allocation3 + $0x878] sm:$0xff]
      %v1755 = vld [vmem:[#allocation3 + $0x880] sm:$0xff]
      %v1756 = vld [vmem:[#allocation3 + $0x888] sm:$0xff]
      %v1757 = vld [vmem:[#allocation3 + $0x890] sm:$0xff]
      %v1758 = vld [vmem:[#allocation3 + $0x898] sm:$0xff]
      %v1759 = vld [vmem:[#allocation3 + $0x8a0] sm:$0xff]
      %v1760 = vld [vmem:[#allocation3 + $0x8a8] sm:$0xff]
      %v1761 = vld [vmem:[#allocation3 + $0x8b0] sm:$0xff]
      %v1762 = vld [vmem:[#allocation3 + $0x8b8] sm:$0xff]
      %v1763 = vld [vmem:[#allocation3 + $0x8c0] sm:$0xff]
      %v1764 = vld [vmem:[#allocation3 + $0x8c8] sm:$0xff]
      %v1765 = vld [vmem:[#allocation3 + $0x8d0] sm:$0xff]
      %v1766 = vld [vmem:[#allocation3 + $0x8d8] sm:$0xff]
      %v1767 = vld [vmem:[#allocation3 + $0x8e0] sm:$0xff]
      %v1768 = vld [vmem:[#allocation3 + $0x8e8] sm:$0xff]
      %v1769 = vld [vmem:[#allocation3 + $0x8f0] sm:$0xff]
      %v1770 = vld [vmem:[#allocation3 + $0x8f8] sm:$0xff]
      %v1771 = vld [vmem:[%s3] sm:$0xff]
      %v1772 = vld [vmem:[%s3 + $0x8] sm:$0xff]
      %v1773 = vld [vmem:[%s3 + $0x10] sm:$0xff]
      %v1774 = vld [vmem:[%s3 + $0x18] sm:$0xff]
      %v1775 = vld [vmem:[%s3 + $0x20] sm:$0xff]
      %v1776 = vld [vmem:[%s3 + $0x28] sm:$0xff]
      %v1777 = vld [vmem:[%s3 + $0x30] sm:$0xff]
      %v1778 = vld [vmem:[%s3 + $0x38] sm:$0xff]
      %v1779 = vld [vmem:[%s3 + $0x40] sm:$0xff]
      %v1780 = vld [vmem:[%s3 + $0x48] sm:$0xff]
      %v1781 = vld [vmem:[%s3 + $0x50] sm:$0xff]
      %v1782 = vld [vmem:[%s3 + $0x58] sm:$0xff]
      %v1783 = vld [vmem:[%s3 + $0x60] sm:$0xff]
      %v1784 = vld [vmem:[%s3 + $0x68] sm:$0xff]
      %v1785 = vld [vmem:[%s3 + $0x70] sm:$0xff]
      %v1786 = vld [vmem:[%s3 + $0x78] sm:$0xff]
      %v1787 = vld [vmem:[%s3 + $0x80] sm:$0xff]
      %v1788 = vld [vmem:[%s3 + $0x88] sm:$0xff]
      %v1789 = vld [vmem:[%s3 + $0x90] sm:$0xff]
      %v1790 = vld [vmem:[%s3 + $0x98] sm:$0xff]
      %v1791 = vld [vmem:[%s3 + $0xa0] sm:$0xff]
      %v1792 = vld [vmem:[%s3 + $0xa8] sm:$0xff]
      %v1793 = vld [vmem:[%s3 + $0xb0] sm:$0xff]
      %v1794 = vld [vmem:[%s3 + $0xb8] sm:$0xff]
      %v1795 = vld [vmem:[%s3 + $0xc0] sm:$0xff]
      %v1796 = vld [vmem:[%s3 + $0xc8] sm:$0xff]
      %v1797 = vld [vmem:[%s3 + $0xd0] sm:$0xff]
      %v1798 = vld [vmem:[%s3 + $0xd8] sm:$0xff]
      %v1799 = vld [vmem:[%s3 + $0xe0] sm:$0xff]
      %v1800 = vld [vmem:[%s3 + $0xe8] sm:$0xff]
      %v1801 = vld [vmem:[%s3 + $0xf0] sm:$0xff]
      %v1802 = vld [vmem:[%s3 + $0xf8] sm:$0xff]
      %v1803 = vld [vmem:[%s3 + $0x100] sm:$0xff]
      %v1804 = vld [vmem:[%s3 + $0x108] sm:$0xff]
      %v1805 = vld [vmem:[%s3 + $0x110] sm:$0xff]
      %v1806 = vld [vmem:[%s3 + $0x118] sm:$0xff]
      %v1807 = vld [vmem:[%s3 + $0x120] sm:$0xff]
      %v1808 = vld [vmem:[%s3 + $0x128] sm:$0xff]
      %v1809 = vld [vmem:[%s3 + $0x130] sm:$0xff]
      %v1810 = vld [vmem:[%s3 + $0x138] sm:$0xff]
      %v1811 = vld [vmem:[%s3 + $0x140] sm:$0xff]
      %v1812 = vld [vmem:[%s3 + $0x148] sm:$0xff]
      %v1813 = vld [vmem:[%s3 + $0x150] sm:$0xff]
      %v1814 = vld [vmem:[%s3 + $0x158] sm:$0xff]
      %v1815 = vld [vmem:[%s3 + $0x160] sm:$0xff]
      %v1816 = vld [vmem:[%s3 + $0x168] sm:$0xff]
      %v1817 = vld [vmem:[%s3 + $0x170] sm:$0xff]
      %v1818 = vld [vmem:[%s3 + $0x178] sm:$0xff]
      %v1819 = vld [vmem:[%s3 + $0x180] sm:$0xff]
      %v1820 = vld [vmem:[%s3 + $0x188] sm:$0xff]
      %v1821 = vld [vmem:[%s3 + $0x190] sm:$0xff]
      %v1822 = vld [vmem:[%s3 + $0x198] sm:$0xff]
      %v1823 = vld [vmem:[%s3 + $0x1a0] sm:$0xff]
      %v1824 = vld [vmem:[%s3 + $0x1a8] sm:$0xff]
      %v1825 = vld [vmem:[%s3 + $0x1b0] sm:$0xff]
      %v1826 = vld [vmem:[%s3 + $0x1b8] sm:$0xff]
      %v1827 = vld [vmem:[%s3 + $0x1c0] sm:$0xff]
      %v1828 = vld [vmem:[%s3 + $0x1c8] sm:$0xff]
      %v1829 = vld [vmem:[%s3 + $0x1d0] sm:$0xff]
      %v1830 = vld [vmem:[%s3 + $0x1d8] sm:$0xff]
      %v1831 = vld [vmem:[%s3 + $0x1e0] sm:$0xff]
      %v1832 = vld [vmem:[%s3 + $0x1e8] sm:$0xff]
      %v1833 = vld [vmem:[%s3 + $0x1f0] sm:$0xff]
      %v1834 = vld [vmem:[%s3 + $0x1f8] sm:$0xff]
      %v1835 = vld [vmem:[%s3 + $0x200] sm:$0xff]
      %v1836 = vld [vmem:[%s3 + $0x208] sm:$0xff]
      %v1837 = vld [vmem:[%s3 + $0x210] sm:$0xff]
      %v1838 = vld [vmem:[%s3 + $0x218] sm:$0xff]
      %v1839 = vld [vmem:[%s3 + $0x220] sm:$0xff]
      %v1840 = vld [vmem:[%s3 + $0x228] sm:$0xff]
      %v1841 = vld [vmem:[%s3 + $0x230] sm:$0xff]
      %v1842 = vld [vmem:[%s3 + $0x238] sm:$0xff]
      %v1843 = vld [vmem:[%s3 + $0x240] sm:$0xff]
      %v1844 = vld [vmem:[%s3 + $0x248] sm:$0xff]
      %v1845 = vld [vmem:[%s3 + $0x250] sm:$0xff]
      %v1846 = vld [vmem:[%s3 + $0x258] sm:$0xff]
      %v1847 = vld [vmem:[%s3 + $0x260] sm:$0xff]
      %v1848 = vld [vmem:[%s3 + $0x268] sm:$0xff]
      %v1849 = vld [vmem:[%s3 + $0x270] sm:$0xff]
      %v1850 = vld [vmem:[%s3 + $0x278] sm:$0xff]
      %v1851 = vld [vmem:[%s3 + $0x280] sm:$0xff]
      %v1852 = vld [vmem:[%s3 + $0x288] sm:$0xff]
      %v1853 = vld [vmem:[%s3 + $0x290] sm:$0xff]
      %v1854 = vld [vmem:[%s3 + $0x298] sm:$0xff]
      %v1855 = vld [vmem:[%s3 + $0x2a0] sm:$0xff]
      %v1856 = vld [vmem:[%s3 + $0x2a8] sm:$0xff]
      %v1857 = vld [vmem:[%s3 + $0x2b0] sm:$0xff]
      %v1858 = vld [vmem:[%s3 + $0x2b8] sm:$0xff]
      %v1859 = vld [vmem:[%s3 + $0x2c0] sm:$0xff]
      %v1860 = vld [vmem:[%s3 + $0x2c8] sm:$0xff]
      %v1861 = vld [vmem:[%s3 + $0x2d0] sm:$0xff]
      %v1862 = vld [vmem:[%s3 + $0x2d8] sm:$0xff]
      %v1863 = vld [vmem:[%s3 + $0x2e0] sm:$0xff]
      %v1864 = vld [vmem:[%s3 + $0x2e8] sm:$0xff]
      %v1865 = vld [vmem:[%s3 + $0x2f0] sm:$0xff]
      %v1866 = vld [vmem:[%s3 + $0x2f8] sm:$0xff]
      %v1867 = vld [vmem:[%s3 + $0x300] sm:$0xff]
      %v1868 = vld [vmem:[%s3 + $0x308] sm:$0xff]
      %v1869 = vld [vmem:[%s3 + $0x310] sm:$0xff]
      %v1870 = vld [vmem:[%s3 + $0x318] sm:$0xff]
      %v1871 = vld [vmem:[%s3 + $0x320] sm:$0xff]
      %v1872 = vld [vmem:[%s3 + $0x328] sm:$0xff]
      %v1873 = vld [vmem:[%s3 + $0x330] sm:$0xff]
      %v1874 = vld [vmem:[%s3 + $0x338] sm:$0xff]
      %v1875 = vld [vmem:[%s3 + $0x340] sm:$0xff]
      %v1876 = vld [vmem:[%s3 + $0x348] sm:$0xff]
      %v1877 = vld [vmem:[%s3 + $0x350] sm:$0xff]
      %v1878 = vld [vmem:[%s3 + $0x358] sm:$0xff]
      %v1879 = vld [vmem:[%s3 + $0x360] sm:$0xff]
      %v1880 = vld [vmem:[%s3 + $0x368] sm:$0xff]
      %v1881 = vld [vmem:[%s3 + $0x370] sm:$0xff]
      %v1882 = vld [vmem:[%s3 + $0x378] sm:$0xff]
      %v1883 = vld [vmem:[%s3 + $0x380] sm:$0xff]
      %v1884 = vld [vmem:[%s3 + $0x388] sm:$0xff]
      %v1885 = vld [vmem:[%s3 + $0x390] sm:$0xff]
      %v1886 = vld [vmem:[%s3 + $0x398] sm:$0xff]
      %v1887 = vld [vmem:[%s3 + $0x3a0] sm:$0xff]
      %v1888 = vld [vmem:[%s3 + $0x3a8] sm:$0xff]
      %v1889 = vld [vmem:[%s3 + $0x3b0] sm:$0xff]
      %v1890 = vld [vmem:[%s3 + $0x3b8] sm:$0xff]
      %v1891 = vld [vmem:[%s3 + $0x3c0] sm:$0xff]
      %v1892 = vld [vmem:[%s3 + $0x3c8] sm:$0xff]
      %v1893 = vld [vmem:[%s3 + $0x3d0] sm:$0xff]
      %v1894 = vld [vmem:[%s3 + $0x3d8] sm:$0xff]
      %v1895 = vld [vmem:[%s3 + $0x3e0] sm:$0xff]
      %v1896 = vld [vmem:[%s3 + $0x3e8] sm:$0xff]
      %v1897 = vld [vmem:[%s3 + $0x3f0] sm:$0xff]
      %v1898 = vld [vmem:[%s3 + $0x3f8] sm:$0xff]
      %v1899 = vld [vmem:[%s3 + $0x400] sm:$0xff]
      %v1900 = vld [vmem:[%s3 + $0x408] sm:$0xff]
      %v1901 = vld [vmem:[%s3 + $0x410] sm:$0xff]
      %v1902 = vld [vmem:[%s3 + $0x418] sm:$0xff]
      %v1903 = vld [vmem:[%s3 + $0x420] sm:$0xff]
      %v1904 = vld [vmem:[%s3 + $0x428] sm:$0xff]
      %v1905 = vld [vmem:[%s3 + $0x430] sm:$0xff]
      %v1906 = vld [vmem:[%s3 + $0x438] sm:$0xff]
      %v1907 = vld [vmem:[%s3 + $0x440] sm:$0xff]
      %v1908 = vld [vmem:[%s3 + $0x448] sm:$0xff]
      %v1909 = vld [vmem:[%s3 + $0x450] sm:$0xff]
      %v1910 = vld [vmem:[%s3 + $0x458] sm:$0xff]
      %v1911 = vld [vmem:[%s3 + $0x460] sm:$0xff]
      %v1912 = vld [vmem:[%s3 + $0x468] sm:$0xff]
      %v1913 = vld [vmem:[%s3 + $0x470] sm:$0xff]
      %v1914 = vld [vmem:[%s3 + $0x478] sm:$0xff]
      %v1915 = vld [vmem:[%s4] sm:$0x1]
      %v1917 = vlaneseq
      %v1918 = vshrl.u32 %v1917, 7
      %v1919 = vsub.s32 0, %v1918
      %v1920 = vrot.slane %v1915, %v1919
      %1922 = vmatprep.subr.mxu0 0.0
      %1923 = vmatpush1.msra.mxu0 %v1771
      %1924 = vmatprep.subr.mxu0 0.0
      %1925 = vmatpush1.msra.mxu0 %v1772
      %1926 = vmatprep.subr.mxu0 0.0
      %1927 = vmatpush1.msra.mxu0 %v1773
      %1928 = vmatprep.subr.mxu0 0.0
      %1929 = vmatpush1.msra.mxu0 %v1774
      %1930 = vmatprep.subr.mxu0 0.0
      %1931 = vmatpush1.msra.mxu0 %v1775
      %1932 = vmatprep.subr.mxu0 0.0
      %1933 = vmatpush1.msra.mxu0 %v1776
      %1934 = vmatprep.subr.mxu0 0.0
      %1935 = vmatpush1.msra.mxu0 %v1777
      %1936 = vmatprep.subr.mxu0 0.0
      %1937 = vmatpush1.msra.mxu0 %v1778
      %1938 = vmatprep.subr.mxu0 0.0
      %1939 = vmatpush1.msra.mxu0 %v1779
      %1940 = vmatprep.subr.mxu0 0.0
      %1941 = vmatpush1.msra.mxu0 %v1780
      %1942 = vmatprep.subr.mxu0 0.0
      %1943 = vmatpush1.msra.mxu0 %v1781
      %1944 = vmatprep.subr.mxu0 0.0
      %1945 = vmatpush1.msra.mxu0 %v1782
      %1946 = vmatprep.subr.mxu0 0.0
      %1947 = vmatpush1.msra.mxu0 %v1783
      %1948 = vmatprep.subr.mxu0 0.0
      %1949 = vmatpush1.msra.mxu0 %v1784
      %1950 = vmatprep.subr.mxu0 0.0
      %1951 = vmatpush1.msra.mxu0 %v1785
      %1952 = vmatprep.subr.mxu0 0.0
      %1953 = vmatpush1.msra.mxu0 %v1786
      %1954 = vmatprep.subr.mxu0 0.0
      %1955 = vmatpush1.msra.mxu0 %v1787
      %1956 = vmatprep.subr.mxu0 0.0
      %1957 = vmatpush1.msra.mxu0 %v1788
      %1958 = vmatprep.subr.mxu0 0.0
      %1959 = vmatpush1.msra.mxu0 %v1789
      %1960 = vmatprep.subr.mxu0 0.0
      %1961 = vmatpush1.msra.mxu0 %v1790
      %1962 = vmatprep.subr.mxu0 0.0
      %1963 = vmatpush1.msra.mxu0 %v1791
      %1964 = vmatprep.subr.mxu0 0.0
      %1965 = vmatpush1.msra.mxu0 %v1792
      %1966 = vmatprep.subr.mxu0 0.0
      %1967 = vmatpush1.msra.mxu0 %v1793
      %1968 = vmatprep.subr.mxu0 0.0
      %1969 = vmatpush1.msra.mxu0 %v1794
      %1970 = vmatprep.subr.mxu0 0.0
      %1971 = vmatpush1.msra.mxu0 %v1795
      %1972 = vmatprep.subr.mxu0 0.0
      %1973 = vmatpush1.msra.mxu0 %v1796
      %1974 = vmatprep.subr.mxu0 0.0
      %1975 = vmatpush1.msra.mxu0 %v1797
      %1976 = vmatprep.subr.mxu0 0.0
      %1977 = vmatpush1.msra.mxu0 %v1798
      %1978 = vmatprep.subr.mxu0 0.0
      %1979 = vmatpush1.msra.mxu0 %v1799
      %1980 = vmatprep.subr.mxu0 0.0
      %1981 = vmatpush1.msra.mxu0 %v1800
      %1982 = vmatprep.subr.mxu0 0.0
      %1983 = vmatpush1.msra.mxu0 %v1801
      %1984 = vmatprep.subr.mxu0 0.0
      %1985 = vmatpush1.msra.mxu0 %v1802
      %1986 = vmatprep.mubr.f32.mxu0 %v1484
      %1987 = vmatmul.mubr.f32.gmra.mrb[0].mxu0 %v1483
      %v1988 = vpop.f32.mrb[0].mxu0
      %v1989 = vadd.f32 %v1920, %v1988
      %v1990 = vpop.f32.mrb[0].mxu0
      %1991 = vmatprep.mubr.f32.mxu0 %v1493
      %1992 = vmatmul.mubr.f32.gmra.mrb[0].mxu0 %v1492
      %v1993 = vpop.f32.mrb[0].mxu0
      %v1994 = vadd.f32 %v1920, %v1993
      %v1995 = vpop.f32.mrb[0].mxu0
      %1996 = vmatprep.mubr.f32.mxu0 %v1502
      %1997 = vmatmul.mubr.f32.gmra.mrb[0].mxu0 %v1501
      %v1998 = vpop.f32.mrb[0].mxu0
      %v1999 = vadd.f32 %v1920, %v1998
      %v2000 = vpop.f32.mrb[0].mxu0
      %2001 = vmatprep.mubr.f32.mxu0 %v1511
      %2002 = vmatmul.mubr.f32.gmra.mrb[0].mxu0 %v1510
      %v2003 = vpop.f32.mrb[0].mxu0
      %v2004 = vadd.f32 %v1920, %v2003
      %v2005 = vpop.f32.mrb[0].mxu0
      %2006 = vmatprep.mubr.f32.mxu0 %v1520
      %2007 = vmatmul.mubr.f32.gmra.mrb[0].mxu0 %v1519
      %v2008 = vpop.f32.mrb[0].mxu0
      %v2009 = vadd.f32 %v1920, %v2008
      %v2010 = vpop.f32.mrb[0].mxu0
      %2011 = vmatprep.mubr.f32.mxu0 %v1529
      %2012 = vmatmul.mubr.f32.gmra.mrb[0].mxu0 %v1528
      %v2013 = vpop.f32.mrb[0].mxu0
      %v2014 = vadd.f32 %v1920, %v2013
      %v2015 = vpop.f32.mrb[0].mxu0
      %2016 = vmatprep.mubr.f32.mxu0 %v1538
      %2017 = vmatmul.mubr.f32.gmra.mrb[0].mxu0 %v1537
      %v2018 = vpop.f32.mrb[0].mxu0
      %v2019 = vadd.f32 %v1920, %v2018
      %v2020 = vpop.f32.mrb[0].mxu0
      %2021 = vmatprep.mubr.f32.mxu0 %v1547
      %2022 = vmatmul.mubr.f32.gmra.mrb[0].mxu0 %v1546
      %v2023 = vpop.f32.mrb[0].mxu0
      %v2024 = vadd.f32 %v1920, %v2023
      %v2025 = vpop.f32.mrb[0].mxu0
      %2026 = vmatprep.mubr.f32.mxu0 %v1556
      %2027 = vmatmul.mubr.f32.gmra.mrb[0].mxu0 %v1555
      %v2028 = vpop.f32.mrb[0].mxu0
      %v2029 = vadd.f32 %v1920, %v2028
      %v2030 = vpop.f32.mrb[0].mxu0
      %2031 = vmatprep.mubr.f32.mxu0 %v1565
      %2032 = vmatmul.mubr.f32.gmra.mrb[0].mxu0 %v1564
      %v2033 = vpop.f32.mrb[0].mxu0
      %v2034 = vadd.f32 %v1920, %v2033
      %v2035 = vpop.f32.mrb[0].mxu0
      %2036 = vmatprep.mubr.f32.mxu0 %v1574
      %2037 = vmatmul.mubr.f32.gmra.mrb[0].mxu0 %v1573
      %v2038 = vpop.f32.mrb[0].mxu0
      %v2039 = vadd.f32 %v1920, %v2038
      %v2040 = vpop.f32.mrb[0].mxu0
      %2041 = vmatprep.mubr.f32.mxu0 %v1583
      %2042 = vmatmul.mubr.f32.gmra.mrb[0].mxu0 %v1582
      %v2043 = vpop.f32.mrb[0].mxu0
      %v2044 = vadd.f32 %v1920, %v2043
      %v2045 = vpop.f32.mrb[0].mxu0
      %2046 = vmatprep.mubr.f32.mxu0 %v1592
      %2047 = vmatmul.mubr.f32.gmra.mrb[0].mxu0 %v1591
      %v2048 = vpop.f32.mrb[0].mxu0
      %v2049 = vadd.f32 %v1920, %v2048
      %v2050 = vpop.f32.mrb[0].mxu0
      %2051 = vmatprep.mubr.f32.mxu0 %v1601
      %2052 = vmatmul.mubr.f32.gmra.mrb[0].mxu0 %v1600
      %v2053 = vpop.f32.mrb[0].mxu0
      %v2054 = vadd.f32 %v1920, %v2053
      %v2055 = vpop.f32.mrb[0].mxu0
      %2056 = vmatprep.mubr.f32.mxu0 %v1610
      %2057 = vmatmul.mubr.f32.gmra.mrb[0].mxu0 %v1609
      %v2058 = vpop.f32.mrb[0].mxu0
      %v2059 = vadd.f32 %v1920, %v2058
      %v2060 = vpop.f32.mrb[0].mxu0
      %2061 = vmatprep.mubr.f32.mxu0 %v1619
      %2062 = vmatmul.mubr.f32.gmra.mrb[0].mxu0 %v1618
      %v2063 = vpop.f32.mrb[0].mxu0
      %v2064 = vadd.f32 %v1920, %v2063
      %v2065 = vpop.f32.mrb[0].mxu0
      %2066 = vmatprep.mubr.f32.mxu0 %v1628
      %2067 = vmatmul.mubr.f32.gmra.mrb[0].mxu0 %v1627
      %v2068 = vpop.f32.mrb[0].mxu0
      %v2069 = vadd.f32 %v1920, %v2068
      %v2070 = vpop.f32.mrb[0].mxu0
      %2071 = vmatprep.mubr.f32.mxu0 %v1637
      %2072 = vmatmul.mubr.f32.gmra.mrb[0].mxu0 %v1636
      %v2073 = vpop.f32.mrb[0].mxu0
      %v2074 = vadd.f32 %v1920, %v2073
      %v2075 = vpop.f32.mrb[0].mxu0
      %2076 = vmatprep.mubr.f32.mxu0 %v1646
      %2077 = vmatmul.mubr.f32.gmra.mrb[0].mxu0 %v1645
      %v2078 = vpop.f32.mrb[0].mxu0
      %v2079 = vadd.f32 %v1920, %v2078
      %v2080 = vpop.f32.mrb[0].mxu0
      %2081 = vmatprep.mubr.f32.mxu0 %v1655
      %2082 = vmatmul.mubr.f32.gmra.mrb[0].mxu0 %v1654
      %v2083 = vpop.f32.mrb[0].mxu0
      %v2084 = vadd.f32 %v1920, %v2083
      %v2085 = vpop.f32.mrb[0].mxu0
      %2086 = vmatprep.mubr.f32.mxu0 %v1664
      %2087 = vmatmul.mubr.f32.gmra.mrb[0].mxu0 %v1663
      %v2088 = vpop.f32.mrb[0].mxu0
      %v2089 = vadd.f32 %v1920, %v2088
      %v2090 = vpop.f32.mrb[0].mxu0
      %2091 = vmatprep.mubr.f32.mxu0 %v1673
      %2092 = vmatmul.mubr.f32.gmra.mrb[0].mxu0 %v1672
      %v2093 = vpop.f32.mrb[0].mxu0
      %v2094 = vadd.f32 %v1920, %v2093
      %v2095 = vpop.f32.mrb[0].mxu0
      %2096 = vmatprep.mubr.f32.mxu0 %v1682
      %2097 = vmatmul.mubr.f32.gmra.mrb[0].mxu0 %v1681
      %v2098 = vpop.f32.mrb[0].mxu0
      %v2099 = vadd.f32 %v1920, %v2098
      %v2100 = vpop.f32.mrb[0].mxu0
      %2101 = vmatprep.mubr.f32.mxu0 %v1691
      %2102 = vmatmul.mubr.f32.gmra.mrb[0].mxu0 %v1690
      %v2103 = vpop.f32.mrb[0].mxu0
      %v2104 = vadd.f32 %v1920, %v2103
      %v2105 = vpop.f32.mrb[0].mxu0
      %2106 = vmatprep.mubr.f32.mxu0 %v1700
      %2107 = vmatmul.mubr.f32.gmra.mrb[0].mxu0 %v1699
      %v2108 = vpop.f32.mrb[0].mxu0
      %v2109 = vadd.f32 %v1920, %v2108
      %v2110 = vpop.f32.mrb[0].mxu0
      %2111 = vmatprep.mubr.f32.mxu0 %v1709
      %2112 = vmatmul.mubr.f32.gmra.mrb[0].mxu0 %v1708
      %v2113 = vpop.f32.mrb[0].mxu0
      %v2114 = vadd.f32 %v1920, %v2113
      %v2115 = vpop.f32.mrb[0].mxu0
      %2116 = vmatprep.mubr.f32.mxu0 %v1718
      %2117 = vmatmul.mubr.f32.gmra.mrb[0].mxu0 %v1717
      %v2118 = vpop.f32.mrb[0].mxu0
      %v2119 = vadd.f32 %v1920, %v2118
      %v2120 = vpop.f32.mrb[0].mxu0
      %2121 = vmatprep.mubr.f32.mxu0 %v1727
      %2122 = vmatmul.mubr.f32.gmra.mrb[0].mxu0 %v1726
      %v2123 = vpop.f32.mrb[0].mxu0
      %v2124 = vadd.f32 %v1920, %v2123
      %v2125 = vpop.f32.mrb[0].mxu0
      %2126 = vmatprep.mubr.f32.mxu0 %v1736
      %2127 = vmatmul.mubr.f32.gmra.mrb[0].mxu0 %v1735
      %v2128 = vpop.f32.mrb[0].mxu0
      %v2129 = vadd.f32 %v1920, %v2128
      %v2130 = vpop.f32.mrb[0].mxu0
      %2131 = vmatprep.mubr.f32.mxu0 %v1745
      %2132 = vmatmul.mubr.f32.gmra.mrb[0].mxu0 %v1744
      %v2133 = vpop.f32.mrb[0].mxu0
      %v2134 = vadd.f32 %v1920, %v2133
      %v2135 = vpop.f32.mrb[0].mxu0
      %2136 = vmatprep.mubr.f32.mxu0 %v1754
      %2137 = vmatmul.mubr.f32.gmra.mrb[0].mxu0 %v1753
      %v2138 = vpop.f32.mrb[0].mxu0
      %v2139 = vadd.f32 %v1920, %v2138
      %v2140 = vpop.f32.mrb[0].mxu0
      %2141 = vmatprep.mubr.f32.mxu0 %v1763
      %2142 = vmatmul.mubr.f32.gmra.mrb[0].mxu0 %v1762
      %v2143 = vpop.f32.mrb[0].mxu0
      %v2144 = vadd.f32 %v1920, %v2143
      %v2145 = vpop.f32.mrb[0].mxu0
      %2146 = vdwg.mxu0
      %2147 = vmatprep.subr.mxu0 0.0
      %2148 = vmatpush1.msra.mxu0 %v1803
      %2149 = vmatprep.subr.mxu0 0.0
      %2150 = vmatpush1.msra.mxu0 %v1804
      %2151 = vmatprep.subr.mxu0 0.0
      %2152 = vmatpush1.msra.mxu0 %v1805
      %2153 = vmatprep.subr.mxu0 0.0
      %2154 = vmatpush1.msra.mxu0 %v1806
      %2155 = vmatprep.subr.mxu0 0.0
      %2156 = vmatpush1.msra.mxu0 %v1807
      %2157 = vmatprep.subr.mxu0 0.0
      %2158 = vmatpush1.msra.mxu0 %v1808
      %2159 = vmatprep.subr.mxu0 0.0
      %2160 = vmatpush1.msra.mxu0 %v1809
      %2161 = vmatprep.subr.mxu0 0.0
      %2162 = vmatpush1.msra.mxu0 %v1810
      %2163 = vmatprep.subr.mxu0 0.0
      %2164 = vmatpush1.msra.mxu0 %v1811
      %2165 = vmatprep.subr.mxu0 0.0
      %2166 = vmatpush1.msra.mxu0 %v1812
      %2167 = vmatprep.subr.mxu0 0.0
      %2168 = vmatpush1.msra.mxu0 %v1813
      %2169 = vmatprep.subr.mxu0 0.0
      %2170 = vmatpush1.msra.mxu0 %v1814
      %2171 = vmatprep.subr.mxu0 0.0
      %2172 = vmatpush1.msra.mxu0 %v1815
      %2173 = vmatprep.subr.mxu0 0.0
      %2174 = vmatpush1.msra.mxu0 %v1816
      %2175 = vmatprep.subr.mxu0 0.0
      %2176 = vmatpush1.msra.mxu0 %v1817
      %2177 = vmatprep.subr.mxu0 0.0
      %2178 = vmatpush1.msra.mxu0 %v1818
      %2179 = vmatprep.subr.mxu0 0.0
      %2180 = vmatpush1.msra.mxu0 %v1819
      %2181 = vmatprep.subr.mxu0 0.0
      %2182 = vmatpush1.msra.mxu0 %v1820
      %2183 = vmatprep.subr.mxu0 0.0
      %2184 = vmatpush1.msra.mxu0 %v1821
      %2185 = vmatprep.subr.mxu0 0.0
      %2186 = vmatpush1.msra.mxu0 %v1822
      %2187 = vmatprep.subr.mxu0 0.0
      %2188 = vmatpush1.msra.mxu0 %v1823
      %2189 = vmatprep.subr.mxu0 0.0
      %2190 = vmatpush1.msra.mxu0 %v1824
      %2191 = vmatprep.subr.mxu0 0.0
      %2192 = vmatpush1.msra.mxu0 %v1825
      %2193 = vmatprep.subr.mxu0 0.0
      %2194 = vmatpush1.msra.mxu0 %v1826
      %2195 = vmatprep.subr.mxu0 0.0
      %2196 = vmatpush1.msra.mxu0 %v1827
      %2197 = vmatprep.subr.mxu0 0.0
      %2198 = vmatpush1.msra.mxu0 %v1828
      %2199 = vmatprep.subr.mxu0 0.0
      %2200 = vmatpush1.msra.mxu0 %v1829
      %2201 = vmatprep.subr.mxu0 0.0
      %2202 = vmatpush1.msra.mxu0 %v1830
      %2203 = vmatprep.subr.mxu0 0.0
      %2204 = vmatpush1.msra.mxu0 %v1831
      %2205 = vmatprep.subr.mxu0 0.0
      %2206 = vmatpush1.msra.mxu0 %v1832
      %2207 = vmatprep.subr.mxu0 0.0
      %2208 = vmatpush1.msra.mxu0 %v1833
      %2209 = vmatprep.subr.mxu0 0.0
      %2210 = vmatpush1.msra.mxu0 %v1834
      %2211 = vmatprep.mubr.f32.mxu0 %v1486
      %2212 = vmatmul.mubr.f32.gmra.mrb[0].mxu0 %v1485
      %v2213 = vpop.f32.mrb[0].mxu0
      %v2214 = vadd.f32 %v1989, %v2213
      %v2215 = vpop.f32.mrb[0].mxu0
      %2216 = vmatprep.mubr.f32.mxu0 %v1495
      %2217 = vmatmul.mubr.f32.gmra.mrb[0].mxu0 %v1494
      %v2218 = vpop.f32.mrb[0].mxu0
      %v2219 = vadd.f32 %v1994, %v2218
      %v2220 = vpop.f32.mrb[0].mxu0
      %2221 = vmatprep.mubr.f32.mxu0 %v1504
      %2222 = vmatmul.mubr.f32.gmra.mrb[0].mxu0 %v1503
      %v2223 = vpop.f32.mrb[0].mxu0
      %v2224 = vadd.f32 %v1999, %v2223
      %v2225 = vpop.f32.mrb[0].mxu0
      %2226 = vmatprep.mubr.f32.mxu0 %v1513
      %2227 = vmatmul.mubr.f32.gmra.mrb[0].mxu0 %v1512
      %v2228 = vpop.f32.mrb[0].mxu0
      %v2229 = vadd.f32 %v2004, %v2228
      %v2230 = vpop.f32.mrb[0].mxu0
      %2231 = vmatprep.mubr.f32.mxu0 %v1522
      %2232 = vmatmul.mubr.f32.gmra.mrb[0].mxu0 %v1521
      %v2233 = vpop.f32.mrb[0].mxu0
      %v2234 = vadd.f32 %v2009, %v2233
      %v2235 = vpop.f32.mrb[0].mxu0
      %2236 = vmatprep.mubr.f32.mxu0 %v1531
      %2237 = vmatmul.mubr.f32.gmra.mrb[0].mxu0 %v1530
      %v2238 = vpop.f32.mrb[0].mxu0
      %v2239 = vadd.f32 %v2014, %v2238
      %v2240 = vpop.f32.mrb[0].mxu0
      %2241 = vmatprep.mubr.f32.mxu0 %v1540
      %2242 = vmatmul.mubr.f32.gmra.mrb[0].mxu0 %v1539
      %v2243 = vpop.f32.mrb[0].mxu0
      %v2244 = vadd.f32 %v2019, %v2243
      %v2245 = vpop.f32.mrb[0].mxu0
      %2246 = vmatprep.mubr.f32.mxu0 %v1549
      %2247 = vmatmul.mubr.f32.gmra.mrb[0].mxu0 %v1548
      %v2248 = vpop.f32.mrb[0].mxu0
      %v2249 = vadd.f32 %v2024, %v2248
      %v2250 = vpop.f32.mrb[0].mxu0
      %2251 = vmatprep.mubr.f32.mxu0 %v1558
      %2252 = vmatmul.mubr.f32.gmra.mrb[0].mxu0 %v1557
      %v2253 = vpop.f32.mrb[0].mxu0
      %v2254 = vadd.f32 %v2029, %v2253
      %v2255 = vpop.f32.mrb[0].mxu0
      %2256 = vmatprep.mubr.f32.mxu0 %v1567
      %2257 = vmatmul.mubr.f32.gmra.mrb[0].mxu0 %v1566
      %v2258 = vpop.f32.mrb[0].mxu0
      %v2259 = vadd.f32 %v2034, %v2258
      %v2260 = vpop.f32.mrb[0].mxu0
      %2261 = vmatprep.mubr.f32.mxu0 %v1576
      %2262 = vmatmul.mubr.f32.gmra.mrb[0].mxu0 %v1575
      %v2263 = vpop.f32.mrb[0].mxu0
      %v2264 = vadd.f32 %v2039, %v2263
      %v2265 = vpop.f32.mrb[0].mxu0
      %2266 = vmatprep.mubr.f32.mxu0 %v1585
      %2267 = vmatmul.mubr.f32.gmra.mrb[0].mxu0 %v1584
      %v2268 = vpop.f32.mrb[0].mxu0
      %v2269 = vadd.f32 %v2044, %v2268
      %v2270 = vpop.f32.mrb[0].mxu0
      %2271 = vmatprep.mubr.f32.mxu0 %v1594
      %2272 = vmatmul.mubr.f32.gmra.mrb[0].mxu0 %v1593
      %v2273 = vpop.f32.mrb[0].mxu0
      %v2274 = vadd.f32 %v2049, %v2273
      %v2275 = vpop.f32.mrb[0].mxu0
      %2276 = vmatprep.mubr.f32.mxu0 %v1603
      %2277 = vmatmul.mubr.f32.gmra.mrb[0].mxu0 %v1602
      %v2278 = vpop.f32.mrb[0].mxu0
      %v2279 = vadd.f32 %v2054, %v2278
      %v2280 = vpop.f32.mrb[0].mxu0
      %2281 = vmatprep.mubr.f32.mxu0 %v1612
      %2282 = vmatmul.mubr.f32.gmra.mrb[0].mxu0 %v1611
      %v2283 = vpop.f32.mrb[0].mxu0
      %v2284 = vadd.f32 %v2059, %v2283
      %v2285 = vpop.f32.mrb[0].mxu0
      %2286 = vmatprep.mubr.f32.mxu0 %v1621
      %2287 = vmatmul.mubr.f32.gmra.mrb[0].mxu0 %v1620
      %v2288 = vpop.f32.mrb[0].mxu0
      %v2289 = vadd.f32 %v2064, %v2288
      %v2290 = vpop.f32.mrb[0].mxu0
      %2291 = vmatprep.mubr.f32.mxu0 %v1630
      %2292 = vmatmul.mubr.f32.gmra.mrb[0].mxu0 %v1629
      %v2293 = vpop.f32.mrb[0].mxu0
      %v2294 = vadd.f32 %v2069, %v2293
      %v2295 = vpop.f32.mrb[0].mxu0
      %2296 = vmatprep.mubr.f32.mxu0 %v1639
      %2297 = vmatmul.mubr.f32.gmra.mrb[0].mxu0 %v1638
      %v2298 = vpop.f32.mrb[0].mxu0
      %v2299 = vadd.f32 %v2074, %v2298
      %v2300 = vpop.f32.mrb[0].mxu0
      %2301 = vmatprep.mubr.f32.mxu0 %v1648
      %2302 = vmatmul.mubr.f32.gmra.mrb[0].mxu0 %v1647
      %v2303 = vpop.f32.mrb[0].mxu0
      %v2304 = vadd.f32 %v2079, %v2303
      %v2305 = vpop.f32.mrb[0].mxu0
      %2306 = vmatprep.mubr.f32.mxu0 %v1657
      %2307 = vmatmul.mubr.f32.gmra.mrb[0].mxu0 %v1656
      %v2308 = vpop.f32.mrb[0].mxu0
      %v2309 = vadd.f32 %v2084, %v2308
      %v2310 = vpop.f32.mrb[0].mxu0
      %2311 = vmatprep.mubr.f32.mxu0 %v1666
      %2312 = vmatmul.mubr.f32.gmra.mrb[0].mxu0 %v1665
      %v2313 = vpop.f32.mrb[0].mxu0
      %v2314 = vadd.f32 %v2089, %v2313
      %v2315 = vpop.f32.mrb[0].mxu0
      %2316 = vmatprep.mubr.f32.mxu0 %v1675
      %2317 = vmatmul.mubr.f32.gmra.mrb[0].mxu0 %v1674
      %v2318 = vpop.f32.mrb[0].mxu0
      %v2319 = vadd.f32 %v2094, %v2318
      %v2320 = vpop.f32.mrb[0].mxu0
      %2321 = vmatprep.mubr.f32.mxu0 %v1684
      %2322 = vmatmul.mubr.f32.gmra.mrb[0].mxu0 %v1683
      %v2323 = vpop.f32.mrb[0].mxu0
      %v2324 = vadd.f32 %v2099, %v2323
      %v2325 = vpop.f32.mrb[0].mxu0
      %2326 = vmatprep.mubr.f32.mxu0 %v1693
      %2327 = vmatmul.mubr.f32.gmra.mrb[0].mxu0 %v1692
      %v2328 = vpop.f32.mrb[0].mxu0
      %v2329 = vadd.f32 %v2104, %v2328
      %v2330 = vpop.f32.mrb[0].mxu0
      %2331 = vmatprep.mubr.f32.mxu0 %v1702
      %2332 = vmatmul.mubr.f32.gmra.mrb[0].mxu0 %v1701
      %v2333 = vpop.f32.mrb[0].mxu0
      %v2334 = vadd.f32 %v2109, %v2333
      %v2335 = vpop.f32.mrb[0].mxu0
      %2336 = vmatprep.mubr.f32.mxu0 %v1711
      %2337 = vmatmul.mubr.f32.gmra.mrb[0].mxu0 %v1710
      %v2338 = vpop.f32.mrb[0].mxu0
      %v2339 = vadd.f32 %v2114, %v2338
      %v2340 = vpop.f32.mrb[0].mxu0
      %2341 = vmatprep.mubr.f32.mxu0 %v1720
      %2342 = vmatmul.mubr.f32.gmra.mrb[0].mxu0 %v1719
      %v2343 = vpop.f32.mrb[0].mxu0
      %v2344 = vadd.f32 %v2119, %v2343
      %v2345 = vpop.f32.mrb[0].mxu0
      %2346 = vmatprep.mubr.f32.mxu0 %v1729
      %2347 = vmatmul.mubr.f32.gmra.mrb[0].mxu0 %v1728
      %v2348 = vpop.f32.mrb[0].mxu0
      %v2349 = vadd.f32 %v2124, %v2348
      %v2350 = vpop.f32.mrb[0].mxu0
      %2351 = vmatprep.mubr.f32.mxu0 %v1738
      %2352 = vmatmul.mubr.f32.gmra.mrb[0].mxu0 %v1737
      %v2353 = vpop.f32.mrb[0].mxu0
      %v2354 = vadd.f32 %v2129, %v2353
      %v2355 = vpop.f32.mrb[0].mxu0
      %2356 = vmatprep.mubr.f32.mxu0 %v1747
      %2357 = vmatmul.mubr.f32.gmra.mrb[0].mxu0 %v1746
      %v2358 = vpop.f32.mrb[0].mxu0
      %v2359 = vadd.f32 %v2134, %v2358
      %v2360 = vpop.f32.mrb[0].mxu0
      %2361 = vmatprep.mubr.f32.mxu0 %v1756
      %2362 = vmatmul.mubr.f32.gmra.mrb[0].mxu0 %v1755
      %v2363 = vpop.f32.mrb[0].mxu0
      %v2364 = vadd.f32 %v2139, %v2363
      %v2365 = vpop.f32.mrb[0].mxu0
      %2366 = vmatprep.mubr.f32.mxu0 %v1765
      %2367 = vmatmul.mubr.f32.gmra.mrb[0].mxu0 %v1764
      %v2368 = vpop.f32.mrb[0].mxu0
      %v2369 = vadd.f32 %v2144, %v2368
      %v2370 = vpop.f32.mrb[0].mxu0
      %2371 = vdwg.mxu0
      %2372 = vmatprep.subr.mxu0 0.0
      %2373 = vmatpush1.msra.mxu0 %v1835
      %2374 = vmatprep.subr.mxu0 0.0
      %2375 = vmatpush1.msra.mxu0 %v1836
      %2376 = vmatprep.subr.mxu0 0.0
      %2377 = vmatpush1.msra.mxu0 %v1837
      %2378 = vmatprep.subr.mxu0 0.0
      %2379 = vmatpush1.msra.mxu0 %v1838
      %2380 = vmatprep.subr.mxu0 0.0
      %2381 = vmatpush1.msra.mxu0 %v1839
      %2382 = vmatprep.subr.mxu0 0.0
      %2383 = vmatpush1.msra.mxu0 %v1840
      %2384 = vmatprep.subr.mxu0 0.0
      %2385 = vmatpush1.msra.mxu0 %v1841
      %2386 = vmatprep.subr.mxu0 0.0
      %2387 = vmatpush1.msra.mxu0 %v1842
      %2388 = vmatprep.subr.mxu0 0.0
      %2389 = vmatpush1.msra.mxu0 %v1843
      %2390 = vmatprep.subr.mxu0 0.0
      %2391 = vmatpush1.msra.mxu0 %v1844
      %2392 = vmatprep.subr.mxu0 0.0
      %2393 = vmatpush1.msra.mxu0 %v1845
      %2394 = vmatprep.subr.mxu0 0.0
      %2395 = vmatpush1.msra.mxu0 %v1846
      %2396 = vmatprep.subr.mxu0 0.0
      %2397 = vmatpush1.msra.mxu0 %v1847
      %2398 = vmatprep.subr.mxu0 0.0
      %2399 = vmatpush1.msra.mxu0 %v1848
      %2400 = vmatprep.subr.mxu0 0.0
      %2401 = vmatpush1.msra.mxu0 %v1849
      %2402 = vmatprep.subr.mxu0 0.0
      %2403 = vmatpush1.msra.mxu0 %v1850
      %2404 = vmatprep.subr.mxu0 0.0
      %2405 = vmatpush1.msra.mxu0 %v1851
      %2406 = vmatprep.subr.mxu0 0.0
      %2407 = vmatpush1.msra.mxu0 %v1852
      %2408 = vmatprep.subr.mxu0 0.0
      %2409 = vmatpush1.msra.mxu0 %v1853
      %2410 = vmatprep.subr.mxu0 0.0
      %2411 = vmatpush1.msra.mxu0 %v1854
      %2412 = vmatprep.subr.mxu0 0.0
      %2413 = vmatpush1.msra.mxu0 %v1855
      %2414 = vmatprep.subr.mxu0 0.0
      %2415 = vmatpush1.msra.mxu0 %v1856
      %2416 = vmatprep.subr.mxu0 0.0
      %2417 = vmatpush1.msra.mxu0 %v1857
      %2418 = vmatprep.subr.mxu0 0.0
      %2419 = vmatpush1.msra.mxu0 %v1858
      %2420 = vmatprep.subr.mxu0 0.0
      %2421 = vmatpush1.msra.mxu0 %v1859
      %2422 = vmatprep.subr.mxu0 0.0
      %2423 = vmatpush1.msra.mxu0 %v1860
      %2424 = vmatprep.subr.mxu0 0.0
      %2425 = vmatpush1.msra.mxu0 %v1861
      %2426 = vmatprep.subr.mxu0 0.0
      %2427 = vmatpush1.msra.mxu0 %v1862
      %2428 = vmatprep.subr.mxu0 0.0
      %2429 = vmatpush1.msra.mxu0 %v1863
      %2430 = vmatprep.subr.mxu0 0.0
      %2431 = vmatpush1.msra.mxu0 %v1864
      %2432 = vmatprep.subr.mxu0 0.0
      %2433 = vmatpush1.msra.mxu0 %v1865
      %2434 = vmatprep.subr.mxu0 0.0
      %2435 = vmatpush1.msra.mxu0 %v1866
      %2436 = vmatprep.mubr.f32.mxu0 %v1488
      %2437 = vmatmul.mubr.f32.gmra.mrb[0].mxu0 %v1487
      %v2438 = vpop.f32.mrb[0].mxu0
      %v2439 = vadd.f32 %v2214, %v2438
      %v2440 = vpop.f32.mrb[0].mxu0
      %2441 = vmatprep.mubr.f32.mxu0 %v1497
      %2442 = vmatmul.mubr.f32.gmra.mrb[0].mxu0 %v1496
      %v2443 = vpop.f32.mrb[0].mxu0
      %v2444 = vadd.f32 %v2219, %v2443
      %v2445 = vpop.f32.mrb[0].mxu0
      %2446 = vmatprep.mubr.f32.mxu0 %v1506
      %2447 = vmatmul.mubr.f32.gmra.mrb[0].mxu0 %v1505
      %v2448 = vpop.f32.mrb[0].mxu0
      %v2449 = vadd.f32 %v2224, %v2448
      %v2450 = vpop.f32.mrb[0].mxu0
      %2451 = vmatprep.mubr.f32.mxu0 %v1515
      %2452 = vmatmul.mubr.f32.gmra.mrb[0].mxu0 %v1514
      %v2453 = vpop.f32.mrb[0].mxu0
      %v2454 = vadd.f32 %v2229, %v2453
      %v2455 = vpop.f32.mrb[0].mxu0
      %2456 = vmatprep.mubr.f32.mxu0 %v1524
      %2457 = vmatmul.mubr.f32.gmra.mrb[0].mxu0 %v1523
      %v2458 = vpop.f32.mrb[0].mxu0
      %v2459 = vadd.f32 %v2234, %v2458
      %v2460 = vpop.f32.mrb[0].mxu0
      %2461 = vmatprep.mubr.f32.mxu0 %v1533
      %2462 = vmatmul.mubr.f32.gmra.mrb[0].mxu0 %v1532
      %v2463 = vpop.f32.mrb[0].mxu0
      %v2464 = vadd.f32 %v2239, %v2463
      %v2465 = vpop.f32.mrb[0].mxu0
      %2466 = vmatprep.mubr.f32.mxu0 %v1542
      %2467 = vmatmul.mubr.f32.gmra.mrb[0].mxu0 %v1541
      %v2468 = vpop.f32.mrb[0].mxu0
      %v2469 = vadd.f32 %v2244, %v2468
      %v2470 = vpop.f32.mrb[0].mxu0
      %2471 = vmatprep.mubr.f32.mxu0 %v1551
      %2472 = vmatmul.mubr.f32.gmra.mrb[0].mxu0 %v1550
      %v2473 = vpop.f32.mrb[0].mxu0
      %v2474 = vadd.f32 %v2249, %v2473
      %v2475 = vpop.f32.mrb[0].mxu0
      %2476 = vmatprep.mubr.f32.mxu0 %v1560
      %2477 = vmatmul.mubr.f32.gmra.mrb[0].mxu0 %v1559
      %v2478 = vpop.f32.mrb[0].mxu0
      %v2479 = vadd.f32 %v2254, %v2478
      %v2480 = vpop.f32.mrb[0].mxu0
      %2481 = vmatprep.mubr.f32.mxu0 %v1569
      %2482 = vmatmul.mubr.f32.gmra.mrb[0].mxu0 %v1568
      %v2483 = vpop.f32.mrb[0].mxu0
      %v2484 = vadd.f32 %v2259, %v2483
      %v2485 = vpop.f32.mrb[0].mxu0
      %2486 = vmatprep.mubr.f32.mxu0 %v1578
      %2487 = vmatmul.mubr.f32.gmra.mrb[0].mxu0 %v1577
      %v2488 = vpop.f32.mrb[0].mxu0
      %v2489 = vadd.f32 %v2264, %v2488
      %v2490 = vpop.f32.mrb[0].mxu0
      %2491 = vmatprep.mubr.f32.mxu0 %v1587
      %2492 = vmatmul.mubr.f32.gmra.mrb[0].mxu0 %v1586
      %v2493 = vpop.f32.mrb[0].mxu0
      %v2494 = vadd.f32 %v2269, %v2493
      %v2495 = vpop.f32.mrb[0].mxu0
      %2496 = vmatprep.mubr.f32.mxu0 %v1596
      %2497 = vmatmul.mubr.f32.gmra.mrb[0].mxu0 %v1595
      %v2498 = vpop.f32.mrb[0].mxu0
      %v2499 = vadd.f32 %v2274, %v2498
      %v2500 = vpop.f32.mrb[0].mxu0
      %2501 = vmatprep.mubr.f32.mxu0 %v1605
      %2502 = vmatmul.mubr.f32.gmra.mrb[0].mxu0 %v1604
      %v2503 = vpop.f32.mrb[0].mxu0
      %v2504 = vadd.f32 %v2279, %v2503
      %v2505 = vpop.f32.mrb[0].mxu0
      %2506 = vmatprep.mubr.f32.mxu0 %v1614
      %2507 = vmatmul.mubr.f32.gmra.mrb[0].mxu0 %v1613
      %v2508 = vpop.f32.mrb[0].mxu0
      %v2509 = vadd.f32 %v2284, %v2508
      %v2510 = vpop.f32.mrb[0].mxu0
      %2511 = vmatprep.mubr.f32.mxu0 %v1623
      %2512 = vmatmul.mubr.f32.gmra.mrb[0].mxu0 %v1622
      %v2513 = vpop.f32.mrb[0].mxu0
      %v2514 = vadd.f32 %v2289, %v2513
      %v2515 = vpop.f32.mrb[0].mxu0
      %2516 = vmatprep.mubr.f32.mxu0 %v1632
      %2517 = vmatmul.mubr.f32.gmra.mrb[0].mxu0 %v1631
      %v2518 = vpop.f32.mrb[0].mxu0
      %v2519 = vadd.f32 %v2294, %v2518
      %v2520 = vpop.f32.mrb[0].mxu0
      %2521 = vmatprep.mubr.f32.mxu0 %v1641
      %2522 = vmatmul.mubr.f32.gmra.mrb[0].mxu0 %v1640
      %v2523 = vpop.f32.mrb[0].mxu0
      %v2524 = vadd.f32 %v2299, %v2523
      %v2525 = vpop.f32.mrb[0].mxu0
      %2526 = vmatprep.mubr.f32.mxu0 %v1650
      %2527 = vmatmul.mubr.f32.gmra.mrb[0].mxu0 %v1649
      %v2528 = vpop.f32.mrb[0].mxu0
      %v2529 = vadd.f32 %v2304, %v2528
      %v2530 = vpop.f32.mrb[0].mxu0
      %2531 = vmatprep.mubr.f32.mxu0 %v1659
      %2532 = vmatmul.mubr.f32.gmra.mrb[0].mxu0 %v1658
      %v2533 = vpop.f32.mrb[0].mxu0
      %v2534 = vadd.f32 %v2309, %v2533
      %v2535 = vpop.f32.mrb[0].mxu0
      %2536 = vmatprep.mubr.f32.mxu0 %v1668
      %2537 = vmatmul.mubr.f32.gmra.mrb[0].mxu0 %v1667
      %v2538 = vpop.f32.mrb[0].mxu0
      %v2539 = vadd.f32 %v2314, %v2538
      %v2540 = vpop.f32.mrb[0].mxu0
      %2541 = vmatprep.mubr.f32.mxu0 %v1677
      %2542 = vmatmul.mubr.f32.gmra.mrb[0].mxu0 %v1676
      %v2543 = vpop.f32.mrb[0].mxu0
      %v2544 = vadd.f32 %v2319, %v2543
      %v2545 = vpop.f32.mrb[0].mxu0
      %2546 = vmatprep.mubr.f32.mxu0 %v1686
      %2547 = vmatmul.mubr.f32.gmra.mrb[0].mxu0 %v1685
      %v2548 = vpop.f32.mrb[0].mxu0
      %v2549 = vadd.f32 %v2324, %v2548
      %v2550 = vpop.f32.mrb[0].mxu0
      %2551 = vmatprep.mubr.f32.mxu0 %v1695
      %2552 = vmatmul.mubr.f32.gmra.mrb[0].mxu0 %v1694
      %v2553 = vpop.f32.mrb[0].mxu0
      %v2554 = vadd.f32 %v2329, %v2553
      %v2555 = vpop.f32.mrb[0].mxu0
      %2556 = vmatprep.mubr.f32.mxu0 %v1704
      %2557 = vmatmul.mubr.f32.gmra.mrb[0].mxu0 %v1703
      %v2558 = vpop.f32.mrb[0].mxu0
      %v2559 = vadd.f32 %v2334, %v2558
      %v2560 = vpop.f32.mrb[0].mxu0
      %2561 = vmatprep.mubr.f32.mxu0 %v1713
      %2562 = vmatmul.mubr.f32.gmra.mrb[0].mxu0 %v1712
      %v2563 = vpop.f32.mrb[0].mxu0
      %v2564 = vadd.f32 %v2339, %v2563
      %v2565 = vpop.f32.mrb[0].mxu0
      %2566 = vmatprep.mubr.f32.mxu0 %v1722
      %2567 = vmatmul.mubr.f32.gmra.mrb[0].mxu0 %v1721
      %v2568 = vpop.f32.mrb[0].mxu0
      %v2569 = vadd.f32 %v2344, %v2568
      %v2570 = vpop.f32.mrb[0].mxu0
      %2571 = vmatprep.mubr.f32.mxu0 %v1731
      %2572 = vmatmul.mubr.f32.gmra.mrb[0].mxu0 %v1730
      %v2573 = vpop.f32.mrb[0].mxu0
      %v2574 = vadd.f32 %v2349, %v2573
      %v2575 = vpop.f32.mrb[0].mxu0
      %2576 = vmatprep.mubr.f32.mxu0 %v1740
      %2577 = vmatmul.mubr.f32.gmra.mrb[0].mxu0 %v1739
      %v2578 = vpop.f32.mrb[0].mxu0
      %v2579 = vadd.f32 %v2354, %v2578
      %v2580 = vpop.f32.mrb[0].mxu0
      %2581 = vmatprep.mubr.f32.mxu0 %v1749
      %2582 = vmatmul.mubr.f32.gmra.mrb[0].mxu0 %v1748
      %v2583 = vpop.f32.mrb[0].mxu0
      %v2584 = vadd.f32 %v2359, %v2583
      %v2585 = vpop.f32.mrb[0].mxu0
      %2586 = vmatprep.mubr.f32.mxu0 %v1758
      %2587 = vmatmul.mubr.f32.gmra.mrb[0].mxu0 %v1757
      %v2588 = vpop.f32.mrb[0].mxu0
      %v2589 = vadd.f32 %v2364, %v2588
      %v2590 = vpop.f32.mrb[0].mxu0
      %2591 = vmatprep.mubr.f32.mxu0 %v1767
      %2592 = vmatmul.mubr.f32.gmra.mrb[0].mxu0 %v1766
      %v2593 = vpop.f32.mrb[0].mxu0
      %v2594 = vadd.f32 %v2369, %v2593
      %v2595 = vpop.f32.mrb[0].mxu0
      %2596 = vdwg.mxu0
      %2597 = vmatprep.subr.mxu0 0.0
      %2598 = vmatpush1.msra.mxu0 %v1867
      %2599 = vmatprep.subr.mxu0 0.0
      %2600 = vmatpush1.msra.mxu0 %v1868
      %2601 = vmatprep.subr.mxu0 0.0
      %2602 = vmatpush1.msra.mxu0 %v1869
      %2603 = vmatprep.subr.mxu0 0.0
      %2604 = vmatpush1.msra.mxu0 %v1870
      %2605 = vmatprep.subr.mxu0 0.0
      %2606 = vmatpush1.msra.mxu0 %v1871
      %2607 = vmatprep.subr.mxu0 0.0
      %2608 = vmatpush1.msra.mxu0 %v1872
      %2609 = vmatprep.subr.mxu0 0.0
      %2610 = vmatpush1.msra.mxu0 %v1873
      %2611 = vmatprep.subr.mxu0 0.0
      %2612 = vmatpush1.msra.mxu0 %v1874
      %2613 = vmatprep.subr.mxu0 0.0
      %2614 = vmatpush1.msra.mxu0 %v1875
      %2615 = vmatprep.subr.mxu0 0.0
      %2616 = vmatpush1.msra.mxu0 %v1876
      %2617 = vmatprep.subr.mxu0 0.0
      %2618 = vmatpush1.msra.mxu0 %v1877
      %2619 = vmatprep.subr.mxu0 0.0
      %2620 = vmatpush1.msra.mxu0 %v1878
      %2621 = vmatprep.subr.mxu0 0.0
      %2622 = vmatpush1.msra.mxu0 %v1879
      %2623 = vmatprep.subr.mxu0 0.0
      %2624 = vmatpush1.msra.mxu0 %v1880
      %2625 = vmatprep.subr.mxu0 0.0
      %2626 = vmatpush1.msra.mxu0 %v1881
      %2627 = vmatprep.subr.mxu0 0.0
      %2628 = vmatpush1.msra.mxu0 %v1882
      %2629 = vmatprep.subr.mxu0 0.0
      %2630 = vmatpush1.msra.mxu0 %v1883
      %2631 = vmatprep.subr.mxu0 0.0
      %2632 = vmatpush1.msra.mxu0 %v1884
      %2633 = vmatprep.subr.mxu0 0.0
      %2634 = vmatpush1.msra.mxu0 %v1885
      %2635 = vmatprep.subr.mxu0 0.0
      %2636 = vmatpush1.msra.mxu0 %v1886
      %2637 = vmatprep.subr.mxu0 0.0
      %2638 = vmatpush1.msra.mxu0 %v1887
      %2639 = vmatprep.subr.mxu0 0.0
      %2640 = vmatpush1.msra.mxu0 %v1888
      %2641 = vmatprep.subr.mxu0 0.0
      %2642 = vmatpush1.msra.mxu0 %v1889
      %2643 = vmatprep.subr.mxu0 0.0
      %2644 = vmatpush1.msra.mxu0 %v1890
      %2645 = vmatprep.subr.mxu0 0.0
      %2646 = vmatpush1.msra.mxu0 %v1891
      %2647 = vmatprep.subr.mxu0 0.0
      %2648 = vmatpush1.msra.mxu0 %v1892
      %2649 = vmatprep.subr.mxu0 0.0
      %2650 = vmatpush1.msra.mxu0 %v1893
      %2651 = vmatprep.subr.mxu0 0.0
      %2652 = vmatpush1.msra.mxu0 %v1894
      %2653 = vmatprep.subr.mxu0 0.0
      %2654 = vmatpush1.msra.mxu0 %v1895
      %2655 = vmatprep.subr.mxu0 0.0
      %2656 = vmatpush1.msra.mxu0 %v1896
      %2657 = vmatprep.subr.mxu0 0.0
      %2658 = vmatpush1.msra.mxu0 %v1897
      %2659 = vmatprep.subr.mxu0 0.0
      %2660 = vmatpush1.msra.mxu0 %v1898
      %2661 = vmatprep.mubr.f32.mxu0 %v1490
      %2662 = vmatmul.mubr.f32.gmra.mrb[0].mxu0 %v1489
      %v2663 = vpop.f32.mrb[0].mxu0
      %v2664 = vadd.f32 %v2439, %v2663
      %v2665 = vpop.f32.mrb[0].mxu0
      %2666 = vmatprep.mubr.f32.mxu0 %v1499
      %2667 = vmatmul.mubr.f32.gmra.mrb[0].mxu0 %v1498
      %v2668 = vpop.f32.mrb[0].mxu0
      %v2669 = vadd.f32 %v2444, %v2668
      %v2670 = vpop.f32.mrb[0].mxu0
      %2671 = vmatprep.mubr.f32.mxu0 %v1508
      %2672 = vmatmul.mubr.f32.gmra.mrb[0].mxu0 %v1507
      %v2673 = vpop.f32.mrb[0].mxu0
      %v2674 = vadd.f32 %v2449, %v2673
      %v2675 = vpop.f32.mrb[0].mxu0
      %2676 = vmatprep.mubr.f32.mxu0 %v1517
      %2677 = vmatmul.mubr.f32.gmra.mrb[0].mxu0 %v1516
      %v2678 = vpop.f32.mrb[0].mxu0
      %v2679 = vadd.f32 %v2454, %v2678
      %v2680 = vpop.f32.mrb[0].mxu0
      %2681 = vmatprep.mubr.f32.mxu0 %v1526
      %2682 = vmatmul.mubr.f32.gmra.mrb[0].mxu0 %v1525
      %v2683 = vpop.f32.mrb[0].mxu0
      %v2684 = vadd.f32 %v2459, %v2683
      %v2685 = vpop.f32.mrb[0].mxu0
      %2686 = vmatprep.mubr.f32.mxu0 %v1535
      %2687 = vmatmul.mubr.f32.gmra.mrb[0].mxu0 %v1534
      %v2688 = vpop.f32.mrb[0].mxu0
      %v2689 = vadd.f32 %v2464, %v2688
      %v2690 = vpop.f32.mrb[0].mxu0
      %2691 = vmatprep.mubr.f32.mxu0 %v1544
      %2692 = vmatmul.mubr.f32.gmra.mrb[0].mxu0 %v1543
      %v2693 = vpop.f32.mrb[0].mxu0
      %v2694 = vadd.f32 %v2469, %v2693
      %v2695 = vpop.f32.mrb[0].mxu0
      %2696 = vmatprep.mubr.f32.mxu0 %v1553
      %2697 = vmatmul.mubr.f32.gmra.mrb[0].mxu0 %v1552
      %v2698 = vpop.f32.mrb[0].mxu0
      %v2699 = vadd.f32 %v2474, %v2698
      %v2700 = vpop.f32.mrb[0].mxu0
      %2701 = vmatprep.mubr.f32.mxu0 %v1562
      %2702 = vmatmul.mubr.f32.gmra.mrb[0].mxu0 %v1561
      %v2703 = vpop.f32.mrb[0].mxu0
      %v2704 = vadd.f32 %v2479, %v2703
      %v2705 = vpop.f32.mrb[0].mxu0
      %2706 = vmatprep.mubr.f32.mxu0 %v1571
      %2707 = vmatmul.mubr.f32.gmra.mrb[0].mxu0 %v1570
      %v2708 = vpop.f32.mrb[0].mxu0
      %v2709 = vadd.f32 %v2484, %v2708
      %v2710 = vpop.f32.mrb[0].mxu0
      %2711 = vmatprep.mubr.f32.mxu0 %v1580
      %2712 = vmatmul.mubr.f32.gmra.mrb[0].mxu0 %v1579
      %v2713 = vpop.f32.mrb[0].mxu0
      %v2714 = vadd.f32 %v2489, %v2713
      %v2715 = vpop.f32.mrb[0].mxu0
      %2716 = vmatprep.mubr.f32.mxu0 %v1589
      %2717 = vmatmul.mubr.f32.gmra.mrb[0].mxu0 %v1588
      %v2718 = vpop.f32.mrb[0].mxu0
      %v2719 = vadd.f32 %v2494, %v2718
      %v2720 = vpop.f32.mrb[0].mxu0
      %2721 = vmatprep.mubr.f32.mxu0 %v1598
      %2722 = vmatmul.mubr.f32.gmra.mrb[0].mxu0 %v1597
      %v2723 = vpop.f32.mrb[0].mxu0
      %v2724 = vadd.f32 %v2499, %v2723
      %v2725 = vpop.f32.mrb[0].mxu0
      %2726 = vmatprep.mubr.f32.mxu0 %v1607
      %2727 = vmatmul.mubr.f32.gmra.mrb[0].mxu0 %v1606
      %v2728 = vpop.f32.mrb[0].mxu0
      %v2729 = vadd.f32 %v2504, %v2728
      %v2730 = vpop.f32.mrb[0].mxu0
      %2731 = vmatprep.mubr.f32.mxu0 %v1616
      %2732 = vmatmul.mubr.f32.gmra.mrb[0].mxu0 %v1615
      %v2733 = vpop.f32.mrb[0].mxu0
      %v2734 = vadd.f32 %v2509, %v2733
      %v2735 = vpop.f32.mrb[0].mxu0
      %2736 = vmatprep.mubr.f32.mxu0 %v1625
      %2737 = vmatmul.mubr.f32.gmra.mrb[0].mxu0 %v1624
      %v2738 = vpop.f32.mrb[0].mxu0
      %v2739 = vadd.f32 %v2514, %v2738
      %v2740 = vpop.f32.mrb[0].mxu0
      %2741 = vmatprep.mubr.f32.mxu0 %v1634
      %2742 = vmatmul.mubr.f32.gmra.mrb[0].mxu0 %v1633
      %v2743 = vpop.f32.mrb[0].mxu0
      %v2744 = vadd.f32 %v2519, %v2743
      %v2745 = vpop.f32.mrb[0].mxu0
      %2746 = vmatprep.mubr.f32.mxu0 %v1643
      %2747 = vmatmul.mubr.f32.gmra.mrb[0].mxu0 %v1642
      %v2748 = vpop.f32.mrb[0].mxu0
      %v2749 = vadd.f32 %v2524, %v2748
      %v2750 = vpop.f32.mrb[0].mxu0
      %2751 = vmatprep.mubr.f32.mxu0 %v1652
      %2752 = vmatmul.mubr.f32.gmra.mrb[0].mxu0 %v1651
      %v2753 = vpop.f32.mrb[0].mxu0
      %v2754 = vadd.f32 %v2529, %v2753
      %v2755 = vpop.f32.mrb[0].mxu0
      %2756 = vmatprep.mubr.f32.mxu0 %v1661
      %2757 = vmatmul.mubr.f32.gmra.mrb[0].mxu0 %v1660
      %v2758 = vpop.f32.mrb[0].mxu0
      %v2759 = vadd.f32 %v2534, %v2758
      %v2760 = vpop.f32.mrb[0].mxu0
      %2761 = vmatprep.mubr.f32.mxu0 %v1670
      %2762 = vmatmul.mubr.f32.gmra.mrb[0].mxu0 %v1669
      %v2763 = vpop.f32.mrb[0].mxu0
      %v2764 = vadd.f32 %v2539, %v2763
      %v2765 = vpop.f32.mrb[0].mxu0
      %2766 = vmatprep.mubr.f32.mxu0 %v1679
      %2767 = vmatmul.mubr.f32.gmra.mrb[0].mxu0 %v1678
      %v2768 = vpop.f32.mrb[0].mxu0
      %v2769 = vadd.f32 %v2544, %v2768
      %v2770 = vpop.f32.mrb[0].mxu0
      %2771 = vmatprep.mubr.f32.mxu0 %v1688
      %2772 = vmatmul.mubr.f32.gmra.mrb[0].mxu0 %v1687
      %v2773 = vpop.f32.mrb[0].mxu0
      %v2774 = vadd.f32 %v2549, %v2773
      %v2775 = vpop.f32.mrb[0].mxu0
      %2776 = vmatprep.mubr.f32.mxu0 %v1697
      %2777 = vmatmul.mubr.f32.gmra.mrb[0].mxu0 %v1696
      %v2778 = vpop.f32.mrb[0].mxu0
      %v2779 = vadd.f32 %v2554, %v2778
      %v2780 = vpop.f32.mrb[0].mxu0
      %2781 = vmatprep.mubr.f32.mxu0 %v1706
      %2782 = vmatmul.mubr.f32.gmra.mrb[0].mxu0 %v1705
      %v2783 = vpop.f32.mrb[0].mxu0
      %v2784 = vadd.f32 %v2559, %v2783
      %v2785 = vpop.f32.mrb[0].mxu0
      %2786 = vmatprep.mubr.f32.mxu0 %v1715
      %2787 = vmatmul.mubr.f32.gmra.mrb[0].mxu0 %v1714
      %v2788 = vpop.f32.mrb[0].mxu0
      %v2789 = vadd.f32 %v2564, %v2788
      %v2790 = vpop.f32.mrb[0].mxu0
      %2791 = vmatprep.mubr.f32.mxu0 %v1724
      %2792 = vmatmul.mubr.f32.gmra.mrb[0].mxu0 %v1723
      %v2793 = vpop.f32.mrb[0].mxu0
      %v2794 = vadd.f32 %v2569, %v2793
      %v2795 = vpop.f32.mrb[0].mxu0
      %2796 = vmatprep.mubr.f32.mxu0 %v1733
      %2797 = vmatmul.mubr.f32.gmra.mrb[0].mxu0 %v1732
      %v2798 = vpop.f32.mrb[0].mxu0
      %v2799 = vadd.f32 %v2574, %v2798
      %v2800 = vpop.f32.mrb[0].mxu0
      %2801 = vmatprep.mubr.f32.mxu0 %v1742
      %2802 = vmatmul.mubr.f32.gmra.mrb[0].mxu0 %v1741
      %v2803 = vpop.f32.mrb[0].mxu0
      %v2804 = vadd.f32 %v2579, %v2803
      %v2805 = vpop.f32.mrb[0].mxu0
      %2806 = vmatprep.mubr.f32.mxu0 %v1751
      %2807 = vmatmul.mubr.f32.gmra.mrb[0].mxu0 %v1750
      %v2808 = vpop.f32.mrb[0].mxu0
      %v2809 = vadd.f32 %v2584, %v2808
      %v2810 = vpop.f32.mrb[0].mxu0
      %2811 = vmatprep.mubr.f32.mxu0 %v1760
      %2812 = vmatmul.mubr.f32.gmra.mrb[0].mxu0 %v1759
      %v2813 = vpop.f32.mrb[0].mxu0
      %v2814 = vadd.f32 %v2589, %v2813
      %v2815 = vpop.f32.mrb[0].mxu0
      %2816 = vmatprep.mubr.f32.mxu0 %v1769
      %2817 = vmatmul.mubr.f32.gmra.mrb[0].mxu0 %v1768
      %v2818 = vpop.f32.mrb[0].mxu0
      %v2819 = vadd.f32 %v2594, %v2818
      %v2820 = vpop.f32.mrb[0].mxu0
      %2821 = vdwg.mxu0
      %2822 = vmatprep.subr.mxu0 0.0
      %2823 = vmatpush1.msra.mxu0 %v1899
      %2824 = vmatprep.subr.mxu0 0.0
      %2825 = vmatpush1.msra.mxu0 %v1900
      %2826 = vmatprep.subr.mxu0 0.0
      %2827 = vmatpush1.msra.mxu0 %v1901
      %2828 = vmatprep.subr.mxu0 0.0
      %2829 = vmatpush1.msra.mxu0 %v1902
      %2830 = vmatprep.subr.mxu0 0.0
      %2831 = vmatpush1.msra.mxu0 %v1903
      %2832 = vmatprep.subr.mxu0 0.0
      %2833 = vmatpush1.msra.mxu0 %v1904
      %2834 = vmatprep.subr.mxu0 0.0
      %2835 = vmatpush1.msra.mxu0 %v1905
      %2836 = vmatprep.subr.mxu0 0.0
      %2837 = vmatpush1.msra.mxu0 %v1906
      %2838 = vmatprep.subr.mxu0 0.0
      %2839 = vmatpush1.msra.mxu0 %v1907
      %2840 = vmatprep.subr.mxu0 0.0
      %2841 = vmatpush1.msra.mxu0 %v1908
      %2842 = vmatprep.subr.mxu0 0.0
      %2843 = vmatpush1.msra.mxu0 %v1909
      %2844 = vmatprep.subr.mxu0 0.0
      %2845 = vmatpush1.msra.mxu0 %v1910
      %2846 = vmatprep.subr.mxu0 0.0
      %2847 = vmatpush1.msra.mxu0 %v1911
      %2848 = vmatprep.subr.mxu0 0.0
      %2849 = vmatpush1.msra.mxu0 %v1912
      %2850 = vmatprep.subr.mxu0 0.0
      %2851 = vmatpush1.msra.mxu0 %v1913
      %2852 = vmatprep.subr.mxu0 0.0
      %2853 = vmatpush1.msra.mxu0 %v1914
      %2854 = vmatprep.subr.mxu0 0.0
      %2855 = vmatpush1.msra.mxu0 0.0
      %2856 = vmatprep.subr.mxu0 0.0
      %2857 = vmatpush1.msra.mxu0 0.0
      %2858 = vmatprep.subr.mxu0 0.0
      %2859 = vmatpush1.msra.mxu0 0.0
      %2860 = vmatprep.subr.mxu0 0.0
      %2861 = vmatpush1.msra.mxu0 0.0
      %2862 = vmatprep.subr.mxu0 0.0
      %2863 = vmatpush1.msra.mxu0 0.0
      %2864 = vmatprep.subr.mxu0 0.0
      %2865 = vmatpush1.msra.mxu0 0.0
      %2866 = vmatprep.subr.mxu0 0.0
      %2867 = vmatpush1.msra.mxu0 0.0
      %2868 = vmatprep.subr.mxu0 0.0
      %2869 = vmatpush1.msra.mxu0 0.0
      %2870 = vmatprep.subr.mxu0 0.0
      %2871 = vmatpush1.msra.mxu0 0.0
      %2872 = vmatprep.subr.mxu0 0.0
      %2873 = vmatpush1.msra.mxu0 0.0
      %2874 = vmatprep.subr.mxu0 0.0
      %2875 = vmatpush1.msra.mxu0 0.0
      %2876 = vmatprep.subr.mxu0 0.0
      %2877 = vmatpush1.msra.mxu0 0.0
      %2878 = vmatprep.subr.mxu0 0.0
      %2879 = vmatpush1.msra.mxu0 0.0
      %2880 = vmatprep.subr.mxu0 0.0
      %2881 = vmatpush1.msra.mxu0 0.0
      %2882 = vmatprep.subr.mxu0 0.0
      %2883 = vmatpush1.msra.mxu0 0.0
      %2884 = vmatprep.subr.mxu0 0.0
      %2885 = vmatpush1.msra.mxu0 0.0
      %2886 = vmatprep.mubr.f32.mxu0 0.0
      %2887 = vmatmul.mubr.f32.gmra.mrb[0].mxu0 %v1491
      %v2888 = vpop.f32.mrb[0].mxu0
      %v2889 = vadd.f32 %v2664, %v2888
      %v2890 = vpop.f32.mrb[0].mxu0
      %2891 = vmatprep.mubr.f32.mxu0 0.0
      %2892 = vmatmul.mubr.f32.gmra.mrb[0].mxu0 %v1500
      %v2893 = vpop.f32.mrb[0].mxu0
      %v2894 = vadd.f32 %v2669, %v2893
      %v2895 = vpop.f32.mrb[0].mxu0
      %2896 = vmatprep.mubr.f32.mxu0 0.0
      %2897 = vmatmul.mubr.f32.gmra.mrb[0].mxu0 %v1509
      %v2898 = vpop.f32.mrb[0].mxu0
      %v2899 = vadd.f32 %v2674, %v2898
      %v2900 = vpop.f32.mrb[0].mxu0
      %2901 = vmatprep.mubr.f32.mxu0 0.0
      %2902 = vmatmul.mubr.f32.gmra.mrb[0].mxu0 %v1518
      %v2903 = vpop.f32.mrb[0].mxu0
      %v2904 = vadd.f32 %v2679, %v2903
      %v2905 = vpop.f32.mrb[0].mxu0
      %2906 = vmatprep.mubr.f32.mxu0 0.0
      %2907 = vmatmul.mubr.f32.gmra.mrb[0].mxu0 %v1527
      %v2908 = vpop.f32.mrb[0].mxu0
      %v2909 = vadd.f32 %v2684, %v2908
      %v2910 = vpop.f32.mrb[0].mxu0
      %2911 = vmatprep.mubr.f32.mxu0 0.0
      %2912 = vmatmul.mubr.f32.gmra.mrb[0].mxu0 %v1536
      %v2913 = vpop.f32.mrb[0].mxu0
      %v2914 = vadd.f32 %v2689, %v2913
      %v2915 = vpop.f32.mrb[0].mxu0
      %2916 = vmatprep.mubr.f32.mxu0 0.0
      %2917 = vmatmul.mubr.f32.gmra.mrb[0].mxu0 %v1545
      %v2918 = vpop.f32.mrb[0].mxu0
      %v2919 = vadd.f32 %v2694, %v2918
      %v2920 = vpop.f32.mrb[0].mxu0
      %2921 = vmatprep.mubr.f32.mxu0 0.0
      %2922 = vmatmul.mubr.f32.gmra.mrb[0].mxu0 %v1554
      %v2923 = vpop.f32.mrb[0].mxu0
      %v2924 = vadd.f32 %v2699, %v2923
      %v2925 = vpop.f32.mrb[0].mxu0
      %2926 = vmatprep.mubr.f32.mxu0 0.0
      %2927 = vmatmul.mubr.f32.gmra.mrb[0].mxu0 %v1563
      %v2928 = vpop.f32.mrb[0].mxu0
      %v2929 = vadd.f32 %v2704, %v2928
      %v2930 = vpop.f32.mrb[0].mxu0
      %2931 = vmatprep.mubr.f32.mxu0 0.0
      %2932 = vmatmul.mubr.f32.gmra.mrb[0].mxu0 %v1572
      %v2933 = vpop.f32.mrb[0].mxu0
      %v2934 = vadd.f32 %v2709, %v2933
      %v2935 = vpop.f32.mrb[0].mxu0
      %2936 = vmatprep.mubr.f32.mxu0 0.0
      %2937 = vmatmul.mubr.f32.gmra.mrb[0].mxu0 %v1581
      %v2938 = vpop.f32.mrb[0].mxu0
      %v2939 = vadd.f32 %v2714, %v2938
      %v2940 = vpop.f32.mrb[0].mxu0
      %2941 = vmatprep.mubr.f32.mxu0 0.0
      %2942 = vmatmul.mubr.f32.gmra.mrb[0].mxu0 %v1590
      %v2943 = vpop.f32.mrb[0].mxu0
      %v2944 = vadd.f32 %v2719, %v2943
      %v2945 = vpop.f32.mrb[0].mxu0
      %2946 = vmatprep.mubr.f32.mxu0 0.0
      %2947 = vmatmul.mubr.f32.gmra.mrb[0].mxu0 %v1599
      %v2948 = vpop.f32.mrb[0].mxu0
      %v2949 = vadd.f32 %v2724, %v2948
      %v2950 = vpop.f32.mrb[0].mxu0
      %2951 = vmatprep.mubr.f32.mxu0 0.0
      %2952 = vmatmul.mubr.f32.gmra.mrb[0].mxu0 %v1608
      %v2953 = vpop.f32.mrb[0].mxu0
      %v2954 = vadd.f32 %v2729, %v2953
      %v2955 = vpop.f32.mrb[0].mxu0
      %2956 = vmatprep.mubr.f32.mxu0 0.0
      %2957 = vmatmul.mubr.f32.gmra.mrb[0].mxu0 %v1617
      %v2958 = vpop.f32.mrb[0].mxu0
      %v2959 = vadd.f32 %v2734, %v2958
      %v2960 = vpop.f32.mrb[0].mxu0
      %2961 = vmatprep.mubr.f32.mxu0 0.0
      %2962 = vmatmul.mubr.f32.gmra.mrb[0].mxu0 %v1626
      %v2963 = vpop.f32.mrb[0].mxu0
      %v2964 = vadd.f32 %v2739, %v2963
      %v2965 = vpop.f32.mrb[0].mxu0
      %2966 = vmatprep.mubr.f32.mxu0 0.0
      %2967 = vmatmul.mubr.f32.gmra.mrb[0].mxu0 %v1635
      %v2968 = vpop.f32.mrb[0].mxu0
      %v2969 = vadd.f32 %v2744, %v2968
      %v2970 = vpop.f32.mrb[0].mxu0
      %2971 = vmatprep.mubr.f32.mxu0 0.0
      %2972 = vmatmul.mubr.f32.gmra.mrb[0].mxu0 %v1644
      %v2973 = vpop.f32.mrb[0].mxu0
      %v2974 = vadd.f32 %v2749, %v2973
      %v2975 = vpop.f32.mrb[0].mxu0
      %2976 = vmatprep.mubr.f32.mxu0 0.0
      %2977 = vmatmul.mubr.f32.gmra.mrb[0].mxu0 %v1653
      %v2978 = vpop.f32.mrb[0].mxu0
      %v2979 = vadd.f32 %v2754, %v2978
      %v2980 = vpop.f32.mrb[0].mxu0
      %2981 = vmatprep.mubr.f32.mxu0 0.0
      %2982 = vmatmul.mubr.f32.gmra.mrb[0].mxu0 %v1662
      %v2983 = vpop.f32.mrb[0].mxu0
      %v2984 = vadd.f32 %v2759, %v2983
      %v2985 = vpop.f32.mrb[0].mxu0
      %2986 = vmatprep.mubr.f32.mxu0 0.0
      %2987 = vmatmul.mubr.f32.gmra.mrb[0].mxu0 %v1671
      %v2988 = vpop.f32.mrb[0].mxu0
      %v2989 = vadd.f32 %v2764, %v2988
      %v2990 = vpop.f32.mrb[0].mxu0
      %2991 = vmatprep.mubr.f32.mxu0 0.0
      %2992 = vmatmul.mubr.f32.gmra.mrb[0].mxu0 %v1680
      %v2993 = vpop.f32.mrb[0].mxu0
      %v2994 = vadd.f32 %v2769, %v2993
      %v2995 = vpop.f32.mrb[0].mxu0
      %2996 = vmatprep.mubr.f32.mxu0 0.0
      %2997 = vmatmul.mubr.f32.gmra.mrb[0].mxu0 %v1689
      %v2998 = vpop.f32.mrb[0].mxu0
      %v2999 = vadd.f32 %v2774, %v2998
      %v3000 = vpop.f32.mrb[0].mxu0
      %3001 = vmatprep.mubr.f32.mxu0 0.0
      %3002 = vmatmul.mubr.f32.gmra.mrb[0].mxu0 %v1698
      %v3003 = vpop.f32.mrb[0].mxu0
      %v3004 = vadd.f32 %v2779, %v3003
      %v3005 = vpop.f32.mrb[0].mxu0
      %3006 = vmatprep.mubr.f32.mxu0 0.0
      %3007 = vmatmul.mubr.f32.gmra.mrb[0].mxu0 %v1707
      %v3008 = vpop.f32.mrb[0].mxu0
      %v3009 = vadd.f32 %v2784, %v3008
      %v3010 = vpop.f32.mrb[0].mxu0
      %3011 = vmatprep.mubr.f32.mxu0 0.0
      %3012 = vmatmul.mubr.f32.gmra.mrb[0].mxu0 %v1716
      %v3013 = vpop.f32.mrb[0].mxu0
      %v3014 = vadd.f32 %v2789, %v3013
      %v3015 = vpop.f32.mrb[0].mxu0
      %3016 = vmatprep.mubr.f32.mxu0 0.0
      %3017 = vmatmul.mubr.f32.gmra.mrb[0].mxu0 %v1725
      %v3018 = vpop.f32.mrb[0].mxu0
      %v3019 = vadd.f32 %v2794, %v3018
      %v3020 = vpop.f32.mrb[0].mxu0
      %3021 = vmatprep.mubr.f32.mxu0 0.0
      %3022 = vmatmul.mubr.f32.gmra.mrb[0].mxu0 %v1734
      %v3023 = vpop.f32.mrb[0].mxu0
      %v3024 = vadd.f32 %v2799, %v3023
      %v3025 = vpop.f32.mrb[0].mxu0
      %3026 = vmatprep.mubr.f32.mxu0 0.0
      %3027 = vmatmul.mubr.f32.gmra.mrb[0].mxu0 %v1743
      %v3028 = vpop.f32.mrb[0].mxu0
      %v3029 = vadd.f32 %v2804, %v3028
      %v3030 = vpop.f32.mrb[0].mxu0
      %3031 = vmatprep.mubr.f32.mxu0 0.0
      %3032 = vmatmul.mubr.f32.gmra.mrb[0].mxu0 %v1752
      %v3033 = vpop.f32.mrb[0].mxu0
      %v3034 = vadd.f32 %v2809, %v3033
      %v3035 = vpop.f32.mrb[0].mxu0
      %3036 = vmatprep.mubr.f32.mxu0 0.0
      %3037 = vmatmul.mubr.f32.gmra.mrb[0].mxu0 %v1761
      %v3038 = vpop.f32.mrb[0].mxu0
      %v3039 = vadd.f32 %v2814, %v3038
      %v3040 = vpop.f32.mrb[0].mxu0
      %3041 = vmatprep.mubr.f32.mxu0 0.0
      %3042 = vmatmul.mubr.f32.gmra.mrb[0].mxu0 %v1770
      %v3043 = vpop.f32.mrb[0].mxu0
      %v3044 = vadd.f32 %v2819, %v3043
      %v3045 = vpop.f32.mrb[0].mxu0
      %3046 = vdwg.mxu0
      %v3047 = vadd.f32 %v2889, %v2894
      %v3048 = vadd.f32 %v3047, %v2899
      %v3049 = vadd.f32 %v3048, %v2904
      %v3050 = vadd.f32 %v3049, %v2909
      %v3051 = vadd.f32 %v3050, %v2914
      %v3052 = vadd.f32 %v3051, %v2919
      %v3053 = vadd.f32 %v3052, %v2924
      %v3054 = vadd.f32 %v3053, %v2929
      %v3055 = vadd.f32 %v3054, %v2934
      %v3056 = vadd.f32 %v3055, %v2939
      %v3057 = vadd.f32 %v3056, %v2944
      %v3058 = vadd.f32 %v3057, %v2949
      %v3059 = vadd.f32 %v3058, %v2954
      %v3060 = vadd.f32 %v3059, %v2959
      %v3061 = vadd.f32 %v3060, %v2964
      %v3062 = vadd.f32 %v3061, %v2969
      %v3063 = vadd.f32 %v3062, %v2974
      %v3064 = vadd.f32 %v3063, %v2979
      %v3065 = vadd.f32 %v3064, %v2984
      %v3066 = vadd.f32 %v3065, %v2989
      %v3067 = vadd.f32 %v3066, %v2994
      %v3068 = vadd.f32 %v3067, %v2999
      %v3069 = vadd.f32 %v3068, %v3004
      %v3070 = vadd.f32 %v3069, %v3009
      %v3071 = vadd.f32 %v3070, %v3014
      %v3072 = vadd.f32 %v3071, %v3019
      %v3073 = vadd.f32 %v3072, %v3024
      %v3074 = vadd.f32 %v3073, %v3029
      %v3075 = vadd.f32 %v3074, %v3034
      %v3076 = vadd.f32 %v3075, %v3039
      %v3077 = vadd.f32 %v3076, %v3044
      %v3078 = vrot.slane %v3077, 4
      %v3079 = vadd.f32 %v3077, %v3078
      %v3080 = vrot.slane %v3079, 2
      %v3081 = vadd.f32 %v3079, %v3080
      %v3082 = vrot.slane %v3081, 1
      %v3083 = vadd.f32 %v3081, %v3082
      %3084 = vst [vmem:[%s292] sm:$0x1] %v3083
      %v3085 = vmul.f32 %v2889, %v2889
      %v3086 = vmul.f32 %v2894, %v2894
      %v3087 = vmul.f32 %v2899, %v2899
      %v3088 = vmul.f32 %v2904, %v2904
      %v3089 = vmul.f32 %v2909, %v2909
      %v3090 = vmul.f32 %v2914, %v2914
      %v3091 = vmul.f32 %v2919, %v2919
      %v3092 = vmul.f32 %v2924, %v2924
      %v3093 = vmul.f32 %v2929, %v2929
      %v3094 = vmul.f32 %v2934, %v2934
      %v3095 = vmul.f32 %v2939, %v2939
      %v3096 = vmul.f32 %v2944, %v2944
      %v3097 = vmul.f32 %v2949, %v2949
      %v3098 = vmul.f32 %v2954, %v2954
      %v3099 = vmul.f32 %v2959, %v2959
      %v3100 = vmul.f32 %v2964, %v2964
      %v3101 = vmul.f32 %v2969, %v2969
      %v3102 = vmul.f32 %v2974, %v2974
      %v3103 = vmul.f32 %v2979, %v2979
      %v3104 = vmul.f32 %v2984, %v2984
      %v3105 = vmul.f32 %v2989, %v2989
      %v3106 = vmul.f32 %v2994, %v2994
      %v3107 = vmul.f32 %v2999, %v2999
      %v3108 = vmul.f32 %v3004, %v3004
      %v3109 = vmul.f32 %v3009, %v3009
      %v3110 = vmul.f32 %v3014, %v3014
      %v3111 = vmul.f32 %v3019, %v3019
      %v3112 = vmul.f32 %v3024, %v3024
      %v3113 = vmul.f32 %v3029, %v3029
      %v3114 = vmul.f32 %v3034, %v3034
      %v3115 = vmul.f32 %v3039, %v3039
      %v3116 = vmul.f32 %v3044, %v3044
      %v3117 = vadd.f32 %v3085, %v3086
      %v3118 = vadd.f32 %v3117, %v3087
      %v3119 = vadd.f32 %v3118, %v3088
      %v3120 = vadd.f32 %v3119, %v3089
      %v3121 = vadd.f32 %v3120, %v3090
      %v3122 = vadd.f32 %v3121, %v3091
      %v3123 = vadd.f32 %v3122, %v3092
      %v3124 = vadd.f32 %v3123, %v3093
      %v3125 = vadd.f32 %v3124, %v3094
      %v3126 = vadd.f32 %v3125, %v3095
      %v3127 = vadd.f32 %v3126, %v3096
      %v3128 = vadd.f32 %v3127, %v3097
      %v3129 = vadd.f32 %v3128, %v3098
      %v3130 = vadd.f32 %v3129, %v3099
      %v3131 = vadd.f32 %v3130, %v3100
      %v3132 = vadd.f32 %v3131, %v3101
      %v3133 = vadd.f32 %v3132, %v3102
      %v3134 = vadd.f32 %v3133, %v3103
      %v3135 = vadd.f32 %v3134, %v3104
      %v3136 = vadd.f32 %v3135, %v3105
      %v3137 = vadd.f32 %v3136, %v3106
      %v3138 = vadd.f32 %v3137, %v3107
      %v3139 = vadd.f32 %v3138, %v3108
      %v3140 = vadd.f32 %v3139, %v3109
      %v3141 = vadd.f32 %v3140, %v3110
      %v3142 = vadd.f32 %v3141, %v3111
      %v3143 = vadd.f32 %v3142, %v3112
      %v3144 = vadd.f32 %v3143, %v3113
      %v3145 = vadd.f32 %v3144, %v3114
      %v3146 = vadd.f32 %v3145, %v3115
      %v3147 = vadd.f32 %v3146, %v3116
      %v3148 = vrot.slane %v3147, 4
      %v3149 = vadd.f32 %v3147, %v3148
      %v3150 = vrot.slane %v3149, 2
      %v3151 = vadd.f32 %v3149, %v3150
      %v3152 = vrot.slane %v3151, 1
      %v3153 = vadd.f32 %v3151, %v3152
      %3154 = vst [vmem:[%s295] sm:$0x1] %v3153
      %3155 = vst.msk [vmem:[%s289] sm:$0xff] %vm336, %v2889
      %3156 = vst.msk [vmem:[%s289 + $0x8] sm:$0xff] %vm336, %v2894
      %3157 = vst.msk [vmem:[%s289 + $0x10] sm:$0xff] %vm336, %v2899
      %3158 = vst.msk [vmem:[%s289 + $0x18] sm:$0xff] %vm336, %v2904
      %3159 = vst.msk [vmem:[%s289 + $0x20] sm:$0xff] %vm336, %v2909
      %3160 = vst.msk [vmem:[%s289 + $0x28] sm:$0xff] %vm336, %v2914
      %3161 = vst.msk [vmem:[%s289 + $0x30] sm:$0xff] %vm336, %v2919
      %3162 = vst.msk [vmem:[%s289 + $0x38] sm:$0xff] %vm336, %v2924
      %3163 = vst.msk [vmem:[%s289 + $0x40] sm:$0xff] %vm336, %v2929
      %3164 = vst.msk [vmem:[%s289 + $0x48] sm:$0xff] %vm336, %v2934
      %3165 = vst.msk [vmem:[%s289 + $0x50] sm:$0xff] %vm336, %v2939
      %3166 = vst.msk [vmem:[%s289 + $0x58] sm:$0xff] %vm336, %v2944
      %3167 = vst.msk [vmem:[%s289 + $0x60] sm:$0xff] %vm336, %v2949
      %3168 = vst.msk [vmem:[%s289 + $0x68] sm:$0xff] %vm336, %v2954
      %3169 = vst.msk [vmem:[%s289 + $0x70] sm:$0xff] %vm336, %v2959
      %3170 = vst.msk [vmem:[%s289 + $0x78] sm:$0xff] %vm336, %v2964
      %3171 = vst.msk [vmem:[%s289 + $0x80] sm:$0xff] %vm336, %v2969
      %3172 = vst.msk [vmem:[%s289 + $0x88] sm:$0xff] %vm336, %v2974
      %3173 = vst.msk [vmem:[%s289 + $0x90] sm:$0xff] %vm336, %v2979
      %3174 = vst.msk [vmem:[%s289 + $0x98] sm:$0xff] %vm336, %v2984
      %3175 = vst.msk [vmem:[%s289 + $0xa0] sm:$0xff] %vm336, %v2989
      %3176 = vst.msk [vmem:[%s289 + $0xa8] sm:$0xff] %vm336, %v2994
      %3177 = vst.msk [vmem:[%s289 + $0xb0] sm:$0xff] %vm336, %v2999
      %3178 = vst.msk [vmem:[%s289 + $0xb8] sm:$0xff] %vm336, %v3004
      %3179 = vst.msk [vmem:[%s289 + $0xc0] sm:$0xff] %vm336, %v3009
      %3180 = vst.msk [vmem:[%s289 + $0xc8] sm:$0xff] %vm336, %v3014
      %3181 = vst.msk [vmem:[%s289 + $0xd0] sm:$0xff] %vm336, %v3019
      %3182 = vst.msk [vmem:[%s289 + $0xd8] sm:$0xff] %vm336, %v3024
      %3183 = vst.msk [vmem:[%s289 + $0xe0] sm:$0xff] %vm336, %v3029
      %3184 = vst.msk [vmem:[%s289 + $0xe8] sm:$0xff] %vm336, %v3034
      %3185 = vst.msk [vmem:[%s289 + $0xf0] sm:$0xff] %vm336, %v3039
      %3186 = vst.msk [vmem:[%s289 + $0xf8] sm:$0xff] %vm336, %v3044
      %p3187 = scmp.lt.s32.totalorder %s19, 1
      %s3188 = scalar_select %p3187, %s19, 1
      %s3189 = smul.addr %s3188, 32
      %s3190 = smul.addr %s3189, 8
      %s3191 = scalar_lea.vmem %s5, %s3190
      %p3192 = scmp.lt.s32.totalorder %s19, 1
      %s3193 = scalar_select %p3192, %s19, 1
      %s3194 = scalar_lea.vmem %s6, %s3193
      %p3195 = scmp.lt.s32.totalorder %s19, 1
      %s3196 = scalar_select %p3195, %s19, 1
      %s3197 = scalar_lea.vmem %s7, %s3196
      // Predicated region
      $region41: #{conv_block_forward.4} parent=39 // pred_check
        %p3198 = pneg %p147
      $region42: #{conv_block_forward.4} parent=39 // pred_check_branch
        %3200 = sbr.rel (%p3198) target = $region44
      $region43: #{conv_block_forward.4} parent=39 // pred_region
        _
      $region44: #{conv_block_forward.4} parent=39 // pred_fallthru
        _
      // Predicated region
      $region45: #{conv_block_forward.4} parent=39 // pred_check
        %p3201 = pneg %p173
      $region46: #{conv_block_forward.4} parent=39 // pred_check_branch
        %3203 = sbr.rel (%p3201) target = $region48
      $region47: #{conv_block_forward.4} parent=39 // pred_region
        _
      $region48: #{conv_block_forward.4} parent=39 // pred_fallthru
        _
      // Predicated region
      $region49: #{conv_block_forward.4} parent=39 // pred_check
        %p3204 = pneg %p199
      $region50: #{conv_block_forward.4} parent=39 // pred_check_branch
        %3206 = sbr.rel (%p3204) target = $region52
      $region51: #{conv_block_forward.4} parent=39 // pred_region
        _
      $region52: #{conv_block_forward.4} parent=39 // pred_fallthru
        _
    $region40: #{conv_block_forward.4} parent=5 // pred_fallthru
      _
    %p3207 = scmp.le.s32.totalorder 2, %s14
    // Predicated region
    $region53: #{conv_block_forward.4} parent=5 // pred_check
      %p3208 = pneg %p3207
    $region54: #{conv_block_forward.4} parent=5 // pred_check_branch
      %3210 = sbr.rel (%p3208) target = $region56
    $region55: #{conv_block_forward.4} parent=5 // pred_region
      %s3211 = ssub.s32 %s14, 2
      // Predicated region
      $region57: #{conv_block_forward.4} parent=55 // pred_check
        %p3212 = pneg %p153
      $region58: #{conv_block_forward.4} parent=55 // pred_check_branch
        %3214 = sbr.rel (%p3212) target = $region60
      $region59: #{conv_block_forward.4} parent=55 // pred_region
        %p3215 = scmp.lt.s32.totalorder %s20, 1
        %s3216 = scalar_select %p3215, %s20, 1
        %s3217 = smul.addr %s3216, 32
        %s3218 = smul.addr %s3217, 8
        %s3219 = scalar_lea.vmem %s5, %s3218
      $region60: #{conv_block_forward.4} parent=55 // pred_fallthru
        _
      // Predicated region
      $region61: #{conv_block_forward.4} parent=55 // pred_check
        %p3220 = pneg %p179
      $region62: #{conv_block_forward.4} parent=55 // pred_check_branch
        %3222 = sbr.rel (%p3220) target = $region64
      $region63: #{conv_block_forward.4} parent=55 // pred_region
        %p3223 = scmp.lt.s32.totalorder %s20, 1
        %s3224 = scalar_select %p3223, %s20, 1
        %s3225 = scalar_lea.vmem %s6, %s3224
      $region64: #{conv_block_forward.4} parent=55 // pred_fallthru
        _
      // Predicated region
      $region65: #{conv_block_forward.4} parent=55 // pred_check
        %p3226 = pneg %p205
      $region66: #{conv_block_forward.4} parent=55 // pred_check_branch
        %3228 = sbr.rel (%p3226) target = $region68
      $region67: #{conv_block_forward.4} parent=55 // pred_region
        %p3229 = scmp.lt.s32.totalorder %s20, 1
        %s3230 = scalar_select %p3229, %s20, 1
        %s3231 = scalar_lea.vmem %s7, %s3230
      $region68: #{conv_block_forward.4} parent=55 // pred_fallthru
        _
    $region56: #{conv_block_forward.4} parent=5 // pred_fallthru
      _
  $region6: #{conv_block_forward.4} parent=0 // loop_footer
    %s18 = sadd.s32 1, %s14
  $region7: #{conv_block_forward.4} parent=0 // loop_footer_branch
    %13 = sbr.rel target = $region3
  $region8: #{conv_block_forward.4} parent=0 // loop_exit
    _

// kernel: conv_block_forward.3
$region0: #{conv_block_forward.3}
  #allocation0 [shape = 'u32[]', space=smem, size = 0x4, offset = 0x4, fixed_abs, tag = 'smem constant byte address 0x4 - core index']
  #allocation1 [shape = 'u32[144,128]{1,0:T(1,128)}', space=vmem, size = 0x12000, scoped, tag = 'internal scratch']
  #allocation2 [shape = 'f32[18,18,128]{2,1,0:T(8,128)}', space=vmem, size = 0x36000, scoped, tag = 'scratch operand']
  #allocation3 [shape = 'f32[256,1152]{1,0:T(8,128)}', space=vmem, size = 0x120000, scoped, tag = 'scratch operand']
  %s0 = inlined_call_operand.vmem [shape: f32[2,256,4], index: 0, kind: input, shape index: {}]
  %s1 = inlined_call_operand.vmem [shape: f32[4,128], index: 1, kind: input, shape index: {}]
  %s2 = inlined_call_operand.vmem [shape: f32[1,128], index: 2, kind: input, shape index: {}, may-alias: {2,4}]
  %s3 = inlined_call_operand.hbm [shape: f32[1152,128], index: 3, kind: input, shape index: {}]
  %s4 = inlined_call_operand.vmem [shape: f32[1,128], index: 4, kind: input, shape index: {}, may-alias: {2,4}]
  %s5 = inlined_call_operand.vmem [shape: f32[2,256,8], index: 5, kind: output, shape index: {0}]
  %s6 = inlined_call_operand.vmem [shape: f32[2,1,128], index: 6, kind: output, shape index: {1}]
  %s7 = inlined_call_operand.vmem [shape: f32[2,1,128], index: 7, kind: output, shape index: {2}]
  %8 = xla_tuple %s5, %s6, %s7
  %s9 = sld [smem:[#allocation0]]
  $region73: #{conv_block_forward.3} parent=0
    _
  %s11 = ssub.s32 1, %s9
  %s12 = scalar_select 0, %s11, %s9
  $region1: #{conv_block_forward.3} parent=0
    #allocation4 [shape = 'u8[589824]{0}', space=vmem, size = 0x90000, scoped, tag = 'input window, operand 3, single buffered']
    #allocation5 [shape = 's32[2]{0}', space=sflag, size = 0x8, scoped, tag = 'scoped memory for conv_block_forward.3']
    %13 = vsyncpa [#allocation5], 0
    loop: start=0, step=1, limit=4
    $region2: #{conv_block_forward.3} parent=1 // loop_pre_header
      _
    $region3: #{conv_block_forward.3} parent=1 // loop_header
      %s15 = sphi 0, %s19
      %p16 = scmp.ge.s32.totalorder %s15, 4
      %s25 = sphi 0, %s27
      %s28 = sphi 0, %s25
      %s29 = sphi 0, %s28
      %s45 = sphi 0, %s29
      %s49 = sphi 0, %s49
      %s51 = sphi 0, %s49
      %s52 = sphi 0, %s51
      %s66 = sphi 0, %s52
      %s70 = sphi 0, %s70
      %s72 = sphi 0, %s70
      %s73 = sphi 0, %s72
      %s87 = sphi 0, %s73
      %s91 = sphi 0, %s91
      %s93 = sphi 0, %s91
      %s94 = sphi 0, %s93
      %s108 = sphi 0, %s94
      %s112 = sphi 0, %s112
      %s114 = sphi 0, %s112
      %s115 = sphi 0, %s114
      %s129 = sphi 0, %s115
      %s135 = sphi 0, %s137
      %s138 = sphi 0, %s135
      %s139 = sphi 0, %s138
      %s155 = sphi 0, %s139
      %s161 = sphi 0, %s163
      %s164 = sphi 0, %s161
      %s165 = sphi 0, %s164
      %s181 = sphi 0, %s165
      %s187 = sphi 0, %s189
      %s190 = sphi 0, %s187
      %s191 = sphi 0, %s190
      %s207 = sphi 0, %s191
    $region4: #{conv_block_forward.3} parent=1 // loop_header_branch
      %18 = sbr.rel (%p16) target = $region8
    $region5: #{conv_block_forward.3} parent=1 // loop_body
      %s20 = ssub.s32 %s15, 1
      %s21 = ssub.s32 %s15, 2
      %s22 = sadd.s32 %s15, 1
      %s23 = ssub.s32 %s15, %s22
      %p24 = scmp.eq.s32.totalorder %s23, 0
      %s26 = sadd.s32 %s25, 1
      %s27 = scalar_select %p24, %s25, %s26
      %p30 = pneg %p24
      %p31 = scmp.eq.s32.totalorder %s15, 1
      %p32 = por %p30, %p31
      %p33 = scmp.ne.s32.totalorder %s25, %s28
      %p34 = scmp.eq.s32.totalorder %s15, 0
      %p35 = por %p33, %p34
      %p36 = scmp.ne.s32.totalorder %s25, %s28
      %p37 = scmp.eq.s32.totalorder %s20, 1
      %p38 = por %p36, %p37
      %p39 = scmp.ne.s32.totalorder %s28, %s29
      %p40 = scmp.eq.s32.totalorder %s20, 0
      %p41 = por %p39, %p40
      %p42 = scmp.ne.s32.totalorder %s28, %s29
      %p43 = scmp.eq.s32.totalorder %s21, 1
      %p44 = por %p42, %p43
      %p46 = scmp.ne.s32.totalorder %s29, %s45
      %p47 = scmp.eq.s32.totalorder %s21, 0
      %p48 = por %p46, %p47
      %s50 = sadd.s32 %s49, 1
      %p53 = scmp.eq.s32.totalorder %s15, 1
      %p54 = scmp.ne.s32.totalorder %s49, %s51
      %p55 = scmp.eq.s32.totalorder %s15, 0
      %p56 = por %p54, %p55
      %p57 = scmp.ne.s32.totalorder %s49, %s51
      %p58 = scmp.eq.s32.totalorder %s20, 1
      %p59 = por %p57, %p58
      %p60 = scmp.ne.s32.totalorder %s51, %s52
      %p61 = scmp.eq.s32.totalorder %s20, 0
      %p62 = por %p60, %p61
      %p63 = scmp.ne.s32.totalorder %s51, %s52
      %p64 = scmp.eq.s32.totalorder %s21, 1
      %p65 = por %p63, %p64
      %p67 = scmp.ne.s32.totalorder %s52, %s66
      %p68 = scmp.eq.s32.totalorder %s21, 0
      %p69 = por %p67, %p68
      %s71 = sadd.s32 %s70, 1
      %p74 = scmp.eq.s32.totalorder %s15, 1
      %p75 = scmp.ne.s32.totalorder %s70, %s72
      %p76 = scmp.eq.s32.totalorder %s15, 0
      %p77 = por %p75, %p76
      %p78 = scmp.ne.s32.totalorder %s70, %s72
      %p79 = scmp.eq.s32.totalorder %s20, 1
      %p80 = por %p78, %p79
      %p81 = scmp.ne.s32.totalorder %s72, %s73
      %p82 = scmp.eq.s32.totalorder %s20, 0
      %p83 = por %p81, %p82
      %p84 = scmp.ne.s32.totalorder %s72, %s73
      %p85 = scmp.eq.s32.totalorder %s21, 1
      %p86 = por %p84, %p85
      %p88 = scmp.ne.s32.totalorder %s73, %s87
      %p89 = scmp.eq.s32.totalorder %s21, 0
      %p90 = por %p88, %p89
      %s92 = sadd.s32 %s91, 1
      %p95 = scmp.eq.s32.totalorder %s15, 1
      %p96 = scmp.ne.s32.totalorder %s91, %s93
      %p97 = scmp.eq.s32.totalorder %s15, 0
      %p98 = por %p96, %p97
      %p99 = scmp.ne.s32.totalorder %s91, %s93
      %p100 = scmp.eq.s32.totalorder %s20, 1
      %p101 = por %p99, %p100
      %p102 = scmp.ne.s32.totalorder %s93, %s94
      %p103 = scmp.eq.s32.totalorder %s20, 0
      %p104 = por %p102, %p103
      %p105 = scmp.ne.s32.totalorder %s93, %s94
      %p106 = scmp.eq.s32.totalorder %s21, 1
      %p107 = por %p105, %p106
      %p109 = scmp.ne.s32.totalorder %s94, %s108
      %p110 = scmp.eq.s32.totalorder %s21, 0
      %p111 = por %p109, %p110
      %s113 = sadd.s32 %s112, 1
      %p116 = scmp.eq.s32.totalorder %s15, 1
      %p117 = scmp.ne.s32.totalorder %s112, %s114
      %p118 = scmp.eq.s32.totalorder %s15, 0
      %p119 = por %p117, %p118
      %p120 = scmp.ne.s32.totalorder %s112, %s114
      %p121 = scmp.eq.s32.totalorder %s20, 1
      %p122 = por %p120, %p121
      %p123 = scmp.ne.s32.totalorder %s114, %s115
      %p124 = scmp.eq.s32.totalorder %s20, 0
      %p125 = por %p123, %p124
      %p126 = scmp.ne.s32.totalorder %s114, %s115
      %p127 = scmp.eq.s32.totalorder %s21, 1
      %p128 = por %p126, %p127
      %p130 = scmp.ne.s32.totalorder %s115, %s129
      %p131 = scmp.eq.s32.totalorder %s21, 0
      %p132 = por %p130, %p131
      %s133 = ssub.s32 %s15, %s22
      %p134 = scmp.eq.s32.totalorder %s133, 0
      %s136 = sadd.s32 %s135, 1
      %s137 = scalar_select %p134, %s135, %s136
      %p140 = pneg %p134
      %p141 = scmp.eq.s32.totalorder %s15, 1
      %p142 = por %p140, %p141
      %p143 = scmp.ne.s32.totalorder %s135, %s138
      %p144 = scmp.eq.s32.totalorder %s15, 0
      %p145 = por %p143, %p144
      %p146 = scmp.ne.s32.totalorder %s135, %s138
      %p147 = scmp.eq.s32.totalorder %s20, 1
      %p148 = por %p146, %p147
      %p149 = scmp.ne.s32.totalorder %s138, %s139
      %p150 = scmp.eq.s32.totalorder %s20, 0
      %p151 = por %p149, %p150
      %p152 = scmp.ne.s32.totalorder %s138, %s139
      %p153 = scmp.eq.s32.totalorder %s21, 1
      %p154 = por %p152, %p153
      %p156 = scmp.ne.s32.totalorder %s139, %s155
      %p157 = scmp.eq.s32.totalorder %s21, 0
      %p158 = por %p156, %p157
      %s159 = ssub.s32 %s15, %s22
      %p160 = scmp.eq.s32.totalorder %s159, 0
      %s162 = sadd.s32 %s161, 1
      %s163 = scalar_select %p160, %s161, %s162
      %p166 = pneg %p160
      %p167 = scmp.eq.s32.totalorder %s15, 1
      %p168 = por %p166, %p167
      %p169 = scmp.ne.s32.totalorder %s161, %s164
      %p170 = scmp.eq.s32.totalorder %s15, 0
      %p171 = por %p169, %p170
      %p172 = scmp.ne.s32.totalorder %s161, %s164
      %p173 = scmp.eq.s32.totalorder %s20, 1
      %p174 = por %p172, %p173
      %p175 = scmp.ne.s32.totalorder %s164, %s165
      %p176 = scmp.eq.s32.totalorder %s20, 0
      %p177 = por %p175, %p176
      %p178 = scmp.ne.s32.totalorder %s164, %s165
      %p179 = scmp.eq.s32.totalorder %s21, 1
      %p180 = por %p178, %p179
      %p182 = scmp.ne.s32.totalorder %s165, %s181
      %p183 = scmp.eq.s32.totalorder %s21, 0
      %p184 = por %p182, %p183
      %s185 = ssub.s32 %s15, %s22
      %p186 = scmp.eq.s32.totalorder %s185, 0
      %s188 = sadd.s32 %s187, 1
      %s189 = scalar_select %p186, %s187, %s188
      %p192 = pneg %p186
      %p193 = scmp.eq.s32.totalorder %s15, 1
      %p194 = por %p192, %p193
      %p195 = scmp.ne.s32.totalorder %s187, %s190
      %p196 = scmp.eq.s32.totalorder %s15, 0
      %p197 = por %p195, %p196
      %p198 = scmp.ne.s32.totalorder %s187, %s190
      %p199 = scmp.eq.s32.totalorder %s20, 1
      %p200 = por %p198, %p199
      %p201 = scmp.ne.s32.totalorder %s190, %s191
      %p202 = scmp.eq.s32.totalorder %s20, 0
      %p203 = por %p201, %p202
      %p204 = scmp.ne.s32.totalorder %s190, %s191
      %p205 = scmp.eq.s32.totalorder %s21, 1
      %p206 = por %p204, %p205
      %p208 = scmp.ne.s32.totalorder %s191, %s207
      %p209 = scmp.eq.s32.totalorder %s21, 0
      %p210 = por %p208, %p209
      %p211 = scmp.le.s32.totalorder 1, %s15
      %p212 = scmp.lt.s32.totalorder %s15, 3
      %p213 = pnand %p211, %p212
      %p214 = pneg %p213
      // Predicated region
      $region9: #{conv_block_forward.3} parent=5 // pred_check
        _
      $region10: #{conv_block_forward.3} parent=5 // pred_check_branch
        %216 = sbr.rel (%p213) target = $region12
      $region11: #{conv_block_forward.3} parent=5 // pred_region
        %s217 = ssub.s32 %s15, 1
        // Predicated region
        $region13: #{conv_block_forward.3} parent=11 // pred_check
          %p218 = pneg %p62
        $region14: #{conv_block_forward.3} parent=11 // pred_check_branch
          %220 = sbr.rel (%p218) target = $region16
        $region15: #{conv_block_forward.3} parent=11 // pred_region
          _
        $region16: #{conv_block_forward.3} parent=11 // pred_fallthru
          _
        // Predicated region
        $region17: #{conv_block_forward.3} parent=11 // pred_check
          %p221 = pneg %p83
        $region18: #{conv_block_forward.3} parent=11 // pred_check_branch
          %223 = sbr.rel (%p221) target = $region20
        $region19: #{conv_block_forward.3} parent=11 // pred_region
          _
        $region20: #{conv_block_forward.3} parent=11 // pred_fallthru
          _
        // Predicated region
        $region21: #{conv_block_forward.3} parent=11 // pred_check
          %p224 = pneg %p104
        $region22: #{conv_block_forward.3} parent=11 // pred_check_branch
          %226 = sbr.rel (%p224) target = $region24
        $region23: #{conv_block_forward.3} parent=11 // pred_region
          %s228 = ssub.s32 18432, 18432
          %229 = vsyncadd [#allocation5], %s228
          %s230 = sshll.u32 [#allocation4], 4
          %s231 = int_to_ptr.vmem [resolvable:$true] %s230
          %236 = dma.hbm_to_vmem [thread:$0]  %s3, 18432, %s231, [#allocation5], 128, 128, 8
        $region24: #{conv_block_forward.3} parent=11 // pred_fallthru
          _
        // Predicated region
        $region25: #{conv_block_forward.3} parent=11 // pred_check
          %p237 = pneg %p125
        $region26: #{conv_block_forward.3} parent=11 // pred_check_branch
          %239 = sbr.rel (%p237) target = $region28
        $region27: #{conv_block_forward.3} parent=11 // pred_region
          _
        $region28: #{conv_block_forward.3} parent=11 // pred_fallthru
          _
      $region12: #{conv_block_forward.3} parent=5 // pred_fallthru
        _
      %p240 = scmp.lt.s32.totalorder %s15, 2
      // Predicated region
      $region29: #{conv_block_forward.3} parent=5 // pred_check
        %p241 = pneg %p240
      $region30: #{conv_block_forward.3} parent=5 // pred_check_branch
        %243 = sbr.rel (%p241) target = $region32
      $region31: #{conv_block_forward.3} parent=5 // pred_region
        // Predicated region
        $region33: #{conv_block_forward.3} parent=31 // pred_check
          %p244 = pneg %p35
        $region34: #{conv_block_forward.3} parent=31 // pred_check_branch
          %246 = sbr.rel (%p244) target = $region36
        $region35: #{conv_block_forward.3} parent=31 // pred_region
          %p247 = scmp.lt.s32.totalorder %s15, 1
          %s248 = scalar_select %p247, %s15, 1
          %s249 = smul.addr %s248, 32
          %s250 = smul.addr %s249, 8
          %s251 = scalar_lea.vmem %s0, %s250
        $region36: #{conv_block_forward.3} parent=31 // pred_fallthru
          _
      $region32: #{conv_block_forward.3} parent=5 // pred_fallthru
        _
      %p252 = scmp.le.s32.totalorder 1, %s15
      %p253 = scmp.lt.s32.totalorder %s15, 3
      %p254 = pnand %p252, %p253
      %p255 = pneg %p254
      // Predicated region
      $region37: #{conv_block_forward.3} parent=5 // pred_check
        _
      $region38: #{conv_block_forward.3} parent=5 // pred_check_branch
        %257 = sbr.rel (%p254) target = $region40
      $region39: #{conv_block_forward.3} parent=5 // pred_region
        %s258 = ssub.s32 %s15, 1
        // Predicated region
        $region41: #{conv_block_forward.3} parent=39 // pred_check
          %p259 = pneg %p104
        $region42: #{conv_block_forward.3} parent=39 // pred_check_branch
          %261 = sbr.rel (%p259) target = $region44
        $region43: #{conv_block_forward.3} parent=39 // pred_region
          %262 = dma.done [#allocation5], 18432
        $region44: #{conv_block_forward.3} parent=39 // pred_fallthru
          _
        %p263 = scmp.lt.s32.totalorder %s20, 1
        %s264 = scalar_select %p263, %s20, 1
        %s265 = smul.addr %s264, 32
        %s266 = smul.addr %s265, 8
        %s267 = scalar_lea.vmem %s0, %s266
        %p268 = pneg %p41
        %p269 = pneg %p38
        %p270 = pneg %p62
        %p271 = pneg %p59
        %p272 = pneg %p83
        %p273 = pneg %p80
        %p274 = pneg %p104
        %p275 = pneg %p101
        %p276 = pneg %p125
        %p277 = pneg %p122
        %p278 = pneg %p151
        %p279 = pneg %p148
        %p280 = scmp.lt.s32.totalorder %s20, 1
        %s281 = scalar_select %p280, %s20, 1
        %s282 = smul.addr %s281, 32
        %s283 = smul.addr %s282, 8
        %s284 = scalar_lea.vmem %s5, %s283
        %p285 = pneg %p177
        %p286 = pneg %p174
        %p287 = scmp.lt.s32.totalorder %s20, 1
        %s288 = scalar_select %p287, %s20, 1
        %s289 = scalar_lea.vmem %s6, %s288
        %p290 = pneg %p203
        %p291 = pneg %p200
        %p292 = scmp.lt.s32.totalorder %s20, 1
        %s293 = scalar_select %p292, %s20, 1
        %s294 = scalar_lea.vmem %s7, %s293
        %p295 = scmp.lt.s32.totalorder %s20, 1
        %s296 = scalar_select %p295, %s20, 1
        %s297 = smul.addr %s296, 32
        %s298 = smul.addr %s297, 8
        %s299 = scalar_lea.vmem %s0, %s298
        %p300 = scmp.lt.s32.totalorder %s20, 1
        %s301 = scalar_select %p300, %s20, 1
        %s302 = smul.addr %s301, 32
        %s303 = smul.addr %s302, 8
        %s304 = scalar_lea.vmem %s5, %s303
        %p305 = scmp.lt.s32.totalorder %s20, 1
        %s306 = scalar_select %p305, %s20, 1
        %s307 = scalar_lea.vmem %s6, %s306
        %p308 = scmp.lt.s32.totalorder %s20, 1
        %s309 = scalar_select %p308, %s20, 1
        %s310 = scalar_lea.vmem %s7, %s309
        %v311 = vld [vmem:[%s299] sm:$0xff]
        %v312 = vld [vmem:[%s299 + $0x8] sm:$0xff]
        %v313 = vld [vmem:[%s299 + $0x10] sm:$0xff]
        %v314 = vld [vmem:[%s299 + $0x18] sm:$0xff]
        %v315 = vld [vmem:[%s299 + $0x20] sm:$0xff]
        %v316 = vld [vmem:[%s299 + $0x28] sm:$0xff]
        %v317 = vld [vmem:[%s299 + $0x30] sm:$0xff]
        %v318 = vld [vmem:[%s299 + $0x38] sm:$0xff]
        %v319 = vld [vmem:[%s299 + $0x40] sm:$0xff]
        %v320 = vld [vmem:[%s299 + $0x48] sm:$0xff]
        %v321 = vld [vmem:[%s299 + $0x50] sm:$0xff]
        %v322 = vld [vmem:[%s299 + $0x58] sm:$0xff]
        %v323 = vld [vmem:[%s299 + $0x60] sm:$0xff]
        %v324 = vld [vmem:[%s299 + $0x68] sm:$0xff]
        %v325 = vld [vmem:[%s299 + $0x70] sm:$0xff]
        %v326 = vld [vmem:[%s299 + $0x78] sm:$0xff]
        %v327 = vld [vmem:[%s299 + $0x80] sm:$0xff]
        %v328 = vld [vmem:[%s299 + $0x88] sm:$0xff]
        %v329 = vld [vmem:[%s299 + $0x90] sm:$0xff]
        %v330 = vld [vmem:[%s299 + $0x98] sm:$0xff]
        %v331 = vld [vmem:[%s299 + $0xa0] sm:$0xff]
        %v332 = vld [vmem:[%s299 + $0xa8] sm:$0xff]
        %v333 = vld [vmem:[%s299 + $0xb0] sm:$0xff]
        %v334 = vld [vmem:[%s299 + $0xb8] sm:$0xff]
        %v335 = vld [vmem:[%s299 + $0xc0] sm:$0xff]
        %v336 = vld [vmem:[%s299 + $0xc8] sm:$0xff]
        %v337 = vld [vmem:[%s299 + $0xd0] sm:$0xff]
        %v338 = vld [vmem:[%s299 + $0xd8] sm:$0xff]
        %v339 = vld [vmem:[%s299 + $0xe0] sm:$0xff]
        %v340 = vld [vmem:[%s299 + $0xe8] sm:$0xff]
        %v341 = vld [vmem:[%s299 + $0xf0] sm:$0xff]
        %v342 = vld [vmem:[%s299 + $0xf8] sm:$0xff]
        %v343 = vld [vmem:[%s1] sm:$0xf]
        %v344 = vld [vmem:[%s2] sm:$0x1]
        %v346 = vlaneseq
        %v347 = vshrl.u32 %v346, 7
        %v348 = vsub.s32 0, %v347
        %v349 = vrot.slane %v344, %v348
        %vm351 = vcmask 31744
        %v353 = vsel %vm351, %v311, 0
        %v356 = vsel %vm351, %v312, 0
        %v359 = vsel %vm351, %v313, 0
        %v362 = vsel %vm351, %v314, 0
        %v365 = vsel %vm351, %v315, 0
        %v368 = vsel %vm351, %v316, 0
        %v371 = vsel %vm351, %v317, 0
        %v374 = vsel %vm351, %v318, 0
        %v377 = vsel %vm351, %v319, 0
        %v380 = vsel %vm351, %v320, 0
        %v383 = vsel %vm351, %v321, 0
        %v386 = vsel %vm351, %v322, 0
        %v389 = vsel %vm351, %v323, 0
        %v392 = vsel %vm351, %v324, 0
        %v395 = vsel %vm351, %v325, 0
        %v398 = vsel %vm351, %v326, 0
        %v401 = vsel %vm351, %v327, 0
        %v404 = vsel %vm351, %v328, 0
        %v407 = vsel %vm351, %v329, 0
        %v410 = vsel %vm351, %v330, 0
        %v413 = vsel %vm351, %v331, 0
        %v416 = vsel %vm351, %v332, 0
        %v419 = vsel %vm351, %v333, 0
        %v422 = vsel %vm351, %v334, 0
        %v425 = vsel %vm351, %v335, 0
        %v428 = vsel %vm351, %v336, 0
        %v431 = vsel %vm351, %v337, 0
        %v434 = vsel %vm351, %v338, 0
        %v437 = vsel %vm351, %v339, 0
        %v440 = vsel %vm351, %v340, 0
        %v443 = vsel %vm351, %v341, 0
        %v446 = vsel %vm351, %v342, 0
        %vm448 = vcmask 1043456
        %v450 = vsel %vm448, %v343, 0
        %452 = vmatprep.subr.mxu0 0.0
        %453 = vmatpush1.msra.mxu0 %v450
        %454 = vmatprep.subr.mxu0 0.0
        %455 = vmatpush1.msra.mxu0 0.0
        %456 = vmatprep.subr.mxu0 0.0
        %457 = vmatpush1.msra.mxu0 0.0
        %458 = vmatprep.subr.mxu0 0.0
        %459 = vmatpush1.msra.mxu0 0.0
        %460 = vmatprep.subr.mxu0 0.0
        %461 = vmatpush1.msra.mxu0 0.0
        %462 = vmatprep.subr.mxu0 0.0
        %463 = vmatpush1.msra.mxu0 0.0
        %464 = vmatprep.subr.mxu0 0.0
        %465 = vmatpush1.msra.mxu0 0.0
        %466 = vmatprep.subr.mxu0 0.0
        %467 = vmatpush1.msra.mxu0 0.0
        %468 = vmatprep.subr.mxu0 0.0
        %469 = vmatpush1.msra.mxu0 0.0
        %470 = vmatprep.subr.mxu0 0.0
        %471 = vmatpush1.msra.mxu0 0.0
        %472 = vmatprep.subr.mxu0 0.0
        %473 = vmatpush1.msra.mxu0 0.0
        %474 = vmatprep.subr.mxu0 0.0
        %475 = vmatpush1.msra.mxu0 0.0
        %476 = vmatprep.subr.mxu0 0.0
        %477 = vmatpush1.msra.mxu0 0.0
        %478 = vmatprep.subr.mxu0 0.0
        %479 = vmatpush1.msra.mxu0 0.0
        %480 = vmatprep.subr.mxu0 0.0
        %481 = vmatpush1.msra.mxu0 0.0
        %482 = vmatprep.subr.mxu0 0.0
        %483 = vmatpush1.msra.mxu0 0.0
        %484 = vmatprep.subr.mxu0 0.0
        %485 = vmatpush1.msra.mxu0 0.0
        %486 = vmatprep.subr.mxu0 0.0
        %487 = vmatpush1.msra.mxu0 0.0
        %488 = vmatprep.subr.mxu0 0.0
        %489 = vmatpush1.msra.mxu0 0.0
        %490 = vmatprep.subr.mxu0 0.0
        %491 = vmatpush1.msra.mxu0 0.0
        %492 = vmatprep.subr.mxu0 0.0
        %493 = vmatpush1.msra.mxu0 0.0
        %494 = vmatprep.subr.mxu0 0.0
        %495 = vmatpush1.msra.mxu0 0.0
        %496 = vmatprep.subr.mxu0 0.0
        %497 = vmatpush1.msra.mxu0 0.0
        %498 = vmatprep.subr.mxu0 0.0
        %499 = vmatpush1.msra.mxu0 0.0
        %500 = vmatprep.subr.mxu0 0.0
        %501 = vmatpush1.msra.mxu0 0.0
        %502 = vmatprep.subr.mxu0 0.0
        %503 = vmatpush1.msra.mxu0 0.0
        %504 = vmatprep.subr.mxu0 0.0
        %505 = vmatpush1.msra.mxu0 0.0
        %506 = vmatprep.subr.mxu0 0.0
        %507 = vmatpush1.msra.mxu0 0.0
        %508 = vmatprep.subr.mxu0 0.0
        %509 = vmatpush1.msra.mxu0 0.0
        %510 = vmatprep.subr.mxu0 0.0
        %511 = vmatpush1.msra.mxu0 0.0
        %512 = vmatprep.subr.mxu0 0.0
        %513 = vmatpush1.msra.mxu0 0.0
        %514 = vmatprep.subr.mxu0 0.0
        %515 = vmatpush1.msra.mxu0 0.0
        %516 = vmatprep.mubr.f32.mxu0 0.0
        %517 = vmatmul.mubr.f32.gmra.mrb[0].mxu0 %v353
        %v518 = vpop.f32.mrb[0].mxu0
        %v519 = vadd.f32 %v349, %v518
        %v520 = vpop.f32.mrb[0].mxu0
        %521 = vmatprep.mubr.f32.mxu0 0.0
        %522 = vmatmul.mubr.f32.gmra.mrb[0].mxu0 %v356
        %v523 = vpop.f32.mrb[0].mxu0
        %v524 = vadd.f32 %v349, %v523
        %v525 = vpop.f32.mrb[0].mxu0
        %526 = vmatprep.mubr.f32.mxu0 0.0
        %527 = vmatmul.mubr.f32.gmra.mrb[0].mxu0 %v359
        %v528 = vpop.f32.mrb[0].mxu0
        %v529 = vadd.f32 %v349, %v528
        %v530 = vpop.f32.mrb[0].mxu0
        %531 = vmatprep.mubr.f32.mxu0 0.0
        %532 = vmatmul.mubr.f32.gmra.mrb[0].mxu0 %v362
        %v533 = vpop.f32.mrb[0].mxu0
        %v534 = vadd.f32 %v349, %v533
        %v535 = vpop.f32.mrb[0].mxu0
        %536 = vmatprep.mubr.f32.mxu0 0.0
        %537 = vmatmul.mubr.f32.gmra.mrb[0].mxu0 %v365
        %v538 = vpop.f32.mrb[0].mxu0
        %v539 = vadd.f32 %v349, %v538
        %v540 = vpop.f32.mrb[0].mxu0
        %541 = vmatprep.mubr.f32.mxu0 0.0
        %542 = vmatmul.mubr.f32.gmra.mrb[0].mxu0 %v368
        %v543 = vpop.f32.mrb[0].mxu0
        %v544 = vadd.f32 %v349, %v543
        %v545 = vpop.f32.mrb[0].mxu0
        %546 = vmatprep.mubr.f32.mxu0 0.0
        %547 = vmatmul.mubr.f32.gmra.mrb[0].mxu0 %v371
        %v548 = vpop.f32.mrb[0].mxu0
        %v549 = vadd.f32 %v349, %v548
        %v550 = vpop.f32.mrb[0].mxu0
        %551 = vmatprep.mubr.f32.mxu0 0.0
        %552 = vmatmul.mubr.f32.gmra.mrb[0].mxu0 %v374
        %v553 = vpop.f32.mrb[0].mxu0
        %v554 = vadd.f32 %v349, %v553
        %v555 = vpop.f32.mrb[0].mxu0
        %556 = vmatprep.mubr.f32.mxu0 0.0
        %557 = vmatmul.mubr.f32.gmra.mrb[0].mxu0 %v377
        %v558 = vpop.f32.mrb[0].mxu0
        %v559 = vadd.f32 %v349, %v558
        %v560 = vpop.f32.mrb[0].mxu0
        %561 = vmatprep.mubr.f32.mxu0 0.0
        %562 = vmatmul.mubr.f32.gmra.mrb[0].mxu0 %v380
        %v563 = vpop.f32.mrb[0].mxu0
        %v564 = vadd.f32 %v349, %v563
        %v565 = vpop.f32.mrb[0].mxu0
        %566 = vmatprep.mubr.f32.mxu0 0.0
        %567 = vmatmul.mubr.f32.gmra.mrb[0].mxu0 %v383
        %v568 = vpop.f32.mrb[0].mxu0
        %v569 = vadd.f32 %v349, %v568
        %v570 = vpop.f32.mrb[0].mxu0
        %571 = vmatprep.mubr.f32.mxu0 0.0
        %572 = vmatmul.mubr.f32.gmra.mrb[0].mxu0 %v386
        %v573 = vpop.f32.mrb[0].mxu0
        %v574 = vadd.f32 %v349, %v573
        %v575 = vpop.f32.mrb[0].mxu0
        %576 = vmatprep.mubr.f32.mxu0 0.0
        %577 = vmatmul.mubr.f32.gmra.mrb[0].mxu0 %v389
        %v578 = vpop.f32.mrb[0].mxu0
        %v579 = vadd.f32 %v349, %v578
        %v580 = vpop.f32.mrb[0].mxu0
        %581 = vmatprep.mubr.f32.mxu0 0.0
        %582 = vmatmul.mubr.f32.gmra.mrb[0].mxu0 %v392
        %v583 = vpop.f32.mrb[0].mxu0
        %v584 = vadd.f32 %v349, %v583
        %v585 = vpop.f32.mrb[0].mxu0
        %586 = vmatprep.mubr.f32.mxu0 0.0
        %587 = vmatmul.mubr.f32.gmra.mrb[0].mxu0 %v395
        %v588 = vpop.f32.mrb[0].mxu0
        %v589 = vadd.f32 %v349, %v588
        %v590 = vpop.f32.mrb[0].mxu0
        %591 = vmatprep.mubr.f32.mxu0 0.0
        %592 = vmatmul.mubr.f32.gmra.mrb[0].mxu0 %v398
        %v593 = vpop.f32.mrb[0].mxu0
        %v594 = vadd.f32 %v349, %v593
        %v595 = vpop.f32.mrb[0].mxu0
        %596 = vmatprep.mubr.f32.mxu0 0.0
        %597 = vmatmul.mubr.f32.gmra.mrb[0].mxu0 %v401
        %v598 = vpop.f32.mrb[0].mxu0
        %v599 = vadd.f32 %v349, %v598
        %v600 = vpop.f32.mrb[0].mxu0
        %601 = vmatprep.mubr.f32.mxu0 0.0
        %602 = vmatmul.mubr.f32.gmra.mrb[0].mxu0 %v404
        %v603 = vpop.f32.mrb[0].mxu0
        %v604 = vadd.f32 %v349, %v603
        %v605 = vpop.f32.mrb[0].mxu0
        %606 = vmatprep.mubr.f32.mxu0 0.0
        %607 = vmatmul.mubr.f32.gmra.mrb[0].mxu0 %v407
        %v608 = vpop.f32.mrb[0].mxu0
        %v609 = vadd.f32 %v349, %v608
        %v610 = vpop.f32.mrb[0].mxu0
        %611 = vmatprep.mubr.f32.mxu0 0.0
        %612 = vmatmul.mubr.f32.gmra.mrb[0].mxu0 %v410
        %v613 = vpop.f32.mrb[0].mxu0
        %v614 = vadd.f32 %v349, %v613
        %v615 = vpop.f32.mrb[0].mxu0
        %616 = vmatprep.mubr.f32.mxu0 0.0
        %617 = vmatmul.mubr.f32.gmra.mrb[0].mxu0 %v413
        %v618 = vpop.f32.mrb[0].mxu0
        %v619 = vadd.f32 %v349, %v618
        %v620 = vpop.f32.mrb[0].mxu0
        %621 = vmatprep.mubr.f32.mxu0 0.0
        %622 = vmatmul.mubr.f32.gmra.mrb[0].mxu0 %v416
        %v623 = vpop.f32.mrb[0].mxu0
        %v624 = vadd.f32 %v349, %v623
        %v625 = vpop.f32.mrb[0].mxu0
        %626 = vmatprep.mubr.f32.mxu0 0.0
        %627 = vmatmul.mubr.f32.gmra.mrb[0].mxu0 %v419
        %v628 = vpop.f32.mrb[0].mxu0
        %v629 = vadd.f32 %v349, %v628
        %v630 = vpop.f32.mrb[0].mxu0
        %631 = vmatprep.mubr.f32.mxu0 0.0
        %632 = vmatmul.mubr.f32.gmra.mrb[0].mxu0 %v422
        %v633 = vpop.f32.mrb[0].mxu0
        %v634 = vadd.f32 %v349, %v633
        %v635 = vpop.f32.mrb[0].mxu0
        %636 = vmatprep.mubr.f32.mxu0 0.0
        %637 = vmatmul.mubr.f32.gmra.mrb[0].mxu0 %v425
        %v638 = vpop.f32.mrb[0].mxu0
        %v639 = vadd.f32 %v349, %v638
        %v640 = vpop.f32.mrb[0].mxu0
        %641 = vmatprep.mubr.f32.mxu0 0.0
        %642 = vmatmul.mubr.f32.gmra.mrb[0].mxu0 %v428
        %v643 = vpop.f32.mrb[0].mxu0
        %v644 = vadd.f32 %v349, %v643
        %v645 = vpop.f32.mrb[0].mxu0
        %646 = vmatprep.mubr.f32.mxu0 0.0
        %647 = vmatmul.mubr.f32.gmra.mrb[0].mxu0 %v431
        %v648 = vpop.f32.mrb[0].mxu0
        %v649 = vadd.f32 %v349, %v648
        %v650 = vpop.f32.mrb[0].mxu0
        %651 = vmatprep.mubr.f32.mxu0 0.0
        %652 = vmatmul.mubr.f32.gmra.mrb[0].mxu0 %v434
        %v653 = vpop.f32.mrb[0].mxu0
        %v654 = vadd.f32 %v349, %v653
        %v655 = vpop.f32.mrb[0].mxu0
        %656 = vmatprep.mubr.f32.mxu0 0.0
        %657 = vmatmul.mubr.f32.gmra.mrb[0].mxu0 %v437
        %v658 = vpop.f32.mrb[0].mxu0
        %v659 = vadd.f32 %v349, %v658
        %v660 = vpop.f32.mrb[0].mxu0
        %661 = vmatprep.mubr.f32.mxu0 0.0
        %662 = vmatmul.mubr.f32.gmra.mrb[0].mxu0 %v440
        %v663 = vpop.f32.mrb[0].mxu0
        %v664 = vadd.f32 %v349, %v663
        %v665 = vpop.f32.mrb[0].mxu0
        %666 = vmatprep.mubr.f32.mxu0 0.0
        %667 = vmatmul.mubr.f32.gmra.mrb[0].mxu0 %v443
        %v668 = vpop.f32.mrb[0].mxu0
        %v669 = vadd.f32 %v349, %v668
        %v670 = vpop.f32.mrb[0].mxu0
        %671 = vmatprep.mubr.f32.mxu0 0.0
        %672 = vmatmul.mubr.f32.gmra.mrb[0].mxu0 %v446
        %v673 = vpop.f32.mrb[0].mxu0
        %v674 = vadd.f32 %v349, %v673
        %v675 = vpop.f32.mrb[0].mxu0
        %676 = vdwg.mxu0
        %vm709 = vcmask 1040384
        %v710 = vrot.slane %v519, 7
        %v711 = vrot.slane %v524, 7
        %v712 = vsel %vm709, %v710, %v711
        %v713 = vrot.slane %v529, 7
        %v714 = vrot.slane %v534, 7
        %v715 = vsel %vm709, %v713, %v714
        %v716 = vrot.slane %v539, 7
        %v717 = vrot.slane %v544, 7
        %v718 = vsel %vm709, %v716, %v717
        %v719 = vrot.slane %v549, 7
        %v720 = vrot.slane %v554, 7
        %v721 = vsel %vm709, %v719, %v720
        %v722 = vrot.slane %v559, 7
        %v723 = vrot.slane %v564, 7
        %v724 = vsel %vm709, %v722, %v723
        %v725 = vrot.slane %v569, 7
        %v726 = vrot.slane %v574, 7
        %v727 = vsel %vm709, %v725, %v726
        %v728 = vrot.slane %v579, 7
        %v729 = vrot.slane %v584, 7
        %v730 = vsel %vm709, %v728, %v729
        %v731 = vrot.slane %v589, 7
        %v732 = vrot.slane %v594, 7
        %v733 = vsel %vm709, %v731, %v732
        %v734 = vrot.slane %v599, 7
        %v735 = vrot.slane %v604, 7
        %v736 = vsel %vm709, %v734, %v735
        %v737 = vrot.slane %v609, 7
        %v738 = vrot.slane %v614, 7
        %v739 = vsel %vm709, %v737, %v738
        %v740 = vrot.slane %v619, 7
        %v741 = vrot.slane %v624, 7
        %v742 = vsel %vm709, %v740, %v741
        %v743 = vrot.slane %v629, 7
        %v744 = vrot.slane %v634, 7
        %v745 = vsel %vm709, %v743, %v744
        %v746 = vrot.slane %v639, 7
        %v747 = vrot.slane %v644, 7
        %v748 = vsel %vm709, %v746, %v747
        %v749 = vrot.slane %v649, 7
        %v750 = vrot.slane %v654, 7
        %v751 = vsel %vm709, %v749, %v750
        %v752 = vrot.slane %v659, 7
        %v753 = vrot.slane %v664, 7
        %v754 = vsel %vm709, %v752, %v753
        %v755 = vrot.slane %v669, 7
        %v756 = vrot.slane %v674, 7
        %v757 = vsel %vm709, %v755, %v756
        %v806 = vsel %vm709, 0.0, %v710
        %v807 = vsel %vm709, 0.0, %v713
        %v808 = vsel %vm709, 0.0, %v716
        %v809 = vsel %vm709, 0.0, %v719
        %v810 = vsel %vm709, 0.0, %v722
        %v811 = vsel %vm709, 0.0, %v725
        %v812 = vsel %vm709, 0.0, %v728
        %v813 = vsel %vm709, 0.0, %v731
        %v814 = vsel %vm709, 0.0, %v734
        %v815 = vsel %vm709, 0.0, %v737
        %v816 = vsel %vm709, 0.0, %v740
        %v817 = vsel %vm709, 0.0, %v743
        %v818 = vsel %vm709, 0.0, %v746
        %v819 = vsel %vm709, 0.0, %v749
        %v820 = vsel %vm709, 0.0, %v752
        %v821 = vsel %vm709, 0.0, %v755
        %v822 = vsel %vm709, %v711, 0.0
        %v823 = vsel %vm709, %v714, 0.0
        %v824 = vsel %vm709, %v717, 0.0
        %v825 = vsel %vm709, %v720, 0.0
        %v826 = vsel %vm709, %v723, 0.0
        %v827 = vsel %vm709, %v726, 0.0
        %v828 = vsel %vm709, %v729, 0.0
        %v829 = vsel %vm709, %v732, 0.0
        %v830 = vsel %vm709, %v735, 0.0
        %v831 = vsel %vm709, %v738, 0.0
        %v832 = vsel %vm709, %v741, 0.0
        %v833 = vsel %vm709, %v744, 0.0
        %v834 = vsel %vm709, %v747, 0.0
        %v835 = vsel %vm709, %v750, 0.0
        %v836 = vsel %vm709, %v753, 0.0
        %v837 = vsel %vm709, %v756, 0.0
        %838 = vst [vmem:[#allocation2] sm:$0xff] 0.0
        %839 = vst [vmem:[#allocation2 + $0x8] sm:$0xff] 0.0
        %840 = vst [vmem:[#allocation2 + $0x10] sm:$0x3] 0.0
        %841 = vst [vmem:[#allocation2 + $0x18] sm:$0xff] %v806
        %842 = vst [vmem:[#allocation2 + $0x20] sm:$0xff] %v712
        %843 = vst [vmem:[#allocation2 + $0x28] sm:$0x3] %v822
        %844 = vst [vmem:[#allocation2 + $0x30] sm:$0xff] %v807
        %845 = vst [vmem:[#allocation2 + $0x38] sm:$0xff] %v715
        %846 = vst [vmem:[#allocation2 + $0x40] sm:$0x3] %v823
        %847 = vst [vmem:[#allocation2 + $0x48] sm:$0xff] %v808
        %848 = vst [vmem:[#allocation2 + $0x50] sm:$0xff] %v718
        %849 = vst [vmem:[#allocation2 + $0x58] sm:$0x3] %v824
        %850 = vst [vmem:[#allocation2 + $0x60] sm:$0xff] %v809
        %851 = vst [vmem:[#allocation2 + $0x68] sm:$0xff] %v721
        %852 = vst [vmem:[#allocation2 + $0x70] sm:$0x3] %v825
        %853 = vst [vmem:[#allocation2 + $0x78] sm:$0xff] %v810
        %854 = vst [vmem:[#allocation2 + $0x80] sm:$0xff] %v724
        %855 = vst [vmem:[#allocation2 + $0x88] sm:$0x3] %v826
        %856 = vst [vmem:[#allocation2 + $0x90] sm:$0xff] %v811
        %857 = vst [vmem:[#allocation2 + $0x98] sm:$0xff] %v727
        %858 = vst [vmem:[#allocation2 + $0xa0] sm:$0x3] %v827
        %859 = vst [vmem:[#allocation2 + $0xa8] sm:$0xff] %v812
        %860 = vst [vmem:[#allocation2 + $0xb0] sm:$0xff] %v730
        %861 = vst [vmem:[#allocation2 + $0xb8] sm:$0x3] %v828
        %862 = vst [vmem:[#allocation2 + $0xc0] sm:$0xff] %v813
        %863 = vst [vmem:[#allocation2 + $0xc8] sm:$0xff] %v733
        %864 = vst [vmem:[#allocation2 + $0xd0] sm:$0x3] %v829
        %865 = vst [vmem:[#allocation2 + $0xd8] sm:$0xff] %v814
        %866 = vst [vmem:[#allocation2 + $0xe0] sm:$0xff] %v736
        %867 = vst [vmem:[#allocation2 + $0xe8] sm:$0x3] %v830
        %868 = vst [vmem:[#allocation2 + $0xf0] sm:$0xff] %v815
        %869 = vst [vmem:[#allocation2 + $0xf8] sm:$0xff] %v739
        %870 = vst [vmem:[#allocation2 + $0x100] sm:$0x3] %v831
        %871 = vst [vmem:[#allocation2 + $0x108] sm:$0xff] %v816
        %872 = vst [vmem:[#allocation2 + $0x110] sm:$0xff] %v742
        %873 = vst [vmem:[#allocation2 + $0x118] sm:$0x3] %v832
        %874 = vst [vmem:[#allocation2 + $0x120] sm:$0xff] %v817
        %875 = vst [vmem:[#allocation2 + $0x128] sm:$0xff] %v745
        %876 = vst [vmem:[#allocation2 + $0x130] sm:$0x3] %v833
        %877 = vst [vmem:[#allocation2 + $0x138] sm:$0xff] %v818
        %878 = vst [vmem:[#allocation2 + $0x140] sm:$0xff] %v748
        %879 = vst [vmem:[#allocation2 + $0x148] sm:$0x3] %v834
        %880 = vst [vmem:[#allocation2 + $0x150] sm:$0xff] %v819
        %881 = vst [vmem:[#allocation2 + $0x158] sm:$0xff] %v751
        %882 = vst [vmem:[#allocation2 + $0x160] sm:$0x3] %v835
        %883 = vst [vmem:[#allocation2 + $0x168] sm:$0xff] %v820
        %884 = vst [vmem:[#allocation2 + $0x170] sm:$0xff] %v754
        %885 = vst [vmem:[#allocation2 + $0x178] sm:$0x3] %v836
        %886 = vst [vmem:[#allocation2 + $0x180] sm:$0xff] %v821
        %887 = vst [vmem:[#allocation2 + $0x188] sm:$0xff] %v757
        %888 = vst [vmem:[#allocation2 + $0x190] sm:$0x3] %v837
        %889 = vst [vmem:[#allocation2 + $0x198] sm:$0xff] 0.0
        %890 = vst [vmem:[#allocation2 + $0x1a0] sm:$0xff] 0.0
        %891 = vst [vmem:[#allocation2 + $0x1a8] sm:$0x3] 0.0
        %v892 = vld [vmem:[#allocation2] sm:$0xff]
        %v893 = vld [vmem:[#allocation2 + $0x8] sm:$0xff]
        %v894 = vld [vmem:[#allocation2 + $0x18] sm:$0xff]
        %v895 = vld [vmem:[#allocation2 + $0x20] sm:$0xff]
        %v896 = vld [vmem:[#allocation2 + $0x30] sm:$0xff]
        %v897 = vld [vmem:[#allocation2 + $0x38] sm:$0xff]
        %v898 = vld [vmem:[#allocation2 + $0x48] sm:$0xff]
        %v899 = vld [vmem:[#allocation2 + $0x50] sm:$0xff]
        %v900 = vld [vmem:[#allocation2 + $0x60] sm:$0xff]
        %v901 = vld [vmem:[#allocation2 + $0x68] sm:$0xff]
        %v902 = vld [vmem:[#allocation2 + $0x78] sm:$0xff]
        %v903 = vld [vmem:[#allocation2 + $0x80] sm:$0xff]
        %v904 = vld [vmem:[#allocation2 + $0x90] sm:$0xff]
        %v905 = vld [vmem:[#allocation2 + $0x98] sm:$0xff]
        %v906 = vld [vmem:[#allocation2 + $0xa8] sm:$0xff]
        %v907 = vld [vmem:[#allocation2 + $0xb0] sm:$0xff]
        %v908 = vld [vmem:[#allocation2 + $0xc0] sm:$0xff]
        %v909 = vld [vmem:[#allocation2 + $0xc8] sm:$0xff]
        %v910 = vld [vmem:[#allocation2 + $0xd8] sm:$0xff]
        %v911 = vld [vmem:[#allocation2 + $0xe0] sm:$0xff]
        %v912 = vld [vmem:[#allocation2 + $0xf0] sm:$0xff]
        %v913 = vld [vmem:[#allocation2 + $0xf8] sm:$0xff]
        %v914 = vld [vmem:[#allocation2 + $0x108] sm:$0xff]
        %v915 = vld [vmem:[#allocation2 + $0x110] sm:$0xff]
        %v916 = vld [vmem:[#allocation2 + $0x120] sm:$0xff]
        %v917 = vld [vmem:[#allocation2 + $0x128] sm:$0xff]
        %v918 = vld [vmem:[#allocation2 + $0x138] sm:$0xff]
        %v919 = vld [vmem:[#allocation2 + $0x140] sm:$0xff]
        %v920 = vld [vmem:[#allocation2 + $0x150] sm:$0xff]
        %v921 = vld [vmem:[#allocation2 + $0x158] sm:$0xff]
        %v922 = vld [vmem:[#allocation2 + $0x168] sm:$0xff]
        %v923 = vld [vmem:[#allocation2 + $0x170] sm:$0xff]
        %924 = vst [vmem:[#allocation3] sm:$0xff] %v892
        %925 = vst [vmem:[#allocation3 + $0x48] sm:$0xff] %v893
        %926 = vst [vmem:[#allocation3 + $0x90] sm:$0xff] %v894
        %927 = vst [vmem:[#allocation3 + $0xd8] sm:$0xff] %v895
        %928 = vst [vmem:[#allocation3 + $0x120] sm:$0xff] %v896
        %929 = vst [vmem:[#allocation3 + $0x168] sm:$0xff] %v897
        %930 = vst [vmem:[#allocation3 + $0x1b0] sm:$0xff] %v898
        %931 = vst [vmem:[#allocation3 + $0x1f8] sm:$0xff] %v899
        %932 = vst [vmem:[#allocation3 + $0x240] sm:$0xff] %v900
        %933 = vst [vmem:[#allocation3 + $0x288] sm:$0xff] %v901
        %934 = vst [vmem:[#allocation3 + $0x2d0] sm:$0xff] %v902
        %935 = vst [vmem:[#allocation3 + $0x318] sm:$0xff] %v903
        %936 = vst [vmem:[#allocation3 + $0x360] sm:$0xff] %v904
        %937 = vst [vmem:[#allocation3 + $0x3a8] sm:$0xff] %v905
        %938 = vst [vmem:[#allocation3 + $0x3f0] sm:$0xff] %v906
        %939 = vst [vmem:[#allocation3 + $0x438] sm:$0xff] %v907
        %940 = vst [vmem:[#allocation3 + $0x480] sm:$0xff] %v908
        %941 = vst [vmem:[#allocation3 + $0x4c8] sm:$0xff] %v909
        %942 = vst [vmem:[#allocation3 + $0x510] sm:$0xff] %v910
        %943 = vst [vmem:[#allocation3 + $0x558] sm:$0xff] %v911
        %944 = vst [vmem:[#allocation3 + $0x5a0] sm:$0xff] %v912
        %945 = vst [vmem:[#allocation3 + $0x5e8] sm:$0xff] %v913
        %946 = vst [vmem:[#allocation3 + $0x630] sm:$0xff] %v914
        %947 = vst [vmem:[#allocation3 + $0x678] sm:$0xff] %v915
        %948 = vst [vmem:[#allocation3 + $0x6c0] sm:$0xff] %v916
        %949 = vst [vmem:[#allocation3 + $0x708] sm:$0xff] %v917
        %950 = vst [vmem:[#allocation3 + $0x750] sm:$0xff] %v918
        %951 = vst [vmem:[#allocation3 + $0x798] sm:$0xff] %v919
        %952 = vst [vmem:[#allocation3 + $0x7e0] sm:$0xff] %v920
        %953 = vst [vmem:[#allocation3 + $0x828] sm:$0xff] %v921
        %954 = vst [vmem:[#allocation3 + $0x870] sm:$0xff] %v922
        %955 = vst [vmem:[#allocation3 + $0x8b8] sm:$0xff] %v923
        %v956 = vld [vmem:[#allocation2 + $0x1] sm:$0xff]
        %v957 = vld [vmem:[#allocation2 + $0x9] sm:$0xff]
        %v958 = vld [vmem:[#allocation2 + $0x19] sm:$0xff]
        %v959 = vld [vmem:[#allocation2 + $0x21] sm:$0xff]
        %v960 = vld [vmem:[#allocation2 + $0x31] sm:$0xff]
        %v961 = vld [vmem:[#allocation2 + $0x39] sm:$0xff]
        %v962 = vld [vmem:[#allocation2 + $0x49] sm:$0xff]
        %v963 = vld [vmem:[#allocation2 + $0x51] sm:$0xff]
        %v964 = vld [vmem:[#allocation2 + $0x61] sm:$0xff]
        %v965 = vld [vmem:[#allocation2 + $0x69] sm:$0xff]
        %v966 = vld [vmem:[#allocation2 + $0x79] sm:$0xff]
        %v967 = vld [vmem:[#allocation2 + $0x81] sm:$0xff]
        %v968 = vld [vmem:[#allocation2 + $0x91] sm:$0xff]
        %v969 = vld [vmem:[#allocation2 + $0x99] sm:$0xff]
        %v970 = vld [vmem:[#allocation2 + $0xa9] sm:$0xff]
        %v971 = vld [vmem:[#allocation2 + $0xb1] sm:$0xff]
        %v972 = vld [vmem:[#allocation2 + $0xc1] sm:$0xff]
        %v973 = vld [vmem:[#allocation2 + $0xc9] sm:$0xff]
        %v974 = vld [vmem:[#allocation2 + $0xd9] sm:$0xff]
        %v975 = vld [vmem:[#allocation2 + $0xe1] sm:$0xff]
        %v976 = vld [vmem:[#allocation2 + $0xf1] sm:$0xff]
        %v977 = vld [vmem:[#allocation2 + $0xf9] sm:$0xff]
        %v978 = vld [vmem:[#allocation2 + $0x109] sm:$0xff]
        %v979 = vld [vmem:[#allocation2 + $0x111] sm:$0xff]
        %v980 = vld [vmem:[#allocation2 + $0x121] sm:$0xff]
        %v981 = vld [vmem:[#allocation2 + $0x129] sm:$0xff]
        %v982 = vld [vmem:[#allocation2 + $0x139] sm:$0xff]
        %v983 = vld [vmem:[#allocation2 + $0x141] sm:$0xff]
        %v984 = vld [vmem:[#allocation2 + $0x151] sm:$0xff]
        %v985 = vld [vmem:[#allocation2 + $0x159] sm:$0xff]
        %v986 = vld [vmem:[#allocation2 + $0x169] sm:$0xff]
        %v987 = vld [vmem:[#allocation2 + $0x171] sm:$0xff]
        %988 = vst [vmem:[#allocation3 + $0x8] sm:$0xff] %v956
        %989 = vst [vmem:[#allocation3 + $0x50] sm:$0xff] %v957
        %990 = vst [vmem:[#allocation3 + $0x98] sm:$0xff] %v958
        %991 = vst [vmem:[#allocation3 + $0xe0] sm:$0xff] %v959
        %992 = vst [vmem:[#allocation3 + $0x128] sm:$0xff] %v960
        %993 = vst [vmem:[#allocation3 + $0x170] sm:$0xff] %v961
        %994 = vst [vmem:[#allocation3 + $0x1b8] sm:$0xff] %v962
        %995 = vst [vmem:[#allocation3 + $0x200] sm:$0xff] %v963
        %996 = vst [vmem:[#allocation3 + $0x248] sm:$0xff] %v964
        %997 = vst [vmem:[#allocation3 + $0x290] sm:$0xff] %v965
        %998 = vst [vmem:[#allocation3 + $0x2d8] sm:$0xff] %v966
        %999 = vst [vmem:[#allocation3 + $0x320] sm:$0xff] %v967
        %1000 = vst [vmem:[#allocation3 + $0x368] sm:$0xff] %v968
        %1001 = vst [vmem:[#allocation3 + $0x3b0] sm:$0xff] %v969
        %1002 = vst [vmem:[#allocation3 + $0x3f8] sm:$0xff] %v970
        %1003 = vst [vmem:[#allocation3 + $0x440] sm:$0xff] %v971
        %1004 = vst [vmem:[#allocation3 + $0x488] sm:$0xff] %v972
        %1005 = vst [vmem:[#allocation3 + $0x4d0] sm:$0xff] %v973
        %1006 = vst [vmem:[#allocation3 + $0x518] sm:$0xff] %v974
        %1007 = vst [vmem:[#allocation3 + $0x560] sm:$0xff] %v975
        %1008 = vst [vmem:[#allocation3 + $0x5a8] sm:$0xff] %v976
        %1009 = vst [vmem:[#allocation3 + $0x5f0] sm:$0xff] %v977
        %1010 = vst [vmem:[#allocation3 + $0x638] sm:$0xff] %v978
        %1011 = vst [vmem:[#allocation3 + $0x680] sm:$0xff] %v979
        %1012 = vst [vmem:[#allocation3 + $0x6c8] sm:$0xff] %v980
        %1013 = vst [vmem:[#allocation3 + $0x710] sm:$0xff] %v981
        %1014 = vst [vmem:[#allocation3 + $0x758] sm:$0xff] %v982
        %1015 = vst [vmem:[#allocation3 + $0x7a0] sm:$0xff] %v983
        %1016 = vst [vmem:[#allocation3 + $0x7e8] sm:$0xff] %v984
        %1017 = vst [vmem:[#allocation3 + $0x830] sm:$0xff] %v985
        %1018 = vst [vmem:[#allocation3 + $0x878] sm:$0xff] %v986
        %1019 = vst [vmem:[#allocation3 + $0x8c0] sm:$0xff] %v987
        %v1020 = vld [vmem:[#allocation2 + $0x2] sm:$0xff]
        %v1021 = vld [vmem:[#allocation2 + $0xa] sm:$0xff]
        %v1022 = vld [vmem:[#allocation2 + $0x1a] sm:$0xff]
        %v1023 = vld [vmem:[#allocation2 + $0x22] sm:$0xff]
        %v1024 = vld [vmem:[#allocation2 + $0x32] sm:$0xff]
        %v1025 = vld [vmem:[#allocation2 + $0x3a] sm:$0xff]
        %v1026 = vld [vmem:[#allocation2 + $0x4a] sm:$0xff]
        %v1027 = vld [vmem:[#allocation2 + $0x52] sm:$0xff]
        %v1028 = vld [vmem:[#allocation2 + $0x62] sm:$0xff]
        %v1029 = vld [vmem:[#allocation2 + $0x6a] sm:$0xff]
        %v1030 = vld [vmem:[#allocation2 + $0x7a] sm:$0xff]
        %v1031 = vld [vmem:[#allocation2 + $0x82] sm:$0xff]
        %v1032 = vld [vmem:[#allocation2 + $0x92] sm:$0xff]
        %v1033 = vld [vmem:[#allocation2 + $0x9a] sm:$0xff]
        %v1034 = vld [vmem:[#allocation2 + $0xaa] sm:$0xff]
        %v1035 = vld [vmem:[#allocation2 + $0xb2] sm:$0xff]
        %v1036 = vld [vmem:[#allocation2 + $0xc2] sm:$0xff]
        %v1037 = vld [vmem:[#allocation2 + $0xca] sm:$0xff]
        %v1038 = vld [vmem:[#allocation2 + $0xda] sm:$0xff]
        %v1039 = vld [vmem:[#allocation2 + $0xe2] sm:$0xff]
        %v1040 = vld [vmem:[#allocation2 + $0xf2] sm:$0xff]
        %v1041 = vld [vmem:[#allocation2 + $0xfa] sm:$0xff]
        %v1042 = vld [vmem:[#allocation2 + $0x10a] sm:$0xff]
        %v1043 = vld [vmem:[#allocation2 + $0x112] sm:$0xff]
        %v1044 = vld [vmem:[#allocation2 + $0x122] sm:$0xff]
        %v1045 = vld [vmem:[#allocation2 + $0x12a] sm:$0xff]
        %v1046 = vld [vmem:[#allocation2 + $0x13a] sm:$0xff]
        %v1047 = vld [vmem:[#allocation2 + $0x142] sm:$0xff]
        %v1048 = vld [vmem:[#allocation2 + $0x152] sm:$0xff]
        %v1049 = vld [vmem:[#allocation2 + $0x15a] sm:$0xff]
        %v1050 = vld [vmem:[#allocation2 + $0x16a] sm:$0xff]
        %v1051 = vld [vmem:[#allocation2 + $0x172] sm:$0xff]
        %1052 = vst [vmem:[#allocation3 + $0x10] sm:$0xff] %v1020
        %1053 = vst [vmem:[#allocation3 + $0x58] sm:$0xff] %v1021
        %1054 = vst [vmem:[#allocation3 + $0xa0] sm:$0xff] %v1022
        %1055 = vst [vmem:[#allocation3 + $0xe8] sm:$0xff] %v1023
        %1056 = vst [vmem:[#allocation3 + $0x130] sm:$0xff] %v1024
        %1057 = vst [vmem:[#allocation3 + $0x178] sm:$0xff] %v1025
        %1058 = vst [vmem:[#allocation3 + $0x1c0] sm:$0xff] %v1026
        %1059 = vst [vmem:[#allocation3 + $0x208] sm:$0xff] %v1027
        %1060 = vst [vmem:[#allocation3 + $0x250] sm:$0xff] %v1028
        %1061 = vst [vmem:[#allocation3 + $0x298] sm:$0xff] %v1029
        %1062 = vst [vmem:[#allocation3 + $0x2e0] sm:$0xff] %v1030
        %1063 = vst [vmem:[#allocation3 + $0x328] sm:$0xff] %v1031
        %1064 = vst [vmem:[#allocation3 + $0x370] sm:$0xff] %v1032
        %1065 = vst [vmem:[#allocation3 + $0x3b8] sm:$0xff] %v1033
        %1066 = vst [vmem:[#allocation3 + $0x400] sm:$0xff] %v1034
        %1067 = vst [vmem:[#allocation3 + $0x448] sm:$0xff] %v1035
        %1068 = vst [vmem:[#allocation3 + $0x490] sm:$0xff] %v1036
        %1069 = vst [vmem:[#allocation3 + $0x4d8] sm:$0xff] %v1037
        %1070 = vst [vmem:[#allocation3 + $0x520] sm:$0xff] %v1038
        %1071 = vst [vmem:[#allocation3 + $0x568] sm:$0xff] %v1039
        %1072 = vst [vmem:[#allocation3 + $0x5b0] sm:$0xff] %v1040
        %1073 = vst [vmem:[#allocation3 + $0x5f8] sm:$0xff] %v1041
        %1074 = vst [vmem:[#allocation3 + $0x640] sm:$0xff] %v1042
        %1075 = vst [vmem:[#allocation3 + $0x688] sm:$0xff] %v1043
        %1076 = vst [vmem:[#allocation3 + $0x6d0] sm:$0xff] %v1044
        %1077 = vst [vmem:[#allocation3 + $0x718] sm:$0xff] %v1045
        %1078 = vst [vmem:[#allocation3 + $0x760] sm:$0xff] %v1046
        %1079 = vst [vmem:[#allocation3 + $0x7a8] sm:$0xff] %v1047
        %1080 = vst [vmem:[#allocation3 + $0x7f0] sm:$0xff] %v1048
        %1081 = vst [vmem:[#allocation3 + $0x838] sm:$0xff] %v1049
        %1082 = vst [vmem:[#allocation3 + $0x880] sm:$0xff] %v1050
        %1083 = vst [vmem:[#allocation3 + $0x8c8] sm:$0xff] %v1051
        %s1084 = scalar_lea.vmem [#allocation2], 24
        %v1085 = vld [vmem:[%s1084] sm:$0xff]
        %v1086 = vld [vmem:[%s1084 + $0x8] sm:$0xff]
        %v1087 = vld [vmem:[%s1084 + $0x18] sm:$0xff]
        %v1088 = vld [vmem:[%s1084 + $0x20] sm:$0xff]
        %v1089 = vld [vmem:[%s1084 + $0x30] sm:$0xff]
        %v1090 = vld [vmem:[%s1084 + $0x38] sm:$0xff]
        %v1091 = vld [vmem:[%s1084 + $0x48] sm:$0xff]
        %v1092 = vld [vmem:[%s1084 + $0x50] sm:$0xff]
        %v1093 = vld [vmem:[%s1084 + $0x60] sm:$0xff]
        %v1094 = vld [vmem:[%s1084 + $0x68] sm:$0xff]
        %v1095 = vld [vmem:[%s1084 + $0x78] sm:$0xff]
        %v1096 = vld [vmem:[%s1084 + $0x80] sm:$0xff]
        %v1097 = vld [vmem:[%s1084 + $0x90] sm:$0xff]
        %v1098 = vld [vmem:[%s1084 + $0x98] sm:$0xff]
        %v1099 = vld [vmem:[%s1084 + $0xa8] sm:$0xff]
        %v1100 = vld [vmem:[%s1084 + $0xb0] sm:$0xff]
        %v1101 = vld [vmem:[%s1084 + $0xc0] sm:$0xff]
        %v1102 = vld [vmem:[%s1084 + $0xc8] sm:$0xff]
        %v1103 = vld [vmem:[%s1084 + $0xd8] sm:$0xff]
        %v1104 = vld [vmem:[%s1084 + $0xe0] sm:$0xff]
        %v1105 = vld [vmem:[%s1084 + $0xf0] sm:$0xff]
        %v1106 = vld [vmem:[%s1084 + $0xf8] sm:$0xff]
        %v1107 = vld [vmem:[%s1084 + $0x108] sm:$0xff]
        %v1108 = vld [vmem:[%s1084 + $0x110] sm:$0xff]
        %v1109 = vld [vmem:[%s1084 + $0x120] sm:$0xff]
        %v1110 = vld [vmem:[%s1084 + $0x128] sm:$0xff]
        %v1111 = vld [vmem:[%s1084 + $0x138] sm:$0xff]
        %v1112 = vld [vmem:[%s1084 + $0x140] sm:$0xff]
        %v1113 = vld [vmem:[%s1084 + $0x150] sm:$0xff]
        %v1114 = vld [vmem:[%s1084 + $0x158] sm:$0xff]
        %v1115 = vld [vmem:[%s1084 + $0x168] sm:$0xff]
        %v1116 = vld [vmem:[%s1084 + $0x170] sm:$0xff]
        %1117 = vst [vmem:[#allocation3 + $0x18] sm:$0xff] %v1085
        %1118 = vst [vmem:[#allocation3 + $0x60] sm:$0xff] %v1086
        %1119 = vst [vmem:[#allocation3 + $0xa8] sm:$0xff] %v1087
        %1120 = vst [vmem:[#allocation3 + $0xf0] sm:$0xff] %v1088
        %1121 = vst [vmem:[#allocation3 + $0x138] sm:$0xff] %v1089
        %1122 = vst [vmem:[#allocation3 + $0x180] sm:$0xff] %v1090
        %1123 = vst [vmem:[#allocation3 + $0x1c8] sm:$0xff] %v1091
        %1124 = vst [vmem:[#allocation3 + $0x210] sm:$0xff] %v1092
        %1125 = vst [vmem:[#allocation3 + $0x258] sm:$0xff] %v1093
        %1126 = vst [vmem:[#allocation3 + $0x2a0] sm:$0xff] %v1094
        %1127 = vst [vmem:[#allocation3 + $0x2e8] sm:$0xff] %v1095
        %1128 = vst [vmem:[#allocation3 + $0x330] sm:$0xff] %v1096
        %1129 = vst [vmem:[#allocation3 + $0x378] sm:$0xff] %v1097
        %1130 = vst [vmem:[#allocation3 + $0x3c0] sm:$0xff] %v1098
        %1131 = vst [vmem:[#allocation3 + $0x408] sm:$0xff] %v1099
        %1132 = vst [vmem:[#allocation3 + $0x450] sm:$0xff] %v1100
        %1133 = vst [vmem:[#allocation3 + $0x498] sm:$0xff] %v1101
        %1134 = vst [vmem:[#allocation3 + $0x4e0] sm:$0xff] %v1102
        %1135 = vst [vmem:[#allocation3 + $0x528] sm:$0xff] %v1103
        %1136 = vst [vmem:[#allocation3 + $0x570] sm:$0xff] %v1104
        %1137 = vst [vmem:[#allocation3 + $0x5b8] sm:$0xff] %v1105
        %1138 = vst [vmem:[#allocation3 + $0x600] sm:$0xff] %v1106
        %1139 = vst [vmem:[#allocation3 + $0x648] sm:$0xff] %v1107
        %1140 = vst [vmem:[#allocation3 + $0x690] sm:$0xff] %v1108
        %1141 = vst [vmem:[#allocation3 + $0x6d8] sm:$0xff] %v1109
        %1142 = vst [vmem:[#allocation3 + $0x720] sm:$0xff] %v1110
        %1143 = vst [vmem:[#allocation3 + $0x768] sm:$0xff] %v1111
        %1144 = vst [vmem:[#allocation3 + $0x7b0] sm:$0xff] %v1112
        %1145 = vst [vmem:[#allocation3 + $0x7f8] sm:$0xff] %v1113
        %1146 = vst [vmem:[#allocation3 + $0x840] sm:$0xff] %v1114
        %1147 = vst [vmem:[#allocation3 + $0x888] sm:$0xff] %v1115
        %1148 = vst [vmem:[#allocation3 + $0x8d0] sm:$0xff] %v1116
        %v1149 = vld [vmem:[%s1084 + $0x1] sm:$0xff]
        %v1150 = vld [vmem:[%s1084 + $0x9] sm:$0xff]
        %v1151 = vld [vmem:[%s1084 + $0x19] sm:$0xff]
        %v1152 = vld [vmem:[%s1084 + $0x21] sm:$0xff]
        %v1153 = vld [vmem:[%s1084 + $0x31] sm:$0xff]
        %v1154 = vld [vmem:[%s1084 + $0x39] sm:$0xff]
        %v1155 = vld [vmem:[%s1084 + $0x49] sm:$0xff]
        %v1156 = vld [vmem:[%s1084 + $0x51] sm:$0xff]
        %v1157 = vld [vmem:[%s1084 + $0x61] sm:$0xff]
        %v1158 = vld [vmem:[%s1084 + $0x69] sm:$0xff]
        %v1159 = vld [vmem:[%s1084 + $0x79] sm:$0xff]
        %v1160 = vld [vmem:[%s1084 + $0x81] sm:$0xff]
        %v1161 = vld [vmem:[%s1084 + $0x91] sm:$0xff]
        %v1162 = vld [vmem:[%s1084 + $0x99] sm:$0xff]
        %v1163 = vld [vmem:[%s1084 + $0xa9] sm:$0xff]
        %v1164 = vld [vmem:[%s1084 + $0xb1] sm:$0xff]
        %v1165 = vld [vmem:[%s1084 + $0xc1] sm:$0xff]
        %v1166 = vld [vmem:[%s1084 + $0xc9] sm:$0xff]
        %v1167 = vld [vmem:[%s1084 + $0xd9] sm:$0xff]
        %v1168 = vld [vmem:[%s1084 + $0xe1] sm:$0xff]
        %v1169 = vld [vmem:[%s1084 + $0xf1] sm:$0xff]
        %v1170 = vld [vmem:[%s1084 + $0xf9] sm:$0xff]
        %v1171 = vld [vmem:[%s1084 + $0x109] sm:$0xff]
        %v1172 = vld [vmem:[%s1084 + $0x111] sm:$0xff]
        %v1173 = vld [vmem:[%s1084 + $0x121] sm:$0xff]
        %v1174 = vld [vmem:[%s1084 + $0x129] sm:$0xff]
        %v1175 = vld [vmem:[%s1084 + $0x139] sm:$0xff]
        %v1176 = vld [vmem:[%s1084 + $0x141] sm:$0xff]
        %v1177 = vld [vmem:[%s1084 + $0x151] sm:$0xff]
        %v1178 = vld [vmem:[%s1084 + $0x159] sm:$0xff]
        %v1179 = vld [vmem:[%s1084 + $0x169] sm:$0xff]
        %v1180 = vld [vmem:[%s1084 + $0x171] sm:$0xff]
        %1181 = vst [vmem:[#allocation3 + $0x20] sm:$0xff] %v1149
        %1182 = vst [vmem:[#allocation3 + $0x68] sm:$0xff] %v1150
        %1183 = vst [vmem:[#allocation3 + $0xb0] sm:$0xff] %v1151
        %1184 = vst [vmem:[#allocation3 + $0xf8] sm:$0xff] %v1152
        %1185 = vst [vmem:[#allocation3 + $0x140] sm:$0xff] %v1153
        %1186 = vst [vmem:[#allocation3 + $0x188] sm:$0xff] %v1154
        %1187 = vst [vmem:[#allocation3 + $0x1d0] sm:$0xff] %v1155
        %1188 = vst [vmem:[#allocation3 + $0x218] sm:$0xff] %v1156
        %1189 = vst [vmem:[#allocation3 + $0x260] sm:$0xff] %v1157
        %1190 = vst [vmem:[#allocation3 + $0x2a8] sm:$0xff] %v1158
        %1191 = vst [vmem:[#allocation3 + $0x2f0] sm:$0xff] %v1159
        %1192 = vst [vmem:[#allocation3 + $0x338] sm:$0xff] %v1160
        %1193 = vst [vmem:[#allocation3 + $0x380] sm:$0xff] %v1161
        %1194 = vst [vmem:[#allocation3 + $0x3c8] sm:$0xff] %v1162
        %1195 = vst [vmem:[#allocation3 + $0x410] sm:$0xff] %v1163
        %1196 = vst [vmem:[#allocation3 + $0x458] sm:$0xff] %v1164
        %1197 = vst [vmem:[#allocation3 + $0x4a0] sm:$0xff] %v1165
        %1198 = vst [vmem:[#allocation3 + $0x4e8] sm:$0xff] %v1166
        %1199 = vst [vmem:[#allocation3 + $0x530] sm:$0xff] %v1167
        %1200 = vst [vmem:[#allocation3 + $0x578] sm:$0xff] %v1168
        %1201 = vst [vmem:[#allocation3 + $0x5c0] sm:$0xff] %v1169
        %1202 = vst [vmem:[#allocation3 + $0x608] sm:$0xff] %v1170
        %1203 = vst [vmem:[#allocation3 + $0x650] sm:$0xff] %v1171
        %1204 = vst [vmem:[#allocation3 + $0x698] sm:$0xff] %v1172
        %1205 = vst [vmem:[#allocation3 + $0x6e0] sm:$0xff] %v1173
        %1206 = vst [vmem:[#allocation3 + $0x728] sm:$0xff] %v1174
        %1207 = vst [vmem:[#allocation3 + $0x770] sm:$0xff] %v1175
        %1208 = vst [vmem:[#allocation3 + $0x7b8] sm:$0xff] %v1176
        %1209 = vst [vmem:[#allocation3 + $0x800] sm:$0xff] %v1177
        %1210 = vst [vmem:[#allocation3 + $0x848] sm:$0xff] %v1178
        %1211 = vst [vmem:[#allocation3 + $0x890] sm:$0xff] %v1179
        %1212 = vst [vmem:[#allocation3 + $0x8d8] sm:$0xff] %v1180
        %v1213 = vld [vmem:[%s1084 + $0x2] sm:$0xff]
        %v1214 = vld [vmem:[%s1084 + $0xa] sm:$0xff]
        %v1215 = vld [vmem:[%s1084 + $0x1a] sm:$0xff]
        %v1216 = vld [vmem:[%s1084 + $0x22] sm:$0xff]
        %v1217 = vld [vmem:[%s1084 + $0x32] sm:$0xff]
        %v1218 = vld [vmem:[%s1084 + $0x3a] sm:$0xff]
        %v1219 = vld [vmem:[%s1084 + $0x4a] sm:$0xff]
        %v1220 = vld [vmem:[%s1084 + $0x52] sm:$0xff]
        %v1221 = vld [vmem:[%s1084 + $0x62] sm:$0xff]
        %v1222 = vld [vmem:[%s1084 + $0x6a] sm:$0xff]
        %v1223 = vld [vmem:[%s1084 + $0x7a] sm:$0xff]
        %v1224 = vld [vmem:[%s1084 + $0x82] sm:$0xff]
        %v1225 = vld [vmem:[%s1084 + $0x92] sm:$0xff]
        %v1226 = vld [vmem:[%s1084 + $0x9a] sm:$0xff]
        %v1227 = vld [vmem:[%s1084 + $0xaa] sm:$0xff]
        %v1228 = vld [vmem:[%s1084 + $0xb2] sm:$0xff]
        %v1229 = vld [vmem:[%s1084 + $0xc2] sm:$0xff]
        %v1230 = vld [vmem:[%s1084 + $0xca] sm:$0xff]
        %v1231 = vld [vmem:[%s1084 + $0xda] sm:$0xff]
        %v1232 = vld [vmem:[%s1084 + $0xe2] sm:$0xff]
        %v1233 = vld [vmem:[%s1084 + $0xf2] sm:$0xff]
        %v1234 = vld [vmem:[%s1084 + $0xfa] sm:$0xff]
        %v1235 = vld [vmem:[%s1084 + $0x10a] sm:$0xff]
        %v1236 = vld [vmem:[%s1084 + $0x112] sm:$0xff]
        %v1237 = vld [vmem:[%s1084 + $0x122] sm:$0xff]
        %v1238 = vld [vmem:[%s1084 + $0x12a] sm:$0xff]
        %v1239 = vld [vmem:[%s1084 + $0x13a] sm:$0xff]
        %v1240 = vld [vmem:[%s1084 + $0x142] sm:$0xff]
        %v1241 = vld [vmem:[%s1084 + $0x152] sm:$0xff]
        %v1242 = vld [vmem:[%s1084 + $0x15a] sm:$0xff]
        %v1243 = vld [vmem:[%s1084 + $0x16a] sm:$0xff]
        %v1244 = vld [vmem:[%s1084 + $0x172] sm:$0xff]
        %1245 = vst [vmem:[#allocation3 + $0x28] sm:$0xff] %v1213
        %1246 = vst [vmem:[#allocation3 + $0x70] sm:$0xff] %v1214
        %1247 = vst [vmem:[#allocation3 + $0xb8] sm:$0xff] %v1215
        %1248 = vst [vmem:[#allocation3 + $0x100] sm:$0xff] %v1216
        %1249 = vst [vmem:[#allocation3 + $0x148] sm:$0xff] %v1217
        %1250 = vst [vmem:[#allocation3 + $0x190] sm:$0xff] %v1218
        %1251 = vst [vmem:[#allocation3 + $0x1d8] sm:$0xff] %v1219
        %1252 = vst [vmem:[#allocation3 + $0x220] sm:$0xff] %v1220
        %1253 = vst [vmem:[#allocation3 + $0x268] sm:$0xff] %v1221
        %1254 = vst [vmem:[#allocation3 + $0x2b0] sm:$0xff] %v1222
        %1255 = vst [vmem:[#allocation3 + $0x2f8] sm:$0xff] %v1223
        %1256 = vst [vmem:[#allocation3 + $0x340] sm:$0xff] %v1224
        %1257 = vst [vmem:[#allocation3 + $0x388] sm:$0xff] %v1225
        %1258 = vst [vmem:[#allocation3 + $0x3d0] sm:$0xff] %v1226
        %1259 = vst [vmem:[#allocation3 + $0x418] sm:$0xff] %v1227
        %1260 = vst [vmem:[#allocation3 + $0x460] sm:$0xff] %v1228
        %1261 = vst [vmem:[#allocation3 + $0x4a8] sm:$0xff] %v1229
        %1262 = vst [vmem:[#allocation3 + $0x4f0] sm:$0xff] %v1230
        %1263 = vst [vmem:[#allocation3 + $0x538] sm:$0xff] %v1231
        %1264 = vst [vmem:[#allocation3 + $0x580] sm:$0xff] %v1232
        %1265 = vst [vmem:[#allocation3 + $0x5c8] sm:$0xff] %v1233
        %1266 = vst [vmem:[#allocation3 + $0x610] sm:$0xff] %v1234
        %1267 = vst [vmem:[#allocation3 + $0x658] sm:$0xff] %v1235
        %1268 = vst [vmem:[#allocation3 + $0x6a0] sm:$0xff] %v1236
        %1269 = vst [vmem:[#allocation3 + $0x6e8] sm:$0xff] %v1237
        %1270 = vst [vmem:[#allocation3 + $0x730] sm:$0xff] %v1238
        %1271 = vst [vmem:[#allocation3 + $0x778] sm:$0xff] %v1239
        %1272 = vst [vmem:[#allocation3 + $0x7c0] sm:$0xff] %v1240
        %1273 = vst [vmem:[#allocation3 + $0x808] sm:$0xff] %v1241
        %1274 = vst [vmem:[#allocation3 + $0x850] sm:$0xff] %v1242
        %1275 = vst [vmem:[#allocation3 + $0x898] sm:$0xff] %v1243
        %1276 = vst [vmem:[#allocation3 + $0x8e0] sm:$0xff] %v1244
        %s1277 = scalar_lea.vmem [#allocation2], 48
        %v1278 = vld [vmem:[%s1277] sm:$0xff]
        %v1279 = vld [vmem:[%s1277 + $0x8] sm:$0xff]
        %v1280 = vld [vmem:[%s1277 + $0x18] sm:$0xff]
        %v1281 = vld [vmem:[%s1277 + $0x20] sm:$0xff]
        %v1282 = vld [vmem:[%s1277 + $0x30] sm:$0xff]
        %v1283 = vld [vmem:[%s1277 + $0x38] sm:$0xff]
        %v1284 = vld [vmem:[%s1277 + $0x48] sm:$0xff]
        %v1285 = vld [vmem:[%s1277 + $0x50] sm:$0xff]
        %v1286 = vld [vmem:[%s1277 + $0x60] sm:$0xff]
        %v1287 = vld [vmem:[%s1277 + $0x68] sm:$0xff]
        %v1288 = vld [vmem:[%s1277 + $0x78] sm:$0xff]
        %v1289 = vld [vmem:[%s1277 + $0x80] sm:$0xff]
        %v1290 = vld [vmem:[%s1277 + $0x90] sm:$0xff]
        %v1291 = vld [vmem:[%s1277 + $0x98] sm:$0xff]
        %v1292 = vld [vmem:[%s1277 + $0xa8] sm:$0xff]
        %v1293 = vld [vmem:[%s1277 + $0xb0] sm:$0xff]
        %v1294 = vld [vmem:[%s1277 + $0xc0] sm:$0xff]
        %v1295 = vld [vmem:[%s1277 + $0xc8] sm:$0xff]
        %v1296 = vld [vmem:[%s1277 + $0xd8] sm:$0xff]
        %v1297 = vld [vmem:[%s1277 + $0xe0] sm:$0xff]
        %v1298 = vld [vmem:[%s1277 + $0xf0] sm:$0xff]
        %v1299 = vld [vmem:[%s1277 + $0xf8] sm:$0xff]
        %v1300 = vld [vmem:[%s1277 + $0x108] sm:$0xff]
        %v1301 = vld [vmem:[%s1277 + $0x110] sm:$0xff]
        %v1302 = vld [vmem:[%s1277 + $0x120] sm:$0xff]
        %v1303 = vld [vmem:[%s1277 + $0x128] sm:$0xff]
        %v1304 = vld [vmem:[%s1277 + $0x138] sm:$0xff]
        %v1305 = vld [vmem:[%s1277 + $0x140] sm:$0xff]
        %v1306 = vld [vmem:[%s1277 + $0x150] sm:$0xff]
        %v1307 = vld [vmem:[%s1277 + $0x158] sm:$0xff]
        %v1308 = vld [vmem:[%s1277 + $0x168] sm:$0xff]
        %v1309 = vld [vmem:[%s1277 + $0x170] sm:$0xff]
        %1310 = vst [vmem:[#allocation3 + $0x30] sm:$0xff] %v1278
        %1311 = vst [vmem:[#allocation3 + $0x78] sm:$0xff] %v1279
        %1312 = vst [vmem:[#allocation3 + $0xc0] sm:$0xff] %v1280
        %1313 = vst [vmem:[#allocation3 + $0x108] sm:$0xff] %v1281
        %1314 = vst [vmem:[#allocation3 + $0x150] sm:$0xff] %v1282
        %1315 = vst [vmem:[#allocation3 + $0x198] sm:$0xff] %v1283
        %1316 = vst [vmem:[#allocation3 + $0x1e0] sm:$0xff] %v1284
        %1317 = vst [vmem:[#allocation3 + $0x228] sm:$0xff] %v1285
        %1318 = vst [vmem:[#allocation3 + $0x270] sm:$0xff] %v1286
        %1319 = vst [vmem:[#allocation3 + $0x2b8] sm:$0xff] %v1287
        %1320 = vst [vmem:[#allocation3 + $0x300] sm:$0xff] %v1288
        %1321 = vst [vmem:[#allocation3 + $0x348] sm:$0xff] %v1289
        %1322 = vst [vmem:[#allocation3 + $0x390] sm:$0xff] %v1290
        %1323 = vst [vmem:[#allocation3 + $0x3d8] sm:$0xff] %v1291
        %1324 = vst [vmem:[#allocation3 + $0x420] sm:$0xff] %v1292
        %1325 = vst [vmem:[#allocation3 + $0x468] sm:$0xff] %v1293
        %1326 = vst [vmem:[#allocation3 + $0x4b0] sm:$0xff] %v1294
        %1327 = vst [vmem:[#allocation3 + $0x4f8] sm:$0xff] %v1295
        %1328 = vst [vmem:[#allocation3 + $0x540] sm:$0xff] %v1296
        %1329 = vst [vmem:[#allocation3 + $0x588] sm:$0xff] %v1297
        %1330 = vst [vmem:[#allocation3 + $0x5d0] sm:$0xff] %v1298
        %1331 = vst [vmem:[#allocation3 + $0x618] sm:$0xff] %v1299
        %1332 = vst [vmem:[#allocation3 + $0x660] sm:$0xff] %v1300
        %1333 = vst [vmem:[#allocation3 + $0x6a8] sm:$0xff] %v1301
        %1334 = vst [vmem:[#allocation3 + $0x6f0] sm:$0xff] %v1302
        %1335 = vst [vmem:[#allocation3 + $0x738] sm:$0xff] %v1303
        %1336 = vst [vmem:[#allocation3 + $0x780] sm:$0xff] %v1304
        %1337 = vst [vmem:[#allocation3 + $0x7c8] sm:$0xff] %v1305
        %1338 = vst [vmem:[#allocation3 + $0x810] sm:$0xff] %v1306
        %1339 = vst [vmem:[#allocation3 + $0x858] sm:$0xff] %v1307
        %1340 = vst [vmem:[#allocation3 + $0x8a0] sm:$0xff] %v1308
        %1341 = vst [vmem:[#allocation3 + $0x8e8] sm:$0xff] %v1309
        %v1342 = vld [vmem:[%s1277 + $0x1] sm:$0xff]
        %v1343 = vld [vmem:[%s1277 + $0x9] sm:$0xff]
        %v1344 = vld [vmem:[%s1277 + $0x19] sm:$0xff]
        %v1345 = vld [vmem:[%s1277 + $0x21] sm:$0xff]
        %v1346 = vld [vmem:[%s1277 + $0x31] sm:$0xff]
        %v1347 = vld [vmem:[%s1277 + $0x39] sm:$0xff]
        %v1348 = vld [vmem:[%s1277 + $0x49] sm:$0xff]
        %v1349 = vld [vmem:[%s1277 + $0x51] sm:$0xff]
        %v1350 = vld [vmem:[%s1277 + $0x61] sm:$0xff]
        %v1351 = vld [vmem:[%s1277 + $0x69] sm:$0xff]
        %v1352 = vld [vmem:[%s1277 + $0x79] sm:$0xff]
        %v1353 = vld [vmem:[%s1277 + $0x81] sm:$0xff]
        %v1354 = vld [vmem:[%s1277 + $0x91] sm:$0xff]
        %v1355 = vld [vmem:[%s1277 + $0x99] sm:$0xff]
        %v1356 = vld [vmem:[%s1277 + $0xa9] sm:$0xff]
        %v1357 = vld [vmem:[%s1277 + $0xb1] sm:$0xff]
        %v1358 = vld [vmem:[%s1277 + $0xc1] sm:$0xff]
        %v1359 = vld [vmem:[%s1277 + $0xc9] sm:$0xff]
        %v1360 = vld [vmem:[%s1277 + $0xd9] sm:$0xff]
        %v1361 = vld [vmem:[%s1277 + $0xe1] sm:$0xff]
        %v1362 = vld [vmem:[%s1277 + $0xf1] sm:$0xff]
        %v1363 = vld [vmem:[%s1277 + $0xf9] sm:$0xff]
        %v1364 = vld [vmem:[%s1277 + $0x109] sm:$0xff]
        %v1365 = vld [vmem:[%s1277 + $0x111] sm:$0xff]
        %v1366 = vld [vmem:[%s1277 + $0x121] sm:$0xff]
        %v1367 = vld [vmem:[%s1277 + $0x129] sm:$0xff]
        %v1368 = vld [vmem:[%s1277 + $0x139] sm:$0xff]
        %v1369 = vld [vmem:[%s1277 + $0x141] sm:$0xff]
        %v1370 = vld [vmem:[%s1277 + $0x151] sm:$0xff]
        %v1371 = vld [vmem:[%s1277 + $0x159] sm:$0xff]
        %v1372 = vld [vmem:[%s1277 + $0x169] sm:$0xff]
        %v1373 = vld [vmem:[%s1277 + $0x171] sm:$0xff]
        %1374 = vst [vmem:[#allocation3 + $0x38] sm:$0xff] %v1342
        %1375 = vst [vmem:[#allocation3 + $0x80] sm:$0xff] %v1343
        %1376 = vst [vmem:[#allocation3 + $0xc8] sm:$0xff] %v1344
        %1377 = vst [vmem:[#allocation3 + $0x110] sm:$0xff] %v1345
        %1378 = vst [vmem:[#allocation3 + $0x158] sm:$0xff] %v1346
        %1379 = vst [vmem:[#allocation3 + $0x1a0] sm:$0xff] %v1347
        %1380 = vst [vmem:[#allocation3 + $0x1e8] sm:$0xff] %v1348
        %1381 = vst [vmem:[#allocation3 + $0x230] sm:$0xff] %v1349
        %1382 = vst [vmem:[#allocation3 + $0x278] sm:$0xff] %v1350
        %1383 = vst [vmem:[#allocation3 + $0x2c0] sm:$0xff] %v1351
        %1384 = vst [vmem:[#allocation3 + $0x308] sm:$0xff] %v1352
        %1385 = vst [vmem:[#allocation3 + $0x350] sm:$0xff] %v1353
        %1386 = vst [vmem:[#allocation3 + $0x398] sm:$0xff] %v1354
        %1387 = vst [vmem:[#allocation3 + $0x3e0] sm:$0xff] %v1355
        %1388 = vst [vmem:[#allocation3 + $0x428] sm:$0xff] %v1356
        %1389 = vst [vmem:[#allocation3 + $0x470] sm:$0xff] %v1357
        %1390 = vst [vmem:[#allocation3 + $0x4b8] sm:$0xff] %v1358
        %1391 = vst [vmem:[#allocation3 + $0x500] sm:$0xff] %v1359
        %1392 = vst [vmem:[#allocation3 + $0x548] sm:$0xff] %v1360
        %1393 = vst [vmem:[#allocation3 + $0x590] sm:$0xff] %v1361
        %1394 = vst [vmem:[#allocation3 + $0x5d8] sm:$0xff] %v1362
        %1395 = vst [vmem:[#allocation3 + $0x620] sm:$0xff] %v1363
        %1396 = vst [vmem:[#allocation3 + $0x668] sm:$0xff] %v1364
        %1397 = vst [vmem:[#allocation3 + $0x6b0] sm:$0xff] %v1365
        %1398 = vst [vmem:[#allocation3 + $0x6f8] sm:$0xff] %v1366
        %1399 = vst [vmem:[#allocation3 + $0x740] sm:$0xff] %v1367
        %1400 = vst [vmem:[#allocation3 + $0x788] sm:$0xff] %v1368
        %1401 = vst [vmem:[#allocation3 + $0x7d0] sm:$0xff] %v1369
        %1402 = vst [vmem:[#allocation3 + $0x818] sm:$0xff] %v1370
        %1403 = vst [vmem:[#allocation3 + $0x860] sm:$0xff] %v1371
        %1404 = vst [vmem:[#allocation3 + $0x8a8] sm:$0xff] %v1372
        %1405 = vst [vmem:[#allocation3 + $0x8f0] sm:$0xff] %v1373
        %v1406 = vld [vmem:[%s1277 + $0x2] sm:$0xff]
        %v1407 = vld [vmem:[%s1277 + $0xa] sm:$0xff]
        %v1408 = vld [vmem:[%s1277 + $0x1a] sm:$0xff]
        %v1409 = vld [vmem:[%s1277 + $0x22] sm:$0xff]
        %v1410 = vld [vmem:[%s1277 + $0x32] sm:$0xff]
        %v1411 = vld [vmem:[%s1277 + $0x3a] sm:$0xff]
        %v1412 = vld [vmem:[%s1277 + $0x4a] sm:$0xff]
        %v1413 = vld [vmem:[%s1277 + $0x52] sm:$0xff]
        %v1414 = vld [vmem:[%s1277 + $0x62] sm:$0xff]
        %v1415 = vld [vmem:[%s1277 + $0x6a] sm:$0xff]
        %v1416 = vld [vmem:[%s1277 + $0x7a] sm:$0xff]
        %v1417 = vld [vmem:[%s1277 + $0x82] sm:$0xff]
        %v1418 = vld [vmem:[%s1277 + $0x92] sm:$0xff]
        %v1419 = vld [vmem:[%s1277 + $0x9a] sm:$0xff]
        %v1420 = vld [vmem:[%s1277 + $0xaa] sm:$0xff]
        %v1421 = vld [vmem:[%s1277 + $0xb2] sm:$0xff]
        %v1422 = vld [vmem:[%s1277 + $0xc2] sm:$0xff]
        %v1423 = vld [vmem:[%s1277 + $0xca] sm:$0xff]
        %v1424 = vld [vmem:[%s1277 + $0xda] sm:$0xff]
        %v1425 = vld [vmem:[%s1277 + $0xe2] sm:$0xff]
        %v1426 = vld [vmem:[%s1277 + $0xf2] sm:$0xff]
        %v1427 = vld [vmem:[%s1277 + $0xfa] sm:$0xff]
        %v1428 = vld [vmem:[%s1277 + $0x10a] sm:$0xff]
        %v1429 = vld [vmem:[%s1277 + $0x112] sm:$0xff]
        %v1430 = vld [vmem:[%s1277 + $0x122] sm:$0xff]
        %v1431 = vld [vmem:[%s1277 + $0x12a] sm:$0xff]
        %v1432 = vld [vmem:[%s1277 + $0x13a] sm:$0xff]
        %v1433 = vld [vmem:[%s1277 + $0x142] sm:$0xff]
        %v1434 = vld [vmem:[%s1277 + $0x152] sm:$0xff]
        %v1435 = vld [vmem:[%s1277 + $0x15a] sm:$0xff]
        %v1436 = vld [vmem:[%s1277 + $0x16a] sm:$0xff]
        %v1437 = vld [vmem:[%s1277 + $0x172] sm:$0xff]
        %1438 = vst [vmem:[#allocation3 + $0x40] sm:$0xff] %v1406
        %1439 = vst [vmem:[#allocation3 + $0x88] sm:$0xff] %v1407
        %1440 = vst [vmem:[#allocation3 + $0xd0] sm:$0xff] %v1408
        %1441 = vst [vmem:[#allocation3 + $0x118] sm:$0xff] %v1409
        %1442 = vst [vmem:[#allocation3 + $0x160] sm:$0xff] %v1410
        %1443 = vst [vmem:[#allocation3 + $0x1a8] sm:$0xff] %v1411
        %1444 = vst [vmem:[#allocation3 + $0x1f0] sm:$0xff] %v1412
        %1445 = vst [vmem:[#allocation3 + $0x238] sm:$0xff] %v1413
        %1446 = vst [vmem:[#allocation3 + $0x280] sm:$0xff] %v1414
        %1447 = vst [vmem:[#allocation3 + $0x2c8] sm:$0xff] %v1415
        %1448 = vst [vmem:[#allocation3 + $0x310] sm:$0xff] %v1416
        %1449 = vst [vmem:[#allocation3 + $0x358] sm:$0xff] %v1417
        %1450 = vst [vmem:[#allocation3 + $0x3a0] sm:$0xff] %v1418
        %1451 = vst [vmem:[#allocation3 + $0x3e8] sm:$0xff] %v1419
        %1452 = vst [vmem:[#allocation3 + $0x430] sm:$0xff] %v1420
        %1453 = vst [vmem:[#allocation3 + $0x478] sm:$0xff] %v1421
        %1454 = vst [vmem:[#allocation3 + $0x4c0] sm:$0xff] %v1422
        %1455 = vst [vmem:[#allocation3 + $0x508] sm:$0xff] %v1423
        %1456 = vst [vmem:[#allocation3 + $0x550] sm:$0xff] %v1424
        %1457 = vst [vmem:[#allocation3 + $0x598] sm:$0xff] %v1425
        %1458 = vst [vmem:[#allocation3 + $0x5e0] sm:$0xff] %v1426
        %1459 = vst [vmem:[#allocation3 + $0x628] sm:$0xff] %v1427
        %1460 = vst [vmem:[#allocation3 + $0x670] sm:$0xff] %v1428
        %1461 = vst [vmem:[#allocation3 + $0x6b8] sm:$0xff] %v1429
        %1462 = vst [vmem:[#allocation3 + $0x700] sm:$0xff] %v1430
        %1463 = vst [vmem:[#allocation3 + $0x748] sm:$0xff] %v1431
        %1464 = vst [vmem:[#allocation3 + $0x790] sm:$0xff] %v1432
        %1465 = vst [vmem:[#allocation3 + $0x7d8] sm:$0xff] %v1433
        %1466 = vst [vmem:[#allocation3 + $0x820] sm:$0xff] %v1434
        %1467 = vst [vmem:[#allocation3 + $0x868] sm:$0xff] %v1435
        %1468 = vst [vmem:[#allocation3 + $0x8b0] sm:$0xff] %v1436
        %1469 = vst [vmem:[#allocation3 + $0x8f8] sm:$0xff] %v1437
        %v1470 = vld [vmem:[#allocation3] sm:$0xff]
        %v1471 = vld [vmem:[#allocation3 + $0x8] sm:$0xff]
        %v1472 = vld [vmem:[#allocation3 + $0x10] sm:$0xff]
        %v1473 = vld [vmem:[#allocation3 + $0x18] sm:$0xff]
        %v1474 = vld [vmem:[#allocation3 + $0x20] sm:$0xff]
        %v1475 = vld [vmem:[#allocation3 + $0x28] sm:$0xff]
        %v1476 = vld [vmem:[#allocation3 + $0x30] sm:$0xff]
        %v1477 = vld [vmem:[#allocation3 + $0x38] sm:$0xff]
        %v1478 = vld [vmem:[#allocation3 + $0x40] sm:$0xff]
        %v1479 = vld [vmem:[#allocation3 + $0x48] sm:$0xff]
        %v1480 = vld [vmem:[#allocation3 + $0x50] sm:$0xff]
        %v1481 = vld [vmem:[#allocation3 + $0x58] sm:$0xff]
        %v1482 = vld [vmem:[#allocation3 + $0x60] sm:$0xff]
        %v1483 = vld [vmem:[#allocation3 + $0x68] sm:$0xff]
        %v1484 = vld [vmem:[#allocation3 + $0x70] sm:$0xff]
        %v1485 = vld [vmem:[#allocation3 + $0x78] sm:$0xff]
        %v1486 = vld [vmem:[#allocation3 + $0x80] sm:$0xff]
        %v1487 = vld [vmem:[#allocation3 + $0x88] sm:$0xff]
        %v1488 = vld [vmem:[#allocation3 + $0x90] sm:$0xff]
        %v1489 = vld [vmem:[#allocation3 + $0x98] sm:$0xff]
        %v1490 = vld [vmem:[#allocation3 + $0xa0] sm:$0xff]
        %v1491 = vld [vmem:[#allocation3 + $0xa8] sm:$0xff]
        %v1492 = vld [vmem:[#allocation3 + $0xb0] sm:$0xff]
        %v1493 = vld [vmem:[#allocation3 + $0xb8] sm:$0xff]
        %v1494 = vld [vmem:[#allocation3 + $0xc0] sm:$0xff]
        %v1495 = vld [vmem:[#allocation3 + $0xc8] sm:$0xff]
        %v1496 = vld [vmem:[#allocation3 + $0xd0] sm:$0xff]
        %v1497 = vld [vmem:[#allocation3 + $0xd8] sm:$0xff]
        %v1498 = vld [vmem:[#allocation3 + $0xe0] sm:$0xff]
        %v1499 = vld [vmem:[#allocation3 + $0xe8] sm:$0xff]
        %v1500 = vld [vmem:[#allocation3 + $0xf0] sm:$0xff]
        %v1501 = vld [vmem:[#allocation3 + $0xf8] sm:$0xff]
        %v1502 = vld [vmem:[#allocation3 + $0x100] sm:$0xff]
        %v1503 = vld [vmem:[#allocation3 + $0x108] sm:$0xff]
        %v1504 = vld [vmem:[#allocation3 + $0x110] sm:$0xff]
        %v1505 = vld [vmem:[#allocation3 + $0x118] sm:$0xff]
        %v1506 = vld [vmem:[#allocation3 + $0x120] sm:$0xff]
        %v1507 = vld [vmem:[#allocation3 + $0x128] sm:$0xff]
        %v1508 = vld [vmem:[#allocation3 + $0x130] sm:$0xff]
        %v1509 = vld [vmem:[#allocation3 + $0x138] sm:$0xff]
        %v1510 = vld [vmem:[#allocation3 + $0x140] sm:$0xff]
        %v1511 = vld [vmem:[#allocation3 + $0x148] sm:$0xff]
        %v1512 = vld [vmem:[#allocation3 + $0x150] sm:$0xff]
        %v1513 = vld [vmem:[#allocation3 + $0x158] sm:$0xff]
        %v1514 = vld [vmem:[#allocation3 + $0x160] sm:$0xff]
        %v1515 = vld [vmem:[#allocation3 + $0x168] sm:$0xff]
        %v1516 = vld [vmem:[#allocation3 + $0x170] sm:$0xff]
        %v1517 = vld [vmem:[#allocation3 + $0x178] sm:$0xff]
        %v1518 = vld [vmem:[#allocation3 + $0x180] sm:$0xff]
        %v1519 = vld [vmem:[#allocation3 + $0x188] sm:$0xff]
        %v1520 = vld [vmem:[#allocation3 + $0x190] sm:$0xff]
        %v1521 = vld [vmem:[#allocation3 + $0x198] sm:$0xff]
        %v1522 = vld [vmem:[#allocation3 + $0x1a0] sm:$0xff]
        %v1523 = vld [vmem:[#allocation3 + $0x1a8] sm:$0xff]
        %v1524 = vld [vmem:[#allocation3 + $0x1b0] sm:$0xff]
        %v1525 = vld [vmem:[#allocation3 + $0x1b8] sm:$0xff]
        %v1526 = vld [vmem:[#allocation3 + $0x1c0] sm:$0xff]
        %v1527 = vld [vmem:[#allocation3 + $0x1c8] sm:$0xff]
        %v1528 = vld [vmem:[#allocation3 + $0x1d0] sm:$0xff]
        %v1529 = vld [vmem:[#allocation3 + $0x1d8] sm:$0xff]
        %v1530 = vld [vmem:[#allocation3 + $0x1e0] sm:$0xff]
        %v1531 = vld [vmem:[#allocation3 + $0x1e8] sm:$0xff]
        %v1532 = vld [vmem:[#allocation3 + $0x1f0] sm:$0xff]
        %v1533 = vld [vmem:[#allocation3 + $0x1f8] sm:$0xff]
        %v1534 = vld [vmem:[#allocation3 + $0x200] sm:$0xff]
        %v1535 = vld [vmem:[#allocation3 + $0x208] sm:$0xff]
        %v1536 = vld [vmem:[#allocation3 + $0x210] sm:$0xff]
        %v1537 = vld [vmem:[#allocation3 + $0x218] sm:$0xff]
        %v1538 = vld [vmem:[#allocation3 + $0x220] sm:$0xff]
        %v1539 = vld [vmem:[#allocation3 + $0x228] sm:$0xff]
        %v1540 = vld [vmem:[#allocation3 + $0x230] sm:$0xff]
        %v1541 = vld [vmem:[#allocation3 + $0x238] sm:$0xff]
        %v1542 = vld [vmem:[#allocation3 + $0x240] sm:$0xff]
        %v1543 = vld [vmem:[#allocation3 + $0x248] sm:$0xff]
        %v1544 = vld [vmem:[#allocation3 + $0x250] sm:$0xff]
        %v1545 = vld [vmem:[#allocation3 + $0x258] sm:$0xff]
        %v1546 = vld [vmem:[#allocation3 + $0x260] sm:$0xff]
        %v1547 = vld [vmem:[#allocation3 + $0x268] sm:$0xff]
        %v1548 = vld [vmem:[#allocation3 + $0x270] sm:$0xff]
        %v1549 = vld [vmem:[#allocation3 + $0x278] sm:$0xff]
        %v1550 = vld [vmem:[#allocation3 + $0x280] sm:$0xff]
        %v1551 = vld [vmem:[#allocation3 + $0x288] sm:$0xff]
        %v1552 = vld [vmem:[#allocation3 + $0x290] sm:$0xff]
        %v1553 = vld [vmem:[#allocation3 + $0x298] sm:$0xff]
        %v1554 = vld [vmem:[#allocation3 + $0x2a0] sm:$0xff]
        %v1555 = vld [vmem:[#allocation3 + $0x2a8] sm:$0xff]
        %v1556 = vld [vmem:[#allocation3 + $0x2b0] sm:$0xff]
        %v1557 = vld [vmem:[#allocation3 + $0x2b8] sm:$0xff]
        %v1558 = vld [vmem:[#allocation3 + $0x2c0] sm:$0xff]
        %v1559 = vld [vmem:[#allocation3 + $0x2c8] sm:$0xff]
        %v1560 = vld [vmem:[#allocation3 + $0x2d0] sm:$0xff]
        %v1561 = vld [vmem:[#allocation3 + $0x2d8] sm:$0xff]
        %v1562 = vld [vmem:[#allocation3 + $0x2e0] sm:$0xff]
        %v1563 = vld [vmem:[#allocation3 + $0x2e8] sm:$0xff]
        %v1564 = vld [vmem:[#allocation3 + $0x2f0] sm:$0xff]
        %v1565 = vld [vmem:[#allocation3 + $0x2f8] sm:$0xff]
        %v1566 = vld [vmem:[#allocation3 + $0x300] sm:$0xff]
        %v1567 = vld [vmem:[#allocation3 + $0x308] sm:$0xff]
        %v1568 = vld [vmem:[#allocation3 + $0x310] sm:$0xff]
        %v1569 = vld [vmem:[#allocation3 + $0x318] sm:$0xff]
        %v1570 = vld [vmem:[#allocation3 + $0x320] sm:$0xff]
        %v1571 = vld [vmem:[#allocation3 + $0x328] sm:$0xff]
        %v1572 = vld [vmem:[#allocation3 + $0x330] sm:$0xff]
        %v1573 = vld [vmem:[#allocation3 + $0x338] sm:$0xff]
        %v1574 = vld [vmem:[#allocation3 + $0x340] sm:$0xff]
        %v1575 = vld [vmem:[#allocation3 + $0x348] sm:$0xff]
        %v1576 = vld [vmem:[#allocation3 + $0x350] sm:$0xff]
        %v1577 = vld [vmem:[#allocation3 + $0x358] sm:$0xff]
        %v1578 = vld [vmem:[#allocation3 + $0x360] sm:$0xff]
        %v1579 = vld [vmem:[#allocation3 + $0x368] sm:$0xff]
        %v1580 = vld [vmem:[#allocation3 + $0x370] sm:$0xff]
        %v1581 = vld [vmem:[#allocation3 + $0x378] sm:$0xff]
        %v1582 = vld [vmem:[#allocation3 + $0x380] sm:$0xff]
        %v1583 = vld [vmem:[#allocation3 + $0x388] sm:$0xff]
        %v1584 = vld [vmem:[#allocation3 + $0x390] sm:$0xff]
        %v1585 = vld [vmem:[#allocation3 + $0x398] sm:$0xff]
        %v1586 = vld [vmem:[#allocation3 + $0x3a0] sm:$0xff]
        %v1587 = vld [vmem:[#allocation3 + $0x3a8] sm:$0xff]
        %v1588 = vld [vmem:[#allocation3 + $0x3b0] sm:$0xff]
        %v1589 = vld [vmem:[#allocation3 + $0x3b8] sm:$0xff]
        %v1590 = vld [vmem:[#allocation3 + $0x3c0] sm:$0xff]
        %v1591 = vld [vmem:[#allocation3 + $0x3c8] sm:$0xff]
        %v1592 = vld [vmem:[#allocation3 + $0x3d0] sm:$0xff]
        %v1593 = vld [vmem:[#allocation3 + $0x3d8] sm:$0xff]
        %v1594 = vld [vmem:[#allocation3 + $0x3e0] sm:$0xff]
        %v1595 = vld [vmem:[#allocation3 + $0x3e8] sm:$0xff]
        %v1596 = vld [vmem:[#allocation3 + $0x3f0] sm:$0xff]
        %v1597 = vld [vmem:[#allocation3 + $0x3f8] sm:$0xff]
        %v1598 = vld [vmem:[#allocation3 + $0x400] sm:$0xff]
        %v1599 = vld [vmem:[#allocation3 + $0x408] sm:$0xff]
        %v1600 = vld [vmem:[#allocation3 + $0x410] sm:$0xff]
        %v1601 = vld [vmem:[#allocation3 + $0x418] sm:$0xff]
        %v1602 = vld [vmem:[#allocation3 + $0x420] sm:$0xff]
        %v1603 = vld [vmem:[#allocation3 + $0x428] sm:$0xff]
        %v1604 = vld [vmem:[#allocation3 + $0x430] sm:$0xff]
        %v1605 = vld [vmem:[#allocation3 + $0x438] sm:$0xff]
        %v1606 = vld [vmem:[#allocation3 + $0x440] sm:$0xff]
        %v1607 = vld [vmem:[#allocation3 + $0x448] sm:$0xff]
        %v1608 = vld [vmem:[#allocation3 + $0x450] sm:$0xff]
        %v1609 = vld [vmem:[#allocation3 + $0x458] sm:$0xff]
        %v1610 = vld [vmem:[#allocation3 + $0x460] sm:$0xff]
        %v1611 = vld [vmem:[#allocation3 + $0x468] sm:$0xff]
        %v1612 = vld [vmem:[#allocation3 + $0x470] sm:$0xff]
        %v1613 = vld [vmem:[#allocation3 + $0x478] sm:$0xff]
        %v1614 = vld [vmem:[#allocation3 + $0x480] sm:$0xff]
        %v1615 = vld [vmem:[#allocation3 + $0x488] sm:$0xff]
        %v1616 = vld [vmem:[#allocation3 + $0x490] sm:$0xff]
        %v1617 = vld [vmem:[#allocation3 + $0x498] sm:$0xff]
        %v1618 = vld [vmem:[#allocation3 + $0x4a0] sm:$0xff]
        %v1619 = vld [vmem:[#allocation3 + $0x4a8] sm:$0xff]
        %v1620 = vld [vmem:[#allocation3 + $0x4b0] sm:$0xff]
        %v1621 = vld [vmem:[#allocation3 + $0x4b8] sm:$0xff]
        %v1622 = vld [vmem:[#allocation3 + $0x4c0] sm:$0xff]
        %v1623 = vld [vmem:[#allocation3 + $0x4c8] sm:$0xff]
        %v1624 = vld [vmem:[#allocation3 + $0x4d0] sm:$0xff]
        %v1625 = vld [vmem:[#allocation3 + $0x4d8] sm:$0xff]
        %v1626 = vld [vmem:[#allocation3 + $0x4e0] sm:$0xff]
        %v1627 = vld [vmem:[#allocation3 + $0x4e8] sm:$0xff]
        %v1628 = vld [vmem:[#allocation3 + $0x4f0] sm:$0xff]
        %v1629 = vld [vmem:[#allocation3 + $0x4f8] sm:$0xff]
        %v1630 = vld [vmem:[#allocation3 + $0x500] sm:$0xff]
        %v1631 = vld [vmem:[#allocation3 + $0x508] sm:$0xff]
        %v1632 = vld [vmem:[#allocation3 + $0x510] sm:$0xff]
        %v1633 = vld [vmem:[#allocation3 + $0x518] sm:$0xff]
        %v1634 = vld [vmem:[#allocation3 + $0x520] sm:$0xff]
        %v1635 = vld [vmem:[#allocation3 + $0x528] sm:$0xff]
        %v1636 = vld [vmem:[#allocation3 + $0x530] sm:$0xff]
        %v1637 = vld [vmem:[#allocation3 + $0x538] sm:$0xff]
        %v1638 = vld [vmem:[#allocation3 + $0x540] sm:$0xff]
        %v1639 = vld [vmem:[#allocation3 + $0x548] sm:$0xff]
        %v1640 = vld [vmem:[#allocation3 + $0x550] sm:$0xff]
        %v1641 = vld [vmem:[#allocation3 + $0x558] sm:$0xff]
        %v1642 = vld [vmem:[#allocation3 + $0x560] sm:$0xff]
        %v1643 = vld [vmem:[#allocation3 + $0x568] sm:$0xff]
        %v1644 = vld [vmem:[#allocation3 + $0x570] sm:$0xff]
        %v1645 = vld [vmem:[#allocation3 + $0x578] sm:$0xff]
        %v1646 = vld [vmem:[#allocation3 + $0x580] sm:$0xff]
        %v1647 = vld [vmem:[#allocation3 + $0x588] sm:$0xff]
        %v1648 = vld [vmem:[#allocation3 + $0x590] sm:$0xff]
        %v1649 = vld [vmem:[#allocation3 + $0x598] sm:$0xff]
        %v1650 = vld [vmem:[#allocation3 + $0x5a0] sm:$0xff]
        %v1651 = vld [vmem:[#allocation3 + $0x5a8] sm:$0xff]
        %v1652 = vld [vmem:[#allocation3 + $0x5b0] sm:$0xff]
        %v1653 = vld [vmem:[#allocation3 + $0x5b8] sm:$0xff]
        %v1654 = vld [vmem:[#allocation3 + $0x5c0] sm:$0xff]
        %v1655 = vld [vmem:[#allocation3 + $0x5c8] sm:$0xff]
        %v1656 = vld [vmem:[#allocation3 + $0x5d0] sm:$0xff]
        %v1657 = vld [vmem:[#allocation3 + $0x5d8] sm:$0xff]
        %v1658 = vld [vmem:[#allocation3 + $0x5e0] sm:$0xff]
        %v1659 = vld [vmem:[#allocation3 + $0x5e8] sm:$0xff]
        %v1660 = vld [vmem:[#allocation3 + $0x5f0] sm:$0xff]
        %v1661 = vld [vmem:[#allocation3 + $0x5f8] sm:$0xff]
        %v1662 = vld [vmem:[#allocation3 + $0x600] sm:$0xff]
        %v1663 = vld [vmem:[#allocation3 + $0x608] sm:$0xff]
        %v1664 = vld [vmem:[#allocation3 + $0x610] sm:$0xff]
        %v1665 = vld [vmem:[#allocation3 + $0x618] sm:$0xff]
        %v1666 = vld [vmem:[#allocation3 + $0x620] sm:$0xff]
        %v1667 = vld [vmem:[#allocation3 + $0x628] sm:$0xff]
        %v1668 = vld [vmem:[#allocation3 + $0x630] sm:$0xff]
        %v1669 = vld [vmem:[#allocation3 + $0x638] sm:$0xff]
        %v1670 = vld [vmem:[#allocation3 + $0x640] sm:$0xff]
        %v1671 = vld [vmem:[#allocation3 + $0x648] sm:$0xff]
        %v1672 = vld [vmem:[#allocation3 + $0x650] sm:$0xff]
        %v1673 = vld [vmem:[#allocation3 + $0x658] sm:$0xff]
        %v1674 = vld [vmem:[#allocation3 + $0x660] sm:$0xff]
        %v1675 = vld [vmem:[#allocation3 + $0x668] sm:$0xff]
        %v1676 = vld [vmem:[#allocation3 + $0x670] sm:$0xff]
        %v1677 = vld [vmem:[#allocation3 + $0x678] sm:$0xff]
        %v1678 = vld [vmem:[#allocation3 + $0x680] sm:$0xff]
        %v1679 = vld [vmem:[#allocation3 + $0x688] sm:$0xff]
        %v1680 = vld [vmem:[#allocation3 + $0x690] sm:$0xff]
        %v1681 = vld [vmem:[#allocation3 + $0x698] sm:$0xff]
        %v1682 = vld [vmem:[#allocation3 + $0x6a0] sm:$0xff]
        %v1683 = vld [vmem:[#allocation3 + $0x6a8] sm:$0xff]
        %v1684 = vld [vmem:[#allocation3 + $0x6b0] sm:$0xff]
        %v1685 = vld [vmem:[#allocation3 + $0x6b8] sm:$0xff]
        %v1686 = vld [vmem:[#allocation3 + $0x6c0] sm:$0xff]
        %v1687 = vld [vmem:[#allocation3 + $0x6c8] sm:$0xff]
        %v1688 = vld [vmem:[#allocation3 + $0x6d0] sm:$0xff]
        %v1689 = vld [vmem:[#allocation3 + $0x6d8] sm:$0xff]
        %v1690 = vld [vmem:[#allocation3 + $0x6e0] sm:$0xff]
        %v1691 = vld [vmem:[#allocation3 + $0x6e8] sm:$0xff]
        %v1692 = vld [vmem:[#allocation3 + $0x6f0] sm:$0xff]
        %v1693 = vld [vmem:[#allocation3 + $0x6f8] sm:$0xff]
        %v1694 = vld [vmem:[#allocation3 + $0x700] sm:$0xff]
        %v1695 = vld [vmem:[#allocation3 + $0x708] sm:$0xff]
        %v1696 = vld [vmem:[#allocation3 + $0x710] sm:$0xff]
        %v1697 = vld [vmem:[#allocation3 + $0x718] sm:$0xff]
        %v1698 = vld [vmem:[#allocation3 + $0x720] sm:$0xff]
        %v1699 = vld [vmem:[#allocation3 + $0x728] sm:$0xff]
        %v1700 = vld [vmem:[#allocation3 + $0x730] sm:$0xff]
        %v1701 = vld [vmem:[#allocation3 + $0x738] sm:$0xff]
        %v1702 = vld [vmem:[#allocation3 + $0x740] sm:$0xff]
        %v1703 = vld [vmem:[#allocation3 + $0x748] sm:$0xff]
        %v1704 = vld [vmem:[#allocation3 + $0x750] sm:$0xff]
        %v1705 = vld [vmem:[#allocation3 + $0x758] sm:$0xff]
        %v1706 = vld [vmem:[#allocation3 + $0x760] sm:$0xff]
        %v1707 = vld [vmem:[#allocation3 + $0x768] sm:$0xff]
        %v1708 = vld [vmem:[#allocation3 + $0x770] sm:$0xff]
        %v1709 = vld [vmem:[#allocation3 + $0x778] sm:$0xff]
        %v1710 = vld [vmem:[#allocation3 + $0x780] sm:$0xff]
        %v1711 = vld [vmem:[#allocation3 + $0x788] sm:$0xff]
        %v1712 = vld [vmem:[#allocation3 + $0x790] sm:$0xff]
        %v1713 = vld [vmem:[#allocation3 + $0x798] sm:$0xff]
        %v1714 = vld [vmem:[#allocation3 + $0x7a0] sm:$0xff]
        %v1715 = vld [vmem:[#allocation3 + $0x7a8] sm:$0xff]
        %v1716 = vld [vmem:[#allocation3 + $0x7b0] sm:$0xff]
        %v1717 = vld [vmem:[#allocation3 + $0x7b8] sm:$0xff]
        %v1718 = vld [vmem:[#allocation3 + $0x7c0] sm:$0xff]
        %v1719 = vld [vmem:[#allocation3 + $0x7c8] sm:$0xff]
        %v1720 = vld [vmem:[#allocation3 + $0x7d0] sm:$0xff]
        %v1721 = vld [vmem:[#allocation3 + $0x7d8] sm:$0xff]
        %v1722 = vld [vmem:[#allocation3 + $0x7e0] sm:$0xff]
        %v1723 = vld [vmem:[#allocation3 + $0x7e8] sm:$0xff]
        %v1724 = vld [vmem:[#allocation3 + $0x7f0] sm:$0xff]
        %v1725 = vld [vmem:[#allocation3 + $0x7f8] sm:$0xff]
        %v1726 = vld [vmem:[#allocation3 + $0x800] sm:$0xff]
        %v1727 = vld [vmem:[#allocation3 + $0x808] sm:$0xff]
        %v1728 = vld [vmem:[#allocation3 + $0x810] sm:$0xff]
        %v1729 = vld [vmem:[#allocation3 + $0x818] sm:$0xff]
        %v1730 = vld [vmem:[#allocation3 + $0x820] sm:$0xff]
        %v1731 = vld [vmem:[#allocation3 + $0x828] sm:$0xff]
        %v1732 = vld [vmem:[#allocation3 + $0x830] sm:$0xff]
        %v1733 = vld [vmem:[#allocation3 + $0x838] sm:$0xff]
        %v1734 = vld [vmem:[#allocation3 + $0x840] sm:$0xff]
        %v1735 = vld [vmem:[#allocation3 + $0x848] sm:$0xff]
        %v1736 = vld [vmem:[#allocation3 + $0x850] sm:$0xff]
        %v1737 = vld [vmem:[#allocation3 + $0x858] sm:$0xff]
        %v1738 = vld [vmem:[#allocation3 + $0x860] sm:$0xff]
        %v1739 = vld [vmem:[#allocation3 + $0x868] sm:$0xff]
        %v1740 = vld [vmem:[#allocation3 + $0x870] sm:$0xff]
        %v1741 = vld [vmem:[#allocation3 + $0x878] sm:$0xff]
        %v1742 = vld [vmem:[#allocation3 + $0x880] sm:$0xff]
        %v1743 = vld [vmem:[#allocation3 + $0x888] sm:$0xff]
        %v1744 = vld [vmem:[#allocation3 + $0x890] sm:$0xff]
        %v1745 = vld [vmem:[#allocation3 + $0x898] sm:$0xff]
        %v1746 = vld [vmem:[#allocation3 + $0x8a0] sm:$0xff]
        %v1747 = vld [vmem:[#allocation3 + $0x8a8] sm:$0xff]
        %v1748 = vld [vmem:[#allocation3 + $0x8b0] sm:$0xff]
        %v1749 = vld [vmem:[#allocation3 + $0x8b8] sm:$0xff]
        %v1750 = vld [vmem:[#allocation3 + $0x8c0] sm:$0xff]
        %v1751 = vld [vmem:[#allocation3 + $0x8c8] sm:$0xff]
        %v1752 = vld [vmem:[#allocation3 + $0x8d0] sm:$0xff]
        %v1753 = vld [vmem:[#allocation3 + $0x8d8] sm:$0xff]
        %v1754 = vld [vmem:[#allocation3 + $0x8e0] sm:$0xff]
        %v1755 = vld [vmem:[#allocation3 + $0x8e8] sm:$0xff]
        %v1756 = vld [vmem:[#allocation3 + $0x8f0] sm:$0xff]
        %v1757 = vld [vmem:[#allocation3 + $0x8f8] sm:$0xff]
        %v1758 = vld [vmem:[#allocation4] sm:$0xff]
        %v1759 = vld [vmem:[#allocation4 + $0x8] sm:$0xff]
        %v1760 = vld [vmem:[#allocation4 + $0x10] sm:$0xff]
        %v1761 = vld [vmem:[#allocation4 + $0x18] sm:$0xff]
        %v1762 = vld [vmem:[#allocation4 + $0x20] sm:$0xff]
        %v1763 = vld [vmem:[#allocation4 + $0x28] sm:$0xff]
        %v1764 = vld [vmem:[#allocation4 + $0x30] sm:$0xff]
        %v1765 = vld [vmem:[#allocation4 + $0x38] sm:$0xff]
        %v1766 = vld [vmem:[#allocation4 + $0x40] sm:$0xff]
        %v1767 = vld [vmem:[#allocation4 + $0x48] sm:$0xff]
        %v1768 = vld [vmem:[#allocation4 + $0x50] sm:$0xff]
        %v1769 = vld [vmem:[#allocation4 + $0x58] sm:$0xff]
        %v1770 = vld [vmem:[#allocation4 + $0x60] sm:$0xff]
        %v1771 = vld [vmem:[#allocation4 + $0x68] sm:$0xff]
        %v1772 = vld [vmem:[#allocation4 + $0x70] sm:$0xff]
        %v1773 = vld [vmem:[#allocation4 + $0x78] sm:$0xff]
        %v1774 = vld [vmem:[#allocation4 + $0x80] sm:$0xff]
        %v1775 = vld [vmem:[#allocation4 + $0x88] sm:$0xff]
        %v1776 = vld [vmem:[#allocation4 + $0x90] sm:$0xff]
        %v1777 = vld [vmem:[#allocation4 + $0x98] sm:$0xff]
        %v1778 = vld [vmem:[#allocation4 + $0xa0] sm:$0xff]
        %v1779 = vld [vmem:[#allocation4 + $0xa8] sm:$0xff]
        %v1780 = vld [vmem:[#allocation4 + $0xb0] sm:$0xff]
        %v1781 = vld [vmem:[#allocation4 + $0xb8] sm:$0xff]
        %v1782 = vld [vmem:[#allocation4 + $0xc0] sm:$0xff]
        %v1783 = vld [vmem:[#allocation4 + $0xc8] sm:$0xff]
        %v1784 = vld [vmem:[#allocation4 + $0xd0] sm:$0xff]
        %v1785 = vld [vmem:[#allocation4 + $0xd8] sm:$0xff]
        %v1786 = vld [vmem:[#allocation4 + $0xe0] sm:$0xff]
        %v1787 = vld [vmem:[#allocation4 + $0xe8] sm:$0xff]
        %v1788 = vld [vmem:[#allocation4 + $0xf0] sm:$0xff]
        %v1789 = vld [vmem:[#allocation4 + $0xf8] sm:$0xff]
        %v1790 = vld [vmem:[#allocation4 + $0x100] sm:$0xff]
        %v1791 = vld [vmem:[#allocation4 + $0x108] sm:$0xff]
        %v1792 = vld [vmem:[#allocation4 + $0x110] sm:$0xff]
        %v1793 = vld [vmem:[#allocation4 + $0x118] sm:$0xff]
        %v1794 = vld [vmem:[#allocation4 + $0x120] sm:$0xff]
        %v1795 = vld [vmem:[#allocation4 + $0x128] sm:$0xff]
        %v1796 = vld [vmem:[#allocation4 + $0x130] sm:$0xff]
        %v1797 = vld [vmem:[#allocation4 + $0x138] sm:$0xff]
        %v1798 = vld [vmem:[#allocation4 + $0x140] sm:$0xff]
        %v1799 = vld [vmem:[#allocation4 + $0x148] sm:$0xff]
        %v1800 = vld [vmem:[#allocation4 + $0x150] sm:$0xff]
        %v1801 = vld [vmem:[#allocation4 + $0x158] sm:$0xff]
        %v1802 = vld [vmem:[#allocation4 + $0x160] sm:$0xff]
        %v1803 = vld [vmem:[#allocation4 + $0x168] sm:$0xff]
        %v1804 = vld [vmem:[#allocation4 + $0x170] sm:$0xff]
        %v1805 = vld [vmem:[#allocation4 + $0x178] sm:$0xff]
        %v1806 = vld [vmem:[#allocation4 + $0x180] sm:$0xff]
        %v1807 = vld [vmem:[#allocation4 + $0x188] sm:$0xff]
        %v1808 = vld [vmem:[#allocation4 + $0x190] sm:$0xff]
        %v1809 = vld [vmem:[#allocation4 + $0x198] sm:$0xff]
        %v1810 = vld [vmem:[#allocation4 + $0x1a0] sm:$0xff]
        %v1811 = vld [vmem:[#allocation4 + $0x1a8] sm:$0xff]
        %v1812 = vld [vmem:[#allocation4 + $0x1b0] sm:$0xff]
        %v1813 = vld [vmem:[#allocation4 + $0x1b8] sm:$0xff]
        %v1814 = vld [vmem:[#allocation4 + $0x1c0] sm:$0xff]
        %v1815 = vld [vmem:[#allocation4 + $0x1c8] sm:$0xff]
        %v1816 = vld [vmem:[#allocation4 + $0x1d0] sm:$0xff]
        %v1817 = vld [vmem:[#allocation4 + $0x1d8] sm:$0xff]
        %v1818 = vld [vmem:[#allocation4 + $0x1e0] sm:$0xff]
        %v1819 = vld [vmem:[#allocation4 + $0x1e8] sm:$0xff]
        %v1820 = vld [vmem:[#allocation4 + $0x1f0] sm:$0xff]
        %v1821 = vld [vmem:[#allocation4 + $0x1f8] sm:$0xff]
        %v1822 = vld [vmem:[#allocation4 + $0x200] sm:$0xff]
        %v1823 = vld [vmem:[#allocation4 + $0x208] sm:$0xff]
        %v1824 = vld [vmem:[#allocation4 + $0x210] sm:$0xff]
        %v1825 = vld [vmem:[#allocation4 + $0x218] sm:$0xff]
        %v1826 = vld [vmem:[#allocation4 + $0x220] sm:$0xff]
        %v1827 = vld [vmem:[#allocation4 + $0x228] sm:$0xff]
        %v1828 = vld [vmem:[#allocation4 + $0x230] sm:$0xff]
        %v1829 = vld [vmem:[#allocation4 + $0x238] sm:$0xff]
        %v1830 = vld [vmem:[#allocation4 + $0x240] sm:$0xff]
        %v1831 = vld [vmem:[#allocation4 + $0x248] sm:$0xff]
        %v1832 = vld [vmem:[#allocation4 + $0x250] sm:$0xff]
        %v1833 = vld [vmem:[#allocation4 + $0x258] sm:$0xff]
        %v1834 = vld [vmem:[#allocation4 + $0x260] sm:$0xff]
        %v1835 = vld [vmem:[#allocation4 + $0x268] sm:$0xff]
        %v1836 = vld [vmem:[#allocation4 + $0x270] sm:$0xff]
        %v1837 = vld [vmem:[#allocation4 + $0x278] sm:$0xff]
        %v1838 = vld [vmem:[#allocation4 + $0x280] sm:$0xff]
        %v1839 = vld [vmem:[#allocation4 + $0x288] sm:$0xff]
        %v1840 = vld [vmem:[#allocation4 + $0x290] sm:$0xff]
        %v1841 = vld [vmem:[#allocation4 + $0x298] sm:$0xff]
        %v1842 = vld [vmem:[#allocation4 + $0x2a0] sm:$0xff]
        %v1843 = vld [vmem:[#allocation4 + $0x2a8] sm:$0xff]
        %v1844 = vld [vmem:[#allocation4 + $0x2b0] sm:$0xff]
        %v1845 = vld [vmem:[#allocation4 + $0x2b8] sm:$0xff]
        %v1846 = vld [vmem:[#allocation4 + $0x2c0] sm:$0xff]
        %v1847 = vld [vmem:[#allocation4 + $0x2c8] sm:$0xff]
        %v1848 = vld [vmem:[#allocation4 + $0x2d0] sm:$0xff]
        %v1849 = vld [vmem:[#allocation4 + $0x2d8] sm:$0xff]
        %v1850 = vld [vmem:[#allocation4 + $0x2e0] sm:$0xff]
        %v1851 = vld [vmem:[#allocation4 + $0x2e8] sm:$0xff]
        %v1852 = vld [vmem:[#allocation4 + $0x2f0] sm:$0xff]
        %v1853 = vld [vmem:[#allocation4 + $0x2f8] sm:$0xff]
        %v1854 = vld [vmem:[#allocation4 + $0x300] sm:$0xff]
        %v1855 = vld [vmem:[#allocation4 + $0x308] sm:$0xff]
        %v1856 = vld [vmem:[#allocation4 + $0x310] sm:$0xff]
        %v1857 = vld [vmem:[#allocation4 + $0x318] sm:$0xff]
        %v1858 = vld [vmem:[#allocation4 + $0x320] sm:$0xff]
        %v1859 = vld [vmem:[#allocation4 + $0x328] sm:$0xff]
        %v1860 = vld [vmem:[#allocation4 + $0x330] sm:$0xff]
        %v1861 = vld [vmem:[#allocation4 + $0x338] sm:$0xff]
        %v1862 = vld [vmem:[#allocation4 + $0x340] sm:$0xff]
        %v1863 = vld [vmem:[#allocation4 + $0x348] sm:$0xff]
        %v1864 = vld [vmem:[#allocation4 + $0x350] sm:$0xff]
        %v1865 = vld [vmem:[#allocation4 + $0x358] sm:$0xff]
        %v1866 = vld [vmem:[#allocation4 + $0x360] sm:$0xff]
        %v1867 = vld [vmem:[#allocation4 + $0x368] sm:$0xff]
        %v1868 = vld [vmem:[#allocation4 + $0x370] sm:$0xff]
        %v1869 = vld [vmem:[#allocation4 + $0x378] sm:$0xff]
        %v1870 = vld [vmem:[#allocation4 + $0x380] sm:$0xff]
        %v1871 = vld [vmem:[#allocation4 + $0x388] sm:$0xff]
        %v1872 = vld [vmem:[#allocation4 + $0x390] sm:$0xff]
        %v1873 = vld [vmem:[#allocation4 + $0x398] sm:$0xff]
        %v1874 = vld [vmem:[#allocation4 + $0x3a0] sm:$0xff]
        %v1875 = vld [vmem:[#allocation4 + $0x3a8] sm:$0xff]
        %v1876 = vld [vmem:[#allocation4 + $0x3b0] sm:$0xff]
        %v1877 = vld [vmem:[#allocation4 + $0x3b8] sm:$0xff]
        %v1878 = vld [vmem:[#allocation4 + $0x3c0] sm:$0xff]
        %v1879 = vld [vmem:[#allocation4 + $0x3c8] sm:$0xff]
        %v1880 = vld [vmem:[#allocation4 + $0x3d0] sm:$0xff]
        %v1881 = vld [vmem:[#allocation4 + $0x3d8] sm:$0xff]
        %v1882 = vld [vmem:[#allocation4 + $0x3e0] sm:$0xff]
        %v1883 = vld [vmem:[#allocation4 + $0x3e8] sm:$0xff]
        %v1884 = vld [vmem:[#allocation4 + $0x3f0] sm:$0xff]
        %v1885 = vld [vmem:[#allocation4 + $0x3f8] sm:$0xff]
        %v1886 = vld [vmem:[#allocation4 + $0x400] sm:$0xff]
        %v1887 = vld [vmem:[#allocation4 + $0x408] sm:$0xff]
        %v1888 = vld [vmem:[#allocation4 + $0x410] sm:$0xff]
        %v1889 = vld [vmem:[#allocation4 + $0x418] sm:$0xff]
        %v1890 = vld [vmem:[#allocation4 + $0x420] sm:$0xff]
        %v1891 = vld [vmem:[#allocation4 + $0x428] sm:$0xff]
        %v1892 = vld [vmem:[#allocation4 + $0x430] sm:$0xff]
        %v1893 = vld [vmem:[#allocation4 + $0x438] sm:$0xff]
        %v1894 = vld [vmem:[#allocation4 + $0x440] sm:$0xff]
        %v1895 = vld [vmem:[#allocation4 + $0x448] sm:$0xff]
        %v1896 = vld [vmem:[#allocation4 + $0x450] sm:$0xff]
        %v1897 = vld [vmem:[#allocation4 + $0x458] sm:$0xff]
        %v1898 = vld [vmem:[#allocation4 + $0x460] sm:$0xff]
        %v1899 = vld [vmem:[#allocation4 + $0x468] sm:$0xff]
        %v1900 = vld [vmem:[#allocation4 + $0x470] sm:$0xff]
        %v1901 = vld [vmem:[#allocation4 + $0x478] sm:$0xff]
        %v1902 = vld [vmem:[%s4] sm:$0x1]
        %v1904 = vlaneseq
        %v1905 = vshrl.u32 %v1904, 7
        %v1906 = vsub.s32 0, %v1905
        %v1907 = vrot.slane %v1902, %v1906
        %1909 = vmatprep.subr.mxu0 0.0
        %1910 = vmatpush1.msra.mxu0 %v1758
        %1911 = vmatprep.subr.mxu0 0.0
        %1912 = vmatpush1.msra.mxu0 %v1759
        %1913 = vmatprep.subr.mxu0 0.0
        %1914 = vmatpush1.msra.mxu0 %v1760
        %1915 = vmatprep.subr.mxu0 0.0
        %1916 = vmatpush1.msra.mxu0 %v1761
        %1917 = vmatprep.subr.mxu0 0.0
        %1918 = vmatpush1.msra.mxu0 %v1762
        %1919 = vmatprep.subr.mxu0 0.0
        %1920 = vmatpush1.msra.mxu0 %v1763
        %1921 = vmatprep.subr.mxu0 0.0
        %1922 = vmatpush1.msra.mxu0 %v1764
        %1923 = vmatprep.subr.mxu0 0.0
        %1924 = vmatpush1.msra.mxu0 %v1765
        %1925 = vmatprep.subr.mxu0 0.0
        %1926 = vmatpush1.msra.mxu0 %v1766
        %1927 = vmatprep.subr.mxu0 0.0
        %1928 = vmatpush1.msra.mxu0 %v1767
        %1929 = vmatprep.subr.mxu0 0.0
        %1930 = vmatpush1.msra.mxu0 %v1768
        %1931 = vmatprep.subr.mxu0 0.0
        %1932 = vmatpush1.msra.mxu0 %v1769
        %1933 = vmatprep.subr.mxu0 0.0
        %1934 = vmatpush1.msra.mxu0 %v1770
        %1935 = vmatprep.subr.mxu0 0.0
        %1936 = vmatpush1.msra.mxu0 %v1771
        %1937 = vmatprep.subr.mxu0 0.0
        %1938 = vmatpush1.msra.mxu0 %v1772
        %1939 = vmatprep.subr.mxu0 0.0
        %1940 = vmatpush1.msra.mxu0 %v1773
        %1941 = vmatprep.subr.mxu0 0.0
        %1942 = vmatpush1.msra.mxu0 %v1774
        %1943 = vmatprep.subr.mxu0 0.0
        %1944 = vmatpush1.msra.mxu0 %v1775
        %1945 = vmatprep.subr.mxu0 0.0
        %1946 = vmatpush1.msra.mxu0 %v1776
        %1947 = vmatprep.subr.mxu0 0.0
        %1948 = vmatpush1.msra.mxu0 %v1777
        %1949 = vmatprep.subr.mxu0 0.0
        %1950 = vmatpush1.msra.mxu0 %v1778
        %1951 = vmatprep.subr.mxu0 0.0
        %1952 = vmatpush1.msra.mxu0 %v1779
        %1953 = vmatprep.subr.mxu0 0.0
        %1954 = vmatpush1.msra.mxu0 %v1780
        %1955 = vmatprep.subr.mxu0 0.0
        %1956 = vmatpush1.msra.mxu0 %v1781
        %1957 = vmatprep.subr.mxu0 0.0
        %1958 = vmatpush1.msra.mxu0 %v1782
        %1959 = vmatprep.subr.mxu0 0.0
        %1960 = vmatpush1.msra.mxu0 %v1783
        %1961 = vmatprep.subr.mxu0 0.0
        %1962 = vmatpush1.msra.mxu0 %v1784
        %1963 = vmatprep.subr.mxu0 0.0
        %1964 = vmatpush1.msra.mxu0 %v1785
        %1965 = vmatprep.subr.mxu0 0.0
        %1966 = vmatpush1.msra.mxu0 %v1786
        %1967 = vmatprep.subr.mxu0 0.0
        %1968 = vmatpush1.msra.mxu0 %v1787
        %1969 = vmatprep.subr.mxu0 0.0
        %1970 = vmatpush1.msra.mxu0 %v1788
        %1971 = vmatprep.subr.mxu0 0.0
        %1972 = vmatpush1.msra.mxu0 %v1789
        %1973 = vmatprep.mubr.f32.mxu0 %v1471
        %1974 = vmatmul.mubr.f32.gmra.mrb[0].mxu0 %v1470
        %v1975 = vpop.f32.mrb[0].mxu0
        %v1976 = vadd.f32 %v1907, %v1975
        %v1977 = vpop.f32.mrb[0].mxu0
        %1978 = vmatprep.mubr.f32.mxu0 %v1480
        %1979 = vmatmul.mubr.f32.gmra.mrb[0].mxu0 %v1479
        %v1980 = vpop.f32.mrb[0].mxu0
        %v1981 = vadd.f32 %v1907, %v1980
        %v1982 = vpop.f32.mrb[0].mxu0
        %1983 = vmatprep.mubr.f32.mxu0 %v1489
        %1984 = vmatmul.mubr.f32.gmra.mrb[0].mxu0 %v1488
        %v1985 = vpop.f32.mrb[0].mxu0
        %v1986 = vadd.f32 %v1907, %v1985
        %v1987 = vpop.f32.mrb[0].mxu0
        %1988 = vmatprep.mubr.f32.mxu0 %v1498
        %1989 = vmatmul.mubr.f32.gmra.mrb[0].mxu0 %v1497
        %v1990 = vpop.f32.mrb[0].mxu0
        %v1991 = vadd.f32 %v1907, %v1990
        %v1992 = vpop.f32.mrb[0].mxu0
        %1993 = vmatprep.mubr.f32.mxu0 %v1507
        %1994 = vmatmul.mubr.f32.gmra.mrb[0].mxu0 %v1506
        %v1995 = vpop.f32.mrb[0].mxu0
        %v1996 = vadd.f32 %v1907, %v1995
        %v1997 = vpop.f32.mrb[0].mxu0
        %1998 = vmatprep.mubr.f32.mxu0 %v1516
        %1999 = vmatmul.mubr.f32.gmra.mrb[0].mxu0 %v1515
        %v2000 = vpop.f32.mrb[0].mxu0
        %v2001 = vadd.f32 %v1907, %v2000
        %v2002 = vpop.f32.mrb[0].mxu0
        %2003 = vmatprep.mubr.f32.mxu0 %v1525
        %2004 = vmatmul.mubr.f32.gmra.mrb[0].mxu0 %v1524
        %v2005 = vpop.f32.mrb[0].mxu0
        %v2006 = vadd.f32 %v1907, %v2005
        %v2007 = vpop.f32.mrb[0].mxu0
        %2008 = vmatprep.mubr.f32.mxu0 %v1534
        %2009 = vmatmul.mubr.f32.gmra.mrb[0].mxu0 %v1533
        %v2010 = vpop.f32.mrb[0].mxu0
        %v2011 = vadd.f32 %v1907, %v2010
        %v2012 = vpop.f32.mrb[0].mxu0
        %2013 = vmatprep.mubr.f32.mxu0 %v1543
        %2014 = vmatmul.mubr.f32.gmra.mrb[0].mxu0 %v1542
        %v2015 = vpop.f32.mrb[0].mxu0
        %v2016 = vadd.f32 %v1907, %v2015
        %v2017 = vpop.f32.mrb[0].mxu0
        %2018 = vmatprep.mubr.f32.mxu0 %v1552
        %2019 = vmatmul.mubr.f32.gmra.mrb[0].mxu0 %v1551
        %v2020 = vpop.f32.mrb[0].mxu0
        %v2021 = vadd.f32 %v1907, %v2020
        %v2022 = vpop.f32.mrb[0].mxu0
        %2023 = vmatprep.mubr.f32.mxu0 %v1561
        %2024 = vmatmul.mubr.f32.gmra.mrb[0].mxu0 %v1560
        %v2025 = vpop.f32.mrb[0].mxu0
        %v2026 = vadd.f32 %v1907, %v2025
        %v2027 = vpop.f32.mrb[0].mxu0
        %2028 = vmatprep.mubr.f32.mxu0 %v1570
        %2029 = vmatmul.mubr.f32.gmra.mrb[0].mxu0 %v1569
        %v2030 = vpop.f32.mrb[0].mxu0
        %v2031 = vadd.f32 %v1907, %v2030
        %v2032 = vpop.f32.mrb[0].mxu0
        %2033 = vmatprep.mubr.f32.mxu0 %v1579
        %2034 = vmatmul.mubr.f32.gmra.mrb[0].mxu0 %v1578
        %v2035 = vpop.f32.mrb[0].mxu0
        %v2036 = vadd.f32 %v1907, %v2035
        %v2037 = vpop.f32.mrb[0].mxu0
        %2038 = vmatprep.mubr.f32.mxu0 %v1588
        %2039 = vmatmul.mubr.f32.gmra.mrb[0].mxu0 %v1587
        %v2040 = vpop.f32.mrb[0].mxu0
        %v2041 = vadd.f32 %v1907, %v2040
        %v2042 = vpop.f32.mrb[0].mxu0
        %2043 = vmatprep.mubr.f32.mxu0 %v1597
        %2044 = vmatmul.mubr.f32.gmra.mrb[0].mxu0 %v1596
        %v2045 = vpop.f32.mrb[0].mxu0
        %v2046 = vadd.f32 %v1907, %v2045
        %v2047 = vpop.f32.mrb[0].mxu0
        %2048 = vmatprep.mubr.f32.mxu0 %v1606
        %2049 = vmatmul.mubr.f32.gmra.mrb[0].mxu0 %v1605
        %v2050 = vpop.f32.mrb[0].mxu0
        %v2051 = vadd.f32 %v1907, %v2050
        %v2052 = vpop.f32.mrb[0].mxu0
        %2053 = vmatprep.mubr.f32.mxu0 %v1615
        %2054 = vmatmul.mubr.f32.gmra.mrb[0].mxu0 %v1614
        %v2055 = vpop.f32.mrb[0].mxu0
        %v2056 = vadd.f32 %v1907, %v2055
        %v2057 = vpop.f32.mrb[0].mxu0
        %2058 = vmatprep.mubr.f32.mxu0 %v1624
        %2059 = vmatmul.mubr.f32.gmra.mrb[0].mxu0 %v1623
        %v2060 = vpop.f32.mrb[0].mxu0
        %v2061 = vadd.f32 %v1907, %v2060
        %v2062 = vpop.f32.mrb[0].mxu0
        %2063 = vmatprep.mubr.f32.mxu0 %v1633
        %2064 = vmatmul.mubr.f32.gmra.mrb[0].mxu0 %v1632
        %v2065 = vpop.f32.mrb[0].mxu0
        %v2066 = vadd.f32 %v1907, %v2065
        %v2067 = vpop.f32.mrb[0].mxu0
        %2068 = vmatprep.mubr.f32.mxu0 %v1642
        %2069 = vmatmul.mubr.f32.gmra.mrb[0].mxu0 %v1641
        %v2070 = vpop.f32.mrb[0].mxu0
        %v2071 = vadd.f32 %v1907, %v2070
        %v2072 = vpop.f32.mrb[0].mxu0
        %2073 = vmatprep.mubr.f32.mxu0 %v1651
        %2074 = vmatmul.mubr.f32.gmra.mrb[0].mxu0 %v1650
        %v2075 = vpop.f32.mrb[0].mxu0
        %v2076 = vadd.f32 %v1907, %v2075
        %v2077 = vpop.f32.mrb[0].mxu0
        %2078 = vmatprep.mubr.f32.mxu0 %v1660
        %2079 = vmatmul.mubr.f32.gmra.mrb[0].mxu0 %v1659
        %v2080 = vpop.f32.mrb[0].mxu0
        %v2081 = vadd.f32 %v1907, %v2080
        %v2082 = vpop.f32.mrb[0].mxu0
        %2083 = vmatprep.mubr.f32.mxu0 %v1669
        %2084 = vmatmul.mubr.f32.gmra.mrb[0].mxu0 %v1668
        %v2085 = vpop.f32.mrb[0].mxu0
        %v2086 = vadd.f32 %v1907, %v2085
        %v2087 = vpop.f32.mrb[0].mxu0
        %2088 = vmatprep.mubr.f32.mxu0 %v1678
        %2089 = vmatmul.mubr.f32.gmra.mrb[0].mxu0 %v1677
        %v2090 = vpop.f32.mrb[0].mxu0
        %v2091 = vadd.f32 %v1907, %v2090
        %v2092 = vpop.f32.mrb[0].mxu0
        %2093 = vmatprep.mubr.f32.mxu0 %v1687
        %2094 = vmatmul.mubr.f32.gmra.mrb[0].mxu0 %v1686
        %v2095 = vpop.f32.mrb[0].mxu0
        %v2096 = vadd.f32 %v1907, %v2095
        %v2097 = vpop.f32.mrb[0].mxu0
        %2098 = vmatprep.mubr.f32.mxu0 %v1696
        %2099 = vmatmul.mubr.f32.gmra.mrb[0].mxu0 %v1695
        %v2100 = vpop.f32.mrb[0].mxu0
        %v2101 = vadd.f32 %v1907, %v2100
        %v2102 = vpop.f32.mrb[0].mxu0
        %2103 = vmatprep.mubr.f32.mxu0 %v1705
        %2104 = vmatmul.mubr.f32.gmra.mrb[0].mxu0 %v1704
        %v2105 = vpop.f32.mrb[0].mxu0
        %v2106 = vadd.f32 %v1907, %v2105
        %v2107 = vpop.f32.mrb[0].mxu0
        %2108 = vmatprep.mubr.f32.mxu0 %v1714
        %2109 = vmatmul.mubr.f32.gmra.mrb[0].mxu0 %v1713
        %v2110 = vpop.f32.mrb[0].mxu0
        %v2111 = vadd.f32 %v1907, %v2110
        %v2112 = vpop.f32.mrb[0].mxu0
        %2113 = vmatprep.mubr.f32.mxu0 %v1723
        %2114 = vmatmul.mubr.f32.gmra.mrb[0].mxu0 %v1722
        %v2115 = vpop.f32.mrb[0].mxu0
        %v2116 = vadd.f32 %v1907, %v2115
        %v2117 = vpop.f32.mrb[0].mxu0
        %2118 = vmatprep.mubr.f32.mxu0 %v1732
        %2119 = vmatmul.mubr.f32.gmra.mrb[0].mxu0 %v1731
        %v2120 = vpop.f32.mrb[0].mxu0
        %v2121 = vadd.f32 %v1907, %v2120
        %v2122 = vpop.f32.mrb[0].mxu0
        %2123 = vmatprep.mubr.f32.mxu0 %v1741
        %2124 = vmatmul.mubr.f32.gmra.mrb[0].mxu0 %v1740
        %v2125 = vpop.f32.mrb[0].mxu0
        %v2126 = vadd.f32 %v1907, %v2125
        %v2127 = vpop.f32.mrb[0].mxu0
        %2128 = vmatprep.mubr.f32.mxu0 %v1750
        %2129 = vmatmul.mubr.f32.gmra.mrb[0].mxu0 %v1749
        %v2130 = vpop.f32.mrb[0].mxu0
        %v2131 = vadd.f32 %v1907, %v2130
        %v2132 = vpop.f32.mrb[0].mxu0
        %2133 = vdwg.mxu0
        %2134 = vmatprep.subr.mxu0 0.0
        %2135 = vmatpush1.msra.mxu0 %v1790
        %2136 = vmatprep.subr.mxu0 0.0
        %2137 = vmatpush1.msra.mxu0 %v1791
        %2138 = vmatprep.subr.mxu0 0.0
        %2139 = vmatpush1.msra.mxu0 %v1792
        %2140 = vmatprep.subr.mxu0 0.0
        %2141 = vmatpush1.msra.mxu0 %v1793
        %2142 = vmatprep.subr.mxu0 0.0
        %2143 = vmatpush1.msra.mxu0 %v1794
        %2144 = vmatprep.subr.mxu0 0.0
        %2145 = vmatpush1.msra.mxu0 %v1795
        %2146 = vmatprep.subr.mxu0 0.0
        %2147 = vmatpush1.msra.mxu0 %v1796
        %2148 = vmatprep.subr.mxu0 0.0
        %2149 = vmatpush1.msra.mxu0 %v1797
        %2150 = vmatprep.subr.mxu0 0.0
        %2151 = vmatpush1.msra.mxu0 %v1798
        %2152 = vmatprep.subr.mxu0 0.0
        %2153 = vmatpush1.msra.mxu0 %v1799
        %2154 = vmatprep.subr.mxu0 0.0
        %2155 = vmatpush1.msra.mxu0 %v1800
        %2156 = vmatprep.subr.mxu0 0.0
        %2157 = vmatpush1.msra.mxu0 %v1801
        %2158 = vmatprep.subr.mxu0 0.0
        %2159 = vmatpush1.msra.mxu0 %v1802
        %2160 = vmatprep.subr.mxu0 0.0
        %2161 = vmatpush1.msra.mxu0 %v1803
        %2162 = vmatprep.subr.mxu0 0.0
        %2163 = vmatpush1.msra.mxu0 %v1804
        %2164 = vmatprep.subr.mxu0 0.0
        %2165 = vmatpush1.msra.mxu0 %v1805
        %2166 = vmatprep.subr.mxu0 0.0
        %2167 = vmatpush1.msra.mxu0 %v1806
        %2168 = vmatprep.subr.mxu0 0.0
        %2169 = vmatpush1.msra.mxu0 %v1807
        %2170 = vmatprep.subr.mxu0 0.0
        %2171 = vmatpush1.msra.mxu0 %v1808
        %2172 = vmatprep.subr.mxu0 0.0
        %2173 = vmatpush1.msra.mxu0 %v1809
        %2174 = vmatprep.subr.mxu0 0.0
        %2175 = vmatpush1.msra.mxu0 %v1810
        %2176 = vmatprep.subr.mxu0 0.0
        %2177 = vmatpush1.msra.mxu0 %v1811
        %2178 = vmatprep.subr.mxu0 0.0
        %2179 = vmatpush1.msra.mxu0 %v1812
        %2180 = vmatprep.subr.mxu0 0.0
        %2181 = vmatpush1.msra.mxu0 %v1813
        %2182 = vmatprep.subr.mxu0 0.0
        %2183 = vmatpush1.msra.mxu0 %v1814
        %2184 = vmatprep.subr.mxu0 0.0
        %2185 = vmatpush1.msra.mxu0 %v1815
        %2186 = vmatprep.subr.mxu0 0.0
        %2187 = vmatpush1.msra.mxu0 %v1816
        %2188 = vmatprep.subr.mxu0 0.0
        %2189 = vmatpush1.msra.mxu0 %v1817
        %2190 = vmatprep.subr.mxu0 0.0
        %2191 = vmatpush1.msra.mxu0 %v1818
        %2192 = vmatprep.subr.mxu0 0.0
        %2193 = vmatpush1.msra.mxu0 %v1819
        %2194 = vmatprep.subr.mxu0 0.0
        %2195 = vmatpush1.msra.mxu0 %v1820
        %2196 = vmatprep.subr.mxu0 0.0
        %2197 = vmatpush1.msra.mxu0 %v1821
        %2198 = vmatprep.mubr.f32.mxu0 %v1473
        %2199 = vmatmul.mubr.f32.gmra.mrb[0].mxu0 %v1472
        %v2200 = vpop.f32.mrb[0].mxu0
        %v2201 = vadd.f32 %v1976, %v2200
        %v2202 = vpop.f32.mrb[0].mxu0
        %2203 = vmatprep.mubr.f32.mxu0 %v1482
        %2204 = vmatmul.mubr.f32.gmra.mrb[0].mxu0 %v1481
        %v2205 = vpop.f32.mrb[0].mxu0
        %v2206 = vadd.f32 %v1981, %v2205
        %v2207 = vpop.f32.mrb[0].mxu0
        %2208 = vmatprep.mubr.f32.mxu0 %v1491
        %2209 = vmatmul.mubr.f32.gmra.mrb[0].mxu0 %v1490
        %v2210 = vpop.f32.mrb[0].mxu0
        %v2211 = vadd.f32 %v1986, %v2210
        %v2212 = vpop.f32.mrb[0].mxu0
        %2213 = vmatprep.mubr.f32.mxu0 %v1500
        %2214 = vmatmul.mubr.f32.gmra.mrb[0].mxu0 %v1499
        %v2215 = vpop.f32.mrb[0].mxu0
        %v2216 = vadd.f32 %v1991, %v2215
        %v2217 = vpop.f32.mrb[0].mxu0
        %2218 = vmatprep.mubr.f32.mxu0 %v1509
        %2219 = vmatmul.mubr.f32.gmra.mrb[0].mxu0 %v1508
        %v2220 = vpop.f32.mrb[0].mxu0
        %v2221 = vadd.f32 %v1996, %v2220
        %v2222 = vpop.f32.mrb[0].mxu0
        %2223 = vmatprep.mubr.f32.mxu0 %v1518
        %2224 = vmatmul.mubr.f32.gmra.mrb[0].mxu0 %v1517
        %v2225 = vpop.f32.mrb[0].mxu0
        %v2226 = vadd.f32 %v2001, %v2225
        %v2227 = vpop.f32.mrb[0].mxu0
        %2228 = vmatprep.mubr.f32.mxu0 %v1527
        %2229 = vmatmul.mubr.f32.gmra.mrb[0].mxu0 %v1526
        %v2230 = vpop.f32.mrb[0].mxu0
        %v2231 = vadd.f32 %v2006, %v2230
        %v2232 = vpop.f32.mrb[0].mxu0
        %2233 = vmatprep.mubr.f32.mxu0 %v1536
        %2234 = vmatmul.mubr.f32.gmra.mrb[0].mxu0 %v1535
        %v2235 = vpop.f32.mrb[0].mxu0
        %v2236 = vadd.f32 %v2011, %v2235
        %v2237 = vpop.f32.mrb[0].mxu0
        %2238 = vmatprep.mubr.f32.mxu0 %v1545
        %2239 = vmatmul.mubr.f32.gmra.mrb[0].mxu0 %v1544
        %v2240 = vpop.f32.mrb[0].mxu0
        %v2241 = vadd.f32 %v2016, %v2240
        %v2242 = vpop.f32.mrb[0].mxu0
        %2243 = vmatprep.mubr.f32.mxu0 %v1554
        %2244 = vmatmul.mubr.f32.gmra.mrb[0].mxu0 %v1553
        %v2245 = vpop.f32.mrb[0].mxu0
        %v2246 = vadd.f32 %v2021, %v2245
        %v2247 = vpop.f32.mrb[0].mxu0
        %2248 = vmatprep.mubr.f32.mxu0 %v1563
        %2249 = vmatmul.mubr.f32.gmra.mrb[0].mxu0 %v1562
        %v2250 = vpop.f32.mrb[0].mxu0
        %v2251 = vadd.f32 %v2026, %v2250
        %v2252 = vpop.f32.mrb[0].mxu0
        %2253 = vmatprep.mubr.f32.mxu0 %v1572
        %2254 = vmatmul.mubr.f32.gmra.mrb[0].mxu0 %v1571
        %v2255 = vpop.f32.mrb[0].mxu0
        %v2256 = vadd.f32 %v2031, %v2255
        %v2257 = vpop.f32.mrb[0].mxu0
        %2258 = vmatprep.mubr.f32.mxu0 %v1581
        %2259 = vmatmul.mubr.f32.gmra.mrb[0].mxu0 %v1580
        %v2260 = vpop.f32.mrb[0].mxu0
        %v2261 = vadd.f32 %v2036, %v2260
        %v2262 = vpop.f32.mrb[0].mxu0
        %2263 = vmatprep.mubr.f32.mxu0 %v1590
        %2264 = vmatmul.mubr.f32.gmra.mrb[0].mxu0 %v1589
        %v2265 = vpop.f32.mrb[0].mxu0
        %v2266 = vadd.f32 %v2041, %v2265
        %v2267 = vpop.f32.mrb[0].mxu0
        %2268 = vmatprep.mubr.f32.mxu0 %v1599
        %2269 = vmatmul.mubr.f32.gmra.mrb[0].mxu0 %v1598
        %v2270 = vpop.f32.mrb[0].mxu0
        %v2271 = vadd.f32 %v2046, %v2270
        %v2272 = vpop.f32.mrb[0].mxu0
        %2273 = vmatprep.mubr.f32.mxu0 %v1608
        %2274 = vmatmul.mubr.f32.gmra.mrb[0].mxu0 %v1607
        %v2275 = vpop.f32.mrb[0].mxu0
        %v2276 = vadd.f32 %v2051, %v2275
        %v2277 = vpop.f32.mrb[0].mxu0
        %2278 = vmatprep.mubr.f32.mxu0 %v1617
        %2279 = vmatmul.mubr.f32.gmra.mrb[0].mxu0 %v1616
        %v2280 = vpop.f32.mrb[0].mxu0
        %v2281 = vadd.f32 %v2056, %v2280
        %v2282 = vpop.f32.mrb[0].mxu0
        %2283 = vmatprep.mubr.f32.mxu0 %v1626
        %2284 = vmatmul.mubr.f32.gmra.mrb[0].mxu0 %v1625
        %v2285 = vpop.f32.mrb[0].mxu0
        %v2286 = vadd.f32 %v2061, %v2285
        %v2287 = vpop.f32.mrb[0].mxu0
        %2288 = vmatprep.mubr.f32.mxu0 %v1635
        %2289 = vmatmul.mubr.f32.gmra.mrb[0].mxu0 %v1634
        %v2290 = vpop.f32.mrb[0].mxu0
        %v2291 = vadd.f32 %v2066, %v2290
        %v2292 = vpop.f32.mrb[0].mxu0
        %2293 = vmatprep.mubr.f32.mxu0 %v1644
        %2294 = vmatmul.mubr.f32.gmra.mrb[0].mxu0 %v1643
        %v2295 = vpop.f32.mrb[0].mxu0
        %v2296 = vadd.f32 %v2071, %v2295
        %v2297 = vpop.f32.mrb[0].mxu0
        %2298 = vmatprep.mubr.f32.mxu0 %v1653
        %2299 = vmatmul.mubr.f32.gmra.mrb[0].mxu0 %v1652
        %v2300 = vpop.f32.mrb[0].mxu0
        %v2301 = vadd.f32 %v2076, %v2300
        %v2302 = vpop.f32.mrb[0].mxu0
        %2303 = vmatprep.mubr.f32.mxu0 %v1662
        %2304 = vmatmul.mubr.f32.gmra.mrb[0].mxu0 %v1661
        %v2305 = vpop.f32.mrb[0].mxu0
        %v2306 = vadd.f32 %v2081, %v2305
        %v2307 = vpop.f32.mrb[0].mxu0
        %2308 = vmatprep.mubr.f32.mxu0 %v1671
        %2309 = vmatmul.mubr.f32.gmra.mrb[0].mxu0 %v1670
        %v2310 = vpop.f32.mrb[0].mxu0
        %v2311 = vadd.f32 %v2086, %v2310
        %v2312 = vpop.f32.mrb[0].mxu0
        %2313 = vmatprep.mubr.f32.mxu0 %v1680
        %2314 = vmatmul.mubr.f32.gmra.mrb[0].mxu0 %v1679
        %v2315 = vpop.f32.mrb[0].mxu0
        %v2316 = vadd.f32 %v2091, %v2315
        %v2317 = vpop.f32.mrb[0].mxu0
        %2318 = vmatprep.mubr.f32.mxu0 %v1689
        %2319 = vmatmul.mubr.f32.gmra.mrb[0].mxu0 %v1688
        %v2320 = vpop.f32.mrb[0].mxu0
        %v2321 = vadd.f32 %v2096, %v2320
        %v2322 = vpop.f32.mrb[0].mxu0
        %2323 = vmatprep.mubr.f32.mxu0 %v1698
        %2324 = vmatmul.mubr.f32.gmra.mrb[0].mxu0 %v1697
        %v2325 = vpop.f32.mrb[0].mxu0
        %v2326 = vadd.f32 %v2101, %v2325
        %v2327 = vpop.f32.mrb[0].mxu0
        %2328 = vmatprep.mubr.f32.mxu0 %v1707
        %2329 = vmatmul.mubr.f32.gmra.mrb[0].mxu0 %v1706
        %v2330 = vpop.f32.mrb[0].mxu0
        %v2331 = vadd.f32 %v2106, %v2330
        %v2332 = vpop.f32.mrb[0].mxu0
        %2333 = vmatprep.mubr.f32.mxu0 %v1716
        %2334 = vmatmul.mubr.f32.gmra.mrb[0].mxu0 %v1715
        %v2335 = vpop.f32.mrb[0].mxu0
        %v2336 = vadd.f32 %v2111, %v2335
        %v2337 = vpop.f32.mrb[0].mxu0
        %2338 = vmatprep.mubr.f32.mxu0 %v1725
        %2339 = vmatmul.mubr.f32.gmra.mrb[0].mxu0 %v1724
        %v2340 = vpop.f32.mrb[0].mxu0
        %v2341 = vadd.f32 %v2116, %v2340
        %v2342 = vpop.f32.mrb[0].mxu0
        %2343 = vmatprep.mubr.f32.mxu0 %v1734
        %2344 = vmatmul.mubr.f32.gmra.mrb[0].mxu0 %v1733
        %v2345 = vpop.f32.mrb[0].mxu0
        %v2346 = vadd.f32 %v2121, %v2345
        %v2347 = vpop.f32.mrb[0].mxu0
        %2348 = vmatprep.mubr.f32.mxu0 %v1743
        %2349 = vmatmul.mubr.f32.gmra.mrb[0].mxu0 %v1742
        %v2350 = vpop.f32.mrb[0].mxu0
        %v2351 = vadd.f32 %v2126, %v2350
        %v2352 = vpop.f32.mrb[0].mxu0
        %2353 = vmatprep.mubr.f32.mxu0 %v1752
        %2354 = vmatmul.mubr.f32.gmra.mrb[0].mxu0 %v1751
        %v2355 = vpop.f32.mrb[0].mxu0
        %v2356 = vadd.f32 %v2131, %v2355
        %v2357 = vpop.f32.mrb[0].mxu0
        %2358 = vdwg.mxu0
        %2359 = vmatprep.subr.mxu0 0.0
        %2360 = vmatpush1.msra.mxu0 %v1822
        %2361 = vmatprep.subr.mxu0 0.0
        %2362 = vmatpush1.msra.mxu0 %v1823
        %2363 = vmatprep.subr.mxu0 0.0
        %2364 = vmatpush1.msra.mxu0 %v1824
        %2365 = vmatprep.subr.mxu0 0.0
        %2366 = vmatpush1.msra.mxu0 %v1825
        %2367 = vmatprep.subr.mxu0 0.0
        %2368 = vmatpush1.msra.mxu0 %v1826
        %2369 = vmatprep.subr.mxu0 0.0
        %2370 = vmatpush1.msra.mxu0 %v1827
        %2371 = vmatprep.subr.mxu0 0.0
        %2372 = vmatpush1.msra.mxu0 %v1828
        %2373 = vmatprep.subr.mxu0 0.0
        %2374 = vmatpush1.msra.mxu0 %v1829
        %2375 = vmatprep.subr.mxu0 0.0
        %2376 = vmatpush1.msra.mxu0 %v1830
        %2377 = vmatprep.subr.mxu0 0.0
        %2378 = vmatpush1.msra.mxu0 %v1831
        %2379 = vmatprep.subr.mxu0 0.0
        %2380 = vmatpush1.msra.mxu0 %v1832
        %2381 = vmatprep.subr.mxu0 0.0
        %2382 = vmatpush1.msra.mxu0 %v1833
        %2383 = vmatprep.subr.mxu0 0.0
        %2384 = vmatpush1.msra.mxu0 %v1834
        %2385 = vmatprep.subr.mxu0 0.0
        %2386 = vmatpush1.msra.mxu0 %v1835
        %2387 = vmatprep.subr.mxu0 0.0
        %2388 = vmatpush1.msra.mxu0 %v1836
        %2389 = vmatprep.subr.mxu0 0.0
        %2390 = vmatpush1.msra.mxu0 %v1837
        %2391 = vmatprep.subr.mxu0 0.0
        %2392 = vmatpush1.msra.mxu0 %v1838
        %2393 = vmatprep.subr.mxu0 0.0
        %2394 = vmatpush1.msra.mxu0 %v1839
        %2395 = vmatprep.subr.mxu0 0.0
        %2396 = vmatpush1.msra.mxu0 %v1840
        %2397 = vmatprep.subr.mxu0 0.0
        %2398 = vmatpush1.msra.mxu0 %v1841
        %2399 = vmatprep.subr.mxu0 0.0
        %2400 = vmatpush1.msra.mxu0 %v1842
        %2401 = vmatprep.subr.mxu0 0.0
        %2402 = vmatpush1.msra.mxu0 %v1843
        %2403 = vmatprep.subr.mxu0 0.0
        %2404 = vmatpush1.msra.mxu0 %v1844
        %2405 = vmatprep.subr.mxu0 0.0
        %2406 = vmatpush1.msra.mxu0 %v1845
        %2407 = vmatprep.subr.mxu0 0.0
        %2408 = vmatpush1.msra.mxu0 %v1846
        %2409 = vmatprep.subr.mxu0 0.0
        %2410 = vmatpush1.msra.mxu0 %v1847
        %2411 = vmatprep.subr.mxu0 0.0
        %2412 = vmatpush1.msra.mxu0 %v1848
        %2413 = vmatprep.subr.mxu0 0.0
        %2414 = vmatpush1.msra.mxu0 %v1849
        %2415 = vmatprep.subr.mxu0 0.0
        %2416 = vmatpush1.msra.mxu0 %v1850
        %2417 = vmatprep.subr.mxu0 0.0
        %2418 = vmatpush1.msra.mxu0 %v1851
        %2419 = vmatprep.subr.mxu0 0.0
        %2420 = vmatpush1.msra.mxu0 %v1852
        %2421 = vmatprep.subr.mxu0 0.0
        %2422 = vmatpush1.msra.mxu0 %v1853
        %2423 = vmatprep.mubr.f32.mxu0 %v1475
        %2424 = vmatmul.mubr.f32.gmra.mrb[0].mxu0 %v1474
        %v2425 = vpop.f32.mrb[0].mxu0
        %v2426 = vadd.f32 %v2201, %v2425
        %v2427 = vpop.f32.mrb[0].mxu0
        %2428 = vmatprep.mubr.f32.mxu0 %v1484
        %2429 = vmatmul.mubr.f32.gmra.mrb[0].mxu0 %v1483
        %v2430 = vpop.f32.mrb[0].mxu0
        %v2431 = vadd.f32 %v2206, %v2430
        %v2432 = vpop.f32.mrb[0].mxu0
        %2433 = vmatprep.mubr.f32.mxu0 %v1493
        %2434 = vmatmul.mubr.f32.gmra.mrb[0].mxu0 %v1492
        %v2435 = vpop.f32.mrb[0].mxu0
        %v2436 = vadd.f32 %v2211, %v2435
        %v2437 = vpop.f32.mrb[0].mxu0
        %2438 = vmatprep.mubr.f32.mxu0 %v1502
        %2439 = vmatmul.mubr.f32.gmra.mrb[0].mxu0 %v1501
        %v2440 = vpop.f32.mrb[0].mxu0
        %v2441 = vadd.f32 %v2216, %v2440
        %v2442 = vpop.f32.mrb[0].mxu0
        %2443 = vmatprep.mubr.f32.mxu0 %v1511
        %2444 = vmatmul.mubr.f32.gmra.mrb[0].mxu0 %v1510
        %v2445 = vpop.f32.mrb[0].mxu0
        %v2446 = vadd.f32 %v2221, %v2445
        %v2447 = vpop.f32.mrb[0].mxu0
        %2448 = vmatprep.mubr.f32.mxu0 %v1520
        %2449 = vmatmul.mubr.f32.gmra.mrb[0].mxu0 %v1519
        %v2450 = vpop.f32.mrb[0].mxu0
        %v2451 = vadd.f32 %v2226, %v2450
        %v2452 = vpop.f32.mrb[0].mxu0
        %2453 = vmatprep.mubr.f32.mxu0 %v1529
        %2454 = vmatmul.mubr.f32.gmra.mrb[0].mxu0 %v1528
        %v2455 = vpop.f32.mrb[0].mxu0
        %v2456 = vadd.f32 %v2231, %v2455
        %v2457 = vpop.f32.mrb[0].mxu0
        %2458 = vmatprep.mubr.f32.mxu0 %v1538
        %2459 = vmatmul.mubr.f32.gmra.mrb[0].mxu0 %v1537
        %v2460 = vpop.f32.mrb[0].mxu0
        %v2461 = vadd.f32 %v2236, %v2460
        %v2462 = vpop.f32.mrb[0].mxu0
        %2463 = vmatprep.mubr.f32.mxu0 %v1547
        %2464 = vmatmul.mubr.f32.gmra.mrb[0].mxu0 %v1546
        %v2465 = vpop.f32.mrb[0].mxu0
        %v2466 = vadd.f32 %v2241, %v2465
        %v2467 = vpop.f32.mrb[0].mxu0
        %2468 = vmatprep.mubr.f32.mxu0 %v1556
        %2469 = vmatmul.mubr.f32.gmra.mrb[0].mxu0 %v1555
        %v2470 = vpop.f32.mrb[0].mxu0
        %v2471 = vadd.f32 %v2246, %v2470
        %v2472 = vpop.f32.mrb[0].mxu0
        %2473 = vmatprep.mubr.f32.mxu0 %v1565
        %2474 = vmatmul.mubr.f32.gmra.mrb[0].mxu0 %v1564
        %v2475 = vpop.f32.mrb[0].mxu0
        %v2476 = vadd.f32 %v2251, %v2475
        %v2477 = vpop.f32.mrb[0].mxu0
        %2478 = vmatprep.mubr.f32.mxu0 %v1574
        %2479 = vmatmul.mubr.f32.gmra.mrb[0].mxu0 %v1573
        %v2480 = vpop.f32.mrb[0].mxu0
        %v2481 = vadd.f32 %v2256, %v2480
        %v2482 = vpop.f32.mrb[0].mxu0
        %2483 = vmatprep.mubr.f32.mxu0 %v1583
        %2484 = vmatmul.mubr.f32.gmra.mrb[0].mxu0 %v1582
        %v2485 = vpop.f32.mrb[0].mxu0
        %v2486 = vadd.f32 %v2261, %v2485
        %v2487 = vpop.f32.mrb[0].mxu0
        %2488 = vmatprep.mubr.f32.mxu0 %v1592
        %2489 = vmatmul.mubr.f32.gmra.mrb[0].mxu0 %v1591
        %v2490 = vpop.f32.mrb[0].mxu0
        %v2491 = vadd.f32 %v2266, %v2490
        %v2492 = vpop.f32.mrb[0].mxu0
        %2493 = vmatprep.mubr.f32.mxu0 %v1601
        %2494 = vmatmul.mubr.f32.gmra.mrb[0].mxu0 %v1600
        %v2495 = vpop.f32.mrb[0].mxu0
        %v2496 = vadd.f32 %v2271, %v2495
        %v2497 = vpop.f32.mrb[0].mxu0
        %2498 = vmatprep.mubr.f32.mxu0 %v1610
        %2499 = vmatmul.mubr.f32.gmra.mrb[0].mxu0 %v1609
        %v2500 = vpop.f32.mrb[0].mxu0
        %v2501 = vadd.f32 %v2276, %v2500
        %v2502 = vpop.f32.mrb[0].mxu0
        %2503 = vmatprep.mubr.f32.mxu0 %v1619
        %2504 = vmatmul.mubr.f32.gmra.mrb[0].mxu0 %v1618
        %v2505 = vpop.f32.mrb[0].mxu0
        %v2506 = vadd.f32 %v2281, %v2505
        %v2507 = vpop.f32.mrb[0].mxu0
        %2508 = vmatprep.mubr.f32.mxu0 %v1628
        %2509 = vmatmul.mubr.f32.gmra.mrb[0].mxu0 %v1627
        %v2510 = vpop.f32.mrb[0].mxu0
        %v2511 = vadd.f32 %v2286, %v2510
        %v2512 = vpop.f32.mrb[0].mxu0
        %2513 = vmatprep.mubr.f32.mxu0 %v1637
        %2514 = vmatmul.mubr.f32.gmra.mrb[0].mxu0 %v1636
        %v2515 = vpop.f32.mrb[0].mxu0
        %v2516 = vadd.f32 %v2291, %v2515
        %v2517 = vpop.f32.mrb[0].mxu0
        %2518 = vmatprep.mubr.f32.mxu0 %v1646
        %2519 = vmatmul.mubr.f32.gmra.mrb[0].mxu0 %v1645
        %v2520 = vpop.f32.mrb[0].mxu0
        %v2521 = vadd.f32 %v2296, %v2520
        %v2522 = vpop.f32.mrb[0].mxu0
        %2523 = vmatprep.mubr.f32.mxu0 %v1655
        %2524 = vmatmul.mubr.f32.gmra.mrb[0].mxu0 %v1654
        %v2525 = vpop.f32.mrb[0].mxu0
        %v2526 = vadd.f32 %v2301, %v2525
        %v2527 = vpop.f32.mrb[0].mxu0
        %2528 = vmatprep.mubr.f32.mxu0 %v1664
        %2529 = vmatmul.mubr.f32.gmra.mrb[0].mxu0 %v1663
        %v2530 = vpop.f32.mrb[0].mxu0
        %v2531 = vadd.f32 %v2306, %v2530
        %v2532 = vpop.f32.mrb[0].mxu0
        %2533 = vmatprep.mubr.f32.mxu0 %v1673
        %2534 = vmatmul.mubr.f32.gmra.mrb[0].mxu0 %v1672
        %v2535 = vpop.f32.mrb[0].mxu0
        %v2536 = vadd.f32 %v2311, %v2535
        %v2537 = vpop.f32.mrb[0].mxu0
        %2538 = vmatprep.mubr.f32.mxu0 %v1682
        %2539 = vmatmul.mubr.f32.gmra.mrb[0].mxu0 %v1681
        %v2540 = vpop.f32.mrb[0].mxu0
        %v2541 = vadd.f32 %v2316, %v2540
        %v2542 = vpop.f32.mrb[0].mxu0
        %2543 = vmatprep.mubr.f32.mxu0 %v1691
        %2544 = vmatmul.mubr.f32.gmra.mrb[0].mxu0 %v1690
        %v2545 = vpop.f32.mrb[0].mxu0
        %v2546 = vadd.f32 %v2321, %v2545
        %v2547 = vpop.f32.mrb[0].mxu0
        %2548 = vmatprep.mubr.f32.mxu0 %v1700
        %2549 = vmatmul.mubr.f32.gmra.mrb[0].mxu0 %v1699
        %v2550 = vpop.f32.mrb[0].mxu0
        %v2551 = vadd.f32 %v2326, %v2550
        %v2552 = vpop.f32.mrb[0].mxu0
        %2553 = vmatprep.mubr.f32.mxu0 %v1709
        %2554 = vmatmul.mubr.f32.gmra.mrb[0].mxu0 %v1708
        %v2555 = vpop.f32.mrb[0].mxu0
        %v2556 = vadd.f32 %v2331, %v2555
        %v2557 = vpop.f32.mrb[0].mxu0
        %2558 = vmatprep.mubr.f32.mxu0 %v1718
        %2559 = vmatmul.mubr.f32.gmra.mrb[0].mxu0 %v1717
        %v2560 = vpop.f32.mrb[0].mxu0
        %v2561 = vadd.f32 %v2336, %v2560
        %v2562 = vpop.f32.mrb[0].mxu0
        %2563 = vmatprep.mubr.f32.mxu0 %v1727
        %2564 = vmatmul.mubr.f32.gmra.mrb[0].mxu0 %v1726
        %v2565 = vpop.f32.mrb[0].mxu0
        %v2566 = vadd.f32 %v2341, %v2565
        %v2567 = vpop.f32.mrb[0].mxu0
        %2568 = vmatprep.mubr.f32.mxu0 %v1736
        %2569 = vmatmul.mubr.f32.gmra.mrb[0].mxu0 %v1735
        %v2570 = vpop.f32.mrb[0].mxu0
        %v2571 = vadd.f32 %v2346, %v2570
        %v2572 = vpop.f32.mrb[0].mxu0
        %2573 = vmatprep.mubr.f32.mxu0 %v1745
        %2574 = vmatmul.mubr.f32.gmra.mrb[0].mxu0 %v1744
        %v2575 = vpop.f32.mrb[0].mxu0
        %v2576 = vadd.f32 %v2351, %v2575
        %v2577 = vpop.f32.mrb[0].mxu0
        %2578 = vmatprep.mubr.f32.mxu0 %v1754
        %2579 = vmatmul.mubr.f32.gmra.mrb[0].mxu0 %v1753
        %v2580 = vpop.f32.mrb[0].mxu0
        %v2581 = vadd.f32 %v2356, %v2580
        %v2582 = vpop.f32.mrb[0].mxu0
        %2583 = vdwg.mxu0
        %2584 = vmatprep.subr.mxu0 0.0
        %2585 = vmatpush1.msra.mxu0 %v1854
        %2586 = vmatprep.subr.mxu0 0.0
        %2587 = vmatpush1.msra.mxu0 %v1855
        %2588 = vmatprep.subr.mxu0 0.0
        %2589 = vmatpush1.msra.mxu0 %v1856
        %2590 = vmatprep.subr.mxu0 0.0
        %2591 = vmatpush1.msra.mxu0 %v1857
        %2592 = vmatprep.subr.mxu0 0.0
        %2593 = vmatpush1.msra.mxu0 %v1858
        %2594 = vmatprep.subr.mxu0 0.0
        %2595 = vmatpush1.msra.mxu0 %v1859
        %2596 = vmatprep.subr.mxu0 0.0
        %2597 = vmatpush1.msra.mxu0 %v1860
        %2598 = vmatprep.subr.mxu0 0.0
        %2599 = vmatpush1.msra.mxu0 %v1861
        %2600 = vmatprep.subr.mxu0 0.0
        %2601 = vmatpush1.msra.mxu0 %v1862
        %2602 = vmatprep.subr.mxu0 0.0
        %2603 = vmatpush1.msra.mxu0 %v1863
        %2604 = vmatprep.subr.mxu0 0.0
        %2605 = vmatpush1.msra.mxu0 %v1864
        %2606 = vmatprep.subr.mxu0 0.0
        %2607 = vmatpush1.msra.mxu0 %v1865
        %2608 = vmatprep.subr.mxu0 0.0
        %2609 = vmatpush1.msra.mxu0 %v1866
        %2610 = vmatprep.subr.mxu0 0.0
        %2611 = vmatpush1.msra.mxu0 %v1867
        %2612 = vmatprep.subr.mxu0 0.0
        %2613 = vmatpush1.msra.mxu0 %v1868
        %2614 = vmatprep.subr.mxu0 0.0
        %2615 = vmatpush1.msra.mxu0 %v1869
        %2616 = vmatprep.subr.mxu0 0.0
        %2617 = vmatpush1.msra.mxu0 %v1870
        %2618 = vmatprep.subr.mxu0 0.0
        %2619 = vmatpush1.msra.mxu0 %v1871
        %2620 = vmatprep.subr.mxu0 0.0
        %2621 = vmatpush1.msra.mxu0 %v1872
        %2622 = vmatprep.subr.mxu0 0.0
        %2623 = vmatpush1.msra.mxu0 %v1873
        %2624 = vmatprep.subr.mxu0 0.0
        %2625 = vmatpush1.msra.mxu0 %v1874
        %2626 = vmatprep.subr.mxu0 0.0
        %2627 = vmatpush1.msra.mxu0 %v1875
        %2628 = vmatprep.subr.mxu0 0.0
        %2629 = vmatpush1.msra.mxu0 %v1876
        %2630 = vmatprep.subr.mxu0 0.0
        %2631 = vmatpush1.msra.mxu0 %v1877
        %2632 = vmatprep.subr.mxu0 0.0
        %2633 = vmatpush1.msra.mxu0 %v1878
        %2634 = vmatprep.subr.mxu0 0.0
        %2635 = vmatpush1.msra.mxu0 %v1879
        %2636 = vmatprep.subr.mxu0 0.0
        %2637 = vmatpush1.msra.mxu0 %v1880
        %2638 = vmatprep.subr.mxu0 0.0
        %2639 = vmatpush1.msra.mxu0 %v1881
        %2640 = vmatprep.subr.mxu0 0.0
        %2641 = vmatpush1.msra.mxu0 %v1882
        %2642 = vmatprep.subr.mxu0 0.0
        %2643 = vmatpush1.msra.mxu0 %v1883
        %2644 = vmatprep.subr.mxu0 0.0
        %2645 = vmatpush1.msra.mxu0 %v1884
        %2646 = vmatprep.subr.mxu0 0.0
        %2647 = vmatpush1.msra.mxu0 %v1885
        %2648 = vmatprep.mubr.f32.mxu0 %v1477
        %2649 = vmatmul.mubr.f32.gmra.mrb[0].mxu0 %v1476
        %v2650 = vpop.f32.mrb[0].mxu0
        %v2651 = vadd.f32 %v2426, %v2650
        %v2652 = vpop.f32.mrb[0].mxu0
        %2653 = vmatprep.mubr.f32.mxu0 %v1486
        %2654 = vmatmul.mubr.f32.gmra.mrb[0].mxu0 %v1485
        %v2655 = vpop.f32.mrb[0].mxu0
        %v2656 = vadd.f32 %v2431, %v2655
        %v2657 = vpop.f32.mrb[0].mxu0
        %2658 = vmatprep.mubr.f32.mxu0 %v1495
        %2659 = vmatmul.mubr.f32.gmra.mrb[0].mxu0 %v1494
        %v2660 = vpop.f32.mrb[0].mxu0
        %v2661 = vadd.f32 %v2436, %v2660
        %v2662 = vpop.f32.mrb[0].mxu0
        %2663 = vmatprep.mubr.f32.mxu0 %v1504
        %2664 = vmatmul.mubr.f32.gmra.mrb[0].mxu0 %v1503
        %v2665 = vpop.f32.mrb[0].mxu0
        %v2666 = vadd.f32 %v2441, %v2665
        %v2667 = vpop.f32.mrb[0].mxu0
        %2668 = vmatprep.mubr.f32.mxu0 %v1513
        %2669 = vmatmul.mubr.f32.gmra.mrb[0].mxu0 %v1512
        %v2670 = vpop.f32.mrb[0].mxu0
        %v2671 = vadd.f32 %v2446, %v2670
        %v2672 = vpop.f32.mrb[0].mxu0
        %2673 = vmatprep.mubr.f32.mxu0 %v1522
        %2674 = vmatmul.mubr.f32.gmra.mrb[0].mxu0 %v1521
        %v2675 = vpop.f32.mrb[0].mxu0
        %v2676 = vadd.f32 %v2451, %v2675
        %v2677 = vpop.f32.mrb[0].mxu0
        %2678 = vmatprep.mubr.f32.mxu0 %v1531
        %2679 = vmatmul.mubr.f32.gmra.mrb[0].mxu0 %v1530
        %v2680 = vpop.f32.mrb[0].mxu0
        %v2681 = vadd.f32 %v2456, %v2680
        %v2682 = vpop.f32.mrb[0].mxu0
        %2683 = vmatprep.mubr.f32.mxu0 %v1540
        %2684 = vmatmul.mubr.f32.gmra.mrb[0].mxu0 %v1539
        %v2685 = vpop.f32.mrb[0].mxu0
        %v2686 = vadd.f32 %v2461, %v2685
        %v2687 = vpop.f32.mrb[0].mxu0
        %2688 = vmatprep.mubr.f32.mxu0 %v1549
        %2689 = vmatmul.mubr.f32.gmra.mrb[0].mxu0 %v1548
        %v2690 = vpop.f32.mrb[0].mxu0
        %v2691 = vadd.f32 %v2466, %v2690
        %v2692 = vpop.f32.mrb[0].mxu0
        %2693 = vmatprep.mubr.f32.mxu0 %v1558
        %2694 = vmatmul.mubr.f32.gmra.mrb[0].mxu0 %v1557
        %v2695 = vpop.f32.mrb[0].mxu0
        %v2696 = vadd.f32 %v2471, %v2695
        %v2697 = vpop.f32.mrb[0].mxu0
        %2698 = vmatprep.mubr.f32.mxu0 %v1567
        %2699 = vmatmul.mubr.f32.gmra.mrb[0].mxu0 %v1566
        %v2700 = vpop.f32.mrb[0].mxu0
        %v2701 = vadd.f32 %v2476, %v2700
        %v2702 = vpop.f32.mrb[0].mxu0
        %2703 = vmatprep.mubr.f32.mxu0 %v1576
        %2704 = vmatmul.mubr.f32.gmra.mrb[0].mxu0 %v1575
        %v2705 = vpop.f32.mrb[0].mxu0
        %v2706 = vadd.f32 %v2481, %v2705
        %v2707 = vpop.f32.mrb[0].mxu0
        %2708 = vmatprep.mubr.f32.mxu0 %v1585
        %2709 = vmatmul.mubr.f32.gmra.mrb[0].mxu0 %v1584
        %v2710 = vpop.f32.mrb[0].mxu0
        %v2711 = vadd.f32 %v2486, %v2710
        %v2712 = vpop.f32.mrb[0].mxu0
        %2713 = vmatprep.mubr.f32.mxu0 %v1594
        %2714 = vmatmul.mubr.f32.gmra.mrb[0].mxu0 %v1593
        %v2715 = vpop.f32.mrb[0].mxu0
        %v2716 = vadd.f32 %v2491, %v2715
        %v2717 = vpop.f32.mrb[0].mxu0
        %2718 = vmatprep.mubr.f32.mxu0 %v1603
        %2719 = vmatmul.mubr.f32.gmra.mrb[0].mxu0 %v1602
        %v2720 = vpop.f32.mrb[0].mxu0
        %v2721 = vadd.f32 %v2496, %v2720
        %v2722 = vpop.f32.mrb[0].mxu0
        %2723 = vmatprep.mubr.f32.mxu0 %v1612
        %2724 = vmatmul.mubr.f32.gmra.mrb[0].mxu0 %v1611
        %v2725 = vpop.f32.mrb[0].mxu0
        %v2726 = vadd.f32 %v2501, %v2725
        %v2727 = vpop.f32.mrb[0].mxu0
        %2728 = vmatprep.mubr.f32.mxu0 %v1621
        %2729 = vmatmul.mubr.f32.gmra.mrb[0].mxu0 %v1620
        %v2730 = vpop.f32.mrb[0].mxu0
        %v2731 = vadd.f32 %v2506, %v2730
        %v2732 = vpop.f32.mrb[0].mxu0
        %2733 = vmatprep.mubr.f32.mxu0 %v1630
        %2734 = vmatmul.mubr.f32.gmra.mrb[0].mxu0 %v1629
        %v2735 = vpop.f32.mrb[0].mxu0
        %v2736 = vadd.f32 %v2511, %v2735
        %v2737 = vpop.f32.mrb[0].mxu0
        %2738 = vmatprep.mubr.f32.mxu0 %v1639
        %2739 = vmatmul.mubr.f32.gmra.mrb[0].mxu0 %v1638
        %v2740 = vpop.f32.mrb[0].mxu0
        %v2741 = vadd.f32 %v2516, %v2740
        %v2742 = vpop.f32.mrb[0].mxu0
        %2743 = vmatprep.mubr.f32.mxu0 %v1648
        %2744 = vmatmul.mubr.f32.gmra.mrb[0].mxu0 %v1647
        %v2745 = vpop.f32.mrb[0].mxu0
        %v2746 = vadd.f32 %v2521, %v2745
        %v2747 = vpop.f32.mrb[0].mxu0
        %2748 = vmatprep.mubr.f32.mxu0 %v1657
        %2749 = vmatmul.mubr.f32.gmra.mrb[0].mxu0 %v1656
        %v2750 = vpop.f32.mrb[0].mxu0
        %v2751 = vadd.f32 %v2526, %v2750
        %v2752 = vpop.f32.mrb[0].mxu0
        %2753 = vmatprep.mubr.f32.mxu0 %v1666
        %2754 = vmatmul.mubr.f32.gmra.mrb[0].mxu0 %v1665
        %v2755 = vpop.f32.mrb[0].mxu0
        %v2756 = vadd.f32 %v2531, %v2755
        %v2757 = vpop.f32.mrb[0].mxu0
        %2758 = vmatprep.mubr.f32.mxu0 %v1675
        %2759 = vmatmul.mubr.f32.gmra.mrb[0].mxu0 %v1674
        %v2760 = vpop.f32.mrb[0].mxu0
        %v2761 = vadd.f32 %v2536, %v2760
        %v2762 = vpop.f32.mrb[0].mxu0
        %2763 = vmatprep.mubr.f32.mxu0 %v1684
        %2764 = vmatmul.mubr.f32.gmra.mrb[0].mxu0 %v1683
        %v2765 = vpop.f32.mrb[0].mxu0
        %v2766 = vadd.f32 %v2541, %v2765
        %v2767 = vpop.f32.mrb[0].mxu0
        %2768 = vmatprep.mubr.f32.mxu0 %v1693
        %2769 = vmatmul.mubr.f32.gmra.mrb[0].mxu0 %v1692
        %v2770 = vpop.f32.mrb[0].mxu0
        %v2771 = vadd.f32 %v2546, %v2770
        %v2772 = vpop.f32.mrb[0].mxu0
        %2773 = vmatprep.mubr.f32.mxu0 %v1702
        %2774 = vmatmul.mubr.f32.gmra.mrb[0].mxu0 %v1701
        %v2775 = vpop.f32.mrb[0].mxu0
        %v2776 = vadd.f32 %v2551, %v2775
        %v2777 = vpop.f32.mrb[0].mxu0
        %2778 = vmatprep.mubr.f32.mxu0 %v1711
        %2779 = vmatmul.mubr.f32.gmra.mrb[0].mxu0 %v1710
        %v2780 = vpop.f32.mrb[0].mxu0
        %v2781 = vadd.f32 %v2556, %v2780
        %v2782 = vpop.f32.mrb[0].mxu0
        %2783 = vmatprep.mubr.f32.mxu0 %v1720
        %2784 = vmatmul.mubr.f32.gmra.mrb[0].mxu0 %v1719
        %v2785 = vpop.f32.mrb[0].mxu0
        %v2786 = vadd.f32 %v2561, %v2785
        %v2787 = vpop.f32.mrb[0].mxu0
        %2788 = vmatprep.mubr.f32.mxu0 %v1729
        %2789 = vmatmul.mubr.f32.gmra.mrb[0].mxu0 %v1728
        %v2790 = vpop.f32.mrb[0].mxu0
        %v2791 = vadd.f32 %v2566, %v2790
        %v2792 = vpop.f32.mrb[0].mxu0
        %2793 = vmatprep.mubr.f32.mxu0 %v1738
        %2794 = vmatmul.mubr.f32.gmra.mrb[0].mxu0 %v1737
        %v2795 = vpop.f32.mrb[0].mxu0
        %v2796 = vadd.f32 %v2571, %v2795
        %v2797 = vpop.f32.mrb[0].mxu0
        %2798 = vmatprep.mubr.f32.mxu0 %v1747
        %2799 = vmatmul.mubr.f32.gmra.mrb[0].mxu0 %v1746
        %v2800 = vpop.f32.mrb[0].mxu0
        %v2801 = vadd.f32 %v2576, %v2800
        %v2802 = vpop.f32.mrb[0].mxu0
        %2803 = vmatprep.mubr.f32.mxu0 %v1756
        %2804 = vmatmul.mubr.f32.gmra.mrb[0].mxu0 %v1755
        %v2805 = vpop.f32.mrb[0].mxu0
        %v2806 = vadd.f32 %v2581, %v2805
        %v2807 = vpop.f32.mrb[0].mxu0
        %2808 = vdwg.mxu0
        %2809 = vmatprep.subr.mxu0 0.0
        %2810 = vmatpush1.msra.mxu0 %v1886
        %2811 = vmatprep.subr.mxu0 0.0
        %2812 = vmatpush1.msra.mxu0 %v1887
        %2813 = vmatprep.subr.mxu0 0.0
        %2814 = vmatpush1.msra.mxu0 %v1888
        %2815 = vmatprep.subr.mxu0 0.0
        %2816 = vmatpush1.msra.mxu0 %v1889
        %2817 = vmatprep.subr.mxu0 0.0
        %2818 = vmatpush1.msra.mxu0 %v1890
        %2819 = vmatprep.subr.mxu0 0.0
        %2820 = vmatpush1.msra.mxu0 %v1891
        %2821 = vmatprep.subr.mxu0 0.0
        %2822 = vmatpush1.msra.mxu0 %v1892
        %2823 = vmatprep.subr.mxu0 0.0
        %2824 = vmatpush1.msra.mxu0 %v1893
        %2825 = vmatprep.subr.mxu0 0.0
        %2826 = vmatpush1.msra.mxu0 %v1894
        %2827 = vmatprep.subr.mxu0 0.0
        %2828 = vmatpush1.msra.mxu0 %v1895
        %2829 = vmatprep.subr.mxu0 0.0
        %2830 = vmatpush1.msra.mxu0 %v1896
        %2831 = vmatprep.subr.mxu0 0.0
        %2832 = vmatpush1.msra.mxu0 %v1897
        %2833 = vmatprep.subr.mxu0 0.0
        %2834 = vmatpush1.msra.mxu0 %v1898
        %2835 = vmatprep.subr.mxu0 0.0
        %2836 = vmatpush1.msra.mxu0 %v1899
        %2837 = vmatprep.subr.mxu0 0.0
        %2838 = vmatpush1.msra.mxu0 %v1900
        %2839 = vmatprep.subr.mxu0 0.0
        %2840 = vmatpush1.msra.mxu0 %v1901
        %2841 = vmatprep.subr.mxu0 0.0
        %2842 = vmatpush1.msra.mxu0 0.0
        %2843 = vmatprep.subr.mxu0 0.0
        %2844 = vmatpush1.msra.mxu0 0.0
        %2845 = vmatprep.subr.mxu0 0.0
        %2846 = vmatpush1.msra.mxu0 0.0
        %2847 = vmatprep.subr.mxu0 0.0
        %2848 = vmatpush1.msra.mxu0 0.0
        %2849 = vmatprep.subr.mxu0 0.0
        %2850 = vmatpush1.msra.mxu0 0.0
        %2851 = vmatprep.subr.mxu0 0.0
        %2852 = vmatpush1.msra.mxu0 0.0
        %2853 = vmatprep.subr.mxu0 0.0
        %2854 = vmatpush1.msra.mxu0 0.0
        %2855 = vmatprep.subr.mxu0 0.0
        %2856 = vmatpush1.msra.mxu0 0.0
        %2857 = vmatprep.subr.mxu0 0.0
        %2858 = vmatpush1.msra.mxu0 0.0
        %2859 = vmatprep.subr.mxu0 0.0
        %2860 = vmatpush1.msra.mxu0 0.0
        %2861 = vmatprep.subr.mxu0 0.0
        %2862 = vmatpush1.msra.mxu0 0.0
        %2863 = vmatprep.subr.mxu0 0.0
        %2864 = vmatpush1.msra.mxu0 0.0
        %2865 = vmatprep.subr.mxu0 0.0
        %2866 = vmatpush1.msra.mxu0 0.0
        %2867 = vmatprep.subr.mxu0 0.0
        %2868 = vmatpush1.msra.mxu0 0.0
        %2869 = vmatprep.subr.mxu0 0.0
        %2870 = vmatpush1.msra.mxu0 0.0
        %2871 = vmatprep.subr.mxu0 0.0
        %2872 = vmatpush1.msra.mxu0 0.0
        %2873 = vmatprep.mubr.f32.mxu0 0.0
        %2874 = vmatmul.mubr.f32.gmra.mrb[0].mxu0 %v1478
        %v2875 = vpop.f32.mrb[0].mxu0
        %v2876 = vadd.f32 %v2651, %v2875
        %v2877 = vpop.f32.mrb[0].mxu0
        %2878 = vmatprep.mubr.f32.mxu0 0.0
        %2879 = vmatmul.mubr.f32.gmra.mrb[0].mxu0 %v1487
        %v2880 = vpop.f32.mrb[0].mxu0
        %v2881 = vadd.f32 %v2656, %v2880
        %v2882 = vpop.f32.mrb[0].mxu0
        %2883 = vmatprep.mubr.f32.mxu0 0.0
        %2884 = vmatmul.mubr.f32.gmra.mrb[0].mxu0 %v1496
        %v2885 = vpop.f32.mrb[0].mxu0
        %v2886 = vadd.f32 %v2661, %v2885
        %v2887 = vpop.f32.mrb[0].mxu0
        %2888 = vmatprep.mubr.f32.mxu0 0.0
        %2889 = vmatmul.mubr.f32.gmra.mrb[0].mxu0 %v1505
        %v2890 = vpop.f32.mrb[0].mxu0
        %v2891 = vadd.f32 %v2666, %v2890
        %v2892 = vpop.f32.mrb[0].mxu0
        %2893 = vmatprep.mubr.f32.mxu0 0.0
        %2894 = vmatmul.mubr.f32.gmra.mrb[0].mxu0 %v1514
        %v2895 = vpop.f32.mrb[0].mxu0
        %v2896 = vadd.f32 %v2671, %v2895
        %v2897 = vpop.f32.mrb[0].mxu0
        %2898 = vmatprep.mubr.f32.mxu0 0.0
        %2899 = vmatmul.mubr.f32.gmra.mrb[0].mxu0 %v1523
        %v2900 = vpop.f32.mrb[0].mxu0
        %v2901 = vadd.f32 %v2676, %v2900
        %v2902 = vpop.f32.mrb[0].mxu0
        %2903 = vmatprep.mubr.f32.mxu0 0.0
        %2904 = vmatmul.mubr.f32.gmra.mrb[0].mxu0 %v1532
        %v2905 = vpop.f32.mrb[0].mxu0
        %v2906 = vadd.f32 %v2681, %v2905
        %v2907 = vpop.f32.mrb[0].mxu0
        %2908 = vmatprep.mubr.f32.mxu0 0.0
        %2909 = vmatmul.mubr.f32.gmra.mrb[0].mxu0 %v1541
        %v2910 = vpop.f32.mrb[0].mxu0
        %v2911 = vadd.f32 %v2686, %v2910
        %v2912 = vpop.f32.mrb[0].mxu0
        %2913 = vmatprep.mubr.f32.mxu0 0.0
        %2914 = vmatmul.mubr.f32.gmra.mrb[0].mxu0 %v1550
        %v2915 = vpop.f32.mrb[0].mxu0
        %v2916 = vadd.f32 %v2691, %v2915
        %v2917 = vpop.f32.mrb[0].mxu0
        %2918 = vmatprep.mubr.f32.mxu0 0.0
        %2919 = vmatmul.mubr.f32.gmra.mrb[0].mxu0 %v1559
        %v2920 = vpop.f32.mrb[0].mxu0
        %v2921 = vadd.f32 %v2696, %v2920
        %v2922 = vpop.f32.mrb[0].mxu0
        %2923 = vmatprep.mubr.f32.mxu0 0.0
        %2924 = vmatmul.mubr.f32.gmra.mrb[0].mxu0 %v1568
        %v2925 = vpop.f32.mrb[0].mxu0
        %v2926 = vadd.f32 %v2701, %v2925
        %v2927 = vpop.f32.mrb[0].mxu0
        %2928 = vmatprep.mubr.f32.mxu0 0.0
        %2929 = vmatmul.mubr.f32.gmra.mrb[0].mxu0 %v1577
        %v2930 = vpop.f32.mrb[0].mxu0
        %v2931 = vadd.f32 %v2706, %v2930
        %v2932 = vpop.f32.mrb[0].mxu0
        %2933 = vmatprep.mubr.f32.mxu0 0.0
        %2934 = vmatmul.mubr.f32.gmra.mrb[0].mxu0 %v1586
        %v2935 = vpop.f32.mrb[0].mxu0
        %v2936 = vadd.f32 %v2711, %v2935
        %v2937 = vpop.f32.mrb[0].mxu0
        %2938 = vmatprep.mubr.f32.mxu0 0.0
        %2939 = vmatmul.mubr.f32.gmra.mrb[0].mxu0 %v1595
        %v2940 = vpop.f32.mrb[0].mxu0
        %v2941 = vadd.f32 %v2716, %v2940
        %v2942 = vpop.f32.mrb[0].mxu0
        %2943 = vmatprep.mubr.f32.mxu0 0.0
        %2944 = vmatmul.mubr.f32.gmra.mrb[0].mxu0 %v1604
        %v2945 = vpop.f32.mrb[0].mxu0
        %v2946 = vadd.f32 %v2721, %v2945
        %v2947 = vpop.f32.mrb[0].mxu0
        %2948 = vmatprep.mubr.f32.mxu0 0.0
        %2949 = vmatmul.mubr.f32.gmra.mrb[0].mxu0 %v1613
        %v2950 = vpop.f32.mrb[0].mxu0
        %v2951 = vadd.f32 %v2726, %v2950
        %v2952 = vpop.f32.mrb[0].mxu0
        %2953 = vmatprep.mubr.f32.mxu0 0.0
        %2954 = vmatmul.mubr.f32.gmra.mrb[0].mxu0 %v1622
        %v2955 = vpop.f32.mrb[0].mxu0
        %v2956 = vadd.f32 %v2731, %v2955
        %v2957 = vpop.f32.mrb[0].mxu0
        %2958 = vmatprep.mubr.f32.mxu0 0.0
        %2959 = vmatmul.mubr.f32.gmra.mrb[0].mxu0 %v1631
        %v2960 = vpop.f32.mrb[0].mxu0
        %v2961 = vadd.f32 %v2736, %v2960
        %v2962 = vpop.f32.mrb[0].mxu0
        %2963 = vmatprep.mubr.f32.mxu0 0.0
        %2964 = vmatmul.mubr.f32.gmra.mrb[0].mxu0 %v1640
        %v2965 = vpop.f32.mrb[0].mxu0
        %v2966 = vadd.f32 %v2741, %v2965
        %v2967 = vpop.f32.mrb[0].mxu0
        %2968 = vmatprep.mubr.f32.mxu0 0.0
        %2969 = vmatmul.mubr.f32.gmra.mrb[0].mxu0 %v1649
        %v2970 = vpop.f32.mrb[0].mxu0
        %v2971 = vadd.f32 %v2746, %v2970
        %v2972 = vpop.f32.mrb[0].mxu0
        %2973 = vmatprep.mubr.f32.mxu0 0.0
        %2974 = vmatmul.mubr.f32.gmra.mrb[0].mxu0 %v1658
        %v2975 = vpop.f32.mrb[0].mxu0
        %v2976 = vadd.f32 %v2751, %v2975
        %v2977 = vpop.f32.mrb[0].mxu0
        %2978 = vmatprep.mubr.f32.mxu0 0.0
        %2979 = vmatmul.mubr.f32.gmra.mrb[0].mxu0 %v1667
        %v2980 = vpop.f32.mrb[0].mxu0
        %v2981 = vadd.f32 %v2756, %v2980
        %v2982 = vpop.f32.mrb[0].mxu0
        %2983 = vmatprep.mubr.f32.mxu0 0.0
        %2984 = vmatmul.mubr.f32.gmra.mrb[0].mxu0 %v1676
        %v2985 = vpop.f32.mrb[0].mxu0
        %v2986 = vadd.f32 %v2761, %v2985
        %v2987 = vpop.f32.mrb[0].mxu0
        %2988 = vmatprep.mubr.f32.mxu0 0.0
        %2989 = vmatmul.mubr.f32.gmra.mrb[0].mxu0 %v1685
        %v2990 = vpop.f32.mrb[0].mxu0
        %v2991 = vadd.f32 %v2766, %v2990
        %v2992 = vpop.f32.mrb[0].mxu0
        %2993 = vmatprep.mubr.f32.mxu0 0.0
        %2994 = vmatmul.mubr.f32.gmra.mrb[0].mxu0 %v1694
        %v2995 = vpop.f32.mrb[0].mxu0
        %v2996 = vadd.f32 %v2771, %v2995
        %v2997 = vpop.f32.mrb[0].mxu0
        %2998 = vmatprep.mubr.f32.mxu0 0.0
        %2999 = vmatmul.mubr.f32.gmra.mrb[0].mxu0 %v1703
        %v3000 = vpop.f32.mrb[0].mxu0
        %v3001 = vadd.f32 %v2776, %v3000
        %v3002 = vpop.f32.mrb[0].mxu0
        %3003 = vmatprep.mubr.f32.mxu0 0.0
        %3004 = vmatmul.mubr.f32.gmra.mrb[0].mxu0 %v1712
        %v3005 = vpop.f32.mrb[0].mxu0
        %v3006 = vadd.f32 %v2781, %v3005
        %v3007 = vpop.f32.mrb[0].mxu0
        %3008 = vmatprep.mubr.f32.mxu0 0.0
        %3009 = vmatmul.mubr.f32.gmra.mrb[0].mxu0 %v1721
        %v3010 = vpop.f32.mrb[0].mxu0
        %v3011 = vadd.f32 %v2786, %v3010
        %v3012 = vpop.f32.mrb[0].mxu0
        %3013 = vmatprep.mubr.f32.mxu0 0.0
        %3014 = vmatmul.mubr.f32.gmra.mrb[0].mxu0 %v1730
        %v3015 = vpop.f32.mrb[0].mxu0
        %v3016 = vadd.f32 %v2791, %v3015
        %v3017 = vpop.f32.mrb[0].mxu0
        %3018 = vmatprep.mubr.f32.mxu0 0.0
        %3019 = vmatmul.mubr.f32.gmra.mrb[0].mxu0 %v1739
        %v3020 = vpop.f32.mrb[0].mxu0
        %v3021 = vadd.f32 %v2796, %v3020
        %v3022 = vpop.f32.mrb[0].mxu0
        %3023 = vmatprep.mubr.f32.mxu0 0.0
        %3024 = vmatmul.mubr.f32.gmra.mrb[0].mxu0 %v1748
        %v3025 = vpop.f32.mrb[0].mxu0
        %v3026 = vadd.f32 %v2801, %v3025
        %v3027 = vpop.f32.mrb[0].mxu0
        %3028 = vmatprep.mubr.f32.mxu0 0.0
        %3029 = vmatmul.mubr.f32.gmra.mrb[0].mxu0 %v1757
        %v3030 = vpop.f32.mrb[0].mxu0
        %v3031 = vadd.f32 %v2806, %v3030
        %v3032 = vpop.f32.mrb[0].mxu0
        %3033 = vdwg.mxu0
        %v3034 = vadd.f32 %v2876, %v2881
        %v3035 = vadd.f32 %v3034, %v2886
        %v3036 = vadd.f32 %v3035, %v2891
        %v3037 = vadd.f32 %v3036, %v2896
        %v3038 = vadd.f32 %v3037, %v2901
        %v3039 = vadd.f32 %v3038, %v2906
        %v3040 = vadd.f32 %v3039, %v2911
        %v3041 = vadd.f32 %v3040, %v2916
        %v3042 = vadd.f32 %v3041, %v2921
        %v3043 = vadd.f32 %v3042, %v2926
        %v3044 = vadd.f32 %v3043, %v2931
        %v3045 = vadd.f32 %v3044, %v2936
        %v3046 = vadd.f32 %v3045, %v2941
        %v3047 = vadd.f32 %v3046, %v2946
        %v3048 = vadd.f32 %v3047, %v2951
        %v3049 = vadd.f32 %v3048, %v2956
        %v3050 = vadd.f32 %v3049, %v2961
        %v3051 = vadd.f32 %v3050, %v2966
        %v3052 = vadd.f32 %v3051, %v2971
        %v3053 = vadd.f32 %v3052, %v2976
        %v3054 = vadd.f32 %v3053, %v2981
        %v3055 = vadd.f32 %v3054, %v2986
        %v3056 = vadd.f32 %v3055, %v2991
        %v3057 = vadd.f32 %v3056, %v2996
        %v3058 = vadd.f32 %v3057, %v3001
        %v3059 = vadd.f32 %v3058, %v3006
        %v3060 = vadd.f32 %v3059, %v3011
        %v3061 = vadd.f32 %v3060, %v3016
        %v3062 = vadd.f32 %v3061, %v3021
        %v3063 = vadd.f32 %v3062, %v3026
        %v3064 = vadd.f32 %v3063, %v3031
        %v3065 = vrot.slane %v3064, 4
        %v3066 = vadd.f32 %v3064, %v3065
        %v3067 = vrot.slane %v3066, 2
        %v3068 = vadd.f32 %v3066, %v3067
        %v3069 = vrot.slane %v3068, 1
        %v3070 = vadd.f32 %v3068, %v3069
        %3071 = vst [vmem:[%s307] sm:$0x1] %v3070
        %v3072 = vmul.f32 %v2876, %v2876
        %v3073 = vmul.f32 %v2881, %v2881
        %v3074 = vmul.f32 %v2886, %v2886
        %v3075 = vmul.f32 %v2891, %v2891
        %v3076 = vmul.f32 %v2896, %v2896
        %v3077 = vmul.f32 %v2901, %v2901
        %v3078 = vmul.f32 %v2906, %v2906
        %v3079 = vmul.f32 %v2911, %v2911
        %v3080 = vmul.f32 %v2916, %v2916
        %v3081 = vmul.f32 %v2921, %v2921
        %v3082 = vmul.f32 %v2926, %v2926
        %v3083 = vmul.f32 %v2931, %v2931
        %v3084 = vmul.f32 %v2936, %v2936
        %v3085 = vmul.f32 %v2941, %v2941
        %v3086 = vmul.f32 %v2946, %v2946
        %v3087 = vmul.f32 %v2951, %v2951
        %v3088 = vmul.f32 %v2956, %v2956
        %v3089 = vmul.f32 %v2961, %v2961
        %v3090 = vmul.f32 %v2966, %v2966
        %v3091 = vmul.f32 %v2971, %v2971
        %v3092 = vmul.f32 %v2976, %v2976
        %v3093 = vmul.f32 %v2981, %v2981
        %v3094 = vmul.f32 %v2986, %v2986
        %v3095 = vmul.f32 %v2991, %v2991
        %v3096 = vmul.f32 %v2996, %v2996
        %v3097 = vmul.f32 %v3001, %v3001
        %v3098 = vmul.f32 %v3006, %v3006
        %v3099 = vmul.f32 %v3011, %v3011
        %v3100 = vmul.f32 %v3016, %v3016
        %v3101 = vmul.f32 %v3021, %v3021
        %v3102 = vmul.f32 %v3026, %v3026
        %v3103 = vmul.f32 %v3031, %v3031
        %v3104 = vadd.f32 %v3072, %v3073
        %v3105 = vadd.f32 %v3104, %v3074
        %v3106 = vadd.f32 %v3105, %v3075
        %v3107 = vadd.f32 %v3106, %v3076
        %v3108 = vadd.f32 %v3107, %v3077
        %v3109 = vadd.f32 %v3108, %v3078
        %v3110 = vadd.f32 %v3109, %v3079
        %v3111 = vadd.f32 %v3110, %v3080
        %v3112 = vadd.f32 %v3111, %v3081
        %v3113 = vadd.f32 %v3112, %v3082
        %v3114 = vadd.f32 %v3113, %v3083
        %v3115 = vadd.f32 %v3114, %v3084
        %v3116 = vadd.f32 %v3115, %v3085
        %v3117 = vadd.f32 %v3116, %v3086
        %v3118 = vadd.f32 %v3117, %v3087
        %v3119 = vadd.f32 %v3118, %v3088
        %v3120 = vadd.f32 %v3119, %v3089
        %v3121 = vadd.f32 %v3120, %v3090
        %v3122 = vadd.f32 %v3121, %v3091
        %v3123 = vadd.f32 %v3122, %v3092
        %v3124 = vadd.f32 %v3123, %v3093
        %v3125 = vadd.f32 %v3124, %v3094
        %v3126 = vadd.f32 %v3125, %v3095
        %v3127 = vadd.f32 %v3126, %v3096
        %v3128 = vadd.f32 %v3127, %v3097
        %v3129 = vadd.f32 %v3128, %v3098
        %v3130 = vadd.f32 %v3129, %v3099
        %v3131 = vadd.f32 %v3130, %v3100
        %v3132 = vadd.f32 %v3131, %v3101
        %v3133 = vadd.f32 %v3132, %v3102
        %v3134 = vadd.f32 %v3133, %v3103
        %v3135 = vrot.slane %v3134, 4
        %v3136 = vadd.f32 %v3134, %v3135
        %v3137 = vrot.slane %v3136, 2
        %v3138 = vadd.f32 %v3136, %v3137
        %v3139 = vrot.slane %v3138, 1
        %v3140 = vadd.f32 %v3138, %v3139
        %3141 = vst [vmem:[%s310] sm:$0x1] %v3140
        %vm3142 = vcmask 64512
        %3143 = vst.msk [vmem:[%s304] sm:$0xff] %vm3142, %v2876
        %3144 = vst.msk [vmem:[%s304 + $0x8] sm:$0xff] %vm3142, %v2881
        %3145 = vst.msk [vmem:[%s304 + $0x10] sm:$0xff] %vm3142, %v2886
        %3146 = vst.msk [vmem:[%s304 + $0x18] sm:$0xff] %vm3142, %v2891
        %3147 = vst.msk [vmem:[%s304 + $0x20] sm:$0xff] %vm3142, %v2896
        %3148 = vst.msk [vmem:[%s304 + $0x28] sm:$0xff] %vm3142, %v2901
        %3149 = vst.msk [vmem:[%s304 + $0x30] sm:$0xff] %vm3142, %v2906
        %3150 = vst.msk [vmem:[%s304 + $0x38] sm:$0xff] %vm3142, %v2911
        %3151 = vst.msk [vmem:[%s304 + $0x40] sm:$0xff] %vm3142, %v2916
        %3152 = vst.msk [vmem:[%s304 + $0x48] sm:$0xff] %vm3142, %v2921
        %3153 = vst.msk [vmem:[%s304 + $0x50] sm:$0xff] %vm3142, %v2926
        %3154 = vst.msk [vmem:[%s304 + $0x58] sm:$0xff] %vm3142, %v2931
        %3155 = vst.msk [vmem:[%s304 + $0x60] sm:$0xff] %vm3142, %v2936
        %3156 = vst.msk [vmem:[%s304 + $0x68] sm:$0xff] %vm3142, %v2941
        %3157 = vst.msk [vmem:[%s304 + $0x70] sm:$0xff] %vm3142, %v2946
        %3158 = vst.msk [vmem:[%s304 + $0x78] sm:$0xff] %vm3142, %v2951
        %3159 = vst.msk [vmem:[%s304 + $0x80] sm:$0xff] %vm3142, %v2956
        %3160 = vst.msk [vmem:[%s304 + $0x88] sm:$0xff] %vm3142, %v2961
        %3161 = vst.msk [vmem:[%s304 + $0x90] sm:$0xff] %vm3142, %v2966
        %3162 = vst.msk [vmem:[%s304 + $0x98] sm:$0xff] %vm3142, %v2971
        %3163 = vst.msk [vmem:[%s304 + $0xa0] sm:$0xff] %vm3142, %v2976
        %3164 = vst.msk [vmem:[%s304 + $0xa8] sm:$0xff] %vm3142, %v2981
        %3165 = vst.msk [vmem:[%s304 + $0xb0] sm:$0xff] %vm3142, %v2986
        %3166 = vst.msk [vmem:[%s304 + $0xb8] sm:$0xff] %vm3142, %v2991
        %3167 = vst.msk [vmem:[%s304 + $0xc0] sm:$0xff] %vm3142, %v2996
        %3168 = vst.msk [vmem:[%s304 + $0xc8] sm:$0xff] %vm3142, %v3001
        %3169 = vst.msk [vmem:[%s304 + $0xd0] sm:$0xff] %vm3142, %v3006
        %3170 = vst.msk [vmem:[%s304 + $0xd8] sm:$0xff] %vm3142, %v3011
        %3171 = vst.msk [vmem:[%s304 + $0xe0] sm:$0xff] %vm3142, %v3016
        %3172 = vst.msk [vmem:[%s304 + $0xe8] sm:$0xff] %vm3142, %v3021
        %3173 = vst.msk [vmem:[%s304 + $0xf0] sm:$0xff] %vm3142, %v3026
        %3174 = vst.msk [vmem:[%s304 + $0xf8] sm:$0xff] %vm3142, %v3031
        %p3175 = scmp.lt.s32.totalorder %s20, 1
        %s3176 = scalar_select %p3175, %s20, 1
        %s3177 = smul.addr %s3176, 32
        %s3178 = smul.addr %s3177, 8
        %s3179 = scalar_lea.vmem %s5, %s3178
        %p3180 = scmp.lt.s32.totalorder %s20, 1
        %s3181 = scalar_select %p3180, %s20, 1
        %s3182 = scalar_lea.vmem %s6, %s3181
        %p3183 = scmp.lt.s32.totalorder %s20, 1
        %s3184 = scalar_select %p3183, %s20, 1
        %s3185 = scalar_lea.vmem %s7, %s3184
        // Predicated region
        $region45: #{conv_block_forward.3} parent=39 // pred_check
          %p3186 = pneg %p148
        $region46: #{conv_block_forward.3} parent=39 // pred_check_branch
          %3188 = sbr.rel (%p3186) target = $region48
        $region47: #{conv_block_forward.3} parent=39 // pred_region
          _
        $region48: #{conv_block_forward.3} parent=39 // pred_fallthru
          _
        // Predicated region
        $region49: #{conv_block_forward.3} parent=39 // pred_check
          %p3189 = pneg %p174
        $region50: #{conv_block_forward.3} parent=39 // pred_check_branch
          %3191 = sbr.rel (%p3189) target = $region52
        $region51: #{conv_block_forward.3} parent=39 // pred_region
          _
        $region52: #{conv_block_forward.3} parent=39 // pred_fallthru
          _
        // Predicated region
        $region53: #{conv_block_forward.3} parent=39 // pred_check
          %p3192 = pneg %p200
        $region54: #{conv_block_forward.3} parent=39 // pred_check_branch
          %3194 = sbr.rel (%p3192) target = $region56
        $region55: #{conv_block_forward.3} parent=39 // pred_region
          _
        $region56: #{conv_block_forward.3} parent=39 // pred_fallthru
          _
      $region40: #{conv_block_forward.3} parent=5 // pred_fallthru
        _
      %p3195 = scmp.le.s32.totalorder 2, %s15
      // Predicated region
      $region57: #{conv_block_forward.3} parent=5 // pred_check
        %p3196 = pneg %p3195
      $region58: #{conv_block_forward.3} parent=5 // pred_check_branch
        %3198 = sbr.rel (%p3196) target = $region60
      $region59: #{conv_block_forward.3} parent=5 // pred_region
        %s3199 = ssub.s32 %s15, 2
        // Predicated region
        $region61: #{conv_block_forward.3} parent=59 // pred_check
          %p3200 = pneg %p154
        $region62: #{conv_block_forward.3} parent=59 // pred_check_branch
          %3202 = sbr.rel (%p3200) target = $region64
        $region63: #{conv_block_forward.3} parent=59 // pred_region
          %p3203 = scmp.lt.s32.totalorder %s21, 1
          %s3204 = scalar_select %p3203, %s21, 1
          %s3205 = smul.addr %s3204, 32
          %s3206 = smul.addr %s3205, 8
          %s3207 = scalar_lea.vmem %s5, %s3206
        $region64: #{conv_block_forward.3} parent=59 // pred_fallthru
          _
        // Predicated region
        $region65: #{conv_block_forward.3} parent=59 // pred_check
          %p3208 = pneg %p180
        $region66: #{conv_block_forward.3} parent=59 // pred_check_branch
          %3210 = sbr.rel (%p3208) target = $region68
        $region67: #{conv_block_forward.3} parent=59 // pred_region
          %p3211 = scmp.lt.s32.totalorder %s21, 1
          %s3212 = scalar_select %p3211, %s21, 1
          %s3213 = scalar_lea.vmem %s6, %s3212
        $region68: #{conv_block_forward.3} parent=59 // pred_fallthru
          _
        // Predicated region
        $region69: #{conv_block_forward.3} parent=59 // pred_check
          %p3214 = pneg %p206
        $region70: #{conv_block_forward.3} parent=59 // pred_check_branch
          %3216 = sbr.rel (%p3214) target = $region72
        $region71: #{conv_block_forward.3} parent=59 // pred_region
          %p3217 = scmp.lt.s32.totalorder %s21, 1
          %s3218 = scalar_select %p3217, %s21, 1
          %s3219 = scalar_lea.vmem %s7, %s3218
        $region72: #{conv_block_forward.3} parent=59 // pred_fallthru
          _
      $region60: #{conv_block_forward.3} parent=5 // pred_fallthru
        _
    $region6: #{conv_block_forward.3} parent=1 // loop_footer
      %s19 = sadd.s32 1, %s15
    $region7: #{conv_block_forward.3} parent=1 // loop_footer_branch
      %14 = sbr.rel target = $region3
    $region8: #{conv_block_forward.3} parent=1 // loop_exit
      _
    %3220 = vsyncpa [#allocation5], 1
    %s3221 = scalar_lea.sflag [#allocation5], 1
    %3222 = vsyncpa %s3221, 1

</llo_original>
